<compile_context>
chip_gen: v7x
topology: tpu7x:2x2x1
jax: 0.10.0
libtpu: 0.0.40
codegen_flags: <defaults>
</compile_context>

<pallas_src>
import functools

import jax
import jax.numpy as jnp
from jax import lax
from jax.experimental import pallas as pl
from jax.experimental.pallas import tpu as pltpu


LAYER_KEYS = ("wqkv", "bqkv", "wo", "bo", "g1", "be1",
              "w1", "b1", "w2", "b2", "g2", "be2")


# ----------------------------- shared layer math -----------------------------

def _encoder_layer_math(x2, mask_bias, wqkv, bqkv, wo, bo,
                        g1, be1, w1, b1, w2, b2, g2, be2,
                        batch, seq, nheads):
    """One post-norm nn.TransformerEncoderLayer (dropout=0, ReLU).

    x2:        (batch*seq, D) activation slab (batch folded into M).
    mask_bias: (batch, 1, seq) additive key-padding bias (0 / -1e30), or None.
    """
    bs, d = x2.shape
    hd = d // nheads
    scale = jnp.float32(1.0 / (hd ** 0.5))

    # QKV projection on the full (batch*seq, D) slab — one big MXU matmul.
    qkv = jnp.dot(x2, wqkv, preferred_element_type=jnp.float32) + bqkv
    q = qkv[:, :d]
    k = qkv[:, d:2 * d]
    v = qkv[:, 2 * d:]

    # Per-head attention: batched (over batch) SxS softmax; each head's output
    # is accumulated straight into the out-projection (no lane-dim concat).
    attn = None
    for h in range(nheads):
        sl = slice(h * hd, (h + 1) * hd)
        qh = q[:, sl].reshape(batch, seq, hd)
        kh = k[:, sl].reshape(batch, seq, hd)
        vh = v[:, sl].reshape(batch, seq, hd)
        s = jnp.einsum('bqd,bkd->bqk', qh, kh,
                       preferred_element_type=jnp.float32) * scale
        if mask_bias is not None:
            s = s + mask_bias                      # mask padded key positions
        m = jnp.max(s, axis=-1, keepdims=True)
        p = jnp.exp(s - m)
        p = p * pl.reciprocal(jnp.sum(p, axis=-1, keepdims=True), approx=True)
        oh = jnp.einsum('bqk,bkd->bqd', p, vh,
                        preferred_element_type=jnp.float32).reshape(bs, hd)
        contrib = jnp.dot(oh, wo[sl, :], preferred_element_type=jnp.float32)
        attn = contrib if attn is None else attn + contrib
    attn = attn + bo

    # residual + LayerNorm 1
    y = x2 + attn
    mu = jnp.mean(y, axis=-1, keepdims=True)
    var = jnp.mean((y - mu) ** 2, axis=-1, keepdims=True)
    y = (y - mu) * lax.rsqrt(var + 1e-5) * g1 + be1

    # feed-forward (ReLU)
    h1 = jnp.maximum(jnp.dot(y, w1, preferred_element_type=jnp.float32) + b1, 0.0)
    h2 = jnp.dot(h1, w2, preferred_element_type=jnp.float32) + b2

    # residual + LayerNorm 2
    z = y + h2
    mu2 = jnp.mean(z, axis=-1, keepdims=True)
    var2 = jnp.mean((z - mu2) ** 2, axis=-1, keepdims=True)
    return (z - mu2) * lax.rsqrt(var2 + 1e-5) * g2 + be2


# ------------------------------ Pallas kernels --------------------------------

def _stream_stack_kernel(x_ref, maskb_ref, ew_ref, eb_ref, pos_ref,
                         wqkv_ref, bqkv_ref, wo_ref, bo_ref,
                         g1_ref, be1_ref, w1_ref, b1_ref,
                         w2_ref, b2_ref, g2_ref, be2_ref,
                         o_ref, *, B, S, H, L):
    """One rs/mo stream: embedding + pos + L encoder layers, whole batch."""
    Fp = ew_ref.shape[0]
    D = ew_ref.shape[1]

    x2 = x_ref[...].reshape(B * S, Fp)                 # batch folded into M
    emb = jnp.dot(x2, ew_ref[...], preferred_element_type=jnp.float32) + eb_ref[...]
    emb = (emb.reshape(B, S, D) + pos_ref[...][None, :, :]).reshape(B * S, D)

    mask_bias = maskb_ref[...]                         # (B, 1, S) additive bias
    h = emb
    for l in range(L):                                 # layers resident in VMEM
        h = _encoder_layer_math(
            h, mask_bias,
            wqkv_ref[l], bqkv_ref[l], wo_ref[l], bo_ref[l],
            g1_ref[l], be1_ref[l], w1_ref[l], b1_ref[l],
            w2_ref[l], b2_ref[l], g2_ref[l], be2_ref[l],
            B, S, H)
    o_ref[...] = h.reshape(B, S, D)


def _combined_stack_kernel(feat_ref, topo_ref, tw_ref, tb_ref,
                           wqkv_ref, bqkv_ref, wo_ref, bo_ref,
                           g1_ref, be1_ref, w1_ref, b1_ref,
                           w2_ref, b2_ref, g2_ref, be2_ref,
                           hw_ref, hb_ref, o_ref, *, S, H, L):
    """Per batch element: topo embed + VMEM concat + L combined layers + head."""
    D = tw_ref.shape[1]

    rs_f = feat_ref[0, 0]                              # (S, D)
    mo_f = feat_ref[1, 0]                              # (S, D)
    t_emb = (jnp.dot(topo_ref[...], tw_ref[...],
                     preferred_element_type=jnp.float32) + tb_ref[...])   # (1, D)
    topo_f = jnp.broadcast_to(t_emb, (S, D))           # .repeat(1, max_len, 1)
    x = jnp.concatenate([rs_f, mo_f, topo_f], axis=-1)  # (S, 3D) — in VMEM only

    for l in range(L):
        x = _encoder_layer_math(
            x, None,
            wqkv_ref[l], bqkv_ref[l], wo_ref[l], bo_ref[l],
            g1_ref[l], be1_ref[l], w1_ref[l], b1_ref[l],
            w2_ref[l], b2_ref[l], g2_ref[l], be2_ref[l],
            1, S, H)

    # output head as epilogue; lane-padded (S, 128) slab -> single dense store
    o_ref[...] = (jnp.dot(x, hw_ref[...], preferred_element_type=jnp.float32)
                  + hb_ref[...])


# ------------------------------ spec helpers ----------------------------------

def _stream_param_spec(p):
    """(2, L, ...) stacked weight: select the stream block, keep the rest."""
    n_rest = p.ndim - 1

    def idx(s):
        return (s,) + (0,) * n_rest
    return pl.BlockSpec((None,) + tuple(p.shape[1:]), idx)


def _const_spec(p):
    """Full-array weight block with constant index (fetched once, reused)."""
    n = p.ndim

    def idx(b):
        return (0,) * n
    return pl.BlockSpec(tuple(p.shape), idx)


# ------------------------------- parameters -----------------------------------

def init_linear(key, fan_in, fan_out):
    kw, kb = jax.random.split(key)
    bound = 1.0 / float(fan_in) ** 0.5
    w = jax.random.uniform(kw, (fan_in, fan_out), jnp.float32, -bound, bound)
    b = jax.random.uniform(kb, (fan_out,), jnp.float32, -bound, bound)
    return w, b


def init_encoder_layer(key, d, f):
    ks = jax.random.split(key, 4)
    wqkv, bqkv = init_linear(ks[0], d, 3 * d)
    wo, bo = init_linear(ks[1], d, d)
    w1, b1 = init_linear(ks[2], d, f)
    w2, b2 = init_linear(ks[3], f, d)
    one = jnp.ones((1, d), jnp.float32)
    zero = jnp.zeros((1, d), jnp.float32)
    return dict(wqkv=wqkv, bqkv=bqkv.reshape(1, 3 * d),
                wo=wo, bo=bo.reshape(1, d),
                g1=one, be1=zero,
                w1=w1, b1=b1.reshape(1, f),
                w2=w2, b2=b2.reshape(1, d),
                g2=one, be2=zero)


def _pad_rows(w, rows):
    return jnp.pad(w, ((0, rows - w.shape[0]), (0, 0)))


def _pad_cols(w, cols):
    return jnp.pad(w, ((0, 0), (0, cols - w.shape[1])))


def init_params(key, rs_dim, mo_dim, out_dim, hidden, ffn, max_len,
                n_layers=3, feat_pad=8, topo_pad=8, out_pad=128):
    assert feat_pad >= max(rs_dim, mo_dim)
    ks = jax.random.split(key, 7)
    rs_w, rs_b = init_linear(ks[0], rs_dim, hidden)
    mo_w, mo_b = init_linear(ks[1], mo_dim, hidden)
    topo_w, topo_b = init_linear(ks[2], 3, hidden)
    out_w, out_b = init_linear(ks[3], 3 * hidden, out_dim)

    # nn.TransformerEncoder deep-copies its prototype layer: all rs/mo layers
    # share initial weights, as do the 3 combined layers.
    single = init_encoder_layer(ks[4], hidden, ffn)
    combined = init_encoder_layer(ks[5], 3 * hidden, ffn)
    pos_emb = jax.random.normal(ks[6], (max_len, hidden), jnp.float32)

    stream_layers = {k: jnp.stack([jnp.stack([single[k]] * n_layers)] * 2)
                     for k in LAYER_KEYS}                       # (2, L, ...)
    comb_layers = {k: jnp.stack([combined[k]] * n_layers)       # (L, ...)
                   for k in LAYER_KEYS}

    emb_w = jnp.stack([_pad_rows(rs_w, feat_pad), _pad_rows(mo_w, feat_pad)])
    emb_b = jnp.stack([rs_b.reshape(1, hidden), mo_b.reshape(1, hidden)])

    return dict(hidden=hidden, out_dim=out_dim, n_layers=n_layers,
                feat_pad=feat_pad, topo_pad=topo_pad, out_pad=out_pad,
                emb_w=emb_w, emb_b=emb_b,
                topo_w=_pad_rows(topo_w, topo_pad),
                topo_b=topo_b.reshape(1, hidden),
                out_w=_pad_cols(out_w, out_pad),
                out_b=_pad_cols(out_b.reshape(1, out_dim), out_pad),
                stream_layers=stream_layers, comb_layers=comb_layers,
                pos_emb=pos_emb)


# --------------------------------- forward ------------------------------------

def hydro_trans_forward(params, rs, mo, topo, nheads):
    B, S, rs_dim = rs.shape
    mo_dim = mo.shape[-1]
    D = params["hidden"]
    L = params["n_layers"]
    Fp = params["feat_pad"]
    TP = params["topo_pad"]
    OP = params["out_pad"]
    out_dim = params["out_dim"]

    # Stack rs/mo on a leading "stream" axis (padded to a common feature width)
    # so one kernel, gridded over streams, handles both.
    x = jnp.stack([jnp.pad(rs, ((0, 0), (0, 0), (0, Fp - rs_dim))),
                   jnp.pad(mo, ((0, 0), (0, 0), (0, Fp - mo_dim)))])   # (2,B,S,Fp)

    # src_key_padding_mask = (rs[:, :, 0] == -1), as an additive key bias.
    rs_bias = jnp.where(rs[:, :, 0] == -1.0,
                        jnp.float32(-1e30), jnp.float32(0.0))          # (B, S)
    maskb = jnp.stack([rs_bias, jnp.zeros_like(rs_bias)]).reshape(2, B, 1, S)

    sl = params["stream_layers"]
    feat = pl.pallas_call(
        functools.partial(_stream_stack_kernel, B=B, S=S, H=nheads, L=L),
        grid=(2,),
        out_shape=jax.ShapeDtypeStruct((2, B, S, D), jnp.float32),
        in_specs=[pl.BlockSpec((None, B, S, Fp), lambda s: (s, 0, 0, 0)),   # x
                  pl.BlockSpec((None, B, 1, S), lambda s: (s, 0, 0, 0)),    # mask bias
                  pl.BlockSpec((None, Fp, D), lambda s: (s, 0, 0)),         # emb W
                  pl.BlockSpec((None, 1, D), lambda s: (s, 0, 0)),          # emb b
                  pl.BlockSpec((S, D), lambda s: (0, 0))]                   # pos
                 + [_stream_param_spec(sl[k]) for k in LAYER_KEYS],
        out_specs=pl.BlockSpec((None, B, S, D), lambda s: (s, 0, 0, 0)),
        compiler_params=pltpu.CompilerParams(
            dimension_semantics=("parallel",)),
    )(x, maskb, params["emb_w"], params["emb_b"], params["pos_emb"],
      *[sl[k] for k in LAYER_KEYS])

    topo_p = jnp.pad(topo, ((0, 0), (0, TP - topo.shape[-1]))).reshape(B, 1, TP)

    cl = params["comb_layers"]
    out_padded = pl.pallas_call(
        functools.partial(_combined_stack_kernel, S=S, H=nheads, L=L),
        grid=(B,),
        out_shape=jax.ShapeDtypeStruct((B, S, OP), jnp.float32),
        in_specs=[pl.BlockSpec((2, 1, S, D), lambda b: (0, b, 0, 0)),       # stream feats
                  pl.BlockSpec((None, 1, TP), lambda b: (b, 0, 0)),          # topo row
                  _const_spec(params["topo_w"]),
                  _const_spec(params["topo_b"])]
                 + [_const_spec(cl[k]) for k in LAYER_KEYS]
                 + [_const_spec(params["out_w"]), _const_spec(params["out_b"])],
        out_specs=pl.BlockSpec((None, S, OP), lambda b: (b, 0, 0)),
        compiler_params=pltpu.CompilerParams(
            dimension_semantics=("parallel",)),
    )(feat, topo_p, params["topo_w"], params["topo_b"],
      *[cl[k] for k in LAYER_KEYS],
      params["out_w"], params["out_b"])

    return out_padded[:, :, :out_dim]


# ----------------------------------- main --------------------------------------

if __name__ == "__main__":
    # Small shapes consistent with the module (scaled-down hidden/seq/ffn).
    B, S = 2, 8                  # batch, sequence length (== max_len)
    RS_DIM, MO_DIM, OUT_DIM = 6, 7, 4
    HIDDEN, HEADS, FFN = 32, 4, 64

    key = jax.random.PRNGKey(0)
    k_rs, k_mo, k_topo, k_par = jax.random.split(key, 4)
    rs = jax.random.normal(k_rs, (B, S, RS_DIM), jnp.float32)
    # mark the last two timesteps of batch element 1 as padded (rs[:, :, 0] == -1)
    rs = rs.at[1, S - 2:, 0].set(-1.0)
    mo = jax.random.normal(k_mo, (B, S, MO_DIM), jnp.float32)
    topo = jax.random.normal(k_topo, (B, 3), jnp.float32)

    params = init_params(k_par, RS_DIM, MO_DIM, OUT_DIM, HIDDEN, FFN, S)

    out = hydro_trans_forward(params, rs, mo, topo, nheads=HEADS)
    out = jax.block_until_ready(out)
    assert out.shape == (B, S, OUT_DIM), out.shape
    assert bool(jnp.all(jnp.isfinite(out)))
    print("KERNEL_OK")
</pallas_src>

<mosaic_0001>
module attributes {stable_mosaic.version = 11 : i64} {
  func.func @_stream_stack_kernel(%arg0: i32, %arg1: memref<1x2x8x8xf32, #tpu.memory_space<vmem>>, %arg2: memref<1x2x1x8xf32, #tpu.memory_space<vmem>>, %arg3: memref<1x8x32xf32, #tpu.memory_space<vmem>>, %arg4: memref<1x1x32xf32, #tpu.memory_space<vmem>>, %arg5: memref<8x32xf32, #tpu.memory_space<vmem>>, %arg6: memref<1x3x32x96xf32, #tpu.memory_space<vmem>>, %arg7: memref<1x3x1x96xf32, #tpu.memory_space<vmem>>, %arg8: memref<1x3x32x32xf32, #tpu.memory_space<vmem>>, %arg9: memref<1x3x1x32xf32, #tpu.memory_space<vmem>>, %arg10: memref<1x3x1x32xf32, #tpu.memory_space<vmem>>, %arg11: memref<1x3x1x32xf32, #tpu.memory_space<vmem>>, %arg12: memref<1x3x32x64xf32, #tpu.memory_space<vmem>>, %arg13: memref<1x3x1x64xf32, #tpu.memory_space<vmem>>, %arg14: memref<1x3x64x32xf32, #tpu.memory_space<vmem>>, %arg15: memref<1x3x1x32xf32, #tpu.memory_space<vmem>>, %arg16: memref<1x3x1x32xf32, #tpu.memory_space<vmem>>, %arg17: memref<1x3x1x32xf32, #tpu.memory_space<vmem>>, %arg18: memref<1x2x8x32xf32, #tpu.memory_space<vmem>>) attributes {dimension_semantics = [#tpu.dimension_semantics<parallel>], iteration_bounds = array<i64: 2>, scalar_prefetch = 0 : i64, scratch_operands = 0 : i64, tpu.core_type = #tpu.core_type<tc>, window_params = [{transform_indices = @transform_0, window_bounds = array<i64: 1, 2, 8, 8>}, {transform_indices = @transform_1, window_bounds = array<i64: 1, 2, 1, 8>}, {transform_indices = @transform_2, window_bounds = array<i64: 1, 8, 32>}, {transform_indices = @transform_3, window_bounds = array<i64: 1, 1, 32>}, {pipeline_mode = #tpu.pipeline_mode<synchronous>, transform_indices = @transform_4, window_bounds = array<i64: 8, 32>}, {transform_indices = @transform_5, window_bounds = array<i64: 1, 3, 32, 96>}, {transform_indices = @transform_6, window_bounds = array<i64: 1, 3, 1, 96>}, {transform_indices = @transform_7, window_bounds = array<i64: 1, 3, 32, 32>}, {transform_indices = @transform_8, window_bounds = array<i64: 1, 3, 1, 32>}, {transform_indices = @transform_9, window_bounds = array<i64: 1, 3, 1, 32>}, {transform_indices = @transform_10, window_bounds = array<i64: 1, 3, 1, 32>}, {transform_indices = @transform_11, window_bounds = array<i64: 1, 3, 32, 64>}, {transform_indices = @transform_12, window_bounds = array<i64: 1, 3, 1, 64>}, {transform_indices = @transform_13, window_bounds = array<i64: 1, 3, 64, 32>}, {transform_indices = @transform_14, window_bounds = array<i64: 1, 3, 1, 32>}, {transform_indices = @transform_15, window_bounds = array<i64: 1, 3, 1, 32>}, {transform_indices = @transform_16, window_bounds = array<i64: 1, 3, 1, 32>}, {transform_indices = @transform_17, window_bounds = array<i64: 1, 2, 8, 32>}]} {
    %c0 = arith.constant 0 : index
    %c0_0 = arith.constant 0 : index
    %c0_1 = arith.constant 0 : index
    %c0_2 = arith.constant 0 : index
    %0 = vector.load %arg1[%c0, %c0_0, %c0_1, %c0_2] : memref<1x2x8x8xf32, #tpu.memory_space<vmem>>, vector<1x2x8x8xf32>
    %1 = vector.shape_cast %0 : vector<1x2x8x8xf32> to vector<2x8x8xf32>
    %2 = vector.shape_cast %1 : vector<2x8x8xf32> to vector<16x8xf32>
    %c0_3 = arith.constant 0 : index
    %c0_4 = arith.constant 0 : index
    %c0_5 = arith.constant 0 : index
    %3 = vector.load %arg3[%c0_3, %c0_4, %c0_5] : memref<1x8x32xf32, #tpu.memory_space<vmem>>, vector<1x8x32xf32>
    %4 = vector.shape_cast %3 : vector<1x8x32xf32> to vector<8x32xf32>
    %cst = arith.constant dense<0.000000e+00> : vector<16x32xf32>
    %5 = tpu.matmul %2, %4, %cst {dimension_numbers = #tpu.dot_dimension_numbers<[1], [0], [0], [1], [0, 0, 1, 1], [], []>} : vector<16x8xf32>, vector<8x32xf32>, vector<16x32xf32> -> vector<16x32xf32>
    %c0_6 = arith.constant 0 : index
    %c0_7 = arith.constant 0 : index
    %c0_8 = arith.constant 0 : index
    %6 = vector.load %arg4[%c0_6, %c0_7, %c0_8] : memref<1x1x32xf32, #tpu.memory_space<vmem>>, vector<1x1x32xf32>
    %7 = vector.shape_cast %6 : vector<1x1x32xf32> to vector<1x32xf32>
    %8 = vector.broadcast %7 : vector<1x32xf32> to vector<16x32xf32>
    %9 = arith.addf %5, %8 : vector<16x32xf32>
    %10 = vector.shape_cast %9 : vector<16x32xf32> to vector<2x8x32xf32>
    %c0_9 = arith.constant 0 : index
    %c0_10 = arith.constant 0 : index
    %11 = vector.load %arg5[%c0_9, %c0_10] : memref<8x32xf32, #tpu.memory_space<vmem>>, vector<8x32xf32>
    %12 = vector.shape_cast %11 : vector<8x32xf32> to vector<1x8x32xf32>
    %13 = vector.broadcast %12 : vector<1x8x32xf32> to vector<2x8x32xf32>
    %14 = arith.addf %10, %13 : vector<2x8x32xf32>
    %15 = vector.shape_cast %14 : vector<2x8x32xf32> to vector<16x32xf32>
    %c0_11 = arith.constant 0 : index
    %c0_12 = arith.constant 0 : index
    %c0_13 = arith.constant 0 : index
    %c0_14 = arith.constant 0 : index
    %16 = vector.load %arg2[%c0_11, %c0_12, %c0_13, %c0_14] : memref<1x2x1x8xf32, #tpu.memory_space<vmem>>, vector<1x2x1x8xf32>
    %17 = vector.shape_cast %16 : vector<1x2x1x8xf32> to vector<2x1x8xf32>
    %c0_15 = arith.constant 0 : index
    %c0_16 = arith.constant 0 : index
    %c0_17 = arith.constant 0 : index
    %c0_18 = arith.constant 0 : index
    %18 = vector.load %arg6[%c0_15, %c0_16, %c0_17, %c0_18] : memref<1x3x32x96xf32, #tpu.memory_space<vmem>>, vector<1x1x32x96xf32>
    %19 = vector.shape_cast %18 : vector<1x1x32x96xf32> to vector<32x96xf32>
    %c0_19 = arith.constant 0 : index
    %c0_20 = arith.constant 0 : index
    %c0_21 = arith.constant 0 : index
    %c0_22 = arith.constant 0 : index
    %20 = vector.load %arg7[%c0_19, %c0_20, %c0_21, %c0_22] : memref<1x3x1x96xf32, #tpu.memory_space<vmem>>, vector<1x1x1x96xf32>
    %21 = vector.shape_cast %20 : vector<1x1x1x96xf32> to vector<1x96xf32>
    %c0_23 = arith.constant 0 : index
    %c0_24 = arith.constant 0 : index
    %c0_25 = arith.constant 0 : index
    %c0_26 = arith.constant 0 : index
    %22 = vector.load %arg8[%c0_23, %c0_24, %c0_25, %c0_26] : memref<1x3x32x32xf32, #tpu.memory_space<vmem>>, vector<1x1x32x32xf32>
    %23 = vector.shape_cast %22 : vector<1x1x32x32xf32> to vector<32x32xf32>
    %c0_27 = arith.constant 0 : index
    %c0_28 = arith.constant 0 : index
    %c0_29 = arith.constant 0 : index
    %c0_30 = arith.constant 0 : index
    %24 = vector.load %arg9[%c0_27, %c0_28, %c0_29, %c0_30] : memref<1x3x1x32xf32, #tpu.memory_space<vmem>>, vector<1x1x1x32xf32>
    %25 = vector.shape_cast %24 : vector<1x1x1x32xf32> to vector<1x32xf32>
    %c0_31 = arith.constant 0 : index
    %c0_32 = arith.constant 0 : index
    %c0_33 = arith.constant 0 : index
    %c0_34 = arith.constant 0 : index
    %26 = vector.load %arg10[%c0_31, %c0_32, %c0_33, %c0_34] : memref<1x3x1x32xf32, #tpu.memory_space<vmem>>, vector<1x1x1x32xf32>
    %27 = vector.shape_cast %26 : vector<1x1x1x32xf32> to vector<1x32xf32>
    %c0_35 = arith.constant 0 : index
    %c0_36 = arith.constant 0 : index
    %c0_37 = arith.constant 0 : index
    %c0_38 = arith.constant 0 : index
    %28 = vector.load %arg11[%c0_35, %c0_36, %c0_37, %c0_38] : memref<1x3x1x32xf32, #tpu.memory_space<vmem>>, vector<1x1x1x32xf32>
    %29 = vector.shape_cast %28 : vector<1x1x1x32xf32> to vector<1x32xf32>
    %c0_39 = arith.constant 0 : index
    %c0_40 = arith.constant 0 : index
    %c0_41 = arith.constant 0 : index
    %c0_42 = arith.constant 0 : index
    %30 = vector.load %arg12[%c0_39, %c0_40, %c0_41, %c0_42] : memref<1x3x32x64xf32, #tpu.memory_space<vmem>>, vector<1x1x32x64xf32>
    %31 = vector.shape_cast %30 : vector<1x1x32x64xf32> to vector<32x64xf32>
    %c0_43 = arith.constant 0 : index
    %c0_44 = arith.constant 0 : index
    %c0_45 = arith.constant 0 : index
    %c0_46 = arith.constant 0 : index
    %32 = vector.load %arg13[%c0_43, %c0_44, %c0_45, %c0_46] : memref<1x3x1x64xf32, #tpu.memory_space<vmem>>, vector<1x1x1x64xf32>
    %33 = vector.shape_cast %32 : vector<1x1x1x64xf32> to vector<1x64xf32>
    %c0_47 = arith.constant 0 : index
    %c0_48 = arith.constant 0 : index
    %c0_49 = arith.constant 0 : index
    %c0_50 = arith.constant 0 : index
    %34 = vector.load %arg14[%c0_47, %c0_48, %c0_49, %c0_50] : memref<1x3x64x32xf32, #tpu.memory_space<vmem>>, vector<1x1x64x32xf32>
    %35 = vector.shape_cast %34 : vector<1x1x64x32xf32> to vector<64x32xf32>
    %c0_51 = arith.constant 0 : index
    %c0_52 = arith.constant 0 : index
    %c0_53 = arith.constant 0 : index
    %c0_54 = arith.constant 0 : index
    %36 = vector.load %arg15[%c0_51, %c0_52, %c0_53, %c0_54] : memref<1x3x1x32xf32, #tpu.memory_space<vmem>>, vector<1x1x1x32xf32>
    %37 = vector.shape_cast %36 : vector<1x1x1x32xf32> to vector<1x32xf32>
    %c0_55 = arith.constant 0 : index
    %c0_56 = arith.constant 0 : index
    %c0_57 = arith.constant 0 : index
    %c0_58 = arith.constant 0 : index
    %38 = vector.load %arg16[%c0_55, %c0_56, %c0_57, %c0_58] : memref<1x3x1x32xf32, #tpu.memory_space<vmem>>, vector<1x1x1x32xf32>
    %39 = vector.shape_cast %38 : vector<1x1x1x32xf32> to vector<1x32xf32>
    %c0_59 = arith.constant 0 : index
    %c0_60 = arith.constant 0 : index
    %c0_61 = arith.constant 0 : index
    %c0_62 = arith.constant 0 : index
    %40 = vector.load %arg17[%c0_59, %c0_60, %c0_61, %c0_62] : memref<1x3x1x32xf32, #tpu.memory_space<vmem>>, vector<1x1x1x32xf32>
    %41 = vector.shape_cast %40 : vector<1x1x1x32xf32> to vector<1x32xf32>
    %cst_63 = arith.constant dense<0.000000e+00> : vector<16x96xf32>
    %42 = tpu.matmul %15, %19, %cst_63 {dimension_numbers = #tpu.dot_dimension_numbers<[1], [0], [0], [1], [0, 0, 1, 1], [], []>} : vector<16x32xf32>, vector<32x96xf32>, vector<16x96xf32> -> vector<16x96xf32>
    %43 = vector.broadcast %21 : vector<1x96xf32> to vector<16x96xf32>
    %44 = arith.addf %42, %43 : vector<16x96xf32>
    %45 = vector.extract_strided_slice %44 {offsets = [0, 0], sizes = [16, 32], strides = [1, 1]} : vector<16x96xf32> to vector<16x32xf32>
    %46 = vector.extract_strided_slice %44 {offsets = [0, 32], sizes = [16, 32], strides = [1, 1]} : vector<16x96xf32> to vector<16x32xf32>
    %47 = vector.extract_strided_slice %44 {offsets = [0, 64], sizes = [16, 32], strides = [1, 1]} : vector<16x96xf32> to vector<16x32xf32>
    %48 = vector.extract_strided_slice %45 {offsets = [0, 0], sizes = [16, 8], strides = [1, 1]} : vector<16x32xf32> to vector<16x8xf32>
    %49 = vector.shape_cast %48 : vector<16x8xf32> to vector<2x8x8xf32>
    %50 = vector.extract_strided_slice %46 {offsets = [0, 0], sizes = [16, 8], strides = [1, 1]} : vector<16x32xf32> to vector<16x8xf32>
    %51 = vector.shape_cast %50 : vector<16x8xf32> to vector<2x8x8xf32>
    %52 = vector.extract_strided_slice %47 {offsets = [0, 0], sizes = [16, 8], strides = [1, 1]} : vector<16x32xf32> to vector<16x8xf32>
    %53 = vector.shape_cast %52 : vector<16x8xf32> to vector<2x8x8xf32>
    "tpu.trace_start"() <{level = 10 : i32, message = "bqd,bkd->bqk"}> : () -> ()
    %cst_64 = arith.constant dense<0.000000e+00> : vector<2x8x8xf32>
    %54 = tpu.matmul %49, %51, %cst_64 {dimension_numbers = #tpu.dot_dimension_numbers<[2], [2], [1], [1], [0, 0, 0, 1, 1, 1], [0], [0]>} : vector<2x8x8xf32>, vector<2x8x8xf32>, vector<2x8x8xf32> -> vector<2x8x8xf32>
    "tpu.trace_stop"() : () -> ()
    %cst_65 = arith.constant 0.353553385 : f32
    %55 = vector.broadcast %cst_65 : f32 to vector<2x8x8xf32>
    %56 = arith.mulf %54, %55 : vector<2x8x8xf32>
    %57 = vector.broadcast %17 : vector<2x1x8xf32> to vector<2x8x8xf32>
    %58 = arith.addf %56, %57 : vector<2x8x8xf32>
    %cst_66 = arith.constant dense<0xFF800000> : vector<2x8xf32>
    %59 = vector.multi_reduction <maximumf>, %58, %cst_66 [2] : vector<2x8x8xf32> to vector<2x8xf32>
    %60 = vector.shape_cast %59 : vector<2x8xf32> to vector<2x8x1xf32>
    %61 = vector.broadcast %60 : vector<2x8x1xf32> to vector<2x8x8xf32>
    %62 = arith.subf %58, %61 : vector<2x8x8xf32>
    %63 = math.exp %62 : vector<2x8x8xf32>
    %cst_67 = arith.constant dense<0.000000e+00> : vector<2x8xf32>
    %64 = vector.multi_reduction <add>, %63, %cst_67 [2] : vector<2x8x8xf32> to vector<2x8xf32>
    %65 = vector.shape_cast %64 : vector<2x8xf32> to vector<2x8x1xf32>
    %66 = tpu.reciprocal %65 {approx = true} : vector<2x8x1xf32> -> vector<2x8x1xf32>
    %67 = vector.broadcast %66 : vector<2x8x1xf32> to vector<2x8x8xf32>
    %68 = arith.mulf %63, %67 : vector<2x8x8xf32>
    "tpu.trace_start"() <{level = 10 : i32, message = "bqk,bkd->bqd"}> : () -> ()
    %cst_68 = arith.constant dense<0.000000e+00> : vector<2x8x8xf32>
    %69 = tpu.matmul %68, %53, %cst_68 {dimension_numbers = #tpu.dot_dimension_numbers<[2], [1], [1], [2], [0, 0, 0, 1, 1, 2], [0], [0]>} : vector<2x8x8xf32>, vector<2x8x8xf32>, vector<2x8x8xf32> -> vector<2x8x8xf32>
    "tpu.trace_stop"() : () -> ()
    %70 = vector.shape_cast %69 : vector<2x8x8xf32> to vector<16x8xf32>
    %71 = vector.extract_strided_slice %23 {offsets = [0, 0], sizes = [8, 32], strides = [1, 1]} : vector<32x32xf32> to vector<8x32xf32>
    %cst_69 = arith.constant dense<0.000000e+00> : vector<16x32xf32>
    %72 = tpu.matmul %70, %71, %cst_69 {dimension_numbers = #tpu.dot_dimension_numbers<[1], [0], [0], [1], [0, 0, 1, 1], [], []>} : vector<16x8xf32>, vector<8x32xf32>, vector<16x32xf32> -> vector<16x32xf32>
    %73 = vector.extract_strided_slice %45 {offsets = [0, 8], sizes = [16, 8], strides = [1, 1]} : vector<16x32xf32> to vector<16x8xf32>
    %74 = vector.shape_cast %73 : vector<16x8xf32> to vector<2x8x8xf32>
    %75 = vector.extract_strided_slice %46 {offsets = [0, 8], sizes = [16, 8], strides = [1, 1]} : vector<16x32xf32> to vector<16x8xf32>
    %76 = vector.shape_cast %75 : vector<16x8xf32> to vector<2x8x8xf32>
    %77 = vector.extract_strided_slice %47 {offsets = [0, 8], sizes = [16, 8], strides = [1, 1]} : vector<16x32xf32> to vector<16x8xf32>
    %78 = vector.shape_cast %77 : vector<16x8xf32> to vector<2x8x8xf32>
    "tpu.trace_start"() <{level = 10 : i32, message = "bqd,bkd->bqk"}> : () -> ()
    %cst_70 = arith.constant dense<0.000000e+00> : vector<2x8x8xf32>
    %79 = tpu.matmul %74, %76, %cst_70 {dimension_numbers = #tpu.dot_dimension_numbers<[2], [2], [1], [1], [0, 0, 0, 1, 1, 1], [0], [0]>} : vector<2x8x8xf32>, vector<2x8x8xf32>, vector<2x8x8xf32> -> vector<2x8x8xf32>
    "tpu.trace_stop"() : () -> ()
    %cst_71 = arith.constant 0.353553385 : f32
    %80 = vector.broadcast %cst_71 : f32 to vector<2x8x8xf32>
    %81 = arith.mulf %79, %80 : vector<2x8x8xf32>
    %82 = vector.broadcast %17 : vector<2x1x8xf32> to vector<2x8x8xf32>
    %83 = arith.addf %81, %82 : vector<2x8x8xf32>
    %cst_72 = arith.constant dense<0xFF800000> : vector<2x8xf32>
    %84 = vector.multi_reduction <maximumf>, %83, %cst_72 [2] : vector<2x8x8xf32> to vector<2x8xf32>
    %85 = vector.shape_cast %84 : vector<2x8xf32> to vector<2x8x1xf32>
    %86 = vector.broadcast %85 : vector<2x8x1xf32> to vector<2x8x8xf32>
    %87 = arith.subf %83, %86 : vector<2x8x8xf32>
    %88 = math.exp %87 : vector<2x8x8xf32>
    %cst_73 = arith.constant dense<0.000000e+00> : vector<2x8xf32>
    %89 = vector.multi_reduction <add>, %88, %cst_73 [2] : vector<2x8x8xf32> to vector<2x8xf32>
    %90 = vector.shape_cast %89 : vector<2x8xf32> to vector<2x8x1xf32>
    %91 = tpu.reciprocal %90 {approx = true} : vector<2x8x1xf32> -> vector<2x8x1xf32>
    %92 = vector.broadcast %91 : vector<2x8x1xf32> to vector<2x8x8xf32>
    %93 = arith.mulf %88, %92 : vector<2x8x8xf32>
    "tpu.trace_start"() <{level = 10 : i32, message = "bqk,bkd->bqd"}> : () -> ()
    %cst_74 = arith.constant dense<0.000000e+00> : vector<2x8x8xf32>
    %94 = tpu.matmul %93, %78, %cst_74 {dimension_numbers = #tpu.dot_dimension_numbers<[2], [1], [1], [2], [0, 0, 0, 1, 1, 2], [0], [0]>} : vector<2x8x8xf32>, vector<2x8x8xf32>, vector<2x8x8xf32> -> vector<2x8x8xf32>
    "tpu.trace_stop"() : () -> ()
    %95 = vector.shape_cast %94 : vector<2x8x8xf32> to vector<16x8xf32>
    %96 = vector.extract_strided_slice %23 {offsets = [8, 0], sizes = [8, 32], strides = [1, 1]} : vector<32x32xf32> to vector<8x32xf32>
    %cst_75 = arith.constant dense<0.000000e+00> : vector<16x32xf32>
    %97 = tpu.matmul %95, %96, %cst_75 {dimension_numbers = #tpu.dot_dimension_numbers<[1], [0], [0], [1], [0, 0, 1, 1], [], []>} : vector<16x8xf32>, vector<8x32xf32>, vector<16x32xf32> -> vector<16x32xf32>
    %98 = arith.addf %72, %97 : vector<16x32xf32>
    %99 = vector.extract_strided_slice %45 {offsets = [0, 16], sizes = [16, 8], strides = [1, 1]} : vector<16x32xf32> to vector<16x8xf32>
    %100 = vector.shape_cast %99 : vector<16x8xf32> to vector<2x8x8xf32>
    %101 = vector.extract_strided_slice %46 {offsets = [0, 16], sizes = [16, 8], strides = [1, 1]} : vector<16x32xf32> to vector<16x8xf32>
    %102 = vector.shape_cast %101 : vector<16x8xf32> to vector<2x8x8xf32>
    %103 = vector.extract_strided_slice %47 {offsets = [0, 16], sizes = [16, 8], strides = [1, 1]} : vector<16x32xf32> to vector<16x8xf32>
    %104 = vector.shape_cast %103 : vector<16x8xf32> to vector<2x8x8xf32>
    "tpu.trace_start"() <{level = 10 : i32, message = "bqd,bkd->bqk"}> : () -> ()
    %cst_76 = arith.constant dense<0.000000e+00> : vector<2x8x8xf32>
    %105 = tpu.matmul %100, %102, %cst_76 {dimension_numbers = #tpu.dot_dimension_numbers<[2], [2], [1], [1], [0, 0, 0, 1, 1, 1], [0], [0]>} : vector<2x8x8xf32>, vector<2x8x8xf32>, vector<2x8x8xf32> -> vector<2x8x8xf32>
    "tpu.trace_stop"() : () -> ()
    %cst_77 = arith.constant 0.353553385 : f32
    %106 = vector.broadcast %cst_77 : f32 to vector<2x8x8xf32>
    %107 = arith.mulf %105, %106 : vector<2x8x8xf32>
    %108 = vector.broadcast %17 : vector<2x1x8xf32> to vector<2x8x8xf32>
    %109 = arith.addf %107, %108 : vector<2x8x8xf32>
    %cst_78 = arith.constant dense<0xFF800000> : vector<2x8xf32>
    %110 = vector.multi_reduction <maximumf>, %109, %cst_78 [2] : vector<2x8x8xf32> to vector<2x8xf32>
    %111 = vector.shape_cast %110 : vector<2x8xf32> to vector<2x8x1xf32>
    %112 = vector.broadcast %111 : vector<2x8x1xf32> to vector<2x8x8xf32>
    %113 = arith.subf %109, %112 : vector<2x8x8xf32>
    %114 = math.exp %113 : vector<2x8x8xf32>
    %cst_79 = arith.constant dense<0.000000e+00> : vector<2x8xf32>
    %115 = vector.multi_reduction <add>, %114, %cst_79 [2] : vector<2x8x8xf32> to vector<2x8xf32>
    %116 = vector.shape_cast %115 : vector<2x8xf32> to vector<2x8x1xf32>
    %117 = tpu.reciprocal %116 {approx = true} : vector<2x8x1xf32> -> vector<2x8x1xf32>
    %118 = vector.broadcast %117 : vector<2x8x1xf32> to vector<2x8x8xf32>
    %119 = arith.mulf %114, %118 : vector<2x8x8xf32>
    "tpu.trace_start"() <{level = 10 : i32, message = "bqk,bkd->bqd"}> : () -> ()
    %cst_80 = arith.constant dense<0.000000e+00> : vector<2x8x8xf32>
    %120 = tpu.matmul %119, %104, %cst_80 {dimension_numbers = #tpu.dot_dimension_numbers<[2], [1], [1], [2], [0, 0, 0, 1, 1, 2], [0], [0]>} : vector<2x8x8xf32>, vector<2x8x8xf32>, vector<2x8x8xf32> -> vector<2x8x8xf32>
    "tpu.trace_stop"() : () -> ()
    %121 = vector.shape_cast %120 : vector<2x8x8xf32> to vector<16x8xf32>
    %122 = vector.extract_strided_slice %23 {offsets = [16, 0], sizes = [8, 32], strides = [1, 1]} : vector<32x32xf32> to vector<8x32xf32>
    %cst_81 = arith.constant dense<0.000000e+00> : vector<16x32xf32>
    %123 = tpu.matmul %121, %122, %cst_81 {dimension_numbers = #tpu.dot_dimension_numbers<[1], [0], [0], [1], [0, 0, 1, 1], [], []>} : vector<16x8xf32>, vector<8x32xf32>, vector<16x32xf32> -> vector<16x32xf32>
    %124 = arith.addf %98, %123 : vector<16x32xf32>
    %125 = vector.extract_strided_slice %45 {offsets = [0, 24], sizes = [16, 8], strides = [1, 1]} : vector<16x32xf32> to vector<16x8xf32>
    %126 = vector.shape_cast %125 : vector<16x8xf32> to vector<2x8x8xf32>
    %127 = vector.extract_strided_slice %46 {offsets = [0, 24], sizes = [16, 8], strides = [1, 1]} : vector<16x32xf32> to vector<16x8xf32>
    %128 = vector.shape_cast %127 : vector<16x8xf32> to vector<2x8x8xf32>
    %129 = vector.extract_strided_slice %47 {offsets = [0, 24], sizes = [16, 8], strides = [1, 1]} : vector<16x32xf32> to vector<16x8xf32>
    %130 = vector.shape_cast %129 : vector<16x8xf32> to vector<2x8x8xf32>
    "tpu.trace_start"() <{level = 10 : i32, message = "bqd,bkd->bqk"}> : () -> ()
    %cst_82 = arith.constant dense<0.000000e+00> : vector<2x8x8xf32>
    %131 = tpu.matmul %126, %128, %cst_82 {dimension_numbers = #tpu.dot_dimension_numbers<[2], [2], [1], [1], [0, 0, 0, 1, 1, 1], [0], [0]>} : vector<2x8x8xf32>, vector<2x8x8xf32>, vector<2x8x8xf32> -> vector<2x8x8xf32>
    "tpu.trace_stop"() : () -> ()
    %cst_83 = arith.constant 0.353553385 : f32
    %132 = vector.broadcast %cst_83 : f32 to vector<2x8x8xf32>
    %133 = arith.mulf %131, %132 : vector<2x8x8xf32>
    %134 = vector.broadcast %17 : vector<2x1x8xf32> to vector<2x8x8xf32>
    %135 = arith.addf %133, %134 : vector<2x8x8xf32>
    %cst_84 = arith.constant dense<0xFF800000> : vector<2x8xf32>
    %136 = vector.multi_reduction <maximumf>, %135, %cst_84 [2] : vector<2x8x8xf32> to vector<2x8xf32>
    %137 = vector.shape_cast %136 : vector<2x8xf32> to vector<2x8x1xf32>
    %138 = vector.broadcast %137 : vector<2x8x1xf32> to vector<2x8x8xf32>
    %139 = arith.subf %135, %138 : vector<2x8x8xf32>
    %140 = math.exp %139 : vector<2x8x8xf32>
    %cst_85 = arith.constant dense<0.000000e+00> : vector<2x8xf32>
    %141 = vector.multi_reduction <add>, %140, %cst_85 [2] : vector<2x8x8xf32> to vector<2x8xf32>
    %142 = vector.shape_cast %141 : vector<2x8xf32> to vector<2x8x1xf32>
    %143 = tpu.reciprocal %142 {approx = true} : vector<2x8x1xf32> -> vector<2x8x1xf32>
    %144 = vector.broadcast %143 : vector<2x8x1xf32> to vector<2x8x8xf32>
    %145 = arith.mulf %140, %144 : vector<2x8x8xf32>
    "tpu.trace_start"() <{level = 10 : i32, message = "bqk,bkd->bqd"}> : () -> ()
    %cst_86 = arith.constant dense<0.000000e+00> : vector<2x8x8xf32>
    %146 = tpu.matmul %145, %130, %cst_86 {dimension_numbers = #tpu.dot_dimension_numbers<[2], [1], [1], [2], [0, 0, 0, 1, 1, 2], [0], [0]>} : vector<2x8x8xf32>, vector<2x8x8xf32>, vector<2x8x8xf32> -> vector<2x8x8xf32>
    "tpu.trace_stop"() : () -> ()
    %147 = vector.shape_cast %146 : vector<2x8x8xf32> to vector<16x8xf32>
    %148 = vector.extract_strided_slice %23 {offsets = [24, 0], sizes = [8, 32], strides = [1, 1]} : vector<32x32xf32> to vector<8x32xf32>
    %cst_87 = arith.constant dense<0.000000e+00> : vector<16x32xf32>
    %149 = tpu.matmul %147, %148, %cst_87 {dimension_numbers = #tpu.dot_dimension_numbers<[1], [0], [0], [1], [0, 0, 1, 1], [], []>} : vector<16x8xf32>, vector<8x32xf32>, vector<16x32xf32> -> vector<16x32xf32>
    %150 = arith.addf %124, %149 : vector<16x32xf32>
    %151 = vector.broadcast %25 : vector<1x32xf32> to vector<16x32xf32>
    %152 = arith.addf %150, %151 : vector<16x32xf32>
    %153 = arith.addf %15, %152 : vector<16x32xf32>
    %cst_88 = arith.constant dense<0.000000e+00> : vector<16xf32>
    %154 = vector.multi_reduction <add>, %153, %cst_88 [1] : vector<16x32xf32> to vector<16xf32>
    %155 = vector.shape_cast %154 : vector<16xf32> to vector<16x1xf32>
    %cst_89 = arith.constant 3.200000e+01 : f32
    %156 = vector.broadcast %cst_89 : f32 to vector<16x1xf32>
    %157 = arith.divf %155, %156 : vector<16x1xf32>
    %158 = vector.broadcast %157 : vector<16x1xf32> to vector<16x32xf32>
    %159 = arith.subf %153, %158 : vector<16x32xf32>
    %160 = arith.mulf %159, %159 : vector<16x32xf32>
    %cst_90 = arith.constant dense<0.000000e+00> : vector<16xf32>
    %161 = vector.multi_reduction <add>, %160, %cst_90 [1] : vector<16x32xf32> to vector<16xf32>
    %162 = vector.shape_cast %161 : vector<16xf32> to vector<16x1xf32>
    %cst_91 = arith.constant 3.200000e+01 : f32
    %163 = vector.broadcast %cst_91 : f32 to vector<16x1xf32>
    %164 = arith.divf %162, %163 : vector<16x1xf32>
    %165 = vector.broadcast %157 : vector<16x1xf32> to vector<16x32xf32>
    %166 = arith.subf %153, %165 : vector<16x32xf32>
    %cst_92 = arith.constant 9.99999974E-6 : f32
    %167 = vector.broadcast %cst_92 : f32 to vector<16x1xf32>
    %168 = arith.addf %164, %167 : vector<16x1xf32>
    %169 = math.rsqrt %168 : vector<16x1xf32>
    %170 = vector.broadcast %169 : vector<16x1xf32> to vector<16x32xf32>
    %171 = arith.mulf %166, %170 : vector<16x32xf32>
    %172 = vector.broadcast %27 : vector<1x32xf32> to vector<16x32xf32>
    %173 = arith.mulf %171, %172 : vector<16x32xf32>
    %174 = vector.broadcast %29 : vector<1x32xf32> to vector<16x32xf32>
    %175 = arith.addf %173, %174 : vector<16x32xf32>
    %cst_93 = arith.constant dense<0.000000e+00> : vector<16x64xf32>
    %176 = tpu.matmul %175, %31, %cst_93 {dimension_numbers = #tpu.dot_dimension_numbers<[1], [0], [0], [1], [0, 0, 1, 1], [], []>} : vector<16x32xf32>, vector<32x64xf32>, vector<16x64xf32> -> vector<16x64xf32>
    %177 = vector.broadcast %33 : vector<1x64xf32> to vector<16x64xf32>
    %178 = arith.addf %176, %177 : vector<16x64xf32>
    %cst_94 = arith.constant 0.000000e+00 : f32
    %179 = vector.broadcast %cst_94 : f32 to vector<16x64xf32>
    %180 = arith.maximumf %178, %179 : vector<16x64xf32>
    %cst_95 = arith.constant dense<0.000000e+00> : vector<16x32xf32>
    %181 = tpu.matmul %180, %35, %cst_95 {dimension_numbers = #tpu.dot_dimension_numbers<[1], [0], [0], [1], [0, 0, 1, 1], [], []>} : vector<16x64xf32>, vector<64x32xf32>, vector<16x32xf32> -> vector<16x32xf32>
    %182 = vector.broadcast %37 : vector<1x32xf32> to vector<16x32xf32>
    %183 = arith.addf %181, %182 : vector<16x32xf32>
    %184 = arith.addf %175, %183 : vector<16x32xf32>
    %cst_96 = arith.constant dense<0.000000e+00> : vector<16xf32>
    %185 = vector.multi_reduction <add>, %184, %cst_96 [1] : vector<16x32xf32> to vector<16xf32>
    %186 = vector.shape_cast %185 : vector<16xf32> to vector<16x1xf32>
    %cst_97 = arith.constant 3.200000e+01 : f32
    %187 = vector.broadcast %cst_97 : f32 to vector<16x1xf32>
    %188 = arith.divf %186, %187 : vector<16x1xf32>
    %189 = vector.broadcast %188 : vector<16x1xf32> to vector<16x32xf32>
    %190 = arith.subf %184, %189 : vector<16x32xf32>
    %191 = arith.mulf %190, %190 : vector<16x32xf32>
    %cst_98 = arith.constant dense<0.000000e+00> : vector<16xf32>
    %192 = vector.multi_reduction <add>, %191, %cst_98 [1] : vector<16x32xf32> to vector<16xf32>
    %193 = vector.shape_cast %192 : vector<16xf32> to vector<16x1xf32>
    %cst_99 = arith.constant 3.200000e+01 : f32
    %194 = vector.broadcast %cst_99 : f32 to vector<16x1xf32>
    %195 = arith.divf %193, %194 : vector<16x1xf32>
    %196 = vector.broadcast %188 : vector<16x1xf32> to vector<16x32xf32>
    %197 = arith.subf %184, %196 : vector<16x32xf32>
    %cst_100 = arith.constant 9.99999974E-6 : f32
    %198 = vector.broadcast %cst_100 : f32 to vector<16x1xf32>
    %199 = arith.addf %195, %198 : vector<16x1xf32>
    %200 = math.rsqrt %199 : vector<16x1xf32>
    %201 = vector.broadcast %200 : vector<16x1xf32> to vector<16x32xf32>
    %202 = arith.mulf %197, %201 : vector<16x32xf32>
    %203 = vector.broadcast %39 : vector<1x32xf32> to vector<16x32xf32>
    %204 = arith.mulf %202, %203 : vector<16x32xf32>
    %205 = vector.broadcast %41 : vector<1x32xf32> to vector<16x32xf32>
    %206 = arith.addf %204, %205 : vector<16x32xf32>
    %c0_101 = arith.constant 0 : index
    %c1 = arith.constant 1 : index
    %c0_102 = arith.constant 0 : index
    %c0_103 = arith.constant 0 : index
    %207 = vector.load %arg6[%c0_101, %c1, %c0_102, %c0_103] : memref<1x3x32x96xf32, #tpu.memory_space<vmem>>, vector<1x1x32x96xf32>
    %208 = vector.shape_cast %207 : vector<1x1x32x96xf32> to vector<32x96xf32>
    %c0_104 = arith.constant 0 : index
    %c1_105 = arith.constant 1 : index
    %c0_106 = arith.constant 0 : index
    %c0_107 = arith.constant 0 : index
    %209 = vector.load %arg7[%c0_104, %c1_105, %c0_106, %c0_107] : memref<1x3x1x96xf32, #tpu.memory_space<vmem>>, vector<1x1x1x96xf32>
    %210 = vector.shape_cast %209 : vector<1x1x1x96xf32> to vector<1x96xf32>
    %c0_108 = arith.constant 0 : index
    %c1_109 = arith.constant 1 : index
    %c0_110 = arith.constant 0 : index
    %c0_111 = arith.constant 0 : index
    %211 = vector.load %arg8[%c0_108, %c1_109, %c0_110, %c0_111] : memref<1x3x32x32xf32, #tpu.memory_space<vmem>>, vector<1x1x32x32xf32>
    %212 = vector.shape_cast %211 : vector<1x1x32x32xf32> to vector<32x32xf32>
    %c0_112 = arith.constant 0 : index
    %c1_113 = arith.constant 1 : index
    %c0_114 = arith.constant 0 : index
    %c0_115 = arith.constant 0 : index
    %213 = vector.load %arg9[%c0_112, %c1_113, %c0_114, %c0_115] : memref<1x3x1x32xf32, #tpu.memory_space<vmem>>, vector<1x1x1x32xf32>
    %214 = vector.shape_cast %213 : vector<1x1x1x32xf32> to vector<1x32xf32>
    %c0_116 = arith.constant 0 : index
    %c1_117 = arith.constant 1 : index
    %c0_118 = arith.constant 0 : index
    %c0_119 = arith.constant 0 : index
    %215 = vector.load %arg10[%c0_116, %c1_117, %c0_118, %c0_119] : memref<1x3x1x32xf32, #tpu.memory_space<vmem>>, vector<1x1x1x32xf32>
    %216 = vector.shape_cast %215 : vector<1x1x1x32xf32> to vector<1x32xf32>
    %c0_120 = arith.constant 0 : index
    %c1_121 = arith.constant 1 : index
    %c0_122 = arith.constant 0 : index
    %c0_123 = arith.constant 0 : index
    %217 = vector.load %arg11[%c0_120, %c1_121, %c0_122, %c0_123] : memref<1x3x1x32xf32, #tpu.memory_space<vmem>>, vector<1x1x1x32xf32>
    %218 = vector.shape_cast %217 : vector<1x1x1x32xf32> to vector<1x32xf32>
    %c0_124 = arith.constant 0 : index
    %c1_125 = arith.constant 1 : index
    %c0_126 = arith.constant 0 : index
    %c0_127 = arith.constant 0 : index
    %219 = vector.load %arg12[%c0_124, %c1_125, %c0_126, %c0_127] : memref<1x3x32x64xf32, #tpu.memory_space<vmem>>, vector<1x1x32x64xf32>
    %220 = vector.shape_cast %219 : vector<1x1x32x64xf32> to vector<32x64xf32>
    %c0_128 = arith.constant 0 : index
    %c1_129 = arith.constant 1 : index
    %c0_130 = arith.constant 0 : index
    %c0_131 = arith.constant 0 : index
    %221 = vector.load %arg13[%c0_128, %c1_129, %c0_130, %c0_131] : memref<1x3x1x64xf32, #tpu.memory_space<vmem>>, vector<1x1x1x64xf32>
    %222 = vector.shape_cast %221 : vector<1x1x1x64xf32> to vector<1x64xf32>
    %c0_132 = arith.constant 0 : index
    %c1_133 = arith.constant 1 : index
    %c0_134 = arith.constant 0 : index
    %c0_135 = arith.constant 0 : index
    %223 = vector.load %arg14[%c0_132, %c1_133, %c0_134, %c0_135] : memref<1x3x64x32xf32, #tpu.memory_space<vmem>>, vector<1x1x64x32xf32>
    %224 = vector.shape_cast %223 : vector<1x1x64x32xf32> to vector<64x32xf32>
    %c0_136 = arith.constant 0 : index
    %c1_137 = arith.constant 1 : index
    %c0_138 = arith.constant 0 : index
    %c0_139 = arith.constant 0 : index
    %225 = vector.load %arg15[%c0_136, %c1_137, %c0_138, %c0_139] : memref<1x3x1x32xf32, #tpu.memory_space<vmem>>, vector<1x1x1x32xf32>
    %226 = vector.shape_cast %225 : vector<1x1x1x32xf32> to vector<1x32xf32>
    %c0_140 = arith.constant 0 : index
    %c1_141 = arith.constant 1 : index
    %c0_142 = arith.constant 0 : index
    %c0_143 = arith.constant 0 : index
    %227 = vector.load %arg16[%c0_140, %c1_141, %c0_142, %c0_143] : memref<1x3x1x32xf32, #tpu.memory_space<vmem>>, vector<1x1x1x32xf32>
    %228 = vector.shape_cast %227 : vector<1x1x1x32xf32> to vector<1x32xf32>
    %c0_144 = arith.constant 0 : index
    %c1_145 = arith.constant 1 : index
    %c0_146 = arith.constant 0 : index
    %c0_147 = arith.constant 0 : index
    %229 = vector.load %arg17[%c0_144, %c1_145, %c0_146, %c0_147] : memref<1x3x1x32xf32, #tpu.memory_space<vmem>>, vector<1x1x1x32xf32>
    %230 = vector.shape_cast %229 : vector<1x1x1x32xf32> to vector<1x32xf32>
    %cst_148 = arith.constant dense<0.000000e+00> : vector<16x96xf32>
    %231 = tpu.matmul %206, %208, %cst_148 {dimension_numbers = #tpu.dot_dimension_numbers<[1], [0], [0], [1], [0, 0, 1, 1], [], []>} : vector<16x32xf32>, vector<32x96xf32>, vector<16x96xf32> -> vector<16x96xf32>
    %232 = vector.broadcast %210 : vector<1x96xf32> to vector<16x96xf32>
    %233 = arith.addf %231, %232 : vector<16x96xf32>
    %234 = vector.extract_strided_slice %233 {offsets = [0, 0], sizes = [16, 32], strides = [1, 1]} : vector<16x96xf32> to vector<16x32xf32>
    %235 = vector.extract_strided_slice %233 {offsets = [0, 32], sizes = [16, 32], strides = [1, 1]} : vector<16x96xf32> to vector<16x32xf32>
    %236 = vector.extract_strided_slice %233 {offsets = [0, 64], sizes = [16, 32], strides = [1, 1]} : vector<16x96xf32> to vector<16x32xf32>
    %237 = vector.extract_strided_slice %234 {offsets = [0, 0], sizes = [16, 8], strides = [1, 1]} : vector<16x32xf32> to vector<16x8xf32>
    %238 = vector.shape_cast %237 : vector<16x8xf32> to vector<2x8x8xf32>
    %239 = vector.extract_strided_slice %235 {offsets = [0, 0], sizes = [16, 8], strides = [1, 1]} : vector<16x32xf32> to vector<16x8xf32>
    %240 = vector.shape_cast %239 : vector<16x8xf32> to vector<2x8x8xf32>
    %241 = vector.extract_strided_slice %236 {offsets = [0, 0], sizes = [16, 8], strides = [1, 1]} : vector<16x32xf32> to vector<16x8xf32>
    %242 = vector.shape_cast %241 : vector<16x8xf32> to vector<2x8x8xf32>
    "tpu.trace_start"() <{level = 10 : i32, message = "bqd,bkd->bqk"}> : () -> ()
    %cst_149 = arith.constant dense<0.000000e+00> : vector<2x8x8xf32>
    %243 = tpu.matmul %238, %240, %cst_149 {dimension_numbers = #tpu.dot_dimension_numbers<[2], [2], [1], [1], [0, 0, 0, 1, 1, 1], [0], [0]>} : vector<2x8x8xf32>, vector<2x8x8xf32>, vector<2x8x8xf32> -> vector<2x8x8xf32>
    "tpu.trace_stop"() : () -> ()
    %cst_150 = arith.constant 0.353553385 : f32
    %244 = vector.broadcast %cst_150 : f32 to vector<2x8x8xf32>
    %245 = arith.mulf %243, %244 : vector<2x8x8xf32>
    %246 = vector.broadcast %17 : vector<2x1x8xf32> to vector<2x8x8xf32>
    %247 = arith.addf %245, %246 : vector<2x8x8xf32>
    %cst_151 = arith.constant dense<0xFF800000> : vector<2x8xf32>
    %248 = vector.multi_reduction <maximumf>, %247, %cst_151 [2] : vector<2x8x8xf32> to vector<2x8xf32>
    %249 = vector.shape_cast %248 : vector<2x8xf32> to vector<2x8x1xf32>
    %250 = vector.broadcast %249 : vector<2x8x1xf32> to vector<2x8x8xf32>
    %251 = arith.subf %247, %250 : vector<2x8x8xf32>
    %252 = math.exp %251 : vector<2x8x8xf32>
    %cst_152 = arith.constant dense<0.000000e+00> : vector<2x8xf32>
    %253 = vector.multi_reduction <add>, %252, %cst_152 [2] : vector<2x8x8xf32> to vector<2x8xf32>
    %254 = vector.shape_cast %253 : vector<2x8xf32> to vector<2x8x1xf32>
    %255 = tpu.reciprocal %254 {approx = true} : vector<2x8x1xf32> -> vector<2x8x1xf32>
    %256 = vector.broadcast %255 : vector<2x8x1xf32> to vector<2x8x8xf32>
    %257 = arith.mulf %252, %256 : vector<2x8x8xf32>
    "tpu.trace_start"() <{level = 10 : i32, message = "bqk,bkd->bqd"}> : () -> ()
    %cst_153 = arith.constant dense<0.000000e+00> : vector<2x8x8xf32>
    %258 = tpu.matmul %257, %242, %cst_153 {dimension_numbers = #tpu.dot_dimension_numbers<[2], [1], [1], [2], [0, 0, 0, 1, 1, 2], [0], [0]>} : vector<2x8x8xf32>, vector<2x8x8xf32>, vector<2x8x8xf32> -> vector<2x8x8xf32>
    "tpu.trace_stop"() : () -> ()
    %259 = vector.shape_cast %258 : vector<2x8x8xf32> to vector<16x8xf32>
    %260 = vector.extract_strided_slice %212 {offsets = [0, 0], sizes = [8, 32], strides = [1, 1]} : vector<32x32xf32> to vector<8x32xf32>
    %cst_154 = arith.constant dense<0.000000e+00> : vector<16x32xf32>
    %261 = tpu.matmul %259, %260, %cst_154 {dimension_numbers = #tpu.dot_dimension_numbers<[1], [0], [0], [1], [0, 0, 1, 1], [], []>} : vector<16x8xf32>, vector<8x32xf32>, vector<16x32xf32> -> vector<16x32xf32>
    %262 = vector.extract_strided_slice %234 {offsets = [0, 8], sizes = [16, 8], strides = [1, 1]} : vector<16x32xf32> to vector<16x8xf32>
    %263 = vector.shape_cast %262 : vector<16x8xf32> to vector<2x8x8xf32>
    %264 = vector.extract_strided_slice %235 {offsets = [0, 8], sizes = [16, 8], strides = [1, 1]} : vector<16x32xf32> to vector<16x8xf32>
    %265 = vector.shape_cast %264 : vector<16x8xf32> to vector<2x8x8xf32>
    %266 = vector.extract_strided_slice %236 {offsets = [0, 8], sizes = [16, 8], strides = [1, 1]} : vector<16x32xf32> to vector<16x8xf32>
    %267 = vector.shape_cast %266 : vector<16x8xf32> to vector<2x8x8xf32>
    "tpu.trace_start"() <{level = 10 : i32, message = "bqd,bkd->bqk"}> : () -> ()
    %cst_155 = arith.constant dense<0.000000e+00> : vector<2x8x8xf32>
    %268 = tpu.matmul %263, %265, %cst_155 {dimension_numbers = #tpu.dot_dimension_numbers<[2], [2], [1], [1], [0, 0, 0, 1, 1, 1], [0], [0]>} : vector<2x8x8xf32>, vector<2x8x8xf32>, vector<2x8x8xf32> -> vector<2x8x8xf32>
    "tpu.trace_stop"() : () -> ()
    %cst_156 = arith.constant 0.353553385 : f32
    %269 = vector.broadcast %cst_156 : f32 to vector<2x8x8xf32>
    %270 = arith.mulf %268, %269 : vector<2x8x8xf32>
    %271 = vector.broadcast %17 : vector<2x1x8xf32> to vector<2x8x8xf32>
    %272 = arith.addf %270, %271 : vector<2x8x8xf32>
    %cst_157 = arith.constant dense<0xFF800000> : vector<2x8xf32>
    %273 = vector.multi_reduction <maximumf>, %272, %cst_157 [2] : vector<2x8x8xf32> to vector<2x8xf32>
    %274 = vector.shape_cast %273 : vector<2x8xf32> to vector<2x8x1xf32>
    %275 = vector.broadcast %274 : vector<2x8x1xf32> to vector<2x8x8xf32>
    %276 = arith.subf %272, %275 : vector<2x8x8xf32>
    %277 = math.exp %276 : vector<2x8x8xf32>
    %cst_158 = arith.constant dense<0.000000e+00> : vector<2x8xf32>
    %278 = vector.multi_reduction <add>, %277, %cst_158 [2] : vector<2x8x8xf32> to vector<2x8xf32>
    %279 = vector.shape_cast %278 : vector<2x8xf32> to vector<2x8x1xf32>
    %280 = tpu.reciprocal %279 {approx = true} : vector<2x8x1xf32> -> vector<2x8x1xf32>
    %281 = vector.broadcast %280 : vector<2x8x1xf32> to vector<2x8x8xf32>
    %282 = arith.mulf %277, %281 : vector<2x8x8xf32>
    "tpu.trace_start"() <{level = 10 : i32, message = "bqk,bkd->bqd"}> : () -> ()
    %cst_159 = arith.constant dense<0.000000e+00> : vector<2x8x8xf32>
    %283 = tpu.matmul %282, %267, %cst_159 {dimension_numbers = #tpu.dot_dimension_numbers<[2], [1], [1], [2], [0, 0, 0, 1, 1, 2], [0], [0]>} : vector<2x8x8xf32>, vector<2x8x8xf32>, vector<2x8x8xf32> -> vector<2x8x8xf32>
    "tpu.trace_stop"() : () -> ()
    %284 = vector.shape_cast %283 : vector<2x8x8xf32> to vector<16x8xf32>
    %285 = vector.extract_strided_slice %212 {offsets = [8, 0], sizes = [8, 32], strides = [1, 1]} : vector<32x32xf32> to vector<8x32xf32>
    %cst_160 = arith.constant dense<0.000000e+00> : vector<16x32xf32>
    %286 = tpu.matmul %284, %285, %cst_160 {dimension_numbers = #tpu.dot_dimension_numbers<[1], [0], [0], [1], [0, 0, 1, 1], [], []>} : vector<16x8xf32>, vector<8x32xf32>, vector<16x32xf32> -> vector<16x32xf32>
    %287 = arith.addf %261, %286 : vector<16x32xf32>
    %288 = vector.extract_strided_slice %234 {offsets = [0, 16], sizes = [16, 8], strides = [1, 1]} : vector<16x32xf32> to vector<16x8xf32>
    %289 = vector.shape_cast %288 : vector<16x8xf32> to vector<2x8x8xf32>
    %290 = vector.extract_strided_slice %235 {offsets = [0, 16], sizes = [16, 8], strides = [1, 1]} : vector<16x32xf32> to vector<16x8xf32>
    %291 = vector.shape_cast %290 : vector<16x8xf32> to vector<2x8x8xf32>
    %292 = vector.extract_strided_slice %236 {offsets = [0, 16], sizes = [16, 8], strides = [1, 1]} : vector<16x32xf32> to vector<16x8xf32>
    %293 = vector.shape_cast %292 : vector<16x8xf32> to vector<2x8x8xf32>
    "tpu.trace_start"() <{level = 10 : i32, message = "bqd,bkd->bqk"}> : () -> ()
    %cst_161 = arith.constant dense<0.000000e+00> : vector<2x8x8xf32>
    %294 = tpu.matmul %289, %291, %cst_161 {dimension_numbers = #tpu.dot_dimension_numbers<[2], [2], [1], [1], [0, 0, 0, 1, 1, 1], [0], [0]>} : vector<2x8x8xf32>, vector<2x8x8xf32>, vector<2x8x8xf32> -> vector<2x8x8xf32>
    "tpu.trace_stop"() : () -> ()
    %cst_162 = arith.constant 0.353553385 : f32
    %295 = vector.broadcast %cst_162 : f32 to vector<2x8x8xf32>
    %296 = arith.mulf %294, %295 : vector<2x8x8xf32>
    %297 = vector.broadcast %17 : vector<2x1x8xf32> to vector<2x8x8xf32>
    %298 = arith.addf %296, %297 : vector<2x8x8xf32>
    %cst_163 = arith.constant dense<0xFF800000> : vector<2x8xf32>
    %299 = vector.multi_reduction <maximumf>, %298, %cst_163 [2] : vector<2x8x8xf32> to vector<2x8xf32>
    %300 = vector.shape_cast %299 : vector<2x8xf32> to vector<2x8x1xf32>
    %301 = vector.broadcast %300 : vector<2x8x1xf32> to vector<2x8x8xf32>
    %302 = arith.subf %298, %301 : vector<2x8x8xf32>
    %303 = math.exp %302 : vector<2x8x8xf32>
    %cst_164 = arith.constant dense<0.000000e+00> : vector<2x8xf32>
    %304 = vector.multi_reduction <add>, %303, %cst_164 [2] : vector<2x8x8xf32> to vector<2x8xf32>
    %305 = vector.shape_cast %304 : vector<2x8xf32> to vector<2x8x1xf32>
    %306 = tpu.reciprocal %305 {approx = true} : vector<2x8x1xf32> -> vector<2x8x1xf32>
    %307 = vector.broadcast %306 : vector<2x8x1xf32> to vector<2x8x8xf32>
    %308 = arith.mulf %303, %307 : vector<2x8x8xf32>
    "tpu.trace_start"() <{level = 10 : i32, message = "bqk,bkd->bqd"}> : () -> ()
    %cst_165 = arith.constant dense<0.000000e+00> : vector<2x8x8xf32>
    %309 = tpu.matmul %308, %293, %cst_165 {dimension_numbers = #tpu.dot_dimension_numbers<[2], [1], [1], [2], [0, 0, 0, 1, 1, 2], [0], [0]>} : vector<2x8x8xf32>, vector<2x8x8xf32>, vector<2x8x8xf32> -> vector<2x8x8xf32>
    "tpu.trace_stop"() : () -> ()
    %310 = vector.shape_cast %309 : vector<2x8x8xf32> to vector<16x8xf32>
    %311 = vector.extract_strided_slice %212 {offsets = [16, 0], sizes = [8, 32], strides = [1, 1]} : vector<32x32xf32> to vector<8x32xf32>
    %cst_166 = arith.constant dense<0.000000e+00> : vector<16x32xf32>
    %312 = tpu.matmul %310, %311, %cst_166 {dimension_numbers = #tpu.dot_dimension_numbers<[1], [0], [0], [1], [0, 0, 1, 1], [], []>} : vector<16x8xf32>, vector<8x32xf32>, vector<16x32xf32> -> vector<16x32xf32>
    %313 = arith.addf %287, %312 : vector<16x32xf32>
    %314 = vector.extract_strided_slice %234 {offsets = [0, 24], sizes = [16, 8], strides = [1, 1]} : vector<16x32xf32> to vector<16x8xf32>
    %315 = vector.shape_cast %314 : vector<16x8xf32> to vector<2x8x8xf32>
    %316 = vector.extract_strided_slice %235 {offsets = [0, 24], sizes = [16, 8], strides = [1, 1]} : vector<16x32xf32> to vector<16x8xf32>
    %317 = vector.shape_cast %316 : vector<16x8xf32> to vector<2x8x8xf32>
    %318 = vector.extract_strided_slice %236 {offsets = [0, 24], sizes = [16, 8], strides = [1, 1]} : vector<16x32xf32> to vector<16x8xf32>
    %319 = vector.shape_cast %318 : vector<16x8xf32> to vector<2x8x8xf32>
    "tpu.trace_start"() <{level = 10 : i32, message = "bqd,bkd->bqk"}> : () -> ()
    %cst_167 = arith.constant dense<0.000000e+00> : vector<2x8x8xf32>
    %320 = tpu.matmul %315, %317, %cst_167 {dimension_numbers = #tpu.dot_dimension_numbers<[2], [2], [1], [1], [0, 0, 0, 1, 1, 1], [0], [0]>} : vector<2x8x8xf32>, vector<2x8x8xf32>, vector<2x8x8xf32> -> vector<2x8x8xf32>
    "tpu.trace_stop"() : () -> ()
    %cst_168 = arith.constant 0.353553385 : f32
    %321 = vector.broadcast %cst_168 : f32 to vector<2x8x8xf32>
    %322 = arith.mulf %320, %321 : vector<2x8x8xf32>
    %323 = vector.broadcast %17 : vector<2x1x8xf32> to vector<2x8x8xf32>
    %324 = arith.addf %322, %323 : vector<2x8x8xf32>
    %cst_169 = arith.constant dense<0xFF800000> : vector<2x8xf32>
    %325 = vector.multi_reduction <maximumf>, %324, %cst_169 [2] : vector<2x8x8xf32> to vector<2x8xf32>
    %326 = vector.shape_cast %325 : vector<2x8xf32> to vector<2x8x1xf32>
    %327 = vector.broadcast %326 : vector<2x8x1xf32> to vector<2x8x8xf32>
    %328 = arith.subf %324, %327 : vector<2x8x8xf32>
    %329 = math.exp %328 : vector<2x8x8xf32>
    %cst_170 = arith.constant dense<0.000000e+00> : vector<2x8xf32>
    %330 = vector.multi_reduction <add>, %329, %cst_170 [2] : vector<2x8x8xf32> to vector<2x8xf32>
    %331 = vector.shape_cast %330 : vector<2x8xf32> to vector<2x8x1xf32>
    %332 = tpu.reciprocal %331 {approx = true} : vector<2x8x1xf32> -> vector<2x8x1xf32>
    %333 = vector.broadcast %332 : vector<2x8x1xf32> to vector<2x8x8xf32>
    %334 = arith.mulf %329, %333 : vector<2x8x8xf32>
    "tpu.trace_start"() <{level = 10 : i32, message = "bqk,bkd->bqd"}> : () -> ()
    %cst_171 = arith.constant dense<0.000000e+00> : vector<2x8x8xf32>
    %335 = tpu.matmul %334, %319, %cst_171 {dimension_numbers = #tpu.dot_dimension_numbers<[2], [1], [1], [2], [0, 0, 0, 1, 1, 2], [0], [0]>} : vector<2x8x8xf32>, vector<2x8x8xf32>, vector<2x8x8xf32> -> vector<2x8x8xf32>
    "tpu.trace_stop"() : () -> ()
    %336 = vector.shape_cast %335 : vector<2x8x8xf32> to vector<16x8xf32>
    %337 = vector.extract_strided_slice %212 {offsets = [24, 0], sizes = [8, 32], strides = [1, 1]} : vector<32x32xf32> to vector<8x32xf32>
    %cst_172 = arith.constant dense<0.000000e+00> : vector<16x32xf32>
    %338 = tpu.matmul %336, %337, %cst_172 {dimension_numbers = #tpu.dot_dimension_numbers<[1], [0], [0], [1], [0, 0, 1, 1], [], []>} : vector<16x8xf32>, vector<8x32xf32>, vector<16x32xf32> -> vector<16x32xf32>
    %339 = arith.addf %313, %338 : vector<16x32xf32>
    %340 = vector.broadcast %214 : vector<1x32xf32> to vector<16x32xf32>
    %341 = arith.addf %339, %340 : vector<16x32xf32>
    %342 = arith.addf %206, %341 : vector<16x32xf32>
    %cst_173 = arith.constant dense<0.000000e+00> : vector<16xf32>
    %343 = vector.multi_reduction <add>, %342, %cst_173 [1] : vector<16x32xf32> to vector<16xf32>
    %344 = vector.shape_cast %343 : vector<16xf32> to vector<16x1xf32>
    %cst_174 = arith.constant 3.200000e+01 : f32
    %345 = vector.broadcast %cst_174 : f32 to vector<16x1xf32>
    %346 = arith.divf %344, %345 : vector<16x1xf32>
    %347 = vector.broadcast %346 : vector<16x1xf32> to vector<16x32xf32>
    %348 = arith.subf %342, %347 : vector<16x32xf32>
    %349 = arith.mulf %348, %348 : vector<16x32xf32>
    %cst_175 = arith.constant dense<0.000000e+00> : vector<16xf32>
    %350 = vector.multi_reduction <add>, %349, %cst_175 [1] : vector<16x32xf32> to vector<16xf32>
    %351 = vector.shape_cast %350 : vector<16xf32> to vector<16x1xf32>
    %cst_176 = arith.constant 3.200000e+01 : f32
    %352 = vector.broadcast %cst_176 : f32 to vector<16x1xf32>
    %353 = arith.divf %351, %352 : vector<16x1xf32>
    %354 = vector.broadcast %346 : vector<16x1xf32> to vector<16x32xf32>
    %355 = arith.subf %342, %354 : vector<16x32xf32>
    %cst_177 = arith.constant 9.99999974E-6 : f32
    %356 = vector.broadcast %cst_177 : f32 to vector<16x1xf32>
    %357 = arith.addf %353, %356 : vector<16x1xf32>
    %358 = math.rsqrt %357 : vector<16x1xf32>
    %359 = vector.broadcast %358 : vector<16x1xf32> to vector<16x32xf32>
    %360 = arith.mulf %355, %359 : vector<16x32xf32>
    %361 = vector.broadcast %216 : vector<1x32xf32> to vector<16x32xf32>
    %362 = arith.mulf %360, %361 : vector<16x32xf32>
    %363 = vector.broadcast %218 : vector<1x32xf32> to vector<16x32xf32>
    %364 = arith.addf %362, %363 : vector<16x32xf32>
    %cst_178 = arith.constant dense<0.000000e+00> : vector<16x64xf32>
    %365 = tpu.matmul %364, %220, %cst_178 {dimension_numbers = #tpu.dot_dimension_numbers<[1], [0], [0], [1], [0, 0, 1, 1], [], []>} : vector<16x32xf32>, vector<32x64xf32>, vector<16x64xf32> -> vector<16x64xf32>
    %366 = vector.broadcast %222 : vector<1x64xf32> to vector<16x64xf32>
    %367 = arith.addf %365, %366 : vector<16x64xf32>
    %cst_179 = arith.constant 0.000000e+00 : f32
    %368 = vector.broadcast %cst_179 : f32 to vector<16x64xf32>
    %369 = arith.maximumf %367, %368 : vector<16x64xf32>
    %cst_180 = arith.constant dense<0.000000e+00> : vector<16x32xf32>
    %370 = tpu.matmul %369, %224, %cst_180 {dimension_numbers = #tpu.dot_dimension_numbers<[1], [0], [0], [1], [0, 0, 1, 1], [], []>} : vector<16x64xf32>, vector<64x32xf32>, vector<16x32xf32> -> vector<16x32xf32>
    %371 = vector.broadcast %226 : vector<1x32xf32> to vector<16x32xf32>
    %372 = arith.addf %370, %371 : vector<16x32xf32>
    %373 = arith.addf %364, %372 : vector<16x32xf32>
    %cst_181 = arith.constant dense<0.000000e+00> : vector<16xf32>
    %374 = vector.multi_reduction <add>, %373, %cst_181 [1] : vector<16x32xf32> to vector<16xf32>
    %375 = vector.shape_cast %374 : vector<16xf32> to vector<16x1xf32>
    %cst_182 = arith.constant 3.200000e+01 : f32
    %376 = vector.broadcast %cst_182 : f32 to vector<16x1xf32>
    %377 = arith.divf %375, %376 : vector<16x1xf32>
    %378 = vector.broadcast %377 : vector<16x1xf32> to vector<16x32xf32>
    %379 = arith.subf %373, %378 : vector<16x32xf32>
    %380 = arith.mulf %379, %379 : vector<16x32xf32>
    %cst_183 = arith.constant dense<0.000000e+00> : vector<16xf32>
    %381 = vector.multi_reduction <add>, %380, %cst_183 [1] : vector<16x32xf32> to vector<16xf32>
    %382 = vector.shape_cast %381 : vector<16xf32> to vector<16x1xf32>
    %cst_184 = arith.constant 3.200000e+01 : f32
    %383 = vector.broadcast %cst_184 : f32 to vector<16x1xf32>
    %384 = arith.divf %382, %383 : vector<16x1xf32>
    %385 = vector.broadcast %377 : vector<16x1xf32> to vector<16x32xf32>
    %386 = arith.subf %373, %385 : vector<16x32xf32>
    %cst_185 = arith.constant 9.99999974E-6 : f32
    %387 = vector.broadcast %cst_185 : f32 to vector<16x1xf32>
    %388 = arith.addf %384, %387 : vector<16x1xf32>
    %389 = math.rsqrt %388 : vector<16x1xf32>
    %390 = vector.broadcast %389 : vector<16x1xf32> to vector<16x32xf32>
    %391 = arith.mulf %386, %390 : vector<16x32xf32>
    %392 = vector.broadcast %228 : vector<1x32xf32> to vector<16x32xf32>
    %393 = arith.mulf %391, %392 : vector<16x32xf32>
    %394 = vector.broadcast %230 : vector<1x32xf32> to vector<16x32xf32>
    %395 = arith.addf %393, %394 : vector<16x32xf32>
    %c0_186 = arith.constant 0 : index
    %c2 = arith.constant 2 : index
    %c0_187 = arith.constant 0 : index
    %c0_188 = arith.constant 0 : index
    %396 = vector.load %arg6[%c0_186, %c2, %c0_187, %c0_188] : memref<1x3x32x96xf32, #tpu.memory_space<vmem>>, vector<1x1x32x96xf32>
    %397 = vector.shape_cast %396 : vector<1x1x32x96xf32> to vector<32x96xf32>
    %c0_189 = arith.constant 0 : index
    %c2_190 = arith.constant 2 : index
    %c0_191 = arith.constant 0 : index
    %c0_192 = arith.constant 0 : index
    %398 = vector.load %arg7[%c0_189, %c2_190, %c0_191, %c0_192] : memref<1x3x1x96xf32, #tpu.memory_space<vmem>>, vector<1x1x1x96xf32>
    %399 = vector.shape_cast %398 : vector<1x1x1x96xf32> to vector<1x96xf32>
    %c0_193 = arith.constant 0 : index
    %c2_194 = arith.constant 2 : index
    %c0_195 = arith.constant 0 : index
    %c0_196 = arith.constant 0 : index
    %400 = vector.load %arg8[%c0_193, %c2_194, %c0_195, %c0_196] : memref<1x3x32x32xf32, #tpu.memory_space<vmem>>, vector<1x1x32x32xf32>
    %401 = vector.shape_cast %400 : vector<1x1x32x32xf32> to vector<32x32xf32>
    %c0_197 = arith.constant 0 : index
    %c2_198 = arith.constant 2 : index
    %c0_199 = arith.constant 0 : index
    %c0_200 = arith.constant 0 : index
    %402 = vector.load %arg9[%c0_197, %c2_198, %c0_199, %c0_200] : memref<1x3x1x32xf32, #tpu.memory_space<vmem>>, vector<1x1x1x32xf32>
    %403 = vector.shape_cast %402 : vector<1x1x1x32xf32> to vector<1x32xf32>
    %c0_201 = arith.constant 0 : index
    %c2_202 = arith.constant 2 : index
    %c0_203 = arith.constant 0 : index
    %c0_204 = arith.constant 0 : index
    %404 = vector.load %arg10[%c0_201, %c2_202, %c0_203, %c0_204] : memref<1x3x1x32xf32, #tpu.memory_space<vmem>>, vector<1x1x1x32xf32>
    %405 = vector.shape_cast %404 : vector<1x1x1x32xf32> to vector<1x32xf32>
    %c0_205 = arith.constant 0 : index
    %c2_206 = arith.constant 2 : index
    %c0_207 = arith.constant 0 : index
    %c0_208 = arith.constant 0 : index
    %406 = vector.load %arg11[%c0_205, %c2_206, %c0_207, %c0_208] : memref<1x3x1x32xf32, #tpu.memory_space<vmem>>, vector<1x1x1x32xf32>
    %407 = vector.shape_cast %406 : vector<1x1x1x32xf32> to vector<1x32xf32>
    %c0_209 = arith.constant 0 : index
    %c2_210 = arith.constant 2 : index
    %c0_211 = arith.constant 0 : index
    %c0_212 = arith.constant 0 : index
    %408 = vector.load %arg12[%c0_209, %c2_210, %c0_211, %c0_212] : memref<1x3x32x64xf32, #tpu.memory_space<vmem>>, vector<1x1x32x64xf32>
    %409 = vector.shape_cast %408 : vector<1x1x32x64xf32> to vector<32x64xf32>
    %c0_213 = arith.constant 0 : index
    %c2_214 = arith.constant 2 : index
    %c0_215 = arith.constant 0 : index
    %c0_216 = arith.constant 0 : index
    %410 = vector.load %arg13[%c0_213, %c2_214, %c0_215, %c0_216] : memref<1x3x1x64xf32, #tpu.memory_space<vmem>>, vector<1x1x1x64xf32>
    %411 = vector.shape_cast %410 : vector<1x1x1x64xf32> to vector<1x64xf32>
    %c0_217 = arith.constant 0 : index
    %c2_218 = arith.constant 2 : index
    %c0_219 = arith.constant 0 : index
    %c0_220 = arith.constant 0 : index
    %412 = vector.load %arg14[%c0_217, %c2_218, %c0_219, %c0_220] : memref<1x3x64x32xf32, #tpu.memory_space<vmem>>, vector<1x1x64x32xf32>
    %413 = vector.shape_cast %412 : vector<1x1x64x32xf32> to vector<64x32xf32>
    %c0_221 = arith.constant 0 : index
    %c2_222 = arith.constant 2 : index
    %c0_223 = arith.constant 0 : index
    %c0_224 = arith.constant 0 : index
    %414 = vector.load %arg15[%c0_221, %c2_222, %c0_223, %c0_224] : memref<1x3x1x32xf32, #tpu.memory_space<vmem>>, vector<1x1x1x32xf32>
    %415 = vector.shape_cast %414 : vector<1x1x1x32xf32> to vector<1x32xf32>
    %c0_225 = arith.constant 0 : index
    %c2_226 = arith.constant 2 : index
    %c0_227 = arith.constant 0 : index
    %c0_228 = arith.constant 0 : index
    %416 = vector.load %arg16[%c0_225, %c2_226, %c0_227, %c0_228] : memref<1x3x1x32xf32, #tpu.memory_space<vmem>>, vector<1x1x1x32xf32>
    %417 = vector.shape_cast %416 : vector<1x1x1x32xf32> to vector<1x32xf32>
    %c0_229 = arith.constant 0 : index
    %c2_230 = arith.constant 2 : index
    %c0_231 = arith.constant 0 : index
    %c0_232 = arith.constant 0 : index
    %418 = vector.load %arg17[%c0_229, %c2_230, %c0_231, %c0_232] : memref<1x3x1x32xf32, #tpu.memory_space<vmem>>, vector<1x1x1x32xf32>
    %419 = vector.shape_cast %418 : vector<1x1x1x32xf32> to vector<1x32xf32>
    %cst_233 = arith.constant dense<0.000000e+00> : vector<16x96xf32>
    %420 = tpu.matmul %395, %397, %cst_233 {dimension_numbers = #tpu.dot_dimension_numbers<[1], [0], [0], [1], [0, 0, 1, 1], [], []>} : vector<16x32xf32>, vector<32x96xf32>, vector<16x96xf32> -> vector<16x96xf32>
    %421 = vector.broadcast %399 : vector<1x96xf32> to vector<16x96xf32>
    %422 = arith.addf %420, %421 : vector<16x96xf32>
    %423 = vector.extract_strided_slice %422 {offsets = [0, 0], sizes = [16, 32], strides = [1, 1]} : vector<16x96xf32> to vector<16x32xf32>
    %424 = vector.extract_strided_slice %422 {offsets = [0, 32], sizes = [16, 32], strides = [1, 1]} : vector<16x96xf32> to vector<16x32xf32>
    %425 = vector.extract_strided_slice %422 {offsets = [0, 64], sizes = [16, 32], strides = [1, 1]} : vector<16x96xf32> to vector<16x32xf32>
    %426 = vector.extract_strided_slice %423 {offsets = [0, 0], sizes = [16, 8], strides = [1, 1]} : vector<16x32xf32> to vector<16x8xf32>
    %427 = vector.shape_cast %426 : vector<16x8xf32> to vector<2x8x8xf32>
    %428 = vector.extract_strided_slice %424 {offsets = [0, 0], sizes = [16, 8], strides = [1, 1]} : vector<16x32xf32> to vector<16x8xf32>
    %429 = vector.shape_cast %428 : vector<16x8xf32> to vector<2x8x8xf32>
    %430 = vector.extract_strided_slice %425 {offsets = [0, 0], sizes = [16, 8], strides = [1, 1]} : vector<16x32xf32> to vector<16x8xf32>
    %431 = vector.shape_cast %430 : vector<16x8xf32> to vector<2x8x8xf32>
    "tpu.trace_start"() <{level = 10 : i32, message = "bqd,bkd->bqk"}> : () -> ()
    %cst_234 = arith.constant dense<0.000000e+00> : vector<2x8x8xf32>
    %432 = tpu.matmul %427, %429, %cst_234 {dimension_numbers = #tpu.dot_dimension_numbers<[2], [2], [1], [1], [0, 0, 0, 1, 1, 1], [0], [0]>} : vector<2x8x8xf32>, vector<2x8x8xf32>, vector<2x8x8xf32> -> vector<2x8x8xf32>
    "tpu.trace_stop"() : () -> ()
    %cst_235 = arith.constant 0.353553385 : f32
    %433 = vector.broadcast %cst_235 : f32 to vector<2x8x8xf32>
    %434 = arith.mulf %432, %433 : vector<2x8x8xf32>
    %435 = vector.broadcast %17 : vector<2x1x8xf32> to vector<2x8x8xf32>
    %436 = arith.addf %434, %435 : vector<2x8x8xf32>
    %cst_236 = arith.constant dense<0xFF800000> : vector<2x8xf32>
    %437 = vector.multi_reduction <maximumf>, %436, %cst_236 [2] : vector<2x8x8xf32> to vector<2x8xf32>
    %438 = vector.shape_cast %437 : vector<2x8xf32> to vector<2x8x1xf32>
    %439 = vector.broadcast %438 : vector<2x8x1xf32> to vector<2x8x8xf32>
    %440 = arith.subf %436, %439 : vector<2x8x8xf32>
    %441 = math.exp %440 : vector<2x8x8xf32>
    %cst_237 = arith.constant dense<0.000000e+00> : vector<2x8xf32>
    %442 = vector.multi_reduction <add>, %441, %cst_237 [2] : vector<2x8x8xf32> to vector<2x8xf32>
    %443 = vector.shape_cast %442 : vector<2x8xf32> to vector<2x8x1xf32>
    %444 = tpu.reciprocal %443 {approx = true} : vector<2x8x1xf32> -> vector<2x8x1xf32>
    %445 = vector.broadcast %444 : vector<2x8x1xf32> to vector<2x8x8xf32>
    %446 = arith.mulf %441, %445 : vector<2x8x8xf32>
    "tpu.trace_start"() <{level = 10 : i32, message = "bqk,bkd->bqd"}> : () -> ()
    %cst_238 = arith.constant dense<0.000000e+00> : vector<2x8x8xf32>
    %447 = tpu.matmul %446, %431, %cst_238 {dimension_numbers = #tpu.dot_dimension_numbers<[2], [1], [1], [2], [0, 0, 0, 1, 1, 2], [0], [0]>} : vector<2x8x8xf32>, vector<2x8x8xf32>, vector<2x8x8xf32> -> vector<2x8x8xf32>
    "tpu.trace_stop"() : () -> ()
    %448 = vector.shape_cast %447 : vector<2x8x8xf32> to vector<16x8xf32>
    %449 = vector.extract_strided_slice %401 {offsets = [0, 0], sizes = [8, 32], strides = [1, 1]} : vector<32x32xf32> to vector<8x32xf32>
    %cst_239 = arith.constant dense<0.000000e+00> : vector<16x32xf32>
    %450 = tpu.matmul %448, %449, %cst_239 {dimension_numbers = #tpu.dot_dimension_numbers<[1], [0], [0], [1], [0, 0, 1, 1], [], []>} : vector<16x8xf32>, vector<8x32xf32>, vector<16x32xf32> -> vector<16x32xf32>
    %451 = vector.extract_strided_slice %423 {offsets = [0, 8], sizes = [16, 8], strides = [1, 1]} : vector<16x32xf32> to vector<16x8xf32>
    %452 = vector.shape_cast %451 : vector<16x8xf32> to vector<2x8x8xf32>
    %453 = vector.extract_strided_slice %424 {offsets = [0, 8], sizes = [16, 8], strides = [1, 1]} : vector<16x32xf32> to vector<16x8xf32>
    %454 = vector.shape_cast %453 : vector<16x8xf32> to vector<2x8x8xf32>
    %455 = vector.extract_strided_slice %425 {offsets = [0, 8], sizes = [16, 8], strides = [1, 1]} : vector<16x32xf32> to vector<16x8xf32>
    %456 = vector.shape_cast %455 : vector<16x8xf32> to vector<2x8x8xf32>
    "tpu.trace_start"() <{level = 10 : i32, message = "bqd,bkd->bqk"}> : () -> ()
    %cst_240 = arith.constant dense<0.000000e+00> : vector<2x8x8xf32>
    %457 = tpu.matmul %452, %454, %cst_240 {dimension_numbers = #tpu.dot_dimension_numbers<[2], [2], [1], [1], [0, 0, 0, 1, 1, 1], [0], [0]>} : vector<2x8x8xf32>, vector<2x8x8xf32>, vector<2x8x8xf32> -> vector<2x8x8xf32>
    "tpu.trace_stop"() : () -> ()
    %cst_241 = arith.constant 0.353553385 : f32
    %458 = vector.broadcast %cst_241 : f32 to vector<2x8x8xf32>
    %459 = arith.mulf %457, %458 : vector<2x8x8xf32>
    %460 = vector.broadcast %17 : vector<2x1x8xf32> to vector<2x8x8xf32>
    %461 = arith.addf %459, %460 : vector<2x8x8xf32>
    %cst_242 = arith.constant dense<0xFF800000> : vector<2x8xf32>
    %462 = vector.multi_reduction <maximumf>, %461, %cst_242 [2] : vector<2x8x8xf32> to vector<2x8xf32>
    %463 = vector.shape_cast %462 : vector<2x8xf32> to vector<2x8x1xf32>
    %464 = vector.broadcast %463 : vector<2x8x1xf32> to vector<2x8x8xf32>
    %465 = arith.subf %461, %464 : vector<2x8x8xf32>
    %466 = math.exp %465 : vector<2x8x8xf32>
    %cst_243 = arith.constant dense<0.000000e+00> : vector<2x8xf32>
    %467 = vector.multi_reduction <add>, %466, %cst_243 [2] : vector<2x8x8xf32> to vector<2x8xf32>
    %468 = vector.shape_cast %467 : vector<2x8xf32> to vector<2x8x1xf32>
    %469 = tpu.reciprocal %468 {approx = true} : vector<2x8x1xf32> -> vector<2x8x1xf32>
    %470 = vector.broadcast %469 : vector<2x8x1xf32> to vector<2x8x8xf32>
    %471 = arith.mulf %466, %470 : vector<2x8x8xf32>
    "tpu.trace_start"() <{level = 10 : i32, message = "bqk,bkd->bqd"}> : () -> ()
    %cst_244 = arith.constant dense<0.000000e+00> : vector<2x8x8xf32>
    %472 = tpu.matmul %471, %456, %cst_244 {dimension_numbers = #tpu.dot_dimension_numbers<[2], [1], [1], [2], [0, 0, 0, 1, 1, 2], [0], [0]>} : vector<2x8x8xf32>, vector<2x8x8xf32>, vector<2x8x8xf32> -> vector<2x8x8xf32>
    "tpu.trace_stop"() : () -> ()
    %473 = vector.shape_cast %472 : vector<2x8x8xf32> to vector<16x8xf32>
    %474 = vector.extract_strided_slice %401 {offsets = [8, 0], sizes = [8, 32], strides = [1, 1]} : vector<32x32xf32> to vector<8x32xf32>
    %cst_245 = arith.constant dense<0.000000e+00> : vector<16x32xf32>
    %475 = tpu.matmul %473, %474, %cst_245 {dimension_numbers = #tpu.dot_dimension_numbers<[1], [0], [0], [1], [0, 0, 1, 1], [], []>} : vector<16x8xf32>, vector<8x32xf32>, vector<16x32xf32> -> vector<16x32xf32>
    %476 = arith.addf %450, %475 : vector<16x32xf32>
    %477 = vector.extract_strided_slice %423 {offsets = [0, 16], sizes = [16, 8], strides = [1, 1]} : vector<16x32xf32> to vector<16x8xf32>
    %478 = vector.shape_cast %477 : vector<16x8xf32> to vector<2x8x8xf32>
    %479 = vector.extract_strided_slice %424 {offsets = [0, 16], sizes = [16, 8], strides = [1, 1]} : vector<16x32xf32> to vector<16x8xf32>
    %480 = vector.shape_cast %479 : vector<16x8xf32> to vector<2x8x8xf32>
    %481 = vector.extract_strided_slice %425 {offsets = [0, 16], sizes = [16, 8], strides = [1, 1]} : vector<16x32xf32> to vector<16x8xf32>
    %482 = vector.shape_cast %481 : vector<16x8xf32> to vector<2x8x8xf32>
    "tpu.trace_start"() <{level = 10 : i32, message = "bqd,bkd->bqk"}> : () -> ()
    %cst_246 = arith.constant dense<0.000000e+00> : vector<2x8x8xf32>
    %483 = tpu.matmul %478, %480, %cst_246 {dimension_numbers = #tpu.dot_dimension_numbers<[2], [2], [1], [1], [0, 0, 0, 1, 1, 1], [0], [0]>} : vector<2x8x8xf32>, vector<2x8x8xf32>, vector<2x8x8xf32> -> vector<2x8x8xf32>
    "tpu.trace_stop"() : () -> ()
    %cst_247 = arith.constant 0.353553385 : f32
    %484 = vector.broadcast %cst_247 : f32 to vector<2x8x8xf32>
    %485 = arith.mulf %483, %484 : vector<2x8x8xf32>
    %486 = vector.broadcast %17 : vector<2x1x8xf32> to vector<2x8x8xf32>
    %487 = arith.addf %485, %486 : vector<2x8x8xf32>
    %cst_248 = arith.constant dense<0xFF800000> : vector<2x8xf32>
    %488 = vector.multi_reduction <maximumf>, %487, %cst_248 [2] : vector<2x8x8xf32> to vector<2x8xf32>
    %489 = vector.shape_cast %488 : vector<2x8xf32> to vector<2x8x1xf32>
    %490 = vector.broadcast %489 : vector<2x8x1xf32> to vector<2x8x8xf32>
    %491 = arith.subf %487, %490 : vector<2x8x8xf32>
    %492 = math.exp %491 : vector<2x8x8xf32>
    %cst_249 = arith.constant dense<0.000000e+00> : vector<2x8xf32>
    %493 = vector.multi_reduction <add>, %492, %cst_249 [2] : vector<2x8x8xf32> to vector<2x8xf32>
    %494 = vector.shape_cast %493 : vector<2x8xf32> to vector<2x8x1xf32>
    %495 = tpu.reciprocal %494 {approx = true} : vector<2x8x1xf32> -> vector<2x8x1xf32>
    %496 = vector.broadcast %495 : vector<2x8x1xf32> to vector<2x8x8xf32>
    %497 = arith.mulf %492, %496 : vector<2x8x8xf32>
    "tpu.trace_start"() <{level = 10 : i32, message = "bqk,bkd->bqd"}> : () -> ()
    %cst_250 = arith.constant dense<0.000000e+00> : vector<2x8x8xf32>
    %498 = tpu.matmul %497, %482, %cst_250 {dimension_numbers = #tpu.dot_dimension_numbers<[2], [1], [1], [2], [0, 0, 0, 1, 1, 2], [0], [0]>} : vector<2x8x8xf32>, vector<2x8x8xf32>, vector<2x8x8xf32> -> vector<2x8x8xf32>
    "tpu.trace_stop"() : () -> ()
    %499 = vector.shape_cast %498 : vector<2x8x8xf32> to vector<16x8xf32>
    %500 = vector.extract_strided_slice %401 {offsets = [16, 0], sizes = [8, 32], strides = [1, 1]} : vector<32x32xf32> to vector<8x32xf32>
    %cst_251 = arith.constant dense<0.000000e+00> : vector<16x32xf32>
    %501 = tpu.matmul %499, %500, %cst_251 {dimension_numbers = #tpu.dot_dimension_numbers<[1], [0], [0], [1], [0, 0, 1, 1], [], []>} : vector<16x8xf32>, vector<8x32xf32>, vector<16x32xf32> -> vector<16x32xf32>
    %502 = arith.addf %476, %501 : vector<16x32xf32>
    %503 = vector.extract_strided_slice %423 {offsets = [0, 24], sizes = [16, 8], strides = [1, 1]} : vector<16x32xf32> to vector<16x8xf32>
    %504 = vector.shape_cast %503 : vector<16x8xf32> to vector<2x8x8xf32>
    %505 = vector.extract_strided_slice %424 {offsets = [0, 24], sizes = [16, 8], strides = [1, 1]} : vector<16x32xf32> to vector<16x8xf32>
    %506 = vector.shape_cast %505 : vector<16x8xf32> to vector<2x8x8xf32>
    %507 = vector.extract_strided_slice %425 {offsets = [0, 24], sizes = [16, 8], strides = [1, 1]} : vector<16x32xf32> to vector<16x8xf32>
    %508 = vector.shape_cast %507 : vector<16x8xf32> to vector<2x8x8xf32>
    "tpu.trace_start"() <{level = 10 : i32, message = "bqd,bkd->bqk"}> : () -> ()
    %cst_252 = arith.constant dense<0.000000e+00> : vector<2x8x8xf32>
    %509 = tpu.matmul %504, %506, %cst_252 {dimension_numbers = #tpu.dot_dimension_numbers<[2], [2], [1], [1], [0, 0, 0, 1, 1, 1], [0], [0]>} : vector<2x8x8xf32>, vector<2x8x8xf32>, vector<2x8x8xf32> -> vector<2x8x8xf32>
    "tpu.trace_stop"() : () -> ()
    %cst_253 = arith.constant 0.353553385 : f32
    %510 = vector.broadcast %cst_253 : f32 to vector<2x8x8xf32>
    %511 = arith.mulf %509, %510 : vector<2x8x8xf32>
    %512 = vector.broadcast %17 : vector<2x1x8xf32> to vector<2x8x8xf32>
    %513 = arith.addf %511, %512 : vector<2x8x8xf32>
    %cst_254 = arith.constant dense<0xFF800000> : vector<2x8xf32>
    %514 = vector.multi_reduction <maximumf>, %513, %cst_254 [2] : vector<2x8x8xf32> to vector<2x8xf32>
    %515 = vector.shape_cast %514 : vector<2x8xf32> to vector<2x8x1xf32>
    %516 = vector.broadcast %515 : vector<2x8x1xf32> to vector<2x8x8xf32>
    %517 = arith.subf %513, %516 : vector<2x8x8xf32>
    %518 = math.exp %517 : vector<2x8x8xf32>
    %cst_255 = arith.constant dense<0.000000e+00> : vector<2x8xf32>
    %519 = vector.multi_reduction <add>, %518, %cst_255 [2] : vector<2x8x8xf32> to vector<2x8xf32>
    %520 = vector.shape_cast %519 : vector<2x8xf32> to vector<2x8x1xf32>
    %521 = tpu.reciprocal %520 {approx = true} : vector<2x8x1xf32> -> vector<2x8x1xf32>
    %522 = vector.broadcast %521 : vector<2x8x1xf32> to vector<2x8x8xf32>
    %523 = arith.mulf %518, %522 : vector<2x8x8xf32>
    "tpu.trace_start"() <{level = 10 : i32, message = "bqk,bkd->bqd"}> : () -> ()
    %cst_256 = arith.constant dense<0.000000e+00> : vector<2x8x8xf32>
    %524 = tpu.matmul %523, %508, %cst_256 {dimension_numbers = #tpu.dot_dimension_numbers<[2], [1], [1], [2], [0, 0, 0, 1, 1, 2], [0], [0]>} : vector<2x8x8xf32>, vector<2x8x8xf32>, vector<2x8x8xf32> -> vector<2x8x8xf32>
    "tpu.trace_stop"() : () -> ()
    %525 = vector.shape_cast %524 : vector<2x8x8xf32> to vector<16x8xf32>
    %526 = vector.extract_strided_slice %401 {offsets = [24, 0], sizes = [8, 32], strides = [1, 1]} : vector<32x32xf32> to vector<8x32xf32>
    %cst_257 = arith.constant dense<0.000000e+00> : vector<16x32xf32>
    %527 = tpu.matmul %525, %526, %cst_257 {dimension_numbers = #tpu.dot_dimension_numbers<[1], [0], [0], [1], [0, 0, 1, 1], [], []>} : vector<16x8xf32>, vector<8x32xf32>, vector<16x32xf32> -> vector<16x32xf32>
    %528 = arith.addf %502, %527 : vector<16x32xf32>
    %529 = vector.broadcast %403 : vector<1x32xf32> to vector<16x32xf32>
    %530 = arith.addf %528, %529 : vector<16x32xf32>
    %531 = arith.addf %395, %530 : vector<16x32xf32>
    %cst_258 = arith.constant dense<0.000000e+00> : vector<16xf32>
    %532 = vector.multi_reduction <add>, %531, %cst_258 [1] : vector<16x32xf32> to vector<16xf32>
    %533 = vector.shape_cast %532 : vector<16xf32> to vector<16x1xf32>
    %cst_259 = arith.constant 3.200000e+01 : f32
    %534 = vector.broadcast %cst_259 : f32 to vector<16x1xf32>
    %535 = arith.divf %533, %534 : vector<16x1xf32>
    %536 = vector.broadcast %535 : vector<16x1xf32> to vector<16x32xf32>
    %537 = arith.subf %531, %536 : vector<16x32xf32>
    %538 = arith.mulf %537, %537 : vector<16x32xf32>
    %cst_260 = arith.constant dense<0.000000e+00> : vector<16xf32>
    %539 = vector.multi_reduction <add>, %538, %cst_260 [1] : vector<16x32xf32> to vector<16xf32>
    %540 = vector.shape_cast %539 : vector<16xf32> to vector<16x1xf32>
    %cst_261 = arith.constant 3.200000e+01 : f32
    %541 = vector.broadcast %cst_261 : f32 to vector<16x1xf32>
    %542 = arith.divf %540, %541 : vector<16x1xf32>
    %543 = vector.broadcast %535 : vector<16x1xf32> to vector<16x32xf32>
    %544 = arith.subf %531, %543 : vector<16x32xf32>
    %cst_262 = arith.constant 9.99999974E-6 : f32
    %545 = vector.broadcast %cst_262 : f32 to vector<16x1xf32>
    %546 = arith.addf %542, %545 : vector<16x1xf32>
    %547 = math.rsqrt %546 : vector<16x1xf32>
    %548 = vector.broadcast %547 : vector<16x1xf32> to vector<16x32xf32>
    %549 = arith.mulf %544, %548 : vector<16x32xf32>
    %550 = vector.broadcast %405 : vector<1x32xf32> to vector<16x32xf32>
    %551 = arith.mulf %549, %550 : vector<16x32xf32>
    %552 = vector.broadcast %407 : vector<1x32xf32> to vector<16x32xf32>
    %553 = arith.addf %551, %552 : vector<16x32xf32>
    %cst_263 = arith.constant dense<0.000000e+00> : vector<16x64xf32>
    %554 = tpu.matmul %553, %409, %cst_263 {dimension_numbers = #tpu.dot_dimension_numbers<[1], [0], [0], [1], [0, 0, 1, 1], [], []>} : vector<16x32xf32>, vector<32x64xf32>, vector<16x64xf32> -> vector<16x64xf32>
    %555 = vector.broadcast %411 : vector<1x64xf32> to vector<16x64xf32>
    %556 = arith.addf %554, %555 : vector<16x64xf32>
    %cst_264 = arith.constant 0.000000e+00 : f32
    %557 = vector.broadcast %cst_264 : f32 to vector<16x64xf32>
    %558 = arith.maximumf %556, %557 : vector<16x64xf32>
    %cst_265 = arith.constant dense<0.000000e+00> : vector<16x32xf32>
    %559 = tpu.matmul %558, %413, %cst_265 {dimension_numbers = #tpu.dot_dimension_numbers<[1], [0], [0], [1], [0, 0, 1, 1], [], []>} : vector<16x64xf32>, vector<64x32xf32>, vector<16x32xf32> -> vector<16x32xf32>
    %560 = vector.broadcast %415 : vector<1x32xf32> to vector<16x32xf32>
    %561 = arith.addf %559, %560 : vector<16x32xf32>
    %562 = arith.addf %553, %561 : vector<16x32xf32>
    %cst_266 = arith.constant dense<0.000000e+00> : vector<16xf32>
    %563 = vector.multi_reduction <add>, %562, %cst_266 [1] : vector<16x32xf32> to vector<16xf32>
    %564 = vector.shape_cast %563 : vector<16xf32> to vector<16x1xf32>
    %cst_267 = arith.constant 3.200000e+01 : f32
    %565 = vector.broadcast %cst_267 : f32 to vector<16x1xf32>
    %566 = arith.divf %564, %565 : vector<16x1xf32>
    %567 = vector.broadcast %566 : vector<16x1xf32> to vector<16x32xf32>
    %568 = arith.subf %562, %567 : vector<16x32xf32>
    %569 = arith.mulf %568, %568 : vector<16x32xf32>
    %cst_268 = arith.constant dense<0.000000e+00> : vector<16xf32>
    %570 = vector.multi_reduction <add>, %569, %cst_268 [1] : vector<16x32xf32> to vector<16xf32>
    %571 = vector.shape_cast %570 : vector<16xf32> to vector<16x1xf32>
    %cst_269 = arith.constant 3.200000e+01 : f32
    %572 = vector.broadcast %cst_269 : f32 to vector<16x1xf32>
    %573 = arith.divf %571, %572 : vector<16x1xf32>
    %574 = vector.broadcast %566 : vector<16x1xf32> to vector<16x32xf32>
    %575 = arith.subf %562, %574 : vector<16x32xf32>
    %cst_270 = arith.constant 9.99999974E-6 : f32
    %576 = vector.broadcast %cst_270 : f32 to vector<16x1xf32>
    %577 = arith.addf %573, %576 : vector<16x1xf32>
    %578 = math.rsqrt %577 : vector<16x1xf32>
    %579 = vector.broadcast %578 : vector<16x1xf32> to vector<16x32xf32>
    %580 = arith.mulf %575, %579 : vector<16x32xf32>
    %581 = vector.broadcast %417 : vector<1x32xf32> to vector<16x32xf32>
    %582 = arith.mulf %580, %581 : vector<16x32xf32>
    %583 = vector.broadcast %419 : vector<1x32xf32> to vector<16x32xf32>
    %584 = arith.addf %582, %583 : vector<16x32xf32>
    %585 = vector.shape_cast %584 : vector<16x32xf32> to vector<2x8x32xf32>
    %c0_271 = arith.constant 0 : index
    %c0_272 = arith.constant 0 : index
    %c0_273 = arith.constant 0 : index
    %c0_274 = arith.constant 0 : index
    %586 = vector.load %arg18[%c0_271, %c0_272, %c0_273, %c0_274] : memref<1x2x8x32xf32, #tpu.memory_space<vmem>>, vector<1x2x8x32xf32>
    %587 = vector.shape_cast %586 : vector<1x2x8x32xf32> to vector<2x8x32xf32>
    %588 = vector.shape_cast %585 : vector<2x8x32xf32> to vector<1x2x8x32xf32>
    tpu.vector_store %arg18[%c0_271, %c0_272, %c0_273, %c0_274], %588 {strides = array<i32>} : memref<1x2x8x32xf32, #tpu.memory_space<vmem>>, vector<1x2x8x32xf32>,
    return
  }
  func.func @transform_0(%arg0: i32) -> (i32, i32, i32, i32) {
    %c0_i32 = arith.constant 0 : i32
    %c0_i32_0 = arith.constant 0 : i32
    %c0_i32_1 = arith.constant 0 : i32
    %c0_i32_2 = arith.constant 0 : i32
    return %arg0, %c0_i32, %c0_i32_0, %c0_i32_1 : i32, i32, i32, i32
  }
  func.func @transform_1(%arg0: i32) -> (i32, i32, i32, i32) {
    %c0_i32 = arith.constant 0 : i32
    %c0_i32_0 = arith.constant 0 : i32
    %c0_i32_1 = arith.constant 0 : i32
    %c0_i32_2 = arith.constant 0 : i32
    return %arg0, %c0_i32, %c0_i32_0, %c0_i32_1 : i32, i32, i32, i32
  }
  func.func @transform_2(%arg0: i32) -> (i32, i32, i32) {
    %c0_i32 = arith.constant 0 : i32
    %c0_i32_0 = arith.constant 0 : i32
    %c0_i32_1 = arith.constant 0 : i32
    return %arg0, %c0_i32, %c0_i32_0 : i32, i32, i32
  }
  func.func @transform_3(%arg0: i32) -> (i32, i32, i32) {
    %c0_i32 = arith.constant 0 : i32
    %c0_i32_0 = arith.constant 0 : i32
    %c0_i32_1 = arith.constant 0 : i32
    return %arg0, %c0_i32, %c0_i32_0 : i32, i32, i32
  }
  func.func @transform_4(%arg0: i32) -> (i32, i32) {
    %c0_i32 = arith.constant 0 : i32
    %c0_i32_0 = arith.constant 0 : i32
    %c0_i32_1 = arith.constant 0 : i32
    return %c0_i32, %c0_i32_0 : i32, i32
  }
  func.func @transform_5(%arg0: i32) -> (i32, i32, i32, i32) {
    %c0_i32 = arith.constant 0 : i32
    %c0_i32_0 = arith.constant 0 : i32
    %c0_i32_1 = arith.constant 0 : i32
    %c0_i32_2 = arith.constant 0 : i32
    return %arg0, %c0_i32, %c0_i32_0, %c0_i32_1 : i32, i32, i32, i32
  }
  func.func @transform_6(%arg0: i32) -> (i32, i32, i32, i32) {
    %c0_i32 = arith.constant 0 : i32
    %c0_i32_0 = arith.constant 0 : i32
    %c0_i32_1 = arith.constant 0 : i32
    %c0_i32_2 = arith.constant 0 : i32
    return %arg0, %c0_i32, %c0_i32_0, %c0_i32_1 : i32, i32, i32, i32
  }
  func.func @transform_7(%arg0: i32) -> (i32, i32, i32, i32) {
    %c0_i32 = arith.constant 0 : i32
    %c0_i32_0 = arith.constant 0 : i32
    %c0_i32_1 = arith.constant 0 : i32
    %c0_i32_2 = arith.constant 0 : i32
    return %arg0, %c0_i32, %c0_i32_0, %c0_i32_1 : i32, i32, i32, i32
  }
  func.func @transform_8(%arg0: i32) -> (i32, i32, i32, i32) {
    %c0_i32 = arith.constant 0 : i32
    %c0_i32_0 = arith.constant 0 : i32
    %c0_i32_1 = arith.constant 0 : i32
    %c0_i32_2 = arith.constant 0 : i32
    return %arg0, %c0_i32, %c0_i32_0, %c0_i32_1 : i32, i32, i32, i32
  }
  func.func @transform_9(%arg0: i32) -> (i32, i32, i32, i32) {
    %c0_i32 = arith.constant 0 : i32
    %c0_i32_0 = arith.constant 0 : i32
    %c0_i32_1 = arith.constant 0 : i32
    %c0_i32_2 = arith.constant 0 : i32
    return %arg0, %c0_i32, %c0_i32_0, %c0_i32_1 : i32, i32, i32, i32
  }
  func.func @transform_10(%arg0: i32) -> (i32, i32, i32, i32) {
    %c0_i32 = arith.constant 0 : i32
    %c0_i32_0 = arith.constant 0 : i32
    %c0_i32_1 = arith.constant 0 : i32
    %c0_i32_2 = arith.constant 0 : i32
    return %arg0, %c0_i32, %c0_i32_0, %c0_i32_1 : i32, i32, i32, i32
  }
  func.func @transform_11(%arg0: i32) -> (i32, i32, i32, i32) {
    %c0_i32 = arith.constant 0 : i32
    %c0_i32_0 = arith.constant 0 : i32
    %c0_i32_1 = arith.constant 0 : i32
    %c0_i32_2 = arith.constant 0 : i32
    return %arg0, %c0_i32, %c0_i32_0, %c0_i32_1 : i32, i32, i32, i32
  }
  func.func @transform_12(%arg0: i32) -> (i32, i32, i32, i32) {
    %c0_i32 = arith.constant 0 : i32
    %c0_i32_0 = arith.constant 0 : i32
    %c0_i32_1 = arith.constant 0 : i32
    %c0_i32_2 = arith.constant 0 : i32
    return %arg0, %c0_i32, %c0_i32_0, %c0_i32_1 : i32, i32, i32, i32
  }
  func.func @transform_13(%arg0: i32) -> (i32, i32, i32, i32) {
    %c0_i32 = arith.constant 0 : i32
    %c0_i32_0 = arith.constant 0 : i32
    %c0_i32_1 = arith.constant 0 : i32
    %c0_i32_2 = arith.constant 0 : i32
    return %arg0, %c0_i32, %c0_i32_0, %c0_i32_1 : i32, i32, i32, i32
  }
  func.func @transform_14(%arg0: i32) -> (i32, i32, i32, i32) {
    %c0_i32 = arith.constant 0 : i32
    %c0_i32_0 = arith.constant 0 : i32
    %c0_i32_1 = arith.constant 0 : i32
    %c0_i32_2 = arith.constant 0 : i32
    return %arg0, %c0_i32, %c0_i32_0, %c0_i32_1 : i32, i32, i32, i32
  }
  func.func @transform_15(%arg0: i32) -> (i32, i32, i32, i32) {
    %c0_i32 = arith.constant 0 : i32
    %c0_i32_0 = arith.constant 0 : i32
    %c0_i32_1 = arith.constant 0 : i32
    %c0_i32_2 = arith.constant 0 : i32
    return %arg0, %c0_i32, %c0_i32_0, %c0_i32_1 : i32, i32, i32, i32
  }
  func.func @transform_16(%arg0: i32) -> (i32, i32, i32, i32) {
    %c0_i32 = arith.constant 0 : i32
    %c0_i32_0 = arith.constant 0 : i32
    %c0_i32_1 = arith.constant 0 : i32
    %c0_i32_2 = arith.constant 0 : i32
    return %arg0, %c0_i32, %c0_i32_0, %c0_i32_1 : i32, i32, i32, i32
  }
  func.func @transform_17(%arg0: i32) -> (i32, i32, i32, i32) {
    %c0_i32 = arith.constant 0 : i32
    %c0_i32_0 = arith.constant 0 : i32
    %c0_i32_1 = arith.constant 0 : i32
    %c0_i32_2 = arith.constant 0 : i32
    return %arg0, %c0_i32, %c0_i32_0, %c0_i32_1 : i32, i32, i32, i32
  }
}

</mosaic_0001>

<llo_original>
// kernel: tpu_custom_call.1
$region0: #{tpu_custom_call.1}
  #allocation0 [shape = 'u32[]', space=smem, size = 0x4, offset = 0x4, fixed_abs, tag = 'smem constant byte address 0x4 - core index']
  #allocation1 [shape = 'u32[144,128]{1,0:T(1,128)}', space=vmem, size = 0x12000, scoped, tag = 'internal scratch']
  %s0 = inlined_call_operand.hbm [shape: f32[2,2,8,8], index: 0, kind: input, shape index: {}]
  %s1 = inlined_call_operand.hbm [shape: f32[2,2,1,8], index: 1, kind: input, shape index: {}]
  %s2 = inlined_call_operand.hbm [shape: f32[2,8,32], index: 2, kind: input, shape index: {}]
  %s3 = inlined_call_operand.hbm [shape: f32[2,1,32], index: 3, kind: input, shape index: {}]
  %s4 = inlined_call_operand.vmem [shape: f32[8,32], index: 4, kind: input, shape index: {}]
  %s5 = inlined_call_operand.vmem [shape: f32[2,3,32,96], index: 5, kind: input, shape index: {}]
  %s6 = inlined_call_operand.vmem [shape: f32[2,3,1,96], index: 6, kind: input, shape index: {}]
  %s7 = inlined_call_operand.vmem [shape: f32[2,3,32,32], index: 7, kind: input, shape index: {}]
  %s8 = inlined_call_operand.vmem [shape: f32[2,3,1,32], index: 8, kind: input, shape index: {}]
  %s9 = inlined_call_operand.vmem [shape: f32[2,3,1,32], index: 9, kind: input, shape index: {}]
  %s10 = inlined_call_operand.vmem [shape: f32[2,3,1,32], index: 10, kind: input, shape index: {}]
  %s11 = inlined_call_operand.vmem [shape: f32[2,3,32,64], index: 11, kind: input, shape index: {}]
  %s12 = inlined_call_operand.vmem [shape: f32[2,3,1,64], index: 12, kind: input, shape index: {}]
  %s13 = inlined_call_operand.vmem [shape: f32[2,3,64,32], index: 13, kind: input, shape index: {}]
  %s14 = inlined_call_operand.vmem [shape: f32[2,3,1,32], index: 14, kind: input, shape index: {}]
  %s15 = inlined_call_operand.vmem [shape: f32[2,3,1,32], index: 15, kind: input, shape index: {}]
  %s16 = inlined_call_operand.vmem [shape: f32[2,3,1,32], index: 16, kind: input, shape index: {}]
  %s17 = inlined_call_operand.hbm [shape: f32[2,2,8,32], index: 17, kind: output, shape index: {}]
  %s18 = sld [smem:[#allocation0]]
  $region117: #{tpu_custom_call.1} parent=0
    _
  %s20 = ssub.s32 1, %s18
  %s21 = scalar_select 0, %s20, %s18
  $region1: #{tpu_custom_call.1} parent=0
    #allocation2 [shape = 'u8[16384]{0}', space=vmem, size = 0x4000, scoped, tag = 'input window, operand 0']
    #allocation3 [shape = 's32[2]{0}', space=sflag, size = 0x8, scoped, tag = 'scoped memory for tpu_custom_call.1']
    #allocation4 [shape = 's32[2]{0}', space=sflag, size = 0x8, scoped, tag = 'scoped memory for tpu_custom_call.1']
    #allocation5 [shape = 'u8[2048]{0}', space=vmem, size = 0x800, scoped, tag = 'input window, operand 1']
    #allocation6 [shape = 's32[2]{0}', space=sflag, size = 0x8, scoped, tag = 'scoped memory for tpu_custom_call.1']
    #allocation7 [shape = 'u8[8192]{0}', space=vmem, size = 0x2000, scoped, tag = 'input window, operand 2']
    #allocation8 [shape = 'u8[1024]{0}', space=vmem, size = 0x400, scoped, tag = 'input window, operand 3']
    #allocation9 [shape = 's32[2]{0}', space=sflag, size = 0x8, scoped, tag = 'scoped memory for tpu_custom_call.1']
    #allocation10 [shape = 'u8[16384]{0}', space=vmem, size = 0x4000, scoped, tag = 'output window, operand 0']
    %22 = vsyncpa [#allocation3], 0
    %s23 = scalar_lea.sflag [#allocation3], 1
    %24 = vsyncpa %s23, 0
    %25 = vsyncpa [#allocation6], 0
    %s26 = scalar_lea.sflag [#allocation6], 1
    %27 = vsyncpa %s26, 0
    %28 = vsyncpa [#allocation9], 0
    %s29 = scalar_lea.sflag [#allocation9], 1
    %30 = vsyncpa %s29, 0
    %31 = vsyncpa [#allocation4], 0
    %s32 = scalar_lea.sflag [#allocation4], 1
    %33 = vsyncpa %s32, 0
    loop: start=0, step=1, limit=4
    $region2: #{tpu_custom_call.1} parent=1 // loop_pre_header
      _
    $region3: #{tpu_custom_call.1} parent=1 // loop_header
      %s35 = sphi 0, %s39
      %p36 = scmp.ge.s32.totalorder %s35, 4
      %s45 = sphi 0, %s47
      %s48 = sphi 0, %s45
      %s49 = sphi 0, %s48
      %s65 = sphi 0, %s49
      %s71 = sphi 0, %s73
      %s74 = sphi 0, %s71
      %s75 = sphi 0, %s74
      %s91 = sphi 0, %s75
      %s97 = sphi 0, %s99
      %s100 = sphi 0, %s97
      %s101 = sphi 0, %s100
      %s117 = sphi 0, %s101
      %s123 = sphi 0, %s125
      %s126 = sphi 0, %s123
      %s127 = sphi 0, %s126
      %s143 = sphi 0, %s127
      %s147 = sphi 0, %s147
      %s149 = sphi 0, %s147
      %s150 = sphi 0, %s149
      %s164 = sphi 0, %s150
      %s170 = sphi 0, %s172
      %s173 = sphi 0, %s170
      %s174 = sphi 0, %s173
      %s190 = sphi 0, %s174
      %s196 = sphi 0, %s198
      %s199 = sphi 0, %s196
      %s200 = sphi 0, %s199
      %s216 = sphi 0, %s200
      %s222 = sphi 0, %s224
      %s225 = sphi 0, %s222
      %s226 = sphi 0, %s225
      %s242 = sphi 0, %s226
      %s248 = sphi 0, %s250
      %s251 = sphi 0, %s248
      %s252 = sphi 0, %s251
      %s268 = sphi 0, %s252
      %s274 = sphi 0, %s276
      %s277 = sphi 0, %s274
      %s278 = sphi 0, %s277
      %s294 = sphi 0, %s278
      %s300 = sphi 0, %s302
      %s303 = sphi 0, %s300
      %s304 = sphi 0, %s303
      %s320 = sphi 0, %s304
      %s326 = sphi 0, %s328
      %s329 = sphi 0, %s326
      %s330 = sphi 0, %s329
      %s346 = sphi 0, %s330
      %s352 = sphi 0, %s354
      %s355 = sphi 0, %s352
      %s356 = sphi 0, %s355
      %s372 = sphi 0, %s356
      %s378 = sphi 0, %s380
      %s381 = sphi 0, %s378
      %s382 = sphi 0, %s381
      %s398 = sphi 0, %s382
      %s404 = sphi 0, %s406
      %s407 = sphi 0, %s404
      %s408 = sphi 0, %s407
      %s424 = sphi 0, %s408
      %s430 = sphi 0, %s432
      %s433 = sphi 0, %s430
      %s434 = sphi 0, %s433
      %s450 = sphi 0, %s434
      %s456 = sphi 0, %s458
      %s459 = sphi 0, %s456
      %s460 = sphi 0, %s459
      %s476 = sphi 0, %s460
      %s482 = sphi 0, %s484
      %s485 = sphi 0, %s482
      %s486 = sphi 0, %s485
      %s502 = sphi 0, %s486
    $region4: #{tpu_custom_call.1} parent=1 // loop_header_branch
      %38 = sbr.rel (%p36) target = $region8
    $region5: #{tpu_custom_call.1} parent=1 // loop_body
      %s40 = ssub.s32 %s35, 1
      %s41 = ssub.s32 %s35, 2
      %s42 = sadd.s32 %s35, 1
      %s43 = ssub.s32 %s35, %s42
      %p44 = scmp.eq.s32.totalorder %s43, 0
      %s46 = sadd.s32 %s45, 1
      %s47 = scalar_select %p44, %s45, %s46
      %p50 = pneg %p44
      %p51 = scmp.eq.s32.totalorder %s35, 1
      %p52 = por %p50, %p51
      %p53 = scmp.ne.s32.totalorder %s45, %s48
      %p54 = scmp.eq.s32.totalorder %s35, 0
      %p55 = por %p53, %p54
      %p56 = scmp.ne.s32.totalorder %s45, %s48
      %p57 = scmp.eq.s32.totalorder %s40, 1
      %p58 = por %p56, %p57
      %p59 = scmp.ne.s32.totalorder %s48, %s49
      %p60 = scmp.eq.s32.totalorder %s40, 0
      %p61 = por %p59, %p60
      %p62 = scmp.ne.s32.totalorder %s48, %s49
      %p63 = scmp.eq.s32.totalorder %s41, 1
      %p64 = por %p62, %p63
      %p66 = scmp.ne.s32.totalorder %s49, %s65
      %p67 = scmp.eq.s32.totalorder %s41, 0
      %p68 = por %p66, %p67
      %s69 = ssub.s32 %s35, %s42
      %p70 = scmp.eq.s32.totalorder %s69, 0
      %s72 = sadd.s32 %s71, 1
      %s73 = scalar_select %p70, %s71, %s72
      %p76 = pneg %p70
      %p77 = scmp.eq.s32.totalorder %s35, 1
      %p78 = por %p76, %p77
      %p79 = scmp.ne.s32.totalorder %s71, %s74
      %p80 = scmp.eq.s32.totalorder %s35, 0
      %p81 = por %p79, %p80
      %p82 = scmp.ne.s32.totalorder %s71, %s74
      %p83 = scmp.eq.s32.totalorder %s40, 1
      %p84 = por %p82, %p83
      %p85 = scmp.ne.s32.totalorder %s74, %s75
      %p86 = scmp.eq.s32.totalorder %s40, 0
      %p87 = por %p85, %p86
      %p88 = scmp.ne.s32.totalorder %s74, %s75
      %p89 = scmp.eq.s32.totalorder %s41, 1
      %p90 = por %p88, %p89
      %p92 = scmp.ne.s32.totalorder %s75, %s91
      %p93 = scmp.eq.s32.totalorder %s41, 0
      %p94 = por %p92, %p93
      %s95 = ssub.s32 %s35, %s42
      %p96 = scmp.eq.s32.totalorder %s95, 0
      %s98 = sadd.s32 %s97, 1
      %s99 = scalar_select %p96, %s97, %s98
      %p102 = pneg %p96
      %p103 = scmp.eq.s32.totalorder %s35, 1
      %p104 = por %p102, %p103
      %p105 = scmp.ne.s32.totalorder %s97, %s100
      %p106 = scmp.eq.s32.totalorder %s35, 0
      %p107 = por %p105, %p106
      %p108 = scmp.ne.s32.totalorder %s97, %s100
      %p109 = scmp.eq.s32.totalorder %s40, 1
      %p110 = por %p108, %p109
      %p111 = scmp.ne.s32.totalorder %s100, %s101
      %p112 = scmp.eq.s32.totalorder %s40, 0
      %p113 = por %p111, %p112
      %p114 = scmp.ne.s32.totalorder %s100, %s101
      %p115 = scmp.eq.s32.totalorder %s41, 1
      %p116 = por %p114, %p115
      %p118 = scmp.ne.s32.totalorder %s101, %s117
      %p119 = scmp.eq.s32.totalorder %s41, 0
      %p120 = por %p118, %p119
      %s121 = ssub.s32 %s35, %s42
      %p122 = scmp.eq.s32.totalorder %s121, 0
      %s124 = sadd.s32 %s123, 1
      %s125 = scalar_select %p122, %s123, %s124
      %p128 = pneg %p122
      %p129 = scmp.eq.s32.totalorder %s35, 1
      %p130 = por %p128, %p129
      %p131 = scmp.ne.s32.totalorder %s123, %s126
      %p132 = scmp.eq.s32.totalorder %s35, 0
      %p133 = por %p131, %p132
      %p134 = scmp.ne.s32.totalorder %s123, %s126
      %p135 = scmp.eq.s32.totalorder %s40, 1
      %p136 = por %p134, %p135
      %p137 = scmp.ne.s32.totalorder %s126, %s127
      %p138 = scmp.eq.s32.totalorder %s40, 0
      %p139 = por %p137, %p138
      %p140 = scmp.ne.s32.totalorder %s126, %s127
      %p141 = scmp.eq.s32.totalorder %s41, 1
      %p142 = por %p140, %p141
      %p144 = scmp.ne.s32.totalorder %s127, %s143
      %p145 = scmp.eq.s32.totalorder %s41, 0
      %p146 = por %p144, %p145
      %s148 = sadd.s32 %s147, 1
      %p151 = scmp.eq.s32.totalorder %s35, 1
      %p152 = scmp.ne.s32.totalorder %s147, %s149
      %p153 = scmp.eq.s32.totalorder %s35, 0
      %p154 = por %p152, %p153
      %p155 = scmp.ne.s32.totalorder %s147, %s149
      %p156 = scmp.eq.s32.totalorder %s40, 1
      %p157 = por %p155, %p156
      %p158 = scmp.ne.s32.totalorder %s149, %s150
      %p159 = scmp.eq.s32.totalorder %s40, 0
      %p160 = por %p158, %p159
      %p161 = scmp.ne.s32.totalorder %s149, %s150
      %p162 = scmp.eq.s32.totalorder %s41, 1
      %p163 = por %p161, %p162
      %p165 = scmp.ne.s32.totalorder %s150, %s164
      %p166 = scmp.eq.s32.totalorder %s41, 0
      %p167 = por %p165, %p166
      %s168 = ssub.s32 %s35, %s42
      %p169 = scmp.eq.s32.totalorder %s168, 0
      %s171 = sadd.s32 %s170, 1
      %s172 = scalar_select %p169, %s170, %s171
      %p175 = pneg %p169
      %p176 = scmp.eq.s32.totalorder %s35, 1
      %p177 = por %p175, %p176
      %p178 = scmp.ne.s32.totalorder %s170, %s173
      %p179 = scmp.eq.s32.totalorder %s35, 0
      %p180 = por %p178, %p179
      %p181 = scmp.ne.s32.totalorder %s170, %s173
      %p182 = scmp.eq.s32.totalorder %s40, 1
      %p183 = por %p181, %p182
      %p184 = scmp.ne.s32.totalorder %s173, %s174
      %p185 = scmp.eq.s32.totalorder %s40, 0
      %p186 = por %p184, %p185
      %p187 = scmp.ne.s32.totalorder %s173, %s174
      %p188 = scmp.eq.s32.totalorder %s41, 1
      %p189 = por %p187, %p188
      %p191 = scmp.ne.s32.totalorder %s174, %s190
      %p192 = scmp.eq.s32.totalorder %s41, 0
      %p193 = por %p191, %p192
      %s194 = ssub.s32 %s35, %s42
      %p195 = scmp.eq.s32.totalorder %s194, 0
      %s197 = sadd.s32 %s196, 1
      %s198 = scalar_select %p195, %s196, %s197
      %p201 = pneg %p195
      %p202 = scmp.eq.s32.totalorder %s35, 1
      %p203 = por %p201, %p202
      %p204 = scmp.ne.s32.totalorder %s196, %s199
      %p205 = scmp.eq.s32.totalorder %s35, 0
      %p206 = por %p204, %p205
      %p207 = scmp.ne.s32.totalorder %s196, %s199
      %p208 = scmp.eq.s32.totalorder %s40, 1
      %p209 = por %p207, %p208
      %p210 = scmp.ne.s32.totalorder %s199, %s200
      %p211 = scmp.eq.s32.totalorder %s40, 0
      %p212 = por %p210, %p211
      %p213 = scmp.ne.s32.totalorder %s199, %s200
      %p214 = scmp.eq.s32.totalorder %s41, 1
      %p215 = por %p213, %p214
      %p217 = scmp.ne.s32.totalorder %s200, %s216
      %p218 = scmp.eq.s32.totalorder %s41, 0
      %p219 = por %p217, %p218
      %s220 = ssub.s32 %s35, %s42
      %p221 = scmp.eq.s32.totalorder %s220, 0
      %s223 = sadd.s32 %s222, 1
      %s224 = scalar_select %p221, %s222, %s223
      %p227 = pneg %p221
      %p228 = scmp.eq.s32.totalorder %s35, 1
      %p229 = por %p227, %p228
      %p230 = scmp.ne.s32.totalorder %s222, %s225
      %p231 = scmp.eq.s32.totalorder %s35, 0
      %p232 = por %p230, %p231
      %p233 = scmp.ne.s32.totalorder %s222, %s225
      %p234 = scmp.eq.s32.totalorder %s40, 1
      %p235 = por %p233, %p234
      %p236 = scmp.ne.s32.totalorder %s225, %s226
      %p237 = scmp.eq.s32.totalorder %s40, 0
      %p238 = por %p236, %p237
      %p239 = scmp.ne.s32.totalorder %s225, %s226
      %p240 = scmp.eq.s32.totalorder %s41, 1
      %p241 = por %p239, %p240
      %p243 = scmp.ne.s32.totalorder %s226, %s242
      %p244 = scmp.eq.s32.totalorder %s41, 0
      %p245 = por %p243, %p244
      %s246 = ssub.s32 %s35, %s42
      %p247 = scmp.eq.s32.totalorder %s246, 0
      %s249 = sadd.s32 %s248, 1
      %s250 = scalar_select %p247, %s248, %s249
      %p253 = pneg %p247
      %p254 = scmp.eq.s32.totalorder %s35, 1
      %p255 = por %p253, %p254
      %p256 = scmp.ne.s32.totalorder %s248, %s251
      %p257 = scmp.eq.s32.totalorder %s35, 0
      %p258 = por %p256, %p257
      %p259 = scmp.ne.s32.totalorder %s248, %s251
      %p260 = scmp.eq.s32.totalorder %s40, 1
      %p261 = por %p259, %p260
      %p262 = scmp.ne.s32.totalorder %s251, %s252
      %p263 = scmp.eq.s32.totalorder %s40, 0
      %p264 = por %p262, %p263
      %p265 = scmp.ne.s32.totalorder %s251, %s252
      %p266 = scmp.eq.s32.totalorder %s41, 1
      %p267 = por %p265, %p266
      %p269 = scmp.ne.s32.totalorder %s252, %s268
      %p270 = scmp.eq.s32.totalorder %s41, 0
      %p271 = por %p269, %p270
      %s272 = ssub.s32 %s35, %s42
      %p273 = scmp.eq.s32.totalorder %s272, 0
      %s275 = sadd.s32 %s274, 1
      %s276 = scalar_select %p273, %s274, %s275
      %p279 = pneg %p273
      %p280 = scmp.eq.s32.totalorder %s35, 1
      %p281 = por %p279, %p280
      %p282 = scmp.ne.s32.totalorder %s274, %s277
      %p283 = scmp.eq.s32.totalorder %s35, 0
      %p284 = por %p282, %p283
      %p285 = scmp.ne.s32.totalorder %s274, %s277
      %p286 = scmp.eq.s32.totalorder %s40, 1
      %p287 = por %p285, %p286
      %p288 = scmp.ne.s32.totalorder %s277, %s278
      %p289 = scmp.eq.s32.totalorder %s40, 0
      %p290 = por %p288, %p289
      %p291 = scmp.ne.s32.totalorder %s277, %s278
      %p292 = scmp.eq.s32.totalorder %s41, 1
      %p293 = por %p291, %p292
      %p295 = scmp.ne.s32.totalorder %s278, %s294
      %p296 = scmp.eq.s32.totalorder %s41, 0
      %p297 = por %p295, %p296
      %s298 = ssub.s32 %s35, %s42
      %p299 = scmp.eq.s32.totalorder %s298, 0
      %s301 = sadd.s32 %s300, 1
      %s302 = scalar_select %p299, %s300, %s301
      %p305 = pneg %p299
      %p306 = scmp.eq.s32.totalorder %s35, 1
      %p307 = por %p305, %p306
      %p308 = scmp.ne.s32.totalorder %s300, %s303
      %p309 = scmp.eq.s32.totalorder %s35, 0
      %p310 = por %p308, %p309
      %p311 = scmp.ne.s32.totalorder %s300, %s303
      %p312 = scmp.eq.s32.totalorder %s40, 1
      %p313 = por %p311, %p312
      %p314 = scmp.ne.s32.totalorder %s303, %s304
      %p315 = scmp.eq.s32.totalorder %s40, 0
      %p316 = por %p314, %p315
      %p317 = scmp.ne.s32.totalorder %s303, %s304
      %p318 = scmp.eq.s32.totalorder %s41, 1
      %p319 = por %p317, %p318
      %p321 = scmp.ne.s32.totalorder %s304, %s320
      %p322 = scmp.eq.s32.totalorder %s41, 0
      %p323 = por %p321, %p322
      %s324 = ssub.s32 %s35, %s42
      %p325 = scmp.eq.s32.totalorder %s324, 0
      %s327 = sadd.s32 %s326, 1
      %s328 = scalar_select %p325, %s326, %s327
      %p331 = pneg %p325
      %p332 = scmp.eq.s32.totalorder %s35, 1
      %p333 = por %p331, %p332
      %p334 = scmp.ne.s32.totalorder %s326, %s329
      %p335 = scmp.eq.s32.totalorder %s35, 0
      %p336 = por %p334, %p335
      %p337 = scmp.ne.s32.totalorder %s326, %s329
      %p338 = scmp.eq.s32.totalorder %s40, 1
      %p339 = por %p337, %p338
      %p340 = scmp.ne.s32.totalorder %s329, %s330
      %p341 = scmp.eq.s32.totalorder %s40, 0
      %p342 = por %p340, %p341
      %p343 = scmp.ne.s32.totalorder %s329, %s330
      %p344 = scmp.eq.s32.totalorder %s41, 1
      %p345 = por %p343, %p344
      %p347 = scmp.ne.s32.totalorder %s330, %s346
      %p348 = scmp.eq.s32.totalorder %s41, 0
      %p349 = por %p347, %p348
      %s350 = ssub.s32 %s35, %s42
      %p351 = scmp.eq.s32.totalorder %s350, 0
      %s353 = sadd.s32 %s352, 1
      %s354 = scalar_select %p351, %s352, %s353
      %p357 = pneg %p351
      %p358 = scmp.eq.s32.totalorder %s35, 1
      %p359 = por %p357, %p358
      %p360 = scmp.ne.s32.totalorder %s352, %s355
      %p361 = scmp.eq.s32.totalorder %s35, 0
      %p362 = por %p360, %p361
      %p363 = scmp.ne.s32.totalorder %s352, %s355
      %p364 = scmp.eq.s32.totalorder %s40, 1
      %p365 = por %p363, %p364
      %p366 = scmp.ne.s32.totalorder %s355, %s356
      %p367 = scmp.eq.s32.totalorder %s40, 0
      %p368 = por %p366, %p367
      %p369 = scmp.ne.s32.totalorder %s355, %s356
      %p370 = scmp.eq.s32.totalorder %s41, 1
      %p371 = por %p369, %p370
      %p373 = scmp.ne.s32.totalorder %s356, %s372
      %p374 = scmp.eq.s32.totalorder %s41, 0
      %p375 = por %p373, %p374
      %s376 = ssub.s32 %s35, %s42
      %p377 = scmp.eq.s32.totalorder %s376, 0
      %s379 = sadd.s32 %s378, 1
      %s380 = scalar_select %p377, %s378, %s379
      %p383 = pneg %p377
      %p384 = scmp.eq.s32.totalorder %s35, 1
      %p385 = por %p383, %p384
      %p386 = scmp.ne.s32.totalorder %s378, %s381
      %p387 = scmp.eq.s32.totalorder %s35, 0
      %p388 = por %p386, %p387
      %p389 = scmp.ne.s32.totalorder %s378, %s381
      %p390 = scmp.eq.s32.totalorder %s40, 1
      %p391 = por %p389, %p390
      %p392 = scmp.ne.s32.totalorder %s381, %s382
      %p393 = scmp.eq.s32.totalorder %s40, 0
      %p394 = por %p392, %p393
      %p395 = scmp.ne.s32.totalorder %s381, %s382
      %p396 = scmp.eq.s32.totalorder %s41, 1
      %p397 = por %p395, %p396
      %p399 = scmp.ne.s32.totalorder %s382, %s398
      %p400 = scmp.eq.s32.totalorder %s41, 0
      %p401 = por %p399, %p400
      %s402 = ssub.s32 %s35, %s42
      %p403 = scmp.eq.s32.totalorder %s402, 0
      %s405 = sadd.s32 %s404, 1
      %s406 = scalar_select %p403, %s404, %s405
      %p409 = pneg %p403
      %p410 = scmp.eq.s32.totalorder %s35, 1
      %p411 = por %p409, %p410
      %p412 = scmp.ne.s32.totalorder %s404, %s407
      %p413 = scmp.eq.s32.totalorder %s35, 0
      %p414 = por %p412, %p413
      %p415 = scmp.ne.s32.totalorder %s404, %s407
      %p416 = scmp.eq.s32.totalorder %s40, 1
      %p417 = por %p415, %p416
      %p418 = scmp.ne.s32.totalorder %s407, %s408
      %p419 = scmp.eq.s32.totalorder %s40, 0
      %p420 = por %p418, %p419
      %p421 = scmp.ne.s32.totalorder %s407, %s408
      %p422 = scmp.eq.s32.totalorder %s41, 1
      %p423 = por %p421, %p422
      %p425 = scmp.ne.s32.totalorder %s408, %s424
      %p426 = scmp.eq.s32.totalorder %s41, 0
      %p427 = por %p425, %p426
      %s428 = ssub.s32 %s35, %s42
      %p429 = scmp.eq.s32.totalorder %s428, 0
      %s431 = sadd.s32 %s430, 1
      %s432 = scalar_select %p429, %s430, %s431
      %p435 = pneg %p429
      %p436 = scmp.eq.s32.totalorder %s35, 1
      %p437 = por %p435, %p436
      %p438 = scmp.ne.s32.totalorder %s430, %s433
      %p439 = scmp.eq.s32.totalorder %s35, 0
      %p440 = por %p438, %p439
      %p441 = scmp.ne.s32.totalorder %s430, %s433
      %p442 = scmp.eq.s32.totalorder %s40, 1
      %p443 = por %p441, %p442
      %p444 = scmp.ne.s32.totalorder %s433, %s434
      %p445 = scmp.eq.s32.totalorder %s40, 0
      %p446 = por %p444, %p445
      %p447 = scmp.ne.s32.totalorder %s433, %s434
      %p448 = scmp.eq.s32.totalorder %s41, 1
      %p449 = por %p447, %p448
      %p451 = scmp.ne.s32.totalorder %s434, %s450
      %p452 = scmp.eq.s32.totalorder %s41, 0
      %p453 = por %p451, %p452
      %s454 = ssub.s32 %s35, %s42
      %p455 = scmp.eq.s32.totalorder %s454, 0
      %s457 = sadd.s32 %s456, 1
      %s458 = scalar_select %p455, %s456, %s457
      %p461 = pneg %p455
      %p462 = scmp.eq.s32.totalorder %s35, 1
      %p463 = por %p461, %p462
      %p464 = scmp.ne.s32.totalorder %s456, %s459
      %p465 = scmp.eq.s32.totalorder %s35, 0
      %p466 = por %p464, %p465
      %p467 = scmp.ne.s32.totalorder %s456, %s459
      %p468 = scmp.eq.s32.totalorder %s40, 1
      %p469 = por %p467, %p468
      %p470 = scmp.ne.s32.totalorder %s459, %s460
      %p471 = scmp.eq.s32.totalorder %s40, 0
      %p472 = por %p470, %p471
      %p473 = scmp.ne.s32.totalorder %s459, %s460
      %p474 = scmp.eq.s32.totalorder %s41, 1
      %p475 = por %p473, %p474
      %p477 = scmp.ne.s32.totalorder %s460, %s476
      %p478 = scmp.eq.s32.totalorder %s41, 0
      %p479 = por %p477, %p478
      %s480 = ssub.s32 %s35, %s42
      %p481 = scmp.eq.s32.totalorder %s480, 0
      %s483 = sadd.s32 %s482, 1
      %s484 = scalar_select %p481, %s482, %s483
      %p487 = pneg %p481
      %p488 = scmp.eq.s32.totalorder %s35, 1
      %p489 = por %p487, %p488
      %p490 = scmp.ne.s32.totalorder %s482, %s485
      %p491 = scmp.eq.s32.totalorder %s35, 0
      %p492 = por %p490, %p491
      %p493 = scmp.ne.s32.totalorder %s482, %s485
      %p494 = scmp.eq.s32.totalorder %s40, 1
      %p495 = por %p493, %p494
      %p496 = scmp.ne.s32.totalorder %s485, %s486
      %p497 = scmp.eq.s32.totalorder %s40, 0
      %p498 = por %p496, %p497
      %p499 = scmp.ne.s32.totalorder %s485, %s486
      %p500 = scmp.eq.s32.totalorder %s41, 1
      %p501 = por %p499, %p500
      %p503 = scmp.ne.s32.totalorder %s486, %s502
      %p504 = scmp.eq.s32.totalorder %s41, 0
      %p505 = por %p503, %p504
      %p506 = scmp.le.s32.totalorder 1, %s35
      %p507 = scmp.lt.s32.totalorder %s35, 3
      %p508 = pnand %p506, %p507
      %p509 = pneg %p508
      // Predicated region
      $region9: #{tpu_custom_call.1} parent=5 // pred_check
        _
      $region10: #{tpu_custom_call.1} parent=5 // pred_check_branch
        %511 = sbr.rel (%p508) target = $region12
      $region11: #{tpu_custom_call.1} parent=5 // pred_region
        %s512 = ssub.s32 %s35, 1
        // Predicated region
        $region13: #{tpu_custom_call.1} parent=11 // pred_check
          %p513 = pneg %p160
        $region14: #{tpu_custom_call.1} parent=11 // pred_check_branch
          %515 = sbr.rel (%p513) target = $region16
        $region15: #{tpu_custom_call.1} parent=11 // pred_region
          _
        $region16: #{tpu_custom_call.1} parent=11 // pred_fallthru
          _
      $region12: #{tpu_custom_call.1} parent=5 // pred_fallthru
        _
      %p516 = scmp.lt.s32.totalorder %s35, 2
      // Predicated region
      $region17: #{tpu_custom_call.1} parent=5 // pred_check
        %p517 = pneg %p516
      $region18: #{tpu_custom_call.1} parent=5 // pred_check_branch
        %519 = sbr.rel (%p517) target = $region20
      $region19: #{tpu_custom_call.1} parent=5 // pred_region
        // Predicated region
        $region21: #{tpu_custom_call.1} parent=19 // pred_check
          %p520 = pneg %p55
        $region22: #{tpu_custom_call.1} parent=19 // pred_check_branch
          %522 = sbr.rel (%p520) target = $region24
        $region23: #{tpu_custom_call.1} parent=19 // pred_region
          %s523 = sand.u32 %s45, 1
          %s524 = scalar_lea.sflag [#allocation3], %s523
          %s525 = sand.u32 %s45, 1
          %s526 = smul.addr %s525, 16
          %s527 = scalar_lea.vmem [#allocation2], %s526
          %s529 = ssub.s32 256, 256
          %530 = vsyncadd %s524, %s529
          %s531 = smul.addr %s35, 2
          %s532 = smul.addr %s531, 128
          %s533 = scalar_lea.hbm %s0, %s532
          %s534 = sshll.u32 %s527, 4
          %s535 = int_to_ptr.vmem [resolvable:$true] %s534
          %540 = dma.hbm_to_vmem [thread:$0]  %s533, 256, %s535, %s524, 128, 128, 8
        $region24: #{tpu_custom_call.1} parent=19 // pred_fallthru
          _
        // Predicated region
        $region25: #{tpu_custom_call.1} parent=19 // pred_check
          %p541 = pneg %p81
        $region26: #{tpu_custom_call.1} parent=19 // pred_check_branch
          %543 = sbr.rel (%p541) target = $region28
        $region27: #{tpu_custom_call.1} parent=19 // pred_region
          %s544 = sand.u32 %s35, 1
          %s545 = scalar_lea.sflag [#allocation6], %s544
          %s546 = sand.u32 %s71, 1
          %s547 = smul.addr %s546, 2
          %s548 = scalar_lea.vmem [#allocation5], %s547
          %s550 = ssub.s32 32, 32
          %551 = vsyncadd %s545, %s550
          %s552 = smul.addr %s35, 2
          %s553 = smul.addr %s552, 16
          %s554 = scalar_lea.hbm %s1, %s553
          %s555 = sshll.u32 %s548, 4
          %s556 = int_to_ptr.vmem [resolvable:$true] %s555
          %561 = dma.hbm_to_vmem [thread:$0]  %s554, 32, %s556, %s545, 16, 16, 1
        $region28: #{tpu_custom_call.1} parent=19 // pred_fallthru
          _
        // Predicated region
        $region29: #{tpu_custom_call.1} parent=19 // pred_check
          %p562 = pneg %p107
        $region30: #{tpu_custom_call.1} parent=19 // pred_check_branch
          %564 = sbr.rel (%p562) target = $region32
        $region31: #{tpu_custom_call.1} parent=19 // pred_region
          %s565 = sand.u32 %s35, 1
          %s566 = scalar_lea.sflag [#allocation6], %s565
          %s567 = sand.u32 %s97, 1
          %s568 = smul.addr %s567, 8
          %s569 = scalar_lea.vmem [#allocation7], %s568
          %s571 = ssub.s32 128, 128
          %572 = vsyncadd %s566, %s571
          %s573 = smul.addr %s35, 128
          %s574 = scalar_lea.hbm %s2, %s573
          %s576 = sshll.u32 %s569, 4
          %s577 = int_to_ptr.vmem [resolvable:$true] %s576
          %579 = dma.hbm_to_vmem [thread:$0]  %s574, 128, %s577, %s566
        $region32: #{tpu_custom_call.1} parent=19 // pred_fallthru
          _
        // Predicated region
        $region33: #{tpu_custom_call.1} parent=19 // pred_check
          %p580 = pneg %p133
        $region34: #{tpu_custom_call.1} parent=19 // pred_check_branch
          %582 = sbr.rel (%p580) target = $region36
        $region35: #{tpu_custom_call.1} parent=19 // pred_region
          %s583 = sand.u32 %s123, 1
          %s584 = scalar_lea.sflag [#allocation9], %s583
          %s585 = sand.u32 %s123, 1
          %s586 = scalar_lea.vmem [#allocation8], %s585
          %s588 = ssub.s32 16, 16
          %589 = vsyncadd %s584, %s588
          %s590 = smul.addr %s35, 16
          %s591 = scalar_lea.hbm %s3, %s590
          %s593 = sshll.u32 %s586, 4
          %s594 = int_to_ptr.vmem [resolvable:$true] %s593
          %596 = dma.hbm_to_vmem [thread:$0]  %s591, 16, %s594, %s584
        $region36: #{tpu_custom_call.1} parent=19 // pred_fallthru
          _
        // Predicated region
        $region37: #{tpu_custom_call.1} parent=19 // pred_check
          %p597 = pneg %p180
        $region38: #{tpu_custom_call.1} parent=19 // pred_check_branch
          %599 = sbr.rel (%p597) target = $region40
        $region39: #{tpu_custom_call.1} parent=19 // pred_region
          %p600 = scmp.lt.s32.totalorder %s35, 1
          %s601 = scalar_select %p600, %s35, 1
          %s602 = smul.addr %s601, 12
          %s603 = smul.addr %s602, 8
          %s604 = scalar_lea.vmem %s5, %s603
        $region40: #{tpu_custom_call.1} parent=19 // pred_fallthru
          _
        // Predicated region
        $region41: #{tpu_custom_call.1} parent=19 // pred_check
          %p605 = pneg %p206
        $region42: #{tpu_custom_call.1} parent=19 // pred_check_branch
          %607 = sbr.rel (%p605) target = $region44
        $region43: #{tpu_custom_call.1} parent=19 // pred_region
          %p608 = scmp.lt.s32.totalorder %s35, 1
          %s609 = scalar_select %p608, %s35, 1
          %s610 = smul.addr %s609, 3
          %s611 = scalar_lea.vmem %s6, %s610
        $region44: #{tpu_custom_call.1} parent=19 // pred_fallthru
          _
        // Predicated region
        $region45: #{tpu_custom_call.1} parent=19 // pred_check
          %p612 = pneg %p232
        $region46: #{tpu_custom_call.1} parent=19 // pred_check_branch
          %614 = sbr.rel (%p612) target = $region48
        $region47: #{tpu_custom_call.1} parent=19 // pred_region
          %p615 = scmp.lt.s32.totalorder %s35, 1
          %s616 = scalar_select %p615, %s35, 1
          %s617 = smul.addr %s616, 12
          %s618 = smul.addr %s617, 8
          %s619 = scalar_lea.vmem %s7, %s618
        $region48: #{tpu_custom_call.1} parent=19 // pred_fallthru
          _
        // Predicated region
        $region49: #{tpu_custom_call.1} parent=19 // pred_check
          %p620 = pneg %p258
        $region50: #{tpu_custom_call.1} parent=19 // pred_check_branch
          %622 = sbr.rel (%p620) target = $region52
        $region51: #{tpu_custom_call.1} parent=19 // pred_region
          %p623 = scmp.lt.s32.totalorder %s35, 1
          %s624 = scalar_select %p623, %s35, 1
          %s625 = smul.addr %s624, 3
          %s626 = scalar_lea.vmem %s8, %s625
        $region52: #{tpu_custom_call.1} parent=19 // pred_fallthru
          _
        // Predicated region
        $region53: #{tpu_custom_call.1} parent=19 // pred_check
          %p627 = pneg %p284
        $region54: #{tpu_custom_call.1} parent=19 // pred_check_branch
          %629 = sbr.rel (%p627) target = $region56
        $region55: #{tpu_custom_call.1} parent=19 // pred_region
          %p630 = scmp.lt.s32.totalorder %s35, 1
          %s631 = scalar_select %p630, %s35, 1
          %s632 = smul.addr %s631, 3
          %s633 = scalar_lea.vmem %s9, %s632
        $region56: #{tpu_custom_call.1} parent=19 // pred_fallthru
          _
        // Predicated region
        $region57: #{tpu_custom_call.1} parent=19 // pred_check
          %p634 = pneg %p310
        $region58: #{tpu_custom_call.1} parent=19 // pred_check_branch
          %636 = sbr.rel (%p634) target = $region60
        $region59: #{tpu_custom_call.1} parent=19 // pred_region
          %p637 = scmp.lt.s32.totalorder %s35, 1
          %s638 = scalar_select %p637, %s35, 1
          %s639 = smul.addr %s638, 3
          %s640 = scalar_lea.vmem %s10, %s639
        $region60: #{tpu_custom_call.1} parent=19 // pred_fallthru
          _
        // Predicated region
        $region61: #{tpu_custom_call.1} parent=19 // pred_check
          %p641 = pneg %p336
        $region62: #{tpu_custom_call.1} parent=19 // pred_check_branch
          %643 = sbr.rel (%p641) target = $region64
        $region63: #{tpu_custom_call.1} parent=19 // pred_region
          %p644 = scmp.lt.s32.totalorder %s35, 1
          %s645 = scalar_select %p644, %s35, 1
          %s646 = smul.addr %s645, 12
          %s647 = smul.addr %s646, 8
          %s648 = scalar_lea.vmem %s11, %s647
        $region64: #{tpu_custom_call.1} parent=19 // pred_fallthru
          _
        // Predicated region
        $region65: #{tpu_custom_call.1} parent=19 // pred_check
          %p649 = pneg %p362
        $region66: #{tpu_custom_call.1} parent=19 // pred_check_branch
          %651 = sbr.rel (%p649) target = $region68
        $region67: #{tpu_custom_call.1} parent=19 // pred_region
          %p652 = scmp.lt.s32.totalorder %s35, 1
          %s653 = scalar_select %p652, %s35, 1
          %s654 = smul.addr %s653, 3
          %s655 = scalar_lea.vmem %s12, %s654
        $region68: #{tpu_custom_call.1} parent=19 // pred_fallthru
          _
        // Predicated region
        $region69: #{tpu_custom_call.1} parent=19 // pred_check
          %p656 = pneg %p388
        $region70: #{tpu_custom_call.1} parent=19 // pred_check_branch
          %658 = sbr.rel (%p656) target = $region72
        $region71: #{tpu_custom_call.1} parent=19 // pred_region
          %p659 = scmp.lt.s32.totalorder %s35, 1
          %s660 = scalar_select %p659, %s35, 1
          %s661 = smul.addr %s660, 24
          %s662 = smul.addr %s661, 8
          %s663 = scalar_lea.vmem %s13, %s662
        $region72: #{tpu_custom_call.1} parent=19 // pred_fallthru
          _
        // Predicated region
        $region73: #{tpu_custom_call.1} parent=19 // pred_check
          %p664 = pneg %p414
        $region74: #{tpu_custom_call.1} parent=19 // pred_check_branch
          %666 = sbr.rel (%p664) target = $region76
        $region75: #{tpu_custom_call.1} parent=19 // pred_region
          %p667 = scmp.lt.s32.totalorder %s35, 1
          %s668 = scalar_select %p667, %s35, 1
          %s669 = smul.addr %s668, 3
          %s670 = scalar_lea.vmem %s14, %s669
        $region76: #{tpu_custom_call.1} parent=19 // pred_fallthru
          _
        // Predicated region
        $region77: #{tpu_custom_call.1} parent=19 // pred_check
          %p671 = pneg %p440
        $region78: #{tpu_custom_call.1} parent=19 // pred_check_branch
          %673 = sbr.rel (%p671) target = $region80
        $region79: #{tpu_custom_call.1} parent=19 // pred_region
          %p674 = scmp.lt.s32.totalorder %s35, 1
          %s675 = scalar_select %p674, %s35, 1
          %s676 = smul.addr %s675, 3
          %s677 = scalar_lea.vmem %s15, %s676
        $region80: #{tpu_custom_call.1} parent=19 // pred_fallthru
          _
        // Predicated region
        $region81: #{tpu_custom_call.1} parent=19 // pred_check
          %p678 = pneg %p466
        $region82: #{tpu_custom_call.1} parent=19 // pred_check_branch
          %680 = sbr.rel (%p678) target = $region84
        $region83: #{tpu_custom_call.1} parent=19 // pred_region
          %p681 = scmp.lt.s32.totalorder %s35, 1
          %s682 = scalar_select %p681, %s35, 1
          %s683 = smul.addr %s682, 3
          %s684 = scalar_lea.vmem %s16, %s683
        $region84: #{tpu_custom_call.1} parent=19 // pred_fallthru
          _
      $region20: #{tpu_custom_call.1} parent=5 // pred_fallthru
        _
      %p685 = scmp.le.s32.totalorder 1, %s35
      %p686 = scmp.lt.s32.totalorder %s35, 3
      %p687 = pnand %p685, %p686
      %p688 = pneg %p687
      // Predicated region
      $region85: #{tpu_custom_call.1} parent=5 // pred_check
        _
      $region86: #{tpu_custom_call.1} parent=5 // pred_check_branch
        %690 = sbr.rel (%p687) target = $region88
      $region87: #{tpu_custom_call.1} parent=5 // pred_region
        %s691 = ssub.s32 %s35, 1
        %s692 = sand.u32 %s48, 1
        %s693 = scalar_lea.sflag [#allocation3], %s692
        %s694 = sand.u32 %s48, 1
        %s695 = smul.addr %s694, 16
        %s696 = scalar_lea.vmem [#allocation2], %s695
        // Predicated region
        $region89: #{tpu_custom_call.1} parent=87 // pred_check
          %p697 = pneg %p61
        $region90: #{tpu_custom_call.1} parent=87 // pred_check_branch
          %699 = sbr.rel (%p697) target = $region92
        $region91: #{tpu_custom_call.1} parent=87 // pred_region
          %700 = dma.done %s693, 256
        $region92: #{tpu_custom_call.1} parent=87 // pred_fallthru
          _
        %s701 = sand.u32 %s40, 1
        %s702 = scalar_lea.sflag [#allocation6], %s701
        %s703 = sand.u32 %s74, 1
        %s704 = smul.addr %s703, 2
        %s705 = scalar_lea.vmem [#allocation5], %s704
        // Predicated region
        $region93: #{tpu_custom_call.1} parent=87 // pred_check
          %p706 = pneg %p87
        $region94: #{tpu_custom_call.1} parent=87 // pred_check_branch
          %708 = sbr.rel (%p706) target = $region96
        $region95: #{tpu_custom_call.1} parent=87 // pred_region
          %709 = dma.done %s702, 32
        $region96: #{tpu_custom_call.1} parent=87 // pred_fallthru
          _
        %s710 = sand.u32 %s40, 1
        %s711 = scalar_lea.sflag [#allocation6], %s710
        %s712 = sand.u32 %s100, 1
        %s713 = smul.addr %s712, 8
        %s714 = scalar_lea.vmem [#allocation7], %s713
        // Predicated region
        $region97: #{tpu_custom_call.1} parent=87 // pred_check
          %p715 = pneg %p113
        $region98: #{tpu_custom_call.1} parent=87 // pred_check_branch
          %717 = sbr.rel (%p715) target = $region100
        $region99: #{tpu_custom_call.1} parent=87 // pred_region
          %718 = dma.done %s711, 128
        $region100: #{tpu_custom_call.1} parent=87 // pred_fallthru
          _
        %s719 = sand.u32 %s126, 1
        %s720 = scalar_lea.sflag [#allocation9], %s719
        %s721 = sand.u32 %s126, 1
        %s722 = scalar_lea.vmem [#allocation8], %s721
        // Predicated region
        $region101: #{tpu_custom_call.1} parent=87 // pred_check
          %p723 = pneg %p139
        $region102: #{tpu_custom_call.1} parent=87 // pred_check_branch
          %725 = sbr.rel (%p723) target = $region104
        $region103: #{tpu_custom_call.1} parent=87 // pred_region
          %726 = dma.done %s720, 16
        $region104: #{tpu_custom_call.1} parent=87 // pred_fallthru
          _
        %s727 = sand.u32 %s48, 1
        %s728 = scalar_lea.sflag [#allocation3], %s727
        %s729 = sand.u32 %s48, 1
        %s730 = smul.addr %s729, 16
        %s731 = scalar_lea.vmem [#allocation2], %s730
        %p732 = pneg %p61
        %p733 = pneg %p58
        %s734 = sand.u32 %s40, 1
        %s735 = scalar_lea.sflag [#allocation6], %s734
        %s736 = sand.u32 %s74, 1
        %s737 = smul.addr %s736, 2
        %s738 = scalar_lea.vmem [#allocation5], %s737
        %p739 = pneg %p87
        %p740 = pneg %p84
        %s741 = sand.u32 %s40, 1
        %s742 = scalar_lea.sflag [#allocation6], %s741
        %s743 = sand.u32 %s100, 1
        %s744 = smul.addr %s743, 8
        %s745 = scalar_lea.vmem [#allocation7], %s744
        %p746 = pneg %p113
        %p747 = pneg %p110
        %s748 = sand.u32 %s126, 1
        %s749 = scalar_lea.sflag [#allocation9], %s748
        %s750 = sand.u32 %s126, 1
        %s751 = scalar_lea.vmem [#allocation8], %s750
        %p752 = pneg %p139
        %p753 = pneg %p136
        %p754 = pneg %p160
        %p755 = pneg %p157
        %p756 = scmp.lt.s32.totalorder %s40, 1
        %s757 = scalar_select %p756, %s40, 1
        %s758 = smul.addr %s757, 12
        %s759 = smul.addr %s758, 8
        %s760 = scalar_lea.vmem %s5, %s759
        %p761 = pneg %p186
        %p762 = pneg %p183
        %p763 = scmp.lt.s32.totalorder %s40, 1
        %s764 = scalar_select %p763, %s40, 1
        %s765 = smul.addr %s764, 3
        %s766 = scalar_lea.vmem %s6, %s765
        %p767 = pneg %p212
        %p768 = pneg %p209
        %p769 = scmp.lt.s32.totalorder %s40, 1
        %s770 = scalar_select %p769, %s40, 1
        %s771 = smul.addr %s770, 12
        %s772 = smul.addr %s771, 8
        %s773 = scalar_lea.vmem %s7, %s772
        %p774 = pneg %p238
        %p775 = pneg %p235
        %p776 = scmp.lt.s32.totalorder %s40, 1
        %s777 = scalar_select %p776, %s40, 1
        %s778 = smul.addr %s777, 3
        %s779 = scalar_lea.vmem %s8, %s778
        %p780 = pneg %p264
        %p781 = pneg %p261
        %p782 = scmp.lt.s32.totalorder %s40, 1
        %s783 = scalar_select %p782, %s40, 1
        %s784 = smul.addr %s783, 3
        %s785 = scalar_lea.vmem %s9, %s784
        %p786 = pneg %p290
        %p787 = pneg %p287
        %p788 = scmp.lt.s32.totalorder %s40, 1
        %s789 = scalar_select %p788, %s40, 1
        %s790 = smul.addr %s789, 3
        %s791 = scalar_lea.vmem %s10, %s790
        %p792 = pneg %p316
        %p793 = pneg %p313
        %p794 = scmp.lt.s32.totalorder %s40, 1
        %s795 = scalar_select %p794, %s40, 1
        %s796 = smul.addr %s795, 12
        %s797 = smul.addr %s796, 8
        %s798 = scalar_lea.vmem %s11, %s797
        %p799 = pneg %p342
        %p800 = pneg %p339
        %p801 = scmp.lt.s32.totalorder %s40, 1
        %s802 = scalar_select %p801, %s40, 1
        %s803 = smul.addr %s802, 3
        %s804 = scalar_lea.vmem %s12, %s803
        %p805 = pneg %p368
        %p806 = pneg %p365
        %p807 = scmp.lt.s32.totalorder %s40, 1
        %s808 = scalar_select %p807, %s40, 1
        %s809 = smul.addr %s808, 24
        %s810 = smul.addr %s809, 8
        %s811 = scalar_lea.vmem %s13, %s810
        %p812 = pneg %p394
        %p813 = pneg %p391
        %p814 = scmp.lt.s32.totalorder %s40, 1
        %s815 = scalar_select %p814, %s40, 1
        %s816 = smul.addr %s815, 3
        %s817 = scalar_lea.vmem %s14, %s816
        %p818 = pneg %p420
        %p819 = pneg %p417
        %p820 = scmp.lt.s32.totalorder %s40, 1
        %s821 = scalar_select %p820, %s40, 1
        %s822 = smul.addr %s821, 3
        %s823 = scalar_lea.vmem %s15, %s822
        %p824 = pneg %p446
        %p825 = pneg %p443
        %p826 = scmp.lt.s32.totalorder %s40, 1
        %s827 = scalar_select %p826, %s40, 1
        %s828 = smul.addr %s827, 3
        %s829 = scalar_lea.vmem %s16, %s828
        %p830 = pneg %p472
        %p831 = pneg %p469
        %p832 = pneg %p498
        %p833 = pneg %p495
        %s834 = sand.u32 %s485, 1
        %s835 = scalar_lea.sflag [#allocation4], %s834
        %s836 = sand.u32 %s485, 1
        %s837 = smul.addr %s836, 16
        %s838 = scalar_lea.vmem [#allocation10], %s837
        %p839 = scmp.lt.s32.totalorder %s40, 1
        %s840 = scalar_select %p839, %s40, 1
        %s841 = smul.addr %s840, 12
        %s842 = smul.addr %s841, 8
        %s843 = scalar_lea.vmem %s5, %s842
        %p844 = scmp.lt.s32.totalorder %s40, 1
        %s845 = scalar_select %p844, %s40, 1
        %s846 = smul.addr %s845, 3
        %s847 = scalar_lea.vmem %s6, %s846
        %p848 = scmp.lt.s32.totalorder %s40, 1
        %s849 = scalar_select %p848, %s40, 1
        %s850 = smul.addr %s849, 12
        %s851 = smul.addr %s850, 8
        %s852 = scalar_lea.vmem %s7, %s851
        %p853 = scmp.lt.s32.totalorder %s40, 1
        %s854 = scalar_select %p853, %s40, 1
        %s855 = smul.addr %s854, 3
        %s856 = scalar_lea.vmem %s8, %s855
        %p857 = scmp.lt.s32.totalorder %s40, 1
        %s858 = scalar_select %p857, %s40, 1
        %s859 = smul.addr %s858, 3
        %s860 = scalar_lea.vmem %s9, %s859
        %p861 = scmp.lt.s32.totalorder %s40, 1
        %s862 = scalar_select %p861, %s40, 1
        %s863 = smul.addr %s862, 3
        %s864 = scalar_lea.vmem %s10, %s863
        %p865 = scmp.lt.s32.totalorder %s40, 1
        %s866 = scalar_select %p865, %s40, 1
        %s867 = smul.addr %s866, 12
        %s868 = smul.addr %s867, 8
        %s869 = scalar_lea.vmem %s11, %s868
        %p870 = scmp.lt.s32.totalorder %s40, 1
        %s871 = scalar_select %p870, %s40, 1
        %s872 = smul.addr %s871, 3
        %s873 = scalar_lea.vmem %s12, %s872
        %p874 = scmp.lt.s32.totalorder %s40, 1
        %s875 = scalar_select %p874, %s40, 1
        %s876 = smul.addr %s875, 24
        %s877 = smul.addr %s876, 8
        %s878 = scalar_lea.vmem %s13, %s877
        %p879 = scmp.lt.s32.totalorder %s40, 1
        %s880 = scalar_select %p879, %s40, 1
        %s881 = smul.addr %s880, 3
        %s882 = scalar_lea.vmem %s14, %s881
        %p883 = scmp.lt.s32.totalorder %s40, 1
        %s884 = scalar_select %p883, %s40, 1
        %s885 = smul.addr %s884, 3
        %s886 = scalar_lea.vmem %s15, %s885
        %p887 = scmp.lt.s32.totalorder %s40, 1
        %s888 = scalar_select %p887, %s40, 1
        %s889 = smul.addr %s888, 3
        %s890 = scalar_lea.vmem %s16, %s889
        %v891 = vld [vmem:[%s696] sm:$0xff]
        %v892 = vld [vmem:[%s696 + $0x8] sm:$0xff]
        %v893 = vld [vmem:[%s714] sm:$0xff]
        %v894 = vld [vmem:[%s722] sm:$0x1]
        %v896 = vlaneseq
        %v897 = vshrl.u32 %v896, 7
        %v898 = vsub.s32 0, %v897
        %v899 = vrot.slane %v894, %v898
        %vm901 = vcmask 64512
        %v903 = vsel %vm901, %v891, 0
        %v906 = vsel %vm901, %v892, 0
        %908 = vmatprep.subr.mxu0 0.0
        %909 = vmatpush1.msra.mxu0 %v893
        %910 = vmatprep.subr.mxu0 0.0
        %911 = vmatpush1.msra.mxu0 0.0
        %912 = vmatprep.subr.mxu0 0.0
        %913 = vmatpush1.msra.mxu0 0.0
        %914 = vmatprep.subr.mxu0 0.0
        %915 = vmatpush1.msra.mxu0 0.0
        %916 = vmatprep.subr.mxu0 0.0
        %917 = vmatpush1.msra.mxu0 0.0
        %918 = vmatprep.subr.mxu0 0.0
        %919 = vmatpush1.msra.mxu0 0.0
        %920 = vmatprep.subr.mxu0 0.0
        %921 = vmatpush1.msra.mxu0 0.0
        %922 = vmatprep.subr.mxu0 0.0
        %923 = vmatpush1.msra.mxu0 0.0
        %924 = vmatprep.subr.mxu0 0.0
        %925 = vmatpush1.msra.mxu0 0.0
        %926 = vmatprep.subr.mxu0 0.0
        %927 = vmatpush1.msra.mxu0 0.0
        %928 = vmatprep.subr.mxu0 0.0
        %929 = vmatpush1.msra.mxu0 0.0
        %930 = vmatprep.subr.mxu0 0.0
        %931 = vmatpush1.msra.mxu0 0.0
        %932 = vmatprep.subr.mxu0 0.0
        %933 = vmatpush1.msra.mxu0 0.0
        %934 = vmatprep.subr.mxu0 0.0
        %935 = vmatpush1.msra.mxu0 0.0
        %936 = vmatprep.subr.mxu0 0.0
        %937 = vmatpush1.msra.mxu0 0.0
        %938 = vmatprep.subr.mxu0 0.0
        %939 = vmatpush1.msra.mxu0 0.0
        %940 = vmatprep.subr.mxu0 0.0
        %941 = vmatpush1.msra.mxu0 0.0
        %942 = vmatprep.subr.mxu0 0.0
        %943 = vmatpush1.msra.mxu0 0.0
        %944 = vmatprep.subr.mxu0 0.0
        %945 = vmatpush1.msra.mxu0 0.0
        %946 = vmatprep.subr.mxu0 0.0
        %947 = vmatpush1.msra.mxu0 0.0
        %948 = vmatprep.subr.mxu0 0.0
        %949 = vmatpush1.msra.mxu0 0.0
        %950 = vmatprep.subr.mxu0 0.0
        %951 = vmatpush1.msra.mxu0 0.0
        %952 = vmatprep.subr.mxu0 0.0
        %953 = vmatpush1.msra.mxu0 0.0
        %954 = vmatprep.subr.mxu0 0.0
        %955 = vmatpush1.msra.mxu0 0.0
        %956 = vmatprep.subr.mxu0 0.0
        %957 = vmatpush1.msra.mxu0 0.0
        %958 = vmatprep.subr.mxu0 0.0
        %959 = vmatpush1.msra.mxu0 0.0
        %960 = vmatprep.subr.mxu0 0.0
        %961 = vmatpush1.msra.mxu0 0.0
        %962 = vmatprep.subr.mxu0 0.0
        %963 = vmatpush1.msra.mxu0 0.0
        %964 = vmatprep.subr.mxu0 0.0
        %965 = vmatpush1.msra.mxu0 0.0
        %966 = vmatprep.subr.mxu0 0.0
        %967 = vmatpush1.msra.mxu0 0.0
        %968 = vmatprep.subr.mxu0 0.0
        %969 = vmatpush1.msra.mxu0 0.0
        %970 = vmatprep.subr.mxu0 0.0
        %971 = vmatpush1.msra.mxu0 0.0
        %972 = vmatprep.mubr.f32.mxu0 0.0
        %973 = vmatmul.mubr.f32.gmra.mrb[0].mxu0 %v903
        %v974 = vpop.f32.mrb[0].mxu0
        %v975 = vadd.f32 %v899, %v974
        %v976 = vpop.f32.mrb[0].mxu0
        %977 = vmatprep.mubr.f32.mxu0 0.0
        %978 = vmatmul.mubr.f32.gmra.mrb[0].mxu0 %v906
        %v979 = vpop.f32.mrb[0].mxu0
        %v980 = vadd.f32 %v899, %v979
        %v981 = vpop.f32.mrb[0].mxu0
        %982 = vdwg.mxu0
        %v983 = vld [vmem:[%s4] sm:$0xff]
        %v984 = vadd.f32 %v975, %v983
        %v985 = vadd.f32 %v980, %v983
        %v986 = vld [vmem:[%s705] sm:$0x1]
        %v987 = vld [vmem:[%s705 + $0x1] sm:$0x1]
        %v988 = vld [vmem:[%s843] sm:$0xff]
        %v989 = vld [vmem:[%s843 + $0x8] sm:$0xff]
        %v990 = vld [vmem:[%s843 + $0x10] sm:$0xff]
        %v991 = vld [vmem:[%s843 + $0x18] sm:$0xff]
        %v992 = vld [vmem:[%s847] sm:$0x1]
        %v993 = vld [vmem:[%s852] sm:$0xff]
        %v994 = vld [vmem:[%s852 + $0x8] sm:$0xff]
        %v995 = vld [vmem:[%s852 + $0x10] sm:$0xff]
        %v996 = vld [vmem:[%s852 + $0x18] sm:$0xff]
        %v997 = vld [vmem:[%s856] sm:$0x1]
        %v998 = vld [vmem:[%s860] sm:$0x1]
        %v999 = vld [vmem:[%s864] sm:$0x1]
        %v1000 = vld [vmem:[%s869] sm:$0xff]
        %v1001 = vld [vmem:[%s869 + $0x8] sm:$0xff]
        %v1002 = vld [vmem:[%s869 + $0x10] sm:$0xff]
        %v1003 = vld [vmem:[%s869 + $0x18] sm:$0xff]
        %v1004 = vld [vmem:[%s873] sm:$0x1]
        %v1005 = vld [vmem:[%s878] sm:$0xff]
        %v1006 = vld [vmem:[%s878 + $0x8] sm:$0xff]
        %v1007 = vld [vmem:[%s878 + $0x10] sm:$0xff]
        %v1008 = vld [vmem:[%s878 + $0x18] sm:$0xff]
        %v1009 = vld [vmem:[%s878 + $0x20] sm:$0xff]
        %v1010 = vld [vmem:[%s878 + $0x28] sm:$0xff]
        %v1011 = vld [vmem:[%s878 + $0x30] sm:$0xff]
        %v1012 = vld [vmem:[%s878 + $0x38] sm:$0xff]
        %v1013 = vld [vmem:[%s882] sm:$0x1]
        %v1014 = vld [vmem:[%s886] sm:$0x1]
        %v1015 = vld [vmem:[%s890] sm:$0x1]
        %v1017 = vlaneseq
        %v1018 = vshrl.u32 %v1017, 7
        %v1019 = vsub.s32 0, %v1018
        %v1020 = vrot.slane %v992, %v1019
        %vm1022 = vcmask 261120
        %v1024 = vsel %vm1022, %v984, 0
        %v1027 = vsel %vm1022, %v985, 0
        %1029 = vmatprep.subr.mxu0 0.0
        %1030 = vmatpush1.msra.mxu0 %v988
        %1031 = vmatprep.subr.mxu0 0.0
        %1032 = vmatpush1.msra.mxu0 %v989
        %1033 = vmatprep.subr.mxu0 0.0
        %1034 = vmatpush1.msra.mxu0 %v990
        %1035 = vmatprep.subr.mxu0 0.0
        %1036 = vmatpush1.msra.mxu0 %v991
        %1037 = vmatprep.subr.mxu0 0.0
        %1038 = vmatpush1.msra.mxu0 0.0
        %1039 = vmatprep.subr.mxu0 0.0
        %1040 = vmatpush1.msra.mxu0 0.0
        %1041 = vmatprep.subr.mxu0 0.0
        %1042 = vmatpush1.msra.mxu0 0.0
        %1043 = vmatprep.subr.mxu0 0.0
        %1044 = vmatpush1.msra.mxu0 0.0
        %1045 = vmatprep.subr.mxu0 0.0
        %1046 = vmatpush1.msra.mxu0 0.0
        %1047 = vmatprep.subr.mxu0 0.0
        %1048 = vmatpush1.msra.mxu0 0.0
        %1049 = vmatprep.subr.mxu0 0.0
        %1050 = vmatpush1.msra.mxu0 0.0
        %1051 = vmatprep.subr.mxu0 0.0
        %1052 = vmatpush1.msra.mxu0 0.0
        %1053 = vmatprep.subr.mxu0 0.0
        %1054 = vmatpush1.msra.mxu0 0.0
        %1055 = vmatprep.subr.mxu0 0.0
        %1056 = vmatpush1.msra.mxu0 0.0
        %1057 = vmatprep.subr.mxu0 0.0
        %1058 = vmatpush1.msra.mxu0 0.0
        %1059 = vmatprep.subr.mxu0 0.0
        %1060 = vmatpush1.msra.mxu0 0.0
        %1061 = vmatprep.subr.mxu0 0.0
        %1062 = vmatpush1.msra.mxu0 0.0
        %1063 = vmatprep.subr.mxu0 0.0
        %1064 = vmatpush1.msra.mxu0 0.0
        %1065 = vmatprep.subr.mxu0 0.0
        %1066 = vmatpush1.msra.mxu0 0.0
        %1067 = vmatprep.subr.mxu0 0.0
        %1068 = vmatpush1.msra.mxu0 0.0
        %1069 = vmatprep.subr.mxu0 0.0
        %1070 = vmatpush1.msra.mxu0 0.0
        %1071 = vmatprep.subr.mxu0 0.0
        %1072 = vmatpush1.msra.mxu0 0.0
        %1073 = vmatprep.subr.mxu0 0.0
        %1074 = vmatpush1.msra.mxu0 0.0
        %1075 = vmatprep.subr.mxu0 0.0
        %1076 = vmatpush1.msra.mxu0 0.0
        %1077 = vmatprep.subr.mxu0 0.0
        %1078 = vmatpush1.msra.mxu0 0.0
        %1079 = vmatprep.subr.mxu0 0.0
        %1080 = vmatpush1.msra.mxu0 0.0
        %1081 = vmatprep.subr.mxu0 0.0
        %1082 = vmatpush1.msra.mxu0 0.0
        %1083 = vmatprep.subr.mxu0 0.0
        %1084 = vmatpush1.msra.mxu0 0.0
        %1085 = vmatprep.subr.mxu0 0.0
        %1086 = vmatpush1.msra.mxu0 0.0
        %1087 = vmatprep.subr.mxu0 0.0
        %1088 = vmatpush1.msra.mxu0 0.0
        %1089 = vmatprep.subr.mxu0 0.0
        %1090 = vmatpush1.msra.mxu0 0.0
        %1091 = vmatprep.subr.mxu0 0.0
        %1092 = vmatpush1.msra.mxu0 0.0
        %1093 = vmatprep.mubr.f32.mxu0 0.0
        %1094 = vmatmul.mubr.f32.gmra.mrb[0].mxu0 %v1024
        %v1095 = vpop.f32.mrb[0].mxu0
        %v1096 = vadd.f32 %v1020, %v1095
        %v1097 = vpop.f32.mrb[0].mxu0
        %1098 = vmatprep.mubr.f32.mxu0 0.0
        %1099 = vmatmul.mubr.f32.gmra.mrb[0].mxu0 %v1027
        %v1100 = vpop.f32.mrb[0].mxu0
        %v1101 = vadd.f32 %v1020, %v1100
        %v1102 = vpop.f32.mrb[0].mxu0
        %1103 = vdwg.mxu0
        %1105 = vrot.lane.b32.xlu0 %v1096, 96
        %v1106 = vpop.permute.xlu0 %1105
        %v1107 = vsel %vm901, %v1096, 0
        %v1109 = vsel %vm901, %v1106, 0
        %1111 = vmatprep.subr.mxu0 0.0
        %1112 = vmatpush1.xpose.msra.mxu0 %v1109
        %1113 = vmatprep.subr.mxu0 0.0
        %1114 = vmatpush1.xpose.msra.mxu0 0.0
        %1115 = vmatprep.subr.mxu0 0.0
        %1116 = vmatpush1.xpose.msra.mxu0 0.0
        %1117 = vmatprep.subr.mxu0 0.0
        %1118 = vmatpush1.xpose.msra.mxu0 0.0
        %1119 = vmatprep.subr.mxu0 0.0
        %1120 = vmatpush1.xpose.msra.mxu0 0.0
        %1121 = vmatprep.subr.mxu0 0.0
        %1122 = vmatpush1.xpose.msra.mxu0 0.0
        %1123 = vmatprep.subr.mxu0 0.0
        %1124 = vmatpush1.xpose.msra.mxu0 0.0
        %1125 = vmatprep.subr.mxu0 0.0
        %1126 = vmatpush1.xpose.msra.mxu0 0.0
        %1127 = vmatprep.subr.mxu0 0.0
        %1128 = vmatpush1.xpose.msra.mxu0 0.0
        %1129 = vmatprep.subr.mxu0 0.0
        %1130 = vmatpush1.xpose.msra.mxu0 0.0
        %1131 = vmatprep.subr.mxu0 0.0
        %1132 = vmatpush1.xpose.msra.mxu0 0.0
        %1133 = vmatprep.subr.mxu0 0.0
        %1134 = vmatpush1.xpose.msra.mxu0 0.0
        %1135 = vmatprep.subr.mxu0 0.0
        %1136 = vmatpush1.xpose.msra.mxu0 0.0
        %1137 = vmatprep.subr.mxu0 0.0
        %1138 = vmatpush1.xpose.msra.mxu0 0.0
        %1139 = vmatprep.subr.mxu0 0.0
        %1140 = vmatpush1.xpose.msra.mxu0 0.0
        %1141 = vmatprep.subr.mxu0 0.0
        %1142 = vmatpush1.xpose.msra.mxu0 0.0
        %1143 = vmatprep.subr.mxu0 0.0
        %1144 = vmatpush1.xpose.msra.mxu0 0.0
        %1145 = vmatprep.subr.mxu0 0.0
        %1146 = vmatpush1.xpose.msra.mxu0 0.0
        %1147 = vmatprep.subr.mxu0 0.0
        %1148 = vmatpush1.xpose.msra.mxu0 0.0
        %1149 = vmatprep.subr.mxu0 0.0
        %1150 = vmatpush1.xpose.msra.mxu0 0.0
        %1151 = vmatprep.subr.mxu0 0.0
        %1152 = vmatpush1.xpose.msra.mxu0 0.0
        %1153 = vmatprep.subr.mxu0 0.0
        %1154 = vmatpush1.xpose.msra.mxu0 0.0
        %1155 = vmatprep.subr.mxu0 0.0
        %1156 = vmatpush1.xpose.msra.mxu0 0.0
        %1157 = vmatprep.subr.mxu0 0.0
        %1158 = vmatpush1.xpose.msra.mxu0 0.0
        %1159 = vmatprep.subr.mxu0 0.0
        %1160 = vmatpush1.xpose.msra.mxu0 0.0
        %1161 = vmatprep.subr.mxu0 0.0
        %1162 = vmatpush1.xpose.msra.mxu0 0.0
        %1163 = vmatprep.subr.mxu0 0.0
        %1164 = vmatpush1.xpose.msra.mxu0 0.0
        %1165 = vmatprep.subr.mxu0 0.0
        %1166 = vmatpush1.xpose.msra.mxu0 0.0
        %1167 = vmatprep.subr.mxu0 0.0
        %1168 = vmatpush1.xpose.msra.mxu0 0.0
        %1169 = vmatprep.subr.mxu0 0.0
        %1170 = vmatpush1.xpose.msra.mxu0 0.0
        %1171 = vmatprep.subr.mxu0 0.0
        %1172 = vmatpush1.xpose.msra.mxu0 0.0
        %1173 = vmatprep.subr.mxu0 0.0
        %1174 = vmatpush1.xpose.msra.mxu0 0.0
        %1175 = vmatprep.mubr.f32.mxu0 0.0
        %1176 = vmatmul.mubr.f32.gmra.mrb[0].mxu0 %v1107
        %v1177 = vpop.f32.mrb[0].mxu0
        %v1178 = vadd.f32 0.0, %v1177
        %v1179 = vpop.f32.mrb[0].mxu0
        %1180 = vdwg.mxu0
        %1182 = vrot.lane.b32.xlu0 %v1101, 96
        %v1183 = vpop.permute.xlu0 %1182
        %v1184 = vsel %vm901, %v1101, 0
        %v1186 = vsel %vm901, %v1183, 0
        %1188 = vmatprep.subr.mxu0 0.0
        %1189 = vmatpush1.xpose.msra.mxu0 %v1186
        %1190 = vmatprep.subr.mxu0 0.0
        %1191 = vmatpush1.xpose.msra.mxu0 0.0
        %1192 = vmatprep.subr.mxu0 0.0
        %1193 = vmatpush1.xpose.msra.mxu0 0.0
        %1194 = vmatprep.subr.mxu0 0.0
        %1195 = vmatpush1.xpose.msra.mxu0 0.0
        %1196 = vmatprep.subr.mxu0 0.0
        %1197 = vmatpush1.xpose.msra.mxu0 0.0
        %1198 = vmatprep.subr.mxu0 0.0
        %1199 = vmatpush1.xpose.msra.mxu0 0.0
        %1200 = vmatprep.subr.mxu0 0.0
        %1201 = vmatpush1.xpose.msra.mxu0 0.0
        %1202 = vmatprep.subr.mxu0 0.0
        %1203 = vmatpush1.xpose.msra.mxu0 0.0
        %1204 = vmatprep.subr.mxu0 0.0
        %1205 = vmatpush1.xpose.msra.mxu0 0.0
        %1206 = vmatprep.subr.mxu0 0.0
        %1207 = vmatpush1.xpose.msra.mxu0 0.0
        %1208 = vmatprep.subr.mxu0 0.0
        %1209 = vmatpush1.xpose.msra.mxu0 0.0
        %1210 = vmatprep.subr.mxu0 0.0
        %1211 = vmatpush1.xpose.msra.mxu0 0.0
        %1212 = vmatprep.subr.mxu0 0.0
        %1213 = vmatpush1.xpose.msra.mxu0 0.0
        %1214 = vmatprep.subr.mxu0 0.0
        %1215 = vmatpush1.xpose.msra.mxu0 0.0
        %1216 = vmatprep.subr.mxu0 0.0
        %1217 = vmatpush1.xpose.msra.mxu0 0.0
        %1218 = vmatprep.subr.mxu0 0.0
        %1219 = vmatpush1.xpose.msra.mxu0 0.0
        %1220 = vmatprep.subr.mxu0 0.0
        %1221 = vmatpush1.xpose.msra.mxu0 0.0
        %1222 = vmatprep.subr.mxu0 0.0
        %1223 = vmatpush1.xpose.msra.mxu0 0.0
        %1224 = vmatprep.subr.mxu0 0.0
        %1225 = vmatpush1.xpose.msra.mxu0 0.0
        %1226 = vmatprep.subr.mxu0 0.0
        %1227 = vmatpush1.xpose.msra.mxu0 0.0
        %1228 = vmatprep.subr.mxu0 0.0
        %1229 = vmatpush1.xpose.msra.mxu0 0.0
        %1230 = vmatprep.subr.mxu0 0.0
        %1231 = vmatpush1.xpose.msra.mxu0 0.0
        %1232 = vmatprep.subr.mxu0 0.0
        %1233 = vmatpush1.xpose.msra.mxu0 0.0
        %1234 = vmatprep.subr.mxu0 0.0
        %1235 = vmatpush1.xpose.msra.mxu0 0.0
        %1236 = vmatprep.subr.mxu0 0.0
        %1237 = vmatpush1.xpose.msra.mxu0 0.0
        %1238 = vmatprep.subr.mxu0 0.0
        %1239 = vmatpush1.xpose.msra.mxu0 0.0
        %1240 = vmatprep.subr.mxu0 0.0
        %1241 = vmatpush1.xpose.msra.mxu0 0.0
        %1242 = vmatprep.subr.mxu0 0.0
        %1243 = vmatpush1.xpose.msra.mxu0 0.0
        %1244 = vmatprep.subr.mxu0 0.0
        %1245 = vmatpush1.xpose.msra.mxu0 0.0
        %1246 = vmatprep.subr.mxu0 0.0
        %1247 = vmatpush1.xpose.msra.mxu0 0.0
        %1248 = vmatprep.subr.mxu0 0.0
        %1249 = vmatpush1.xpose.msra.mxu0 0.0
        %1250 = vmatprep.subr.mxu0 0.0
        %1251 = vmatpush1.xpose.msra.mxu0 0.0
        %1252 = vmatprep.mubr.f32.mxu0 0.0
        %1253 = vmatmul.mubr.f32.gmra.mrb[0].mxu0 %v1184
        %v1254 = vpop.f32.mrb[0].mxu0
        %v1255 = vadd.f32 0.0, %v1254
        %v1256 = vpop.f32.mrb[0].mxu0
        %1257 = vdwg.mxu0
        %v1258 = vmul.f32 %v1178, 0.35355338
        %v1259 = vmul.f32 %v1255, 0.35355338
        %v1262 = vlaneseq
        %v1263 = vshrl.u32 %v1262, 7
        %v1264 = vsub.s32 0, %v1263
        %v1265 = vrot.slane %v986, %v1264
        %v1266 = vlaneseq
        %v1267 = vshrl.u32 %v1266, 7
        %v1268 = vsub.s32 0, %v1267
        %v1269 = vrot.slane %v987, %v1268
        %v1272 = vadd.f32 %v1258, %v1265
        %v1273 = vadd.f32 %v1259, %v1269
        %v1274 = vsel %vm901, %v1272, -inf
        %1275 = vmax.xlane.f32.xlu0 %v1274
        %v1276 = vpop.xlane.xlu0 %1275
        %v1277 = vsel %vm901, %v1273, -inf
        %1278 = vmax.xlane.f32.xlu0 %v1277
        %v1279 = vpop.xlane.xlu0 %1278
        %v1280 = vsub.f32 %v1272, %v1276
        %v1281 = vsub.f32 %v1273, %v1279
        %v1282 = vmul.f32 %v1280, 1.442695
        %v1283 = vpow.pop %v1282
        %v1284 = vmul.f32 %v1281, 1.442695
        %v1285 = vpow.pop %v1284
        %v1286 = vsel %vm901, %v1283, 0.0
        %1287 = vadd.xlane.f32.xlu0 %v1286
        %v1288 = vpop.xlane.xlu0 %1287
        %v1289 = vsel %vm901, %v1285, 0.0
        %1290 = vadd.xlane.f32.xlu0 %v1289
        %v1291 = vpop.xlane.xlu0 %1290
        %v1292 = vrcp.pop %v1288
        %v1293 = vrcp.pop %v1291
        %v1294 = vmul.f32 %v1283, %v1292
        %v1295 = vmul.f32 %v1285, %v1293
        %1296 = vrot.lane.b32.xlu0 %v1096, 64
        %v1297 = vpop.permute.xlu0 %1296
        %v1300 = vsel %vm901, %v1294, 0
        %1302 = vmatprep.subr.mxu0 0.0
        %1303 = vmatpush1.msra.mxu0 %v1297
        %1304 = vmatprep.subr.mxu0 0.0
        %1305 = vmatpush1.msra.mxu0 0.0
        %1306 = vmatprep.subr.mxu0 0.0
        %1307 = vmatpush1.msra.mxu0 0.0
        %1308 = vmatprep.subr.mxu0 0.0
        %1309 = vmatpush1.msra.mxu0 0.0
        %1310 = vmatprep.subr.mxu0 0.0
        %1311 = vmatpush1.msra.mxu0 0.0
        %1312 = vmatprep.subr.mxu0 0.0
        %1313 = vmatpush1.msra.mxu0 0.0
        %1314 = vmatprep.subr.mxu0 0.0
        %1315 = vmatpush1.msra.mxu0 0.0
        %1316 = vmatprep.subr.mxu0 0.0
        %1317 = vmatpush1.msra.mxu0 0.0
        %1318 = vmatprep.subr.mxu0 0.0
        %1319 = vmatpush1.msra.mxu0 0.0
        %1320 = vmatprep.subr.mxu0 0.0
        %1321 = vmatpush1.msra.mxu0 0.0
        %1322 = vmatprep.subr.mxu0 0.0
        %1323 = vmatpush1.msra.mxu0 0.0
        %1324 = vmatprep.subr.mxu0 0.0
        %1325 = vmatpush1.msra.mxu0 0.0
        %1326 = vmatprep.subr.mxu0 0.0
        %1327 = vmatpush1.msra.mxu0 0.0
        %1328 = vmatprep.subr.mxu0 0.0
        %1329 = vmatpush1.msra.mxu0 0.0
        %1330 = vmatprep.subr.mxu0 0.0
        %1331 = vmatpush1.msra.mxu0 0.0
        %1332 = vmatprep.subr.mxu0 0.0
        %1333 = vmatpush1.msra.mxu0 0.0
        %1334 = vmatprep.subr.mxu0 0.0
        %1335 = vmatpush1.msra.mxu0 0.0
        %1336 = vmatprep.subr.mxu0 0.0
        %1337 = vmatpush1.msra.mxu0 0.0
        %1338 = vmatprep.subr.mxu0 0.0
        %1339 = vmatpush1.msra.mxu0 0.0
        %1340 = vmatprep.subr.mxu0 0.0
        %1341 = vmatpush1.msra.mxu0 0.0
        %1342 = vmatprep.subr.mxu0 0.0
        %1343 = vmatpush1.msra.mxu0 0.0
        %1344 = vmatprep.subr.mxu0 0.0
        %1345 = vmatpush1.msra.mxu0 0.0
        %1346 = vmatprep.subr.mxu0 0.0
        %1347 = vmatpush1.msra.mxu0 0.0
        %1348 = vmatprep.subr.mxu0 0.0
        %1349 = vmatpush1.msra.mxu0 0.0
        %1350 = vmatprep.subr.mxu0 0.0
        %1351 = vmatpush1.msra.mxu0 0.0
        %1352 = vmatprep.subr.mxu0 0.0
        %1353 = vmatpush1.msra.mxu0 0.0
        %1354 = vmatprep.subr.mxu0 0.0
        %1355 = vmatpush1.msra.mxu0 0.0
        %1356 = vmatprep.subr.mxu0 0.0
        %1357 = vmatpush1.msra.mxu0 0.0
        %1358 = vmatprep.subr.mxu0 0.0
        %1359 = vmatpush1.msra.mxu0 0.0
        %1360 = vmatprep.subr.mxu0 0.0
        %1361 = vmatpush1.msra.mxu0 0.0
        %1362 = vmatprep.subr.mxu0 0.0
        %1363 = vmatpush1.msra.mxu0 0.0
        %1364 = vmatprep.subr.mxu0 0.0
        %1365 = vmatpush1.msra.mxu0 0.0
        %1366 = vmatprep.mubr.f32.mxu0 0.0
        %1367 = vmatmul.mubr.f32.gmra.mrb[0].mxu0 %v1300
        %v1368 = vpop.f32.mrb[0].mxu0
        %v1369 = vadd.f32 0.0, %v1368
        %v1370 = vpop.f32.mrb[0].mxu0
        %1371 = vdwg.mxu0
        %1372 = vrot.lane.b32.xlu0 %v1101, 64
        %v1373 = vpop.permute.xlu0 %1372
        %v1376 = vsel %vm901, %v1295, 0
        %1378 = vmatprep.subr.mxu0 0.0
        %1379 = vmatpush1.msra.mxu0 %v1373
        %1380 = vmatprep.subr.mxu0 0.0
        %1381 = vmatpush1.msra.mxu0 0.0
        %1382 = vmatprep.subr.mxu0 0.0
        %1383 = vmatpush1.msra.mxu0 0.0
        %1384 = vmatprep.subr.mxu0 0.0
        %1385 = vmatpush1.msra.mxu0 0.0
        %1386 = vmatprep.subr.mxu0 0.0
        %1387 = vmatpush1.msra.mxu0 0.0
        %1388 = vmatprep.subr.mxu0 0.0
        %1389 = vmatpush1.msra.mxu0 0.0
        %1390 = vmatprep.subr.mxu0 0.0
        %1391 = vmatpush1.msra.mxu0 0.0
        %1392 = vmatprep.subr.mxu0 0.0
        %1393 = vmatpush1.msra.mxu0 0.0
        %1394 = vmatprep.subr.mxu0 0.0
        %1395 = vmatpush1.msra.mxu0 0.0
        %1396 = vmatprep.subr.mxu0 0.0
        %1397 = vmatpush1.msra.mxu0 0.0
        %1398 = vmatprep.subr.mxu0 0.0
        %1399 = vmatpush1.msra.mxu0 0.0
        %1400 = vmatprep.subr.mxu0 0.0
        %1401 = vmatpush1.msra.mxu0 0.0
        %1402 = vmatprep.subr.mxu0 0.0
        %1403 = vmatpush1.msra.mxu0 0.0
        %1404 = vmatprep.subr.mxu0 0.0
        %1405 = vmatpush1.msra.mxu0 0.0
        %1406 = vmatprep.subr.mxu0 0.0
        %1407 = vmatpush1.msra.mxu0 0.0
        %1408 = vmatprep.subr.mxu0 0.0
        %1409 = vmatpush1.msra.mxu0 0.0
        %1410 = vmatprep.subr.mxu0 0.0
        %1411 = vmatpush1.msra.mxu0 0.0
        %1412 = vmatprep.subr.mxu0 0.0
        %1413 = vmatpush1.msra.mxu0 0.0
        %1414 = vmatprep.subr.mxu0 0.0
        %1415 = vmatpush1.msra.mxu0 0.0
        %1416 = vmatprep.subr.mxu0 0.0
        %1417 = vmatpush1.msra.mxu0 0.0
        %1418 = vmatprep.subr.mxu0 0.0
        %1419 = vmatpush1.msra.mxu0 0.0
        %1420 = vmatprep.subr.mxu0 0.0
        %1421 = vmatpush1.msra.mxu0 0.0
        %1422 = vmatprep.subr.mxu0 0.0
        %1423 = vmatpush1.msra.mxu0 0.0
        %1424 = vmatprep.subr.mxu0 0.0
        %1425 = vmatpush1.msra.mxu0 0.0
        %1426 = vmatprep.subr.mxu0 0.0
        %1427 = vmatpush1.msra.mxu0 0.0
        %1428 = vmatprep.subr.mxu0 0.0
        %1429 = vmatpush1.msra.mxu0 0.0
        %1430 = vmatprep.subr.mxu0 0.0
        %1431 = vmatpush1.msra.mxu0 0.0
        %1432 = vmatprep.subr.mxu0 0.0
        %1433 = vmatpush1.msra.mxu0 0.0
        %1434 = vmatprep.subr.mxu0 0.0
        %1435 = vmatpush1.msra.mxu0 0.0
        %1436 = vmatprep.subr.mxu0 0.0
        %1437 = vmatpush1.msra.mxu0 0.0
        %1438 = vmatprep.subr.mxu0 0.0
        %1439 = vmatpush1.msra.mxu0 0.0
        %1440 = vmatprep.subr.mxu0 0.0
        %1441 = vmatpush1.msra.mxu0 0.0
        %1442 = vmatprep.mubr.f32.mxu0 0.0
        %1443 = vmatmul.mubr.f32.gmra.mrb[0].mxu0 %v1376
        %v1444 = vpop.f32.mrb[0].mxu0
        %v1445 = vadd.f32 0.0, %v1444
        %v1446 = vpop.f32.mrb[0].mxu0
        %1447 = vdwg.mxu0
        %1448 = vrot.lane.b32.xlu0 %v1096, 120
        %v1449 = vpop.permute.xlu0 %1448
        %1450 = vrot.lane.b32.xlu0 %v1096, 88
        %v1451 = vpop.permute.xlu0 %1450
        %v1452 = vsel %vm901, %v1449, 0
        %v1454 = vsel %vm901, %v1451, 0
        %1456 = vmatprep.subr.mxu0 0.0
        %1457 = vmatpush1.xpose.msra.mxu0 %v1454
        %1458 = vmatprep.subr.mxu0 0.0
        %1459 = vmatpush1.xpose.msra.mxu0 0.0
        %1460 = vmatprep.subr.mxu0 0.0
        %1461 = vmatpush1.xpose.msra.mxu0 0.0
        %1462 = vmatprep.subr.mxu0 0.0
        %1463 = vmatpush1.xpose.msra.mxu0 0.0
        %1464 = vmatprep.subr.mxu0 0.0
        %1465 = vmatpush1.xpose.msra.mxu0 0.0
        %1466 = vmatprep.subr.mxu0 0.0
        %1467 = vmatpush1.xpose.msra.mxu0 0.0
        %1468 = vmatprep.subr.mxu0 0.0
        %1469 = vmatpush1.xpose.msra.mxu0 0.0
        %1470 = vmatprep.subr.mxu0 0.0
        %1471 = vmatpush1.xpose.msra.mxu0 0.0
        %1472 = vmatprep.subr.mxu0 0.0
        %1473 = vmatpush1.xpose.msra.mxu0 0.0
        %1474 = vmatprep.subr.mxu0 0.0
        %1475 = vmatpush1.xpose.msra.mxu0 0.0
        %1476 = vmatprep.subr.mxu0 0.0
        %1477 = vmatpush1.xpose.msra.mxu0 0.0
        %1478 = vmatprep.subr.mxu0 0.0
        %1479 = vmatpush1.xpose.msra.mxu0 0.0
        %1480 = vmatprep.subr.mxu0 0.0
        %1481 = vmatpush1.xpose.msra.mxu0 0.0
        %1482 = vmatprep.subr.mxu0 0.0
        %1483 = vmatpush1.xpose.msra.mxu0 0.0
        %1484 = vmatprep.subr.mxu0 0.0
        %1485 = vmatpush1.xpose.msra.mxu0 0.0
        %1486 = vmatprep.subr.mxu0 0.0
        %1487 = vmatpush1.xpose.msra.mxu0 0.0
        %1488 = vmatprep.subr.mxu0 0.0
        %1489 = vmatpush1.xpose.msra.mxu0 0.0
        %1490 = vmatprep.subr.mxu0 0.0
        %1491 = vmatpush1.xpose.msra.mxu0 0.0
        %1492 = vmatprep.subr.mxu0 0.0
        %1493 = vmatpush1.xpose.msra.mxu0 0.0
        %1494 = vmatprep.subr.mxu0 0.0
        %1495 = vmatpush1.xpose.msra.mxu0 0.0
        %1496 = vmatprep.subr.mxu0 0.0
        %1497 = vmatpush1.xpose.msra.mxu0 0.0
        %1498 = vmatprep.subr.mxu0 0.0
        %1499 = vmatpush1.xpose.msra.mxu0 0.0
        %1500 = vmatprep.subr.mxu0 0.0
        %1501 = vmatpush1.xpose.msra.mxu0 0.0
        %1502 = vmatprep.subr.mxu0 0.0
        %1503 = vmatpush1.xpose.msra.mxu0 0.0
        %1504 = vmatprep.subr.mxu0 0.0
        %1505 = vmatpush1.xpose.msra.mxu0 0.0
        %1506 = vmatprep.subr.mxu0 0.0
        %1507 = vmatpush1.xpose.msra.mxu0 0.0
        %1508 = vmatprep.subr.mxu0 0.0
        %1509 = vmatpush1.xpose.msra.mxu0 0.0
        %1510 = vmatprep.subr.mxu0 0.0
        %1511 = vmatpush1.xpose.msra.mxu0 0.0
        %1512 = vmatprep.subr.mxu0 0.0
        %1513 = vmatpush1.xpose.msra.mxu0 0.0
        %1514 = vmatprep.subr.mxu0 0.0
        %1515 = vmatpush1.xpose.msra.mxu0 0.0
        %1516 = vmatprep.subr.mxu0 0.0
        %1517 = vmatpush1.xpose.msra.mxu0 0.0
        %1518 = vmatprep.subr.mxu0 0.0
        %1519 = vmatpush1.xpose.msra.mxu0 0.0
        %1520 = vmatprep.mubr.f32.mxu0 0.0
        %1521 = vmatmul.mubr.f32.gmra.mrb[0].mxu0 %v1452
        %v1522 = vpop.f32.mrb[0].mxu0
        %v1523 = vadd.f32 0.0, %v1522
        %v1524 = vpop.f32.mrb[0].mxu0
        %1525 = vdwg.mxu0
        %1526 = vrot.lane.b32.xlu0 %v1101, 120
        %v1527 = vpop.permute.xlu0 %1526
        %1528 = vrot.lane.b32.xlu0 %v1101, 88
        %v1529 = vpop.permute.xlu0 %1528
        %v1530 = vsel %vm901, %v1527, 0
        %v1532 = vsel %vm901, %v1529, 0
        %1534 = vmatprep.subr.mxu0 0.0
        %1535 = vmatpush1.xpose.msra.mxu0 %v1532
        %1536 = vmatprep.subr.mxu0 0.0
        %1537 = vmatpush1.xpose.msra.mxu0 0.0
        %1538 = vmatprep.subr.mxu0 0.0
        %1539 = vmatpush1.xpose.msra.mxu0 0.0
        %1540 = vmatprep.subr.mxu0 0.0
        %1541 = vmatpush1.xpose.msra.mxu0 0.0
        %1542 = vmatprep.subr.mxu0 0.0
        %1543 = vmatpush1.xpose.msra.mxu0 0.0
        %1544 = vmatprep.subr.mxu0 0.0
        %1545 = vmatpush1.xpose.msra.mxu0 0.0
        %1546 = vmatprep.subr.mxu0 0.0
        %1547 = vmatpush1.xpose.msra.mxu0 0.0
        %1548 = vmatprep.subr.mxu0 0.0
        %1549 = vmatpush1.xpose.msra.mxu0 0.0
        %1550 = vmatprep.subr.mxu0 0.0
        %1551 = vmatpush1.xpose.msra.mxu0 0.0
        %1552 = vmatprep.subr.mxu0 0.0
        %1553 = vmatpush1.xpose.msra.mxu0 0.0
        %1554 = vmatprep.subr.mxu0 0.0
        %1555 = vmatpush1.xpose.msra.mxu0 0.0
        %1556 = vmatprep.subr.mxu0 0.0
        %1557 = vmatpush1.xpose.msra.mxu0 0.0
        %1558 = vmatprep.subr.mxu0 0.0
        %1559 = vmatpush1.xpose.msra.mxu0 0.0
        %1560 = vmatprep.subr.mxu0 0.0
        %1561 = vmatpush1.xpose.msra.mxu0 0.0
        %1562 = vmatprep.subr.mxu0 0.0
        %1563 = vmatpush1.xpose.msra.mxu0 0.0
        %1564 = vmatprep.subr.mxu0 0.0
        %1565 = vmatpush1.xpose.msra.mxu0 0.0
        %1566 = vmatprep.subr.mxu0 0.0
        %1567 = vmatpush1.xpose.msra.mxu0 0.0
        %1568 = vmatprep.subr.mxu0 0.0
        %1569 = vmatpush1.xpose.msra.mxu0 0.0
        %1570 = vmatprep.subr.mxu0 0.0
        %1571 = vmatpush1.xpose.msra.mxu0 0.0
        %1572 = vmatprep.subr.mxu0 0.0
        %1573 = vmatpush1.xpose.msra.mxu0 0.0
        %1574 = vmatprep.subr.mxu0 0.0
        %1575 = vmatpush1.xpose.msra.mxu0 0.0
        %1576 = vmatprep.subr.mxu0 0.0
        %1577 = vmatpush1.xpose.msra.mxu0 0.0
        %1578 = vmatprep.subr.mxu0 0.0
        %1579 = vmatpush1.xpose.msra.mxu0 0.0
        %1580 = vmatprep.subr.mxu0 0.0
        %1581 = vmatpush1.xpose.msra.mxu0 0.0
        %1582 = vmatprep.subr.mxu0 0.0
        %1583 = vmatpush1.xpose.msra.mxu0 0.0
        %1584 = vmatprep.subr.mxu0 0.0
        %1585 = vmatpush1.xpose.msra.mxu0 0.0
        %1586 = vmatprep.subr.mxu0 0.0
        %1587 = vmatpush1.xpose.msra.mxu0 0.0
        %1588 = vmatprep.subr.mxu0 0.0
        %1589 = vmatpush1.xpose.msra.mxu0 0.0
        %1590 = vmatprep.subr.mxu0 0.0
        %1591 = vmatpush1.xpose.msra.mxu0 0.0
        %1592 = vmatprep.subr.mxu0 0.0
        %1593 = vmatpush1.xpose.msra.mxu0 0.0
        %1594 = vmatprep.subr.mxu0 0.0
        %1595 = vmatpush1.xpose.msra.mxu0 0.0
        %1596 = vmatprep.subr.mxu0 0.0
        %1597 = vmatpush1.xpose.msra.mxu0 0.0
        %1598 = vmatprep.mubr.f32.mxu0 0.0
        %1599 = vmatmul.mubr.f32.gmra.mrb[0].mxu0 %v1530
        %v1600 = vpop.f32.mrb[0].mxu0
        %v1601 = vadd.f32 0.0, %v1600
        %v1602 = vpop.f32.mrb[0].mxu0
        %1603 = vdwg.mxu0
        %v1604 = vmul.f32 %v1523, 0.35355338
        %v1605 = vmul.f32 %v1601, 0.35355338
        %v1606 = vadd.f32 %v1604, %v1265
        %v1607 = vadd.f32 %v1605, %v1269
        %v1608 = vsel %vm901, %v1606, -inf
        %1609 = vmax.xlane.f32.xlu0 %v1608
        %v1610 = vpop.xlane.xlu0 %1609
        %v1611 = vsel %vm901, %v1607, -inf
        %1612 = vmax.xlane.f32.xlu0 %v1611
        %v1613 = vpop.xlane.xlu0 %1612
        %v1614 = vsub.f32 %v1606, %v1610
        %v1615 = vsub.f32 %v1607, %v1613
        %v1616 = vmul.f32 %v1614, 1.442695
        %v1617 = vpow.pop %v1616
        %v1618 = vmul.f32 %v1615, 1.442695
        %v1619 = vpow.pop %v1618
        %v1620 = vsel %vm901, %v1617, 0.0
        %1621 = vadd.xlane.f32.xlu0 %v1620
        %v1622 = vpop.xlane.xlu0 %1621
        %v1623 = vsel %vm901, %v1619, 0.0
        %1624 = vadd.xlane.f32.xlu0 %v1623
        %v1625 = vpop.xlane.xlu0 %1624
        %v1626 = vrcp.pop %v1622
        %v1627 = vrcp.pop %v1625
        %v1628 = vmul.f32 %v1617, %v1626
        %v1629 = vmul.f32 %v1619, %v1627
        %1630 = vrot.lane.b32.xlu0 %v1096, 56
        %v1631 = vpop.permute.xlu0 %1630
        %v1634 = vsel %vm901, %v1628, 0
        %1636 = vmatprep.subr.mxu0 0.0
        %1637 = vmatpush1.msra.mxu0 %v1631
        %1638 = vmatprep.subr.mxu0 0.0
        %1639 = vmatpush1.msra.mxu0 0.0
        %1640 = vmatprep.subr.mxu0 0.0
        %1641 = vmatpush1.msra.mxu0 0.0
        %1642 = vmatprep.subr.mxu0 0.0
        %1643 = vmatpush1.msra.mxu0 0.0
        %1644 = vmatprep.subr.mxu0 0.0
        %1645 = vmatpush1.msra.mxu0 0.0
        %1646 = vmatprep.subr.mxu0 0.0
        %1647 = vmatpush1.msra.mxu0 0.0
        %1648 = vmatprep.subr.mxu0 0.0
        %1649 = vmatpush1.msra.mxu0 0.0
        %1650 = vmatprep.subr.mxu0 0.0
        %1651 = vmatpush1.msra.mxu0 0.0
        %1652 = vmatprep.subr.mxu0 0.0
        %1653 = vmatpush1.msra.mxu0 0.0
        %1654 = vmatprep.subr.mxu0 0.0
        %1655 = vmatpush1.msra.mxu0 0.0
        %1656 = vmatprep.subr.mxu0 0.0
        %1657 = vmatpush1.msra.mxu0 0.0
        %1658 = vmatprep.subr.mxu0 0.0
        %1659 = vmatpush1.msra.mxu0 0.0
        %1660 = vmatprep.subr.mxu0 0.0
        %1661 = vmatpush1.msra.mxu0 0.0
        %1662 = vmatprep.subr.mxu0 0.0
        %1663 = vmatpush1.msra.mxu0 0.0
        %1664 = vmatprep.subr.mxu0 0.0
        %1665 = vmatpush1.msra.mxu0 0.0
        %1666 = vmatprep.subr.mxu0 0.0
        %1667 = vmatpush1.msra.mxu0 0.0
        %1668 = vmatprep.subr.mxu0 0.0
        %1669 = vmatpush1.msra.mxu0 0.0
        %1670 = vmatprep.subr.mxu0 0.0
        %1671 = vmatpush1.msra.mxu0 0.0
        %1672 = vmatprep.subr.mxu0 0.0
        %1673 = vmatpush1.msra.mxu0 0.0
        %1674 = vmatprep.subr.mxu0 0.0
        %1675 = vmatpush1.msra.mxu0 0.0
        %1676 = vmatprep.subr.mxu0 0.0
        %1677 = vmatpush1.msra.mxu0 0.0
        %1678 = vmatprep.subr.mxu0 0.0
        %1679 = vmatpush1.msra.mxu0 0.0
        %1680 = vmatprep.subr.mxu0 0.0
        %1681 = vmatpush1.msra.mxu0 0.0
        %1682 = vmatprep.subr.mxu0 0.0
        %1683 = vmatpush1.msra.mxu0 0.0
        %1684 = vmatprep.subr.mxu0 0.0
        %1685 = vmatpush1.msra.mxu0 0.0
        %1686 = vmatprep.subr.mxu0 0.0
        %1687 = vmatpush1.msra.mxu0 0.0
        %1688 = vmatprep.subr.mxu0 0.0
        %1689 = vmatpush1.msra.mxu0 0.0
        %1690 = vmatprep.subr.mxu0 0.0
        %1691 = vmatpush1.msra.mxu0 0.0
        %1692 = vmatprep.subr.mxu0 0.0
        %1693 = vmatpush1.msra.mxu0 0.0
        %1694 = vmatprep.subr.mxu0 0.0
        %1695 = vmatpush1.msra.mxu0 0.0
        %1696 = vmatprep.subr.mxu0 0.0
        %1697 = vmatpush1.msra.mxu0 0.0
        %1698 = vmatprep.subr.mxu0 0.0
        %1699 = vmatpush1.msra.mxu0 0.0
        %1700 = vmatprep.mubr.f32.mxu0 0.0
        %1701 = vmatmul.mubr.f32.gmra.mrb[0].mxu0 %v1634
        %v1702 = vpop.f32.mrb[0].mxu0
        %v1703 = vadd.f32 0.0, %v1702
        %v1704 = vpop.f32.mrb[0].mxu0
        %1705 = vdwg.mxu0
        %1706 = vrot.lane.b32.xlu0 %v1101, 56
        %v1707 = vpop.permute.xlu0 %1706
        %v1710 = vsel %vm901, %v1629, 0
        %1712 = vmatprep.subr.mxu0 0.0
        %1713 = vmatpush1.msra.mxu0 %v1707
        %1714 = vmatprep.subr.mxu0 0.0
        %1715 = vmatpush1.msra.mxu0 0.0
        %1716 = vmatprep.subr.mxu0 0.0
        %1717 = vmatpush1.msra.mxu0 0.0
        %1718 = vmatprep.subr.mxu0 0.0
        %1719 = vmatpush1.msra.mxu0 0.0
        %1720 = vmatprep.subr.mxu0 0.0
        %1721 = vmatpush1.msra.mxu0 0.0
        %1722 = vmatprep.subr.mxu0 0.0
        %1723 = vmatpush1.msra.mxu0 0.0
        %1724 = vmatprep.subr.mxu0 0.0
        %1725 = vmatpush1.msra.mxu0 0.0
        %1726 = vmatprep.subr.mxu0 0.0
        %1727 = vmatpush1.msra.mxu0 0.0
        %1728 = vmatprep.subr.mxu0 0.0
        %1729 = vmatpush1.msra.mxu0 0.0
        %1730 = vmatprep.subr.mxu0 0.0
        %1731 = vmatpush1.msra.mxu0 0.0
        %1732 = vmatprep.subr.mxu0 0.0
        %1733 = vmatpush1.msra.mxu0 0.0
        %1734 = vmatprep.subr.mxu0 0.0
        %1735 = vmatpush1.msra.mxu0 0.0
        %1736 = vmatprep.subr.mxu0 0.0
        %1737 = vmatpush1.msra.mxu0 0.0
        %1738 = vmatprep.subr.mxu0 0.0
        %1739 = vmatpush1.msra.mxu0 0.0
        %1740 = vmatprep.subr.mxu0 0.0
        %1741 = vmatpush1.msra.mxu0 0.0
        %1742 = vmatprep.subr.mxu0 0.0
        %1743 = vmatpush1.msra.mxu0 0.0
        %1744 = vmatprep.subr.mxu0 0.0
        %1745 = vmatpush1.msra.mxu0 0.0
        %1746 = vmatprep.subr.mxu0 0.0
        %1747 = vmatpush1.msra.mxu0 0.0
        %1748 = vmatprep.subr.mxu0 0.0
        %1749 = vmatpush1.msra.mxu0 0.0
        %1750 = vmatprep.subr.mxu0 0.0
        %1751 = vmatpush1.msra.mxu0 0.0
        %1752 = vmatprep.subr.mxu0 0.0
        %1753 = vmatpush1.msra.mxu0 0.0
        %1754 = vmatprep.subr.mxu0 0.0
        %1755 = vmatpush1.msra.mxu0 0.0
        %1756 = vmatprep.subr.mxu0 0.0
        %1757 = vmatpush1.msra.mxu0 0.0
        %1758 = vmatprep.subr.mxu0 0.0
        %1759 = vmatpush1.msra.mxu0 0.0
        %1760 = vmatprep.subr.mxu0 0.0
        %1761 = vmatpush1.msra.mxu0 0.0
        %1762 = vmatprep.subr.mxu0 0.0
        %1763 = vmatpush1.msra.mxu0 0.0
        %1764 = vmatprep.subr.mxu0 0.0
        %1765 = vmatpush1.msra.mxu0 0.0
        %1766 = vmatprep.subr.mxu0 0.0
        %1767 = vmatpush1.msra.mxu0 0.0
        %1768 = vmatprep.subr.mxu0 0.0
        %1769 = vmatpush1.msra.mxu0 0.0
        %1770 = vmatprep.subr.mxu0 0.0
        %1771 = vmatpush1.msra.mxu0 0.0
        %1772 = vmatprep.subr.mxu0 0.0
        %1773 = vmatpush1.msra.mxu0 0.0
        %1774 = vmatprep.subr.mxu0 0.0
        %1775 = vmatpush1.msra.mxu0 0.0
        %1776 = vmatprep.mubr.f32.mxu0 0.0
        %1777 = vmatmul.mubr.f32.gmra.mrb[0].mxu0 %v1710
        %v1778 = vpop.f32.mrb[0].mxu0
        %v1779 = vadd.f32 0.0, %v1778
        %v1780 = vpop.f32.mrb[0].mxu0
        %1781 = vdwg.mxu0
        %v1783 = vsel %vm901, %v1703, 0
        %v1786 = vsel %vm901, %v1779, 0
        %1788 = vmatprep.subr.mxu0 0.0
        %1789 = vmatpush1.msra.mxu0 %v994
        %1790 = vmatprep.subr.mxu0 0.0
        %1791 = vmatpush1.msra.mxu0 0.0
        %1792 = vmatprep.subr.mxu0 0.0
        %1793 = vmatpush1.msra.mxu0 0.0
        %1794 = vmatprep.subr.mxu0 0.0
        %1795 = vmatpush1.msra.mxu0 0.0
        %1796 = vmatprep.subr.mxu0 0.0
        %1797 = vmatpush1.msra.mxu0 0.0
        %1798 = vmatprep.subr.mxu0 0.0
        %1799 = vmatpush1.msra.mxu0 0.0
        %1800 = vmatprep.subr.mxu0 0.0
        %1801 = vmatpush1.msra.mxu0 0.0
        %1802 = vmatprep.subr.mxu0 0.0
        %1803 = vmatpush1.msra.mxu0 0.0
        %1804 = vmatprep.subr.mxu0 0.0
        %1805 = vmatpush1.msra.mxu0 0.0
        %1806 = vmatprep.subr.mxu0 0.0
        %1807 = vmatpush1.msra.mxu0 0.0
        %1808 = vmatprep.subr.mxu0 0.0
        %1809 = vmatpush1.msra.mxu0 0.0
        %1810 = vmatprep.subr.mxu0 0.0
        %1811 = vmatpush1.msra.mxu0 0.0
        %1812 = vmatprep.subr.mxu0 0.0
        %1813 = vmatpush1.msra.mxu0 0.0
        %1814 = vmatprep.subr.mxu0 0.0
        %1815 = vmatpush1.msra.mxu0 0.0
        %1816 = vmatprep.subr.mxu0 0.0
        %1817 = vmatpush1.msra.mxu0 0.0
        %1818 = vmatprep.subr.mxu0 0.0
        %1819 = vmatpush1.msra.mxu0 0.0
        %1820 = vmatprep.subr.mxu0 0.0
        %1821 = vmatpush1.msra.mxu0 0.0
        %1822 = vmatprep.subr.mxu0 0.0
        %1823 = vmatpush1.msra.mxu0 0.0
        %1824 = vmatprep.subr.mxu0 0.0
        %1825 = vmatpush1.msra.mxu0 0.0
        %1826 = vmatprep.subr.mxu0 0.0
        %1827 = vmatpush1.msra.mxu0 0.0
        %1828 = vmatprep.subr.mxu0 0.0
        %1829 = vmatpush1.msra.mxu0 0.0
        %1830 = vmatprep.subr.mxu0 0.0
        %1831 = vmatpush1.msra.mxu0 0.0
        %1832 = vmatprep.subr.mxu0 0.0
        %1833 = vmatpush1.msra.mxu0 0.0
        %1834 = vmatprep.subr.mxu0 0.0
        %1835 = vmatpush1.msra.mxu0 0.0
        %1836 = vmatprep.subr.mxu0 0.0
        %1837 = vmatpush1.msra.mxu0 0.0
        %1838 = vmatprep.subr.mxu0 0.0
        %1839 = vmatpush1.msra.mxu0 0.0
        %1840 = vmatprep.subr.mxu0 0.0
        %1841 = vmatpush1.msra.mxu0 0.0
        %1842 = vmatprep.subr.mxu0 0.0
        %1843 = vmatpush1.msra.mxu0 0.0
        %1844 = vmatprep.subr.mxu0 0.0
        %1845 = vmatpush1.msra.mxu0 0.0
        %1846 = vmatprep.subr.mxu0 0.0
        %1847 = vmatpush1.msra.mxu0 0.0
        %1848 = vmatprep.subr.mxu0 0.0
        %1849 = vmatpush1.msra.mxu0 0.0
        %1850 = vmatprep.subr.mxu0 0.0
        %1851 = vmatpush1.msra.mxu0 0.0
        %1852 = vmatprep.mubr.f32.mxu0 0.0
        %1853 = vmatmul.mubr.f32.gmra.mrb[0].mxu0 %v1783
        %v1854 = vpop.f32.mrb[0].mxu0
        %v1855 = vadd.f32 0.0, %v1854
        %v1856 = vpop.f32.mrb[0].mxu0
        %1857 = vmatprep.mubr.f32.mxu0 0.0
        %1858 = vmatmul.mubr.f32.gmra.mrb[0].mxu0 %v1786
        %v1859 = vpop.f32.mrb[0].mxu0
        %v1860 = vadd.f32 0.0, %v1859
        %v1861 = vpop.f32.mrb[0].mxu0
        %1862 = vdwg.mxu0
        %v1864 = vsel %vm901, %v1369, 0
        %v1867 = vsel %vm901, %v1445, 0
        %1869 = vmatprep.subr.mxu0 0.0
        %1870 = vmatpush1.msra.mxu0 %v993
        %1871 = vmatprep.subr.mxu0 0.0
        %1872 = vmatpush1.msra.mxu0 0.0
        %1873 = vmatprep.subr.mxu0 0.0
        %1874 = vmatpush1.msra.mxu0 0.0
        %1875 = vmatprep.subr.mxu0 0.0
        %1876 = vmatpush1.msra.mxu0 0.0
        %1877 = vmatprep.subr.mxu0 0.0
        %1878 = vmatpush1.msra.mxu0 0.0
        %1879 = vmatprep.subr.mxu0 0.0
        %1880 = vmatpush1.msra.mxu0 0.0
        %1881 = vmatprep.subr.mxu0 0.0
        %1882 = vmatpush1.msra.mxu0 0.0
        %1883 = vmatprep.subr.mxu0 0.0
        %1884 = vmatpush1.msra.mxu0 0.0
        %1885 = vmatprep.subr.mxu0 0.0
        %1886 = vmatpush1.msra.mxu0 0.0
        %1887 = vmatprep.subr.mxu0 0.0
        %1888 = vmatpush1.msra.mxu0 0.0
        %1889 = vmatprep.subr.mxu0 0.0
        %1890 = vmatpush1.msra.mxu0 0.0
        %1891 = vmatprep.subr.mxu0 0.0
        %1892 = vmatpush1.msra.mxu0 0.0
        %1893 = vmatprep.subr.mxu0 0.0
        %1894 = vmatpush1.msra.mxu0 0.0
        %1895 = vmatprep.subr.mxu0 0.0
        %1896 = vmatpush1.msra.mxu0 0.0
        %1897 = vmatprep.subr.mxu0 0.0
        %1898 = vmatpush1.msra.mxu0 0.0
        %1899 = vmatprep.subr.mxu0 0.0
        %1900 = vmatpush1.msra.mxu0 0.0
        %1901 = vmatprep.subr.mxu0 0.0
        %1902 = vmatpush1.msra.mxu0 0.0
        %1903 = vmatprep.subr.mxu0 0.0
        %1904 = vmatpush1.msra.mxu0 0.0
        %1905 = vmatprep.subr.mxu0 0.0
        %1906 = vmatpush1.msra.mxu0 0.0
        %1907 = vmatprep.subr.mxu0 0.0
        %1908 = vmatpush1.msra.mxu0 0.0
        %1909 = vmatprep.subr.mxu0 0.0
        %1910 = vmatpush1.msra.mxu0 0.0
        %1911 = vmatprep.subr.mxu0 0.0
        %1912 = vmatpush1.msra.mxu0 0.0
        %1913 = vmatprep.subr.mxu0 0.0
        %1914 = vmatpush1.msra.mxu0 0.0
        %1915 = vmatprep.subr.mxu0 0.0
        %1916 = vmatpush1.msra.mxu0 0.0
        %1917 = vmatprep.subr.mxu0 0.0
        %1918 = vmatpush1.msra.mxu0 0.0
        %1919 = vmatprep.subr.mxu0 0.0
        %1920 = vmatpush1.msra.mxu0 0.0
        %1921 = vmatprep.subr.mxu0 0.0
        %1922 = vmatpush1.msra.mxu0 0.0
        %1923 = vmatprep.subr.mxu0 0.0
        %1924 = vmatpush1.msra.mxu0 0.0
        %1925 = vmatprep.subr.mxu0 0.0
        %1926 = vmatpush1.msra.mxu0 0.0
        %1927 = vmatprep.subr.mxu0 0.0
        %1928 = vmatpush1.msra.mxu0 0.0
        %1929 = vmatprep.subr.mxu0 0.0
        %1930 = vmatpush1.msra.mxu0 0.0
        %1931 = vmatprep.subr.mxu0 0.0
        %1932 = vmatpush1.msra.mxu0 0.0
        %1933 = vmatprep.mubr.f32.mxu0 0.0
        %1934 = vmatmul.mubr.f32.gmra.mrb[0].mxu0 %v1864
        %v1935 = vpop.f32.mrb[0].mxu0
        %v1936 = vadd.f32 %v1855, %v1935
        %v1937 = vpop.f32.mrb[0].mxu0
        %1938 = vmatprep.mubr.f32.mxu0 0.0
        %1939 = vmatmul.mubr.f32.gmra.mrb[0].mxu0 %v1867
        %v1940 = vpop.f32.mrb[0].mxu0
        %v1941 = vadd.f32 %v1860, %v1940
        %v1942 = vpop.f32.mrb[0].mxu0
        %1943 = vdwg.mxu0
        %1944 = vrot.lane.b32.xlu0 %v1096, 112
        %v1945 = vpop.permute.xlu0 %1944
        %1946 = vrot.lane.b32.xlu0 %v1096, 80
        %v1947 = vpop.permute.xlu0 %1946
        %v1948 = vsel %vm901, %v1945, 0
        %v1950 = vsel %vm901, %v1947, 0
        %1952 = vmatprep.subr.mxu0 0.0
        %1953 = vmatpush1.xpose.msra.mxu0 %v1950
        %1954 = vmatprep.subr.mxu0 0.0
        %1955 = vmatpush1.xpose.msra.mxu0 0.0
        %1956 = vmatprep.subr.mxu0 0.0
        %1957 = vmatpush1.xpose.msra.mxu0 0.0
        %1958 = vmatprep.subr.mxu0 0.0
        %1959 = vmatpush1.xpose.msra.mxu0 0.0
        %1960 = vmatprep.subr.mxu0 0.0
        %1961 = vmatpush1.xpose.msra.mxu0 0.0
        %1962 = vmatprep.subr.mxu0 0.0
        %1963 = vmatpush1.xpose.msra.mxu0 0.0
        %1964 = vmatprep.subr.mxu0 0.0
        %1965 = vmatpush1.xpose.msra.mxu0 0.0
        %1966 = vmatprep.subr.mxu0 0.0
        %1967 = vmatpush1.xpose.msra.mxu0 0.0
        %1968 = vmatprep.subr.mxu0 0.0
        %1969 = vmatpush1.xpose.msra.mxu0 0.0
        %1970 = vmatprep.subr.mxu0 0.0
        %1971 = vmatpush1.xpose.msra.mxu0 0.0
        %1972 = vmatprep.subr.mxu0 0.0
        %1973 = vmatpush1.xpose.msra.mxu0 0.0
        %1974 = vmatprep.subr.mxu0 0.0
        %1975 = vmatpush1.xpose.msra.mxu0 0.0
        %1976 = vmatprep.subr.mxu0 0.0
        %1977 = vmatpush1.xpose.msra.mxu0 0.0
        %1978 = vmatprep.subr.mxu0 0.0
        %1979 = vmatpush1.xpose.msra.mxu0 0.0
        %1980 = vmatprep.subr.mxu0 0.0
        %1981 = vmatpush1.xpose.msra.mxu0 0.0
        %1982 = vmatprep.subr.mxu0 0.0
        %1983 = vmatpush1.xpose.msra.mxu0 0.0
        %1984 = vmatprep.subr.mxu0 0.0
        %1985 = vmatpush1.xpose.msra.mxu0 0.0
        %1986 = vmatprep.subr.mxu0 0.0
        %1987 = vmatpush1.xpose.msra.mxu0 0.0
        %1988 = vmatprep.subr.mxu0 0.0
        %1989 = vmatpush1.xpose.msra.mxu0 0.0
        %1990 = vmatprep.subr.mxu0 0.0
        %1991 = vmatpush1.xpose.msra.mxu0 0.0
        %1992 = vmatprep.subr.mxu0 0.0
        %1993 = vmatpush1.xpose.msra.mxu0 0.0
        %1994 = vmatprep.subr.mxu0 0.0
        %1995 = vmatpush1.xpose.msra.mxu0 0.0
        %1996 = vmatprep.subr.mxu0 0.0
        %1997 = vmatpush1.xpose.msra.mxu0 0.0
        %1998 = vmatprep.subr.mxu0 0.0
        %1999 = vmatpush1.xpose.msra.mxu0 0.0
        %2000 = vmatprep.subr.mxu0 0.0
        %2001 = vmatpush1.xpose.msra.mxu0 0.0
        %2002 = vmatprep.subr.mxu0 0.0
        %2003 = vmatpush1.xpose.msra.mxu0 0.0
        %2004 = vmatprep.subr.mxu0 0.0
        %2005 = vmatpush1.xpose.msra.mxu0 0.0
        %2006 = vmatprep.subr.mxu0 0.0
        %2007 = vmatpush1.xpose.msra.mxu0 0.0
        %2008 = vmatprep.subr.mxu0 0.0
        %2009 = vmatpush1.xpose.msra.mxu0 0.0
        %2010 = vmatprep.subr.mxu0 0.0
        %2011 = vmatpush1.xpose.msra.mxu0 0.0
        %2012 = vmatprep.subr.mxu0 0.0
        %2013 = vmatpush1.xpose.msra.mxu0 0.0
        %2014 = vmatprep.subr.mxu0 0.0
        %2015 = vmatpush1.xpose.msra.mxu0 0.0
        %2016 = vmatprep.mubr.f32.mxu0 0.0
        %2017 = vmatmul.mubr.f32.gmra.mrb[0].mxu0 %v1948
        %v2018 = vpop.f32.mrb[0].mxu0
        %v2019 = vadd.f32 0.0, %v2018
        %v2020 = vpop.f32.mrb[0].mxu0
        %2021 = vdwg.mxu0
        %2022 = vrot.lane.b32.xlu0 %v1101, 112
        %v2023 = vpop.permute.xlu0 %2022
        %2024 = vrot.lane.b32.xlu0 %v1101, 80
        %v2025 = vpop.permute.xlu0 %2024
        %v2026 = vsel %vm901, %v2023, 0
        %v2028 = vsel %vm901, %v2025, 0
        %2030 = vmatprep.subr.mxu0 0.0
        %2031 = vmatpush1.xpose.msra.mxu0 %v2028
        %2032 = vmatprep.subr.mxu0 0.0
        %2033 = vmatpush1.xpose.msra.mxu0 0.0
        %2034 = vmatprep.subr.mxu0 0.0
        %2035 = vmatpush1.xpose.msra.mxu0 0.0
        %2036 = vmatprep.subr.mxu0 0.0
        %2037 = vmatpush1.xpose.msra.mxu0 0.0
        %2038 = vmatprep.subr.mxu0 0.0
        %2039 = vmatpush1.xpose.msra.mxu0 0.0
        %2040 = vmatprep.subr.mxu0 0.0
        %2041 = vmatpush1.xpose.msra.mxu0 0.0
        %2042 = vmatprep.subr.mxu0 0.0
        %2043 = vmatpush1.xpose.msra.mxu0 0.0
        %2044 = vmatprep.subr.mxu0 0.0
        %2045 = vmatpush1.xpose.msra.mxu0 0.0
        %2046 = vmatprep.subr.mxu0 0.0
        %2047 = vmatpush1.xpose.msra.mxu0 0.0
        %2048 = vmatprep.subr.mxu0 0.0
        %2049 = vmatpush1.xpose.msra.mxu0 0.0
        %2050 = vmatprep.subr.mxu0 0.0
        %2051 = vmatpush1.xpose.msra.mxu0 0.0
        %2052 = vmatprep.subr.mxu0 0.0
        %2053 = vmatpush1.xpose.msra.mxu0 0.0
        %2054 = vmatprep.subr.mxu0 0.0
        %2055 = vmatpush1.xpose.msra.mxu0 0.0
        %2056 = vmatprep.subr.mxu0 0.0
        %2057 = vmatpush1.xpose.msra.mxu0 0.0
        %2058 = vmatprep.subr.mxu0 0.0
        %2059 = vmatpush1.xpose.msra.mxu0 0.0
        %2060 = vmatprep.subr.mxu0 0.0
        %2061 = vmatpush1.xpose.msra.mxu0 0.0
        %2062 = vmatprep.subr.mxu0 0.0
        %2063 = vmatpush1.xpose.msra.mxu0 0.0
        %2064 = vmatprep.subr.mxu0 0.0
        %2065 = vmatpush1.xpose.msra.mxu0 0.0
        %2066 = vmatprep.subr.mxu0 0.0
        %2067 = vmatpush1.xpose.msra.mxu0 0.0
        %2068 = vmatprep.subr.mxu0 0.0
        %2069 = vmatpush1.xpose.msra.mxu0 0.0
        %2070 = vmatprep.subr.mxu0 0.0
        %2071 = vmatpush1.xpose.msra.mxu0 0.0
        %2072 = vmatprep.subr.mxu0 0.0
        %2073 = vmatpush1.xpose.msra.mxu0 0.0
        %2074 = vmatprep.subr.mxu0 0.0
        %2075 = vmatpush1.xpose.msra.mxu0 0.0
        %2076 = vmatprep.subr.mxu0 0.0
        %2077 = vmatpush1.xpose.msra.mxu0 0.0
        %2078 = vmatprep.subr.mxu0 0.0
        %2079 = vmatpush1.xpose.msra.mxu0 0.0
        %2080 = vmatprep.subr.mxu0 0.0
        %2081 = vmatpush1.xpose.msra.mxu0 0.0
        %2082 = vmatprep.subr.mxu0 0.0
        %2083 = vmatpush1.xpose.msra.mxu0 0.0
        %2084 = vmatprep.subr.mxu0 0.0
        %2085 = vmatpush1.xpose.msra.mxu0 0.0
        %2086 = vmatprep.subr.mxu0 0.0
        %2087 = vmatpush1.xpose.msra.mxu0 0.0
        %2088 = vmatprep.subr.mxu0 0.0
        %2089 = vmatpush1.xpose.msra.mxu0 0.0
        %2090 = vmatprep.subr.mxu0 0.0
        %2091 = vmatpush1.xpose.msra.mxu0 0.0
        %2092 = vmatprep.subr.mxu0 0.0
        %2093 = vmatpush1.xpose.msra.mxu0 0.0
        %2094 = vmatprep.mubr.f32.mxu0 0.0
        %2095 = vmatmul.mubr.f32.gmra.mrb[0].mxu0 %v2026
        %v2096 = vpop.f32.mrb[0].mxu0
        %v2097 = vadd.f32 0.0, %v2096
        %v2098 = vpop.f32.mrb[0].mxu0
        %2099 = vdwg.mxu0
        %v2100 = vmul.f32 %v2019, 0.35355338
        %v2101 = vmul.f32 %v2097, 0.35355338
        %v2102 = vadd.f32 %v2100, %v1265
        %v2103 = vadd.f32 %v2101, %v1269
        %v2104 = vsel %vm901, %v2102, -inf
        %2105 = vmax.xlane.f32.xlu0 %v2104
        %v2106 = vpop.xlane.xlu0 %2105
        %v2107 = vsel %vm901, %v2103, -inf
        %2108 = vmax.xlane.f32.xlu0 %v2107
        %v2109 = vpop.xlane.xlu0 %2108
        %v2110 = vsub.f32 %v2102, %v2106
        %v2111 = vsub.f32 %v2103, %v2109
        %v2112 = vmul.f32 %v2110, 1.442695
        %v2113 = vpow.pop %v2112
        %v2114 = vmul.f32 %v2111, 1.442695
        %v2115 = vpow.pop %v2114
        %v2116 = vsel %vm901, %v2113, 0.0
        %2117 = vadd.xlane.f32.xlu0 %v2116
        %v2118 = vpop.xlane.xlu0 %2117
        %v2119 = vsel %vm901, %v2115, 0.0
        %2120 = vadd.xlane.f32.xlu0 %v2119
        %v2121 = vpop.xlane.xlu0 %2120
        %v2122 = vrcp.pop %v2118
        %v2123 = vrcp.pop %v2121
        %v2124 = vmul.f32 %v2113, %v2122
        %v2125 = vmul.f32 %v2115, %v2123
        %2126 = vrot.lane.b32.xlu0 %v1096, 48
        %v2127 = vpop.permute.xlu0 %2126
        %v2130 = vsel %vm901, %v2124, 0
        %2132 = vmatprep.subr.mxu0 0.0
        %2133 = vmatpush1.msra.mxu0 %v2127
        %2134 = vmatprep.subr.mxu0 0.0
        %2135 = vmatpush1.msra.mxu0 0.0
        %2136 = vmatprep.subr.mxu0 0.0
        %2137 = vmatpush1.msra.mxu0 0.0
        %2138 = vmatprep.subr.mxu0 0.0
        %2139 = vmatpush1.msra.mxu0 0.0
        %2140 = vmatprep.subr.mxu0 0.0
        %2141 = vmatpush1.msra.mxu0 0.0
        %2142 = vmatprep.subr.mxu0 0.0
        %2143 = vmatpush1.msra.mxu0 0.0
        %2144 = vmatprep.subr.mxu0 0.0
        %2145 = vmatpush1.msra.mxu0 0.0
        %2146 = vmatprep.subr.mxu0 0.0
        %2147 = vmatpush1.msra.mxu0 0.0
        %2148 = vmatprep.subr.mxu0 0.0
        %2149 = vmatpush1.msra.mxu0 0.0
        %2150 = vmatprep.subr.mxu0 0.0
        %2151 = vmatpush1.msra.mxu0 0.0
        %2152 = vmatprep.subr.mxu0 0.0
        %2153 = vmatpush1.msra.mxu0 0.0
        %2154 = vmatprep.subr.mxu0 0.0
        %2155 = vmatpush1.msra.mxu0 0.0
        %2156 = vmatprep.subr.mxu0 0.0
        %2157 = vmatpush1.msra.mxu0 0.0
        %2158 = vmatprep.subr.mxu0 0.0
        %2159 = vmatpush1.msra.mxu0 0.0
        %2160 = vmatprep.subr.mxu0 0.0
        %2161 = vmatpush1.msra.mxu0 0.0
        %2162 = vmatprep.subr.mxu0 0.0
        %2163 = vmatpush1.msra.mxu0 0.0
        %2164 = vmatprep.subr.mxu0 0.0
        %2165 = vmatpush1.msra.mxu0 0.0
        %2166 = vmatprep.subr.mxu0 0.0
        %2167 = vmatpush1.msra.mxu0 0.0
        %2168 = vmatprep.subr.mxu0 0.0
        %2169 = vmatpush1.msra.mxu0 0.0
        %2170 = vmatprep.subr.mxu0 0.0
        %2171 = vmatpush1.msra.mxu0 0.0
        %2172 = vmatprep.subr.mxu0 0.0
        %2173 = vmatpush1.msra.mxu0 0.0
        %2174 = vmatprep.subr.mxu0 0.0
        %2175 = vmatpush1.msra.mxu0 0.0
        %2176 = vmatprep.subr.mxu0 0.0
        %2177 = vmatpush1.msra.mxu0 0.0
        %2178 = vmatprep.subr.mxu0 0.0
        %2179 = vmatpush1.msra.mxu0 0.0
        %2180 = vmatprep.subr.mxu0 0.0
        %2181 = vmatpush1.msra.mxu0 0.0
        %2182 = vmatprep.subr.mxu0 0.0
        %2183 = vmatpush1.msra.mxu0 0.0
        %2184 = vmatprep.subr.mxu0 0.0
        %2185 = vmatpush1.msra.mxu0 0.0
        %2186 = vmatprep.subr.mxu0 0.0
        %2187 = vmatpush1.msra.mxu0 0.0
        %2188 = vmatprep.subr.mxu0 0.0
        %2189 = vmatpush1.msra.mxu0 0.0
        %2190 = vmatprep.subr.mxu0 0.0
        %2191 = vmatpush1.msra.mxu0 0.0
        %2192 = vmatprep.subr.mxu0 0.0
        %2193 = vmatpush1.msra.mxu0 0.0
        %2194 = vmatprep.subr.mxu0 0.0
        %2195 = vmatpush1.msra.mxu0 0.0
        %2196 = vmatprep.mubr.f32.mxu0 0.0
        %2197 = vmatmul.mubr.f32.gmra.mrb[0].mxu0 %v2130
        %v2198 = vpop.f32.mrb[0].mxu0
        %v2199 = vadd.f32 0.0, %v2198
        %v2200 = vpop.f32.mrb[0].mxu0
        %2201 = vdwg.mxu0
        %2202 = vrot.lane.b32.xlu0 %v1101, 48
        %v2203 = vpop.permute.xlu0 %2202
        %v2206 = vsel %vm901, %v2125, 0
        %2208 = vmatprep.subr.mxu0 0.0
        %2209 = vmatpush1.msra.mxu0 %v2203
        %2210 = vmatprep.subr.mxu0 0.0
        %2211 = vmatpush1.msra.mxu0 0.0
        %2212 = vmatprep.subr.mxu0 0.0
        %2213 = vmatpush1.msra.mxu0 0.0
        %2214 = vmatprep.subr.mxu0 0.0
        %2215 = vmatpush1.msra.mxu0 0.0
        %2216 = vmatprep.subr.mxu0 0.0
        %2217 = vmatpush1.msra.mxu0 0.0
        %2218 = vmatprep.subr.mxu0 0.0
        %2219 = vmatpush1.msra.mxu0 0.0
        %2220 = vmatprep.subr.mxu0 0.0
        %2221 = vmatpush1.msra.mxu0 0.0
        %2222 = vmatprep.subr.mxu0 0.0
        %2223 = vmatpush1.msra.mxu0 0.0
        %2224 = vmatprep.subr.mxu0 0.0
        %2225 = vmatpush1.msra.mxu0 0.0
        %2226 = vmatprep.subr.mxu0 0.0
        %2227 = vmatpush1.msra.mxu0 0.0
        %2228 = vmatprep.subr.mxu0 0.0
        %2229 = vmatpush1.msra.mxu0 0.0
        %2230 = vmatprep.subr.mxu0 0.0
        %2231 = vmatpush1.msra.mxu0 0.0
        %2232 = vmatprep.subr.mxu0 0.0
        %2233 = vmatpush1.msra.mxu0 0.0
        %2234 = vmatprep.subr.mxu0 0.0
        %2235 = vmatpush1.msra.mxu0 0.0
        %2236 = vmatprep.subr.mxu0 0.0
        %2237 = vmatpush1.msra.mxu0 0.0
        %2238 = vmatprep.subr.mxu0 0.0
        %2239 = vmatpush1.msra.mxu0 0.0
        %2240 = vmatprep.subr.mxu0 0.0
        %2241 = vmatpush1.msra.mxu0 0.0
        %2242 = vmatprep.subr.mxu0 0.0
        %2243 = vmatpush1.msra.mxu0 0.0
        %2244 = vmatprep.subr.mxu0 0.0
        %2245 = vmatpush1.msra.mxu0 0.0
        %2246 = vmatprep.subr.mxu0 0.0
        %2247 = vmatpush1.msra.mxu0 0.0
        %2248 = vmatprep.subr.mxu0 0.0
        %2249 = vmatpush1.msra.mxu0 0.0
        %2250 = vmatprep.subr.mxu0 0.0
        %2251 = vmatpush1.msra.mxu0 0.0
        %2252 = vmatprep.subr.mxu0 0.0
        %2253 = vmatpush1.msra.mxu0 0.0
        %2254 = vmatprep.subr.mxu0 0.0
        %2255 = vmatpush1.msra.mxu0 0.0
        %2256 = vmatprep.subr.mxu0 0.0
        %2257 = vmatpush1.msra.mxu0 0.0
        %2258 = vmatprep.subr.mxu0 0.0
        %2259 = vmatpush1.msra.mxu0 0.0
        %2260 = vmatprep.subr.mxu0 0.0
        %2261 = vmatpush1.msra.mxu0 0.0
        %2262 = vmatprep.subr.mxu0 0.0
        %2263 = vmatpush1.msra.mxu0 0.0
        %2264 = vmatprep.subr.mxu0 0.0
        %2265 = vmatpush1.msra.mxu0 0.0
        %2266 = vmatprep.subr.mxu0 0.0
        %2267 = vmatpush1.msra.mxu0 0.0
        %2268 = vmatprep.subr.mxu0 0.0
        %2269 = vmatpush1.msra.mxu0 0.0
        %2270 = vmatprep.subr.mxu0 0.0
        %2271 = vmatpush1.msra.mxu0 0.0
        %2272 = vmatprep.mubr.f32.mxu0 0.0
        %2273 = vmatmul.mubr.f32.gmra.mrb[0].mxu0 %v2206
        %v2274 = vpop.f32.mrb[0].mxu0
        %v2275 = vadd.f32 0.0, %v2274
        %v2276 = vpop.f32.mrb[0].mxu0
        %2277 = vdwg.mxu0
        %v2279 = vsel %vm901, %v2199, 0
        %v2282 = vsel %vm901, %v2275, 0
        %2284 = vmatprep.subr.mxu0 0.0
        %2285 = vmatpush1.msra.mxu0 %v995
        %2286 = vmatprep.subr.mxu0 0.0
        %2287 = vmatpush1.msra.mxu0 0.0
        %2288 = vmatprep.subr.mxu0 0.0
        %2289 = vmatpush1.msra.mxu0 0.0
        %2290 = vmatprep.subr.mxu0 0.0
        %2291 = vmatpush1.msra.mxu0 0.0
        %2292 = vmatprep.subr.mxu0 0.0
        %2293 = vmatpush1.msra.mxu0 0.0
        %2294 = vmatprep.subr.mxu0 0.0
        %2295 = vmatpush1.msra.mxu0 0.0
        %2296 = vmatprep.subr.mxu0 0.0
        %2297 = vmatpush1.msra.mxu0 0.0
        %2298 = vmatprep.subr.mxu0 0.0
        %2299 = vmatpush1.msra.mxu0 0.0
        %2300 = vmatprep.subr.mxu0 0.0
        %2301 = vmatpush1.msra.mxu0 0.0
        %2302 = vmatprep.subr.mxu0 0.0
        %2303 = vmatpush1.msra.mxu0 0.0
        %2304 = vmatprep.subr.mxu0 0.0
        %2305 = vmatpush1.msra.mxu0 0.0
        %2306 = vmatprep.subr.mxu0 0.0
        %2307 = vmatpush1.msra.mxu0 0.0
        %2308 = vmatprep.subr.mxu0 0.0
        %2309 = vmatpush1.msra.mxu0 0.0
        %2310 = vmatprep.subr.mxu0 0.0
        %2311 = vmatpush1.msra.mxu0 0.0
        %2312 = vmatprep.subr.mxu0 0.0
        %2313 = vmatpush1.msra.mxu0 0.0
        %2314 = vmatprep.subr.mxu0 0.0
        %2315 = vmatpush1.msra.mxu0 0.0
        %2316 = vmatprep.subr.mxu0 0.0
        %2317 = vmatpush1.msra.mxu0 0.0
        %2318 = vmatprep.subr.mxu0 0.0
        %2319 = vmatpush1.msra.mxu0 0.0
        %2320 = vmatprep.subr.mxu0 0.0
        %2321 = vmatpush1.msra.mxu0 0.0
        %2322 = vmatprep.subr.mxu0 0.0
        %2323 = vmatpush1.msra.mxu0 0.0
        %2324 = vmatprep.subr.mxu0 0.0
        %2325 = vmatpush1.msra.mxu0 0.0
        %2326 = vmatprep.subr.mxu0 0.0
        %2327 = vmatpush1.msra.mxu0 0.0
        %2328 = vmatprep.subr.mxu0 0.0
        %2329 = vmatpush1.msra.mxu0 0.0
        %2330 = vmatprep.subr.mxu0 0.0
        %2331 = vmatpush1.msra.mxu0 0.0
        %2332 = vmatprep.subr.mxu0 0.0
        %2333 = vmatpush1.msra.mxu0 0.0
        %2334 = vmatprep.subr.mxu0 0.0
        %2335 = vmatpush1.msra.mxu0 0.0
        %2336 = vmatprep.subr.mxu0 0.0
        %2337 = vmatpush1.msra.mxu0 0.0
        %2338 = vmatprep.subr.mxu0 0.0
        %2339 = vmatpush1.msra.mxu0 0.0
        %2340 = vmatprep.subr.mxu0 0.0
        %2341 = vmatpush1.msra.mxu0 0.0
        %2342 = vmatprep.subr.mxu0 0.0
        %2343 = vmatpush1.msra.mxu0 0.0
        %2344 = vmatprep.subr.mxu0 0.0
        %2345 = vmatpush1.msra.mxu0 0.0
        %2346 = vmatprep.subr.mxu0 0.0
        %2347 = vmatpush1.msra.mxu0 0.0
        %2348 = vmatprep.mubr.f32.mxu0 0.0
        %2349 = vmatmul.mubr.f32.gmra.mrb[0].mxu0 %v2279
        %v2350 = vpop.f32.mrb[0].mxu0
        %v2351 = vadd.f32 0.0, %v2350
        %v2352 = vpop.f32.mrb[0].mxu0
        %2353 = vmatprep.mubr.f32.mxu0 0.0
        %2354 = vmatmul.mubr.f32.gmra.mrb[0].mxu0 %v2282
        %v2355 = vpop.f32.mrb[0].mxu0
        %v2356 = vadd.f32 0.0, %v2355
        %v2357 = vpop.f32.mrb[0].mxu0
        %2358 = vdwg.mxu0
        %v2359 = vadd.f32 %v1936, %v2351
        %v2360 = vadd.f32 %v1941, %v2356
        %2361 = vrot.lane.b32.xlu0 %v1096, 104
        %v2362 = vpop.permute.xlu0 %2361
        %2363 = vrot.lane.b32.xlu0 %v1096, 72
        %v2364 = vpop.permute.xlu0 %2363
        %v2365 = vsel %vm901, %v2362, 0
        %v2367 = vsel %vm901, %v2364, 0
        %2369 = vmatprep.subr.mxu0 0.0
        %2370 = vmatpush1.xpose.msra.mxu0 %v2367
        %2371 = vmatprep.subr.mxu0 0.0
        %2372 = vmatpush1.xpose.msra.mxu0 0.0
        %2373 = vmatprep.subr.mxu0 0.0
        %2374 = vmatpush1.xpose.msra.mxu0 0.0
        %2375 = vmatprep.subr.mxu0 0.0
        %2376 = vmatpush1.xpose.msra.mxu0 0.0
        %2377 = vmatprep.subr.mxu0 0.0
        %2378 = vmatpush1.xpose.msra.mxu0 0.0
        %2379 = vmatprep.subr.mxu0 0.0
        %2380 = vmatpush1.xpose.msra.mxu0 0.0
        %2381 = vmatprep.subr.mxu0 0.0
        %2382 = vmatpush1.xpose.msra.mxu0 0.0
        %2383 = vmatprep.subr.mxu0 0.0
        %2384 = vmatpush1.xpose.msra.mxu0 0.0
        %2385 = vmatprep.subr.mxu0 0.0
        %2386 = vmatpush1.xpose.msra.mxu0 0.0
        %2387 = vmatprep.subr.mxu0 0.0
        %2388 = vmatpush1.xpose.msra.mxu0 0.0
        %2389 = vmatprep.subr.mxu0 0.0
        %2390 = vmatpush1.xpose.msra.mxu0 0.0
        %2391 = vmatprep.subr.mxu0 0.0
        %2392 = vmatpush1.xpose.msra.mxu0 0.0
        %2393 = vmatprep.subr.mxu0 0.0
        %2394 = vmatpush1.xpose.msra.mxu0 0.0
        %2395 = vmatprep.subr.mxu0 0.0
        %2396 = vmatpush1.xpose.msra.mxu0 0.0
        %2397 = vmatprep.subr.mxu0 0.0
        %2398 = vmatpush1.xpose.msra.mxu0 0.0
        %2399 = vmatprep.subr.mxu0 0.0
        %2400 = vmatpush1.xpose.msra.mxu0 0.0
        %2401 = vmatprep.subr.mxu0 0.0
        %2402 = vmatpush1.xpose.msra.mxu0 0.0
        %2403 = vmatprep.subr.mxu0 0.0
        %2404 = vmatpush1.xpose.msra.mxu0 0.0
        %2405 = vmatprep.subr.mxu0 0.0
        %2406 = vmatpush1.xpose.msra.mxu0 0.0
        %2407 = vmatprep.subr.mxu0 0.0
        %2408 = vmatpush1.xpose.msra.mxu0 0.0
        %2409 = vmatprep.subr.mxu0 0.0
        %2410 = vmatpush1.xpose.msra.mxu0 0.0
        %2411 = vmatprep.subr.mxu0 0.0
        %2412 = vmatpush1.xpose.msra.mxu0 0.0
        %2413 = vmatprep.subr.mxu0 0.0
        %2414 = vmatpush1.xpose.msra.mxu0 0.0
        %2415 = vmatprep.subr.mxu0 0.0
        %2416 = vmatpush1.xpose.msra.mxu0 0.0
        %2417 = vmatprep.subr.mxu0 0.0
        %2418 = vmatpush1.xpose.msra.mxu0 0.0
        %2419 = vmatprep.subr.mxu0 0.0
        %2420 = vmatpush1.xpose.msra.mxu0 0.0
        %2421 = vmatprep.subr.mxu0 0.0
        %2422 = vmatpush1.xpose.msra.mxu0 0.0
        %2423 = vmatprep.subr.mxu0 0.0
        %2424 = vmatpush1.xpose.msra.mxu0 0.0
        %2425 = vmatprep.subr.mxu0 0.0
        %2426 = vmatpush1.xpose.msra.mxu0 0.0
        %2427 = vmatprep.subr.mxu0 0.0
        %2428 = vmatpush1.xpose.msra.mxu0 0.0
        %2429 = vmatprep.subr.mxu0 0.0
        %2430 = vmatpush1.xpose.msra.mxu0 0.0
        %2431 = vmatprep.subr.mxu0 0.0
        %2432 = vmatpush1.xpose.msra.mxu0 0.0
        %2433 = vmatprep.mubr.f32.mxu0 0.0
        %2434 = vmatmul.mubr.f32.gmra.mrb[0].mxu0 %v2365
        %v2435 = vpop.f32.mrb[0].mxu0
        %v2436 = vadd.f32 0.0, %v2435
        %v2437 = vpop.f32.mrb[0].mxu0
        %2438 = vdwg.mxu0
        %2439 = vrot.lane.b32.xlu0 %v1101, 104
        %v2440 = vpop.permute.xlu0 %2439
        %2441 = vrot.lane.b32.xlu0 %v1101, 72
        %v2442 = vpop.permute.xlu0 %2441
        %v2443 = vsel %vm901, %v2440, 0
        %v2445 = vsel %vm901, %v2442, 0
        %2447 = vmatprep.subr.mxu0 0.0
        %2448 = vmatpush1.xpose.msra.mxu0 %v2445
        %2449 = vmatprep.subr.mxu0 0.0
        %2450 = vmatpush1.xpose.msra.mxu0 0.0
        %2451 = vmatprep.subr.mxu0 0.0
        %2452 = vmatpush1.xpose.msra.mxu0 0.0
        %2453 = vmatprep.subr.mxu0 0.0
        %2454 = vmatpush1.xpose.msra.mxu0 0.0
        %2455 = vmatprep.subr.mxu0 0.0
        %2456 = vmatpush1.xpose.msra.mxu0 0.0
        %2457 = vmatprep.subr.mxu0 0.0
        %2458 = vmatpush1.xpose.msra.mxu0 0.0
        %2459 = vmatprep.subr.mxu0 0.0
        %2460 = vmatpush1.xpose.msra.mxu0 0.0
        %2461 = vmatprep.subr.mxu0 0.0
        %2462 = vmatpush1.xpose.msra.mxu0 0.0
        %2463 = vmatprep.subr.mxu0 0.0
        %2464 = vmatpush1.xpose.msra.mxu0 0.0
        %2465 = vmatprep.subr.mxu0 0.0
        %2466 = vmatpush1.xpose.msra.mxu0 0.0
        %2467 = vmatprep.subr.mxu0 0.0
        %2468 = vmatpush1.xpose.msra.mxu0 0.0
        %2469 = vmatprep.subr.mxu0 0.0
        %2470 = vmatpush1.xpose.msra.mxu0 0.0
        %2471 = vmatprep.subr.mxu0 0.0
        %2472 = vmatpush1.xpose.msra.mxu0 0.0
        %2473 = vmatprep.subr.mxu0 0.0
        %2474 = vmatpush1.xpose.msra.mxu0 0.0
        %2475 = vmatprep.subr.mxu0 0.0
        %2476 = vmatpush1.xpose.msra.mxu0 0.0
        %2477 = vmatprep.subr.mxu0 0.0
        %2478 = vmatpush1.xpose.msra.mxu0 0.0
        %2479 = vmatprep.subr.mxu0 0.0
        %2480 = vmatpush1.xpose.msra.mxu0 0.0
        %2481 = vmatprep.subr.mxu0 0.0
        %2482 = vmatpush1.xpose.msra.mxu0 0.0
        %2483 = vmatprep.subr.mxu0 0.0
        %2484 = vmatpush1.xpose.msra.mxu0 0.0
        %2485 = vmatprep.subr.mxu0 0.0
        %2486 = vmatpush1.xpose.msra.mxu0 0.0
        %2487 = vmatprep.subr.mxu0 0.0
        %2488 = vmatpush1.xpose.msra.mxu0 0.0
        %2489 = vmatprep.subr.mxu0 0.0
        %2490 = vmatpush1.xpose.msra.mxu0 0.0
        %2491 = vmatprep.subr.mxu0 0.0
        %2492 = vmatpush1.xpose.msra.mxu0 0.0
        %2493 = vmatprep.subr.mxu0 0.0
        %2494 = vmatpush1.xpose.msra.mxu0 0.0
        %2495 = vmatprep.subr.mxu0 0.0
        %2496 = vmatpush1.xpose.msra.mxu0 0.0
        %2497 = vmatprep.subr.mxu0 0.0
        %2498 = vmatpush1.xpose.msra.mxu0 0.0
        %2499 = vmatprep.subr.mxu0 0.0
        %2500 = vmatpush1.xpose.msra.mxu0 0.0
        %2501 = vmatprep.subr.mxu0 0.0
        %2502 = vmatpush1.xpose.msra.mxu0 0.0
        %2503 = vmatprep.subr.mxu0 0.0
        %2504 = vmatpush1.xpose.msra.mxu0 0.0
        %2505 = vmatprep.subr.mxu0 0.0
        %2506 = vmatpush1.xpose.msra.mxu0 0.0
        %2507 = vmatprep.subr.mxu0 0.0
        %2508 = vmatpush1.xpose.msra.mxu0 0.0
        %2509 = vmatprep.subr.mxu0 0.0
        %2510 = vmatpush1.xpose.msra.mxu0 0.0
        %2511 = vmatprep.mubr.f32.mxu0 0.0
        %2512 = vmatmul.mubr.f32.gmra.mrb[0].mxu0 %v2443
        %v2513 = vpop.f32.mrb[0].mxu0
        %v2514 = vadd.f32 0.0, %v2513
        %v2515 = vpop.f32.mrb[0].mxu0
        %2516 = vdwg.mxu0
        %v2517 = vmul.f32 %v2436, 0.35355338
        %v2518 = vmul.f32 %v2514, 0.35355338
        %v2519 = vadd.f32 %v2517, %v1265
        %v2520 = vadd.f32 %v2518, %v1269
        %v2521 = vsel %vm901, %v2519, -inf
        %2522 = vmax.xlane.f32.xlu0 %v2521
        %v2523 = vpop.xlane.xlu0 %2522
        %v2524 = vsel %vm901, %v2520, -inf
        %2525 = vmax.xlane.f32.xlu0 %v2524
        %v2526 = vpop.xlane.xlu0 %2525
        %v2527 = vsub.f32 %v2519, %v2523
        %v2528 = vsub.f32 %v2520, %v2526
        %v2529 = vmul.f32 %v2527, 1.442695
        %v2530 = vpow.pop %v2529
        %v2531 = vmul.f32 %v2528, 1.442695
        %v2532 = vpow.pop %v2531
        %v2533 = vsel %vm901, %v2530, 0.0
        %2534 = vadd.xlane.f32.xlu0 %v2533
        %v2535 = vpop.xlane.xlu0 %2534
        %v2536 = vsel %vm901, %v2532, 0.0
        %2537 = vadd.xlane.f32.xlu0 %v2536
        %v2538 = vpop.xlane.xlu0 %2537
        %v2539 = vrcp.pop %v2535
        %v2540 = vrcp.pop %v2538
        %v2541 = vmul.f32 %v2530, %v2539
        %v2542 = vmul.f32 %v2532, %v2540
        %2543 = vrot.lane.b32.xlu0 %v1096, 40
        %v2544 = vpop.permute.xlu0 %2543
        %v2547 = vsel %vm901, %v2541, 0
        %2549 = vmatprep.subr.mxu0 0.0
        %2550 = vmatpush1.msra.mxu0 %v2544
        %2551 = vmatprep.subr.mxu0 0.0
        %2552 = vmatpush1.msra.mxu0 0.0
        %2553 = vmatprep.subr.mxu0 0.0
        %2554 = vmatpush1.msra.mxu0 0.0
        %2555 = vmatprep.subr.mxu0 0.0
        %2556 = vmatpush1.msra.mxu0 0.0
        %2557 = vmatprep.subr.mxu0 0.0
        %2558 = vmatpush1.msra.mxu0 0.0
        %2559 = vmatprep.subr.mxu0 0.0
        %2560 = vmatpush1.msra.mxu0 0.0
        %2561 = vmatprep.subr.mxu0 0.0
        %2562 = vmatpush1.msra.mxu0 0.0
        %2563 = vmatprep.subr.mxu0 0.0
        %2564 = vmatpush1.msra.mxu0 0.0
        %2565 = vmatprep.subr.mxu0 0.0
        %2566 = vmatpush1.msra.mxu0 0.0
        %2567 = vmatprep.subr.mxu0 0.0
        %2568 = vmatpush1.msra.mxu0 0.0
        %2569 = vmatprep.subr.mxu0 0.0
        %2570 = vmatpush1.msra.mxu0 0.0
        %2571 = vmatprep.subr.mxu0 0.0
        %2572 = vmatpush1.msra.mxu0 0.0
        %2573 = vmatprep.subr.mxu0 0.0
        %2574 = vmatpush1.msra.mxu0 0.0
        %2575 = vmatprep.subr.mxu0 0.0
        %2576 = vmatpush1.msra.mxu0 0.0
        %2577 = vmatprep.subr.mxu0 0.0
        %2578 = vmatpush1.msra.mxu0 0.0
        %2579 = vmatprep.subr.mxu0 0.0
        %2580 = vmatpush1.msra.mxu0 0.0
        %2581 = vmatprep.subr.mxu0 0.0
        %2582 = vmatpush1.msra.mxu0 0.0
        %2583 = vmatprep.subr.mxu0 0.0
        %2584 = vmatpush1.msra.mxu0 0.0
        %2585 = vmatprep.subr.mxu0 0.0
        %2586 = vmatpush1.msra.mxu0 0.0
        %2587 = vmatprep.subr.mxu0 0.0
        %2588 = vmatpush1.msra.mxu0 0.0
        %2589 = vmatprep.subr.mxu0 0.0
        %2590 = vmatpush1.msra.mxu0 0.0
        %2591 = vmatprep.subr.mxu0 0.0
        %2592 = vmatpush1.msra.mxu0 0.0
        %2593 = vmatprep.subr.mxu0 0.0
        %2594 = vmatpush1.msra.mxu0 0.0
        %2595 = vmatprep.subr.mxu0 0.0
        %2596 = vmatpush1.msra.mxu0 0.0
        %2597 = vmatprep.subr.mxu0 0.0
        %2598 = vmatpush1.msra.mxu0 0.0
        %2599 = vmatprep.subr.mxu0 0.0
        %2600 = vmatpush1.msra.mxu0 0.0
        %2601 = vmatprep.subr.mxu0 0.0
        %2602 = vmatpush1.msra.mxu0 0.0
        %2603 = vmatprep.subr.mxu0 0.0
        %2604 = vmatpush1.msra.mxu0 0.0
        %2605 = vmatprep.subr.mxu0 0.0
        %2606 = vmatpush1.msra.mxu0 0.0
        %2607 = vmatprep.subr.mxu0 0.0
        %2608 = vmatpush1.msra.mxu0 0.0
        %2609 = vmatprep.subr.mxu0 0.0
        %2610 = vmatpush1.msra.mxu0 0.0
        %2611 = vmatprep.subr.mxu0 0.0
        %2612 = vmatpush1.msra.mxu0 0.0
        %2613 = vmatprep.mubr.f32.mxu0 0.0
        %2614 = vmatmul.mubr.f32.gmra.mrb[0].mxu0 %v2547
        %v2615 = vpop.f32.mrb[0].mxu0
        %v2616 = vadd.f32 0.0, %v2615
        %v2617 = vpop.f32.mrb[0].mxu0
        %2618 = vdwg.mxu0
        %2619 = vrot.lane.b32.xlu0 %v1101, 40
        %v2620 = vpop.permute.xlu0 %2619
        %v2623 = vsel %vm901, %v2542, 0
        %2625 = vmatprep.subr.mxu0 0.0
        %2626 = vmatpush1.msra.mxu0 %v2620
        %2627 = vmatprep.subr.mxu0 0.0
        %2628 = vmatpush1.msra.mxu0 0.0
        %2629 = vmatprep.subr.mxu0 0.0
        %2630 = vmatpush1.msra.mxu0 0.0
        %2631 = vmatprep.subr.mxu0 0.0
        %2632 = vmatpush1.msra.mxu0 0.0
        %2633 = vmatprep.subr.mxu0 0.0
        %2634 = vmatpush1.msra.mxu0 0.0
        %2635 = vmatprep.subr.mxu0 0.0
        %2636 = vmatpush1.msra.mxu0 0.0
        %2637 = vmatprep.subr.mxu0 0.0
        %2638 = vmatpush1.msra.mxu0 0.0
        %2639 = vmatprep.subr.mxu0 0.0
        %2640 = vmatpush1.msra.mxu0 0.0
        %2641 = vmatprep.subr.mxu0 0.0
        %2642 = vmatpush1.msra.mxu0 0.0
        %2643 = vmatprep.subr.mxu0 0.0
        %2644 = vmatpush1.msra.mxu0 0.0
        %2645 = vmatprep.subr.mxu0 0.0
        %2646 = vmatpush1.msra.mxu0 0.0
        %2647 = vmatprep.subr.mxu0 0.0
        %2648 = vmatpush1.msra.mxu0 0.0
        %2649 = vmatprep.subr.mxu0 0.0
        %2650 = vmatpush1.msra.mxu0 0.0
        %2651 = vmatprep.subr.mxu0 0.0
        %2652 = vmatpush1.msra.mxu0 0.0
        %2653 = vmatprep.subr.mxu0 0.0
        %2654 = vmatpush1.msra.mxu0 0.0
        %2655 = vmatprep.subr.mxu0 0.0
        %2656 = vmatpush1.msra.mxu0 0.0
        %2657 = vmatprep.subr.mxu0 0.0
        %2658 = vmatpush1.msra.mxu0 0.0
        %2659 = vmatprep.subr.mxu0 0.0
        %2660 = vmatpush1.msra.mxu0 0.0
        %2661 = vmatprep.subr.mxu0 0.0
        %2662 = vmatpush1.msra.mxu0 0.0
        %2663 = vmatprep.subr.mxu0 0.0
        %2664 = vmatpush1.msra.mxu0 0.0
        %2665 = vmatprep.subr.mxu0 0.0
        %2666 = vmatpush1.msra.mxu0 0.0
        %2667 = vmatprep.subr.mxu0 0.0
        %2668 = vmatpush1.msra.mxu0 0.0
        %2669 = vmatprep.subr.mxu0 0.0
        %2670 = vmatpush1.msra.mxu0 0.0
        %2671 = vmatprep.subr.mxu0 0.0
        %2672 = vmatpush1.msra.mxu0 0.0
        %2673 = vmatprep.subr.mxu0 0.0
        %2674 = vmatpush1.msra.mxu0 0.0
        %2675 = vmatprep.subr.mxu0 0.0
        %2676 = vmatpush1.msra.mxu0 0.0
        %2677 = vmatprep.subr.mxu0 0.0
        %2678 = vmatpush1.msra.mxu0 0.0
        %2679 = vmatprep.subr.mxu0 0.0
        %2680 = vmatpush1.msra.mxu0 0.0
        %2681 = vmatprep.subr.mxu0 0.0
        %2682 = vmatpush1.msra.mxu0 0.0
        %2683 = vmatprep.subr.mxu0 0.0
        %2684 = vmatpush1.msra.mxu0 0.0
        %2685 = vmatprep.subr.mxu0 0.0
        %2686 = vmatpush1.msra.mxu0 0.0
        %2687 = vmatprep.subr.mxu0 0.0
        %2688 = vmatpush1.msra.mxu0 0.0
        %2689 = vmatprep.mubr.f32.mxu0 0.0
        %2690 = vmatmul.mubr.f32.gmra.mrb[0].mxu0 %v2623
        %v2691 = vpop.f32.mrb[0].mxu0
        %v2692 = vadd.f32 0.0, %v2691
        %v2693 = vpop.f32.mrb[0].mxu0
        %2694 = vdwg.mxu0
        %v2696 = vsel %vm901, %v2616, 0
        %v2699 = vsel %vm901, %v2692, 0
        %2701 = vmatprep.subr.mxu0 0.0
        %2702 = vmatpush1.msra.mxu0 %v996
        %2703 = vmatprep.subr.mxu0 0.0
        %2704 = vmatpush1.msra.mxu0 0.0
        %2705 = vmatprep.subr.mxu0 0.0
        %2706 = vmatpush1.msra.mxu0 0.0
        %2707 = vmatprep.subr.mxu0 0.0
        %2708 = vmatpush1.msra.mxu0 0.0
        %2709 = vmatprep.subr.mxu0 0.0
        %2710 = vmatpush1.msra.mxu0 0.0
        %2711 = vmatprep.subr.mxu0 0.0
        %2712 = vmatpush1.msra.mxu0 0.0
        %2713 = vmatprep.subr.mxu0 0.0
        %2714 = vmatpush1.msra.mxu0 0.0
        %2715 = vmatprep.subr.mxu0 0.0
        %2716 = vmatpush1.msra.mxu0 0.0
        %2717 = vmatprep.subr.mxu0 0.0
        %2718 = vmatpush1.msra.mxu0 0.0
        %2719 = vmatprep.subr.mxu0 0.0
        %2720 = vmatpush1.msra.mxu0 0.0
        %2721 = vmatprep.subr.mxu0 0.0
        %2722 = vmatpush1.msra.mxu0 0.0
        %2723 = vmatprep.subr.mxu0 0.0
        %2724 = vmatpush1.msra.mxu0 0.0
        %2725 = vmatprep.subr.mxu0 0.0
        %2726 = vmatpush1.msra.mxu0 0.0
        %2727 = vmatprep.subr.mxu0 0.0
        %2728 = vmatpush1.msra.mxu0 0.0
        %2729 = vmatprep.subr.mxu0 0.0
        %2730 = vmatpush1.msra.mxu0 0.0
        %2731 = vmatprep.subr.mxu0 0.0
        %2732 = vmatpush1.msra.mxu0 0.0
        %2733 = vmatprep.subr.mxu0 0.0
        %2734 = vmatpush1.msra.mxu0 0.0
        %2735 = vmatprep.subr.mxu0 0.0
        %2736 = vmatpush1.msra.mxu0 0.0
        %2737 = vmatprep.subr.mxu0 0.0
        %2738 = vmatpush1.msra.mxu0 0.0
        %2739 = vmatprep.subr.mxu0 0.0
        %2740 = vmatpush1.msra.mxu0 0.0
        %2741 = vmatprep.subr.mxu0 0.0
        %2742 = vmatpush1.msra.mxu0 0.0
        %2743 = vmatprep.subr.mxu0 0.0
        %2744 = vmatpush1.msra.mxu0 0.0
        %2745 = vmatprep.subr.mxu0 0.0
        %2746 = vmatpush1.msra.mxu0 0.0
        %2747 = vmatprep.subr.mxu0 0.0
        %2748 = vmatpush1.msra.mxu0 0.0
        %2749 = vmatprep.subr.mxu0 0.0
        %2750 = vmatpush1.msra.mxu0 0.0
        %2751 = vmatprep.subr.mxu0 0.0
        %2752 = vmatpush1.msra.mxu0 0.0
        %2753 = vmatprep.subr.mxu0 0.0
        %2754 = vmatpush1.msra.mxu0 0.0
        %2755 = vmatprep.subr.mxu0 0.0
        %2756 = vmatpush1.msra.mxu0 0.0
        %2757 = vmatprep.subr.mxu0 0.0
        %2758 = vmatpush1.msra.mxu0 0.0
        %2759 = vmatprep.subr.mxu0 0.0
        %2760 = vmatpush1.msra.mxu0 0.0
        %2761 = vmatprep.subr.mxu0 0.0
        %2762 = vmatpush1.msra.mxu0 0.0
        %2763 = vmatprep.subr.mxu0 0.0
        %2764 = vmatpush1.msra.mxu0 0.0
        %2765 = vmatprep.mubr.f32.mxu0 0.0
        %2766 = vmatmul.mubr.f32.gmra.mrb[0].mxu0 %v2696
        %v2767 = vpop.f32.mrb[0].mxu0
        %v2768 = vadd.f32 0.0, %v2767
        %v2769 = vpop.f32.mrb[0].mxu0
        %2770 = vmatprep.mubr.f32.mxu0 0.0
        %2771 = vmatmul.mubr.f32.gmra.mrb[0].mxu0 %v2699
        %v2772 = vpop.f32.mrb[0].mxu0
        %v2773 = vadd.f32 0.0, %v2772
        %v2774 = vpop.f32.mrb[0].mxu0
        %2775 = vdwg.mxu0
        %v2776 = vadd.f32 %v2359, %v2768
        %v2777 = vadd.f32 %v2360, %v2773
        %v2779 = vlaneseq
        %v2780 = vshrl.u32 %v2779, 7
        %v2781 = vsub.s32 0, %v2780
        %v2782 = vrot.slane %v997, %v2781
        %v2784 = vadd.f32 %v2776, %v2782
        %v2785 = vadd.f32 %v2777, %v2782
        %v2786 = vadd.f32 %v984, %v2784
        %v2787 = vadd.f32 %v985, %v2785
        %v2788 = vsel %vm1022, %v2786, 0.0
        %2789 = vadd.xlane.f32.xlu0 %v2788
        %v2790 = vpop.xlane.xlu0 %2789
        %v2791 = vsel %vm1022, %v2787, 0.0
        %2792 = vadd.xlane.f32.xlu0 %v2791
        %v2793 = vpop.xlane.xlu0 %2792
        %v2794 = vrcp.pop 32.0
        %v2795 = vmul.f32 %v2790, %v2794
        %v2796 = vmul.f32 %v2793, %v2794
        %v2797 = vsub.f32 %v2786, %v2795
        %v2798 = vsub.f32 %v2787, %v2796
        %v2799 = vmul.f32 %v2797, %v2797
        %v2800 = vmul.f32 %v2798, %v2798
        %v2801 = vsel %vm1022, %v2799, 0.0
        %2802 = vadd.xlane.f32.xlu0 %v2801
        %v2803 = vpop.xlane.xlu0 %2802
        %v2804 = vsel %vm1022, %v2800, 0.0
        %2805 = vadd.xlane.f32.xlu0 %v2804
        %v2806 = vpop.xlane.xlu0 %2805
        %v2807 = vmul.f32 %v2803, %v2794
        %v2808 = vmul.f32 %v2806, %v2794
        %v2809 = vadd.f32 %v2807, 1e-05
        %v2810 = vadd.f32 %v2808, 1e-05
        %v2811 = vrsqrt.pop %v2809
        %v2812 = vrsqrt.pop %v2810
        %v2813 = vmul.f32 %v2797, %v2811
        %v2814 = vmul.f32 %v2798, %v2812
        %v2816 = vlaneseq
        %v2817 = vshrl.u32 %v2816, 7
        %v2818 = vsub.s32 0, %v2817
        %v2819 = vrot.slane %v998, %v2818
        %v2821 = vmul.f32 %v2813, %v2819
        %v2822 = vmul.f32 %v2814, %v2819
        %v2824 = vlaneseq
        %v2825 = vshrl.u32 %v2824, 7
        %v2826 = vsub.s32 0, %v2825
        %v2827 = vrot.slane %v999, %v2826
        %v2829 = vadd.f32 %v2821, %v2827
        %v2830 = vadd.f32 %v2822, %v2827
        %v2832 = vlaneseq
        %v2833 = vshrl.u32 %v2832, 7
        %v2834 = vsub.s32 0, %v2833
        %v2835 = vrot.slane %v1004, %v2834
        %v2838 = vsel %vm1022, %v2829, 0
        %v2841 = vsel %vm1022, %v2830, 0
        %2843 = vmatprep.subr.mxu0 0.0
        %2844 = vmatpush1.msra.mxu0 %v1000
        %2845 = vmatprep.subr.mxu0 0.0
        %2846 = vmatpush1.msra.mxu0 %v1001
        %2847 = vmatprep.subr.mxu0 0.0
        %2848 = vmatpush1.msra.mxu0 %v1002
        %2849 = vmatprep.subr.mxu0 0.0
        %2850 = vmatpush1.msra.mxu0 %v1003
        %2851 = vmatprep.subr.mxu0 0.0
        %2852 = vmatpush1.msra.mxu0 0.0
        %2853 = vmatprep.subr.mxu0 0.0
        %2854 = vmatpush1.msra.mxu0 0.0
        %2855 = vmatprep.subr.mxu0 0.0
        %2856 = vmatpush1.msra.mxu0 0.0
        %2857 = vmatprep.subr.mxu0 0.0
        %2858 = vmatpush1.msra.mxu0 0.0
        %2859 = vmatprep.subr.mxu0 0.0
        %2860 = vmatpush1.msra.mxu0 0.0
        %2861 = vmatprep.subr.mxu0 0.0
        %2862 = vmatpush1.msra.mxu0 0.0
        %2863 = vmatprep.subr.mxu0 0.0
        %2864 = vmatpush1.msra.mxu0 0.0
        %2865 = vmatprep.subr.mxu0 0.0
        %2866 = vmatpush1.msra.mxu0 0.0
        %2867 = vmatprep.subr.mxu0 0.0
        %2868 = vmatpush1.msra.mxu0 0.0
        %2869 = vmatprep.subr.mxu0 0.0
        %2870 = vmatpush1.msra.mxu0 0.0
        %2871 = vmatprep.subr.mxu0 0.0
        %2872 = vmatpush1.msra.mxu0 0.0
        %2873 = vmatprep.subr.mxu0 0.0
        %2874 = vmatpush1.msra.mxu0 0.0
        %2875 = vmatprep.subr.mxu0 0.0
        %2876 = vmatpush1.msra.mxu0 0.0
        %2877 = vmatprep.subr.mxu0 0.0
        %2878 = vmatpush1.msra.mxu0 0.0
        %2879 = vmatprep.subr.mxu0 0.0
        %2880 = vmatpush1.msra.mxu0 0.0
        %2881 = vmatprep.subr.mxu0 0.0
        %2882 = vmatpush1.msra.mxu0 0.0
        %2883 = vmatprep.subr.mxu0 0.0
        %2884 = vmatpush1.msra.mxu0 0.0
        %2885 = vmatprep.subr.mxu0 0.0
        %2886 = vmatpush1.msra.mxu0 0.0
        %2887 = vmatprep.subr.mxu0 0.0
        %2888 = vmatpush1.msra.mxu0 0.0
        %2889 = vmatprep.subr.mxu0 0.0
        %2890 = vmatpush1.msra.mxu0 0.0
        %2891 = vmatprep.subr.mxu0 0.0
        %2892 = vmatpush1.msra.mxu0 0.0
        %2893 = vmatprep.subr.mxu0 0.0
        %2894 = vmatpush1.msra.mxu0 0.0
        %2895 = vmatprep.subr.mxu0 0.0
        %2896 = vmatpush1.msra.mxu0 0.0
        %2897 = vmatprep.subr.mxu0 0.0
        %2898 = vmatpush1.msra.mxu0 0.0
        %2899 = vmatprep.subr.mxu0 0.0
        %2900 = vmatpush1.msra.mxu0 0.0
        %2901 = vmatprep.subr.mxu0 0.0
        %2902 = vmatpush1.msra.mxu0 0.0
        %2903 = vmatprep.subr.mxu0 0.0
        %2904 = vmatpush1.msra.mxu0 0.0
        %2905 = vmatprep.subr.mxu0 0.0
        %2906 = vmatpush1.msra.mxu0 0.0
        %2907 = vmatprep.mubr.f32.mxu0 0.0
        %2908 = vmatmul.mubr.f32.gmra.mrb[0].mxu0 %v2838
        %v2909 = vpop.f32.mrb[0].mxu0
        %v2910 = vadd.f32 %v2835, %v2909
        %v2911 = vpop.f32.mrb[0].mxu0
        %2912 = vmatprep.mubr.f32.mxu0 0.0
        %2913 = vmatmul.mubr.f32.gmra.mrb[0].mxu0 %v2841
        %v2914 = vpop.f32.mrb[0].mxu0
        %v2915 = vadd.f32 %v2835, %v2914
        %v2916 = vpop.f32.mrb[0].mxu0
        %2917 = vdwg.mxu0
        %v2918 = vmax.f32 %v2910, 0.0
        %v2919 = vmax.f32 %v2915, 0.0
        %v2921 = vlaneseq
        %v2922 = vshrl.u32 %v2921, 7
        %v2923 = vsub.s32 0, %v2922
        %v2924 = vrot.slane %v1013, %v2923
        %vm2926 = vcmask 523264
        %v2928 = vsel %vm2926, %v2918, 0
        %v2931 = vsel %vm2926, %v2919, 0
        %2933 = vmatprep.subr.mxu0 0.0
        %2934 = vmatpush1.msra.mxu0 %v1005
        %2935 = vmatprep.subr.mxu0 0.0
        %2936 = vmatpush1.msra.mxu0 %v1006
        %2937 = vmatprep.subr.mxu0 0.0
        %2938 = vmatpush1.msra.mxu0 %v1007
        %2939 = vmatprep.subr.mxu0 0.0
        %2940 = vmatpush1.msra.mxu0 %v1008
        %2941 = vmatprep.subr.mxu0 0.0
        %2942 = vmatpush1.msra.mxu0 %v1009
        %2943 = vmatprep.subr.mxu0 0.0
        %2944 = vmatpush1.msra.mxu0 %v1010
        %2945 = vmatprep.subr.mxu0 0.0
        %2946 = vmatpush1.msra.mxu0 %v1011
        %2947 = vmatprep.subr.mxu0 0.0
        %2948 = vmatpush1.msra.mxu0 %v1012
        %2949 = vmatprep.subr.mxu0 0.0
        %2950 = vmatpush1.msra.mxu0 0.0
        %2951 = vmatprep.subr.mxu0 0.0
        %2952 = vmatpush1.msra.mxu0 0.0
        %2953 = vmatprep.subr.mxu0 0.0
        %2954 = vmatpush1.msra.mxu0 0.0
        %2955 = vmatprep.subr.mxu0 0.0
        %2956 = vmatpush1.msra.mxu0 0.0
        %2957 = vmatprep.subr.mxu0 0.0
        %2958 = vmatpush1.msra.mxu0 0.0
        %2959 = vmatprep.subr.mxu0 0.0
        %2960 = vmatpush1.msra.mxu0 0.0
        %2961 = vmatprep.subr.mxu0 0.0
        %2962 = vmatpush1.msra.mxu0 0.0
        %2963 = vmatprep.subr.mxu0 0.0
        %2964 = vmatpush1.msra.mxu0 0.0
        %2965 = vmatprep.subr.mxu0 0.0
        %2966 = vmatpush1.msra.mxu0 0.0
        %2967 = vmatprep.subr.mxu0 0.0
        %2968 = vmatpush1.msra.mxu0 0.0
        %2969 = vmatprep.subr.mxu0 0.0
        %2970 = vmatpush1.msra.mxu0 0.0
        %2971 = vmatprep.subr.mxu0 0.0
        %2972 = vmatpush1.msra.mxu0 0.0
        %2973 = vmatprep.subr.mxu0 0.0
        %2974 = vmatpush1.msra.mxu0 0.0
        %2975 = vmatprep.subr.mxu0 0.0
        %2976 = vmatpush1.msra.mxu0 0.0
        %2977 = vmatprep.subr.mxu0 0.0
        %2978 = vmatpush1.msra.mxu0 0.0
        %2979 = vmatprep.subr.mxu0 0.0
        %2980 = vmatpush1.msra.mxu0 0.0
        %2981 = vmatprep.subr.mxu0 0.0
        %2982 = vmatpush1.msra.mxu0 0.0
        %2983 = vmatprep.subr.mxu0 0.0
        %2984 = vmatpush1.msra.mxu0 0.0
        %2985 = vmatprep.subr.mxu0 0.0
        %2986 = vmatpush1.msra.mxu0 0.0
        %2987 = vmatprep.subr.mxu0 0.0
        %2988 = vmatpush1.msra.mxu0 0.0
        %2989 = vmatprep.subr.mxu0 0.0
        %2990 = vmatpush1.msra.mxu0 0.0
        %2991 = vmatprep.subr.mxu0 0.0
        %2992 = vmatpush1.msra.mxu0 0.0
        %2993 = vmatprep.subr.mxu0 0.0
        %2994 = vmatpush1.msra.mxu0 0.0
        %2995 = vmatprep.subr.mxu0 0.0
        %2996 = vmatpush1.msra.mxu0 0.0
        %2997 = vmatprep.mubr.f32.mxu0 0.0
        %2998 = vmatmul.mubr.f32.gmra.mrb[0].mxu0 %v2928
        %v2999 = vpop.f32.mrb[0].mxu0
        %v3000 = vadd.f32 %v2924, %v2999
        %v3001 = vpop.f32.mrb[0].mxu0
        %3002 = vmatprep.mubr.f32.mxu0 0.0
        %3003 = vmatmul.mubr.f32.gmra.mrb[0].mxu0 %v2931
        %v3004 = vpop.f32.mrb[0].mxu0
        %v3005 = vadd.f32 %v2924, %v3004
        %v3006 = vpop.f32.mrb[0].mxu0
        %3007 = vdwg.mxu0
        %v3008 = vadd.f32 %v2829, %v3000
        %v3009 = vadd.f32 %v2830, %v3005
        %v3010 = vsel %vm1022, %v3008, 0.0
        %3011 = vadd.xlane.f32.xlu0 %v3010
        %v3012 = vpop.xlane.xlu0 %3011
        %v3013 = vsel %vm1022, %v3009, 0.0
        %3014 = vadd.xlane.f32.xlu0 %v3013
        %v3015 = vpop.xlane.xlu0 %3014
        %v3016 = vmul.f32 %v3012, %v2794
        %v3017 = vmul.f32 %v3015, %v2794
        %v3018 = vsub.f32 %v3008, %v3016
        %v3019 = vsub.f32 %v3009, %v3017
        %v3020 = vmul.f32 %v3018, %v3018
        %v3021 = vmul.f32 %v3019, %v3019
        %v3022 = vsel %vm1022, %v3020, 0.0
        %3023 = vadd.xlane.f32.xlu0 %v3022
        %v3024 = vpop.xlane.xlu0 %3023
        %v3025 = vsel %vm1022, %v3021, 0.0
        %3026 = vadd.xlane.f32.xlu0 %v3025
        %v3027 = vpop.xlane.xlu0 %3026
        %v3028 = vmul.f32 %v3024, %v2794
        %v3029 = vmul.f32 %v3027, %v2794
        %v3030 = vadd.f32 %v3028, 1e-05
        %v3031 = vadd.f32 %v3029, 1e-05
        %v3032 = vrsqrt.pop %v3030
        %v3033 = vrsqrt.pop %v3031
        %v3034 = vmul.f32 %v3018, %v3032
        %v3035 = vmul.f32 %v3019, %v3033
        %v3037 = vlaneseq
        %v3038 = vshrl.u32 %v3037, 7
        %v3039 = vsub.s32 0, %v3038
        %v3040 = vrot.slane %v1014, %v3039
        %v3042 = vmul.f32 %v3034, %v3040
        %v3043 = vmul.f32 %v3035, %v3040
        %v3045 = vlaneseq
        %v3046 = vshrl.u32 %v3045, 7
        %v3047 = vsub.s32 0, %v3046
        %v3048 = vrot.slane %v1015, %v3047
        %v3050 = vadd.f32 %v3042, %v3048
        %v3051 = vadd.f32 %v3043, %v3048
        %s3052 = scalar_lea.vmem %s843, 32
        %v3053 = vld [vmem:[%s3052] sm:$0xff]
        %v3054 = vld [vmem:[%s3052 + $0x8] sm:$0xff]
        %v3055 = vld [vmem:[%s3052 + $0x10] sm:$0xff]
        %v3056 = vld [vmem:[%s3052 + $0x18] sm:$0xff]
        %s3057 = scalar_lea.vmem %s847, 1
        %v3058 = vld [vmem:[%s3057] sm:$0x1]
        %s3059 = scalar_lea.vmem %s852, 32
        %v3060 = vld [vmem:[%s3059] sm:$0xff]
        %v3061 = vld [vmem:[%s3059 + $0x8] sm:$0xff]
        %v3062 = vld [vmem:[%s3059 + $0x10] sm:$0xff]
        %v3063 = vld [vmem:[%s3059 + $0x18] sm:$0xff]
        %s3064 = scalar_lea.vmem %s856, 1
        %v3065 = vld [vmem:[%s3064] sm:$0x1]
        %s3066 = scalar_lea.vmem %s860, 1
        %v3067 = vld [vmem:[%s3066] sm:$0x1]
        %s3068 = scalar_lea.vmem %s864, 1
        %v3069 = vld [vmem:[%s3068] sm:$0x1]
        %s3070 = scalar_lea.vmem %s869, 32
        %v3071 = vld [vmem:[%s3070] sm:$0xff]
        %v3072 = vld [vmem:[%s3070 + $0x8] sm:$0xff]
        %v3073 = vld [vmem:[%s3070 + $0x10] sm:$0xff]
        %v3074 = vld [vmem:[%s3070 + $0x18] sm:$0xff]
        %s3075 = scalar_lea.vmem %s873, 1
        %v3076 = vld [vmem:[%s3075] sm:$0x1]
        %s3077 = scalar_lea.vmem %s878, 64
        %v3078 = vld [vmem:[%s3077] sm:$0xff]
        %v3079 = vld [vmem:[%s3077 + $0x8] sm:$0xff]
        %v3080 = vld [vmem:[%s3077 + $0x10] sm:$0xff]
        %v3081 = vld [vmem:[%s3077 + $0x18] sm:$0xff]
        %v3082 = vld [vmem:[%s3077 + $0x20] sm:$0xff]
        %v3083 = vld [vmem:[%s3077 + $0x28] sm:$0xff]
        %v3084 = vld [vmem:[%s3077 + $0x30] sm:$0xff]
        %v3085 = vld [vmem:[%s3077 + $0x38] sm:$0xff]
        %s3086 = scalar_lea.vmem %s882, 1
        %v3087 = vld [vmem:[%s3086] sm:$0x1]
        %s3088 = scalar_lea.vmem %s886, 1
        %v3089 = vld [vmem:[%s3088] sm:$0x1]
        %s3090 = scalar_lea.vmem %s890, 1
        %v3091 = vld [vmem:[%s3090] sm:$0x1]
        %v3093 = vlaneseq
        %v3094 = vshrl.u32 %v3093, 7
        %v3095 = vsub.s32 0, %v3094
        %v3096 = vrot.slane %v3058, %v3095
        %v3099 = vsel %vm1022, %v3050, 0
        %v3102 = vsel %vm1022, %v3051, 0
        %3104 = vmatprep.subr.mxu0 0.0
        %3105 = vmatpush1.msra.mxu0 %v3053
        %3106 = vmatprep.subr.mxu0 0.0
        %3107 = vmatpush1.msra.mxu0 %v3054
        %3108 = vmatprep.subr.mxu0 0.0
        %3109 = vmatpush1.msra.mxu0 %v3055
        %3110 = vmatprep.subr.mxu0 0.0
        %3111 = vmatpush1.msra.mxu0 %v3056
        %3112 = vmatprep.subr.mxu0 0.0
        %3113 = vmatpush1.msra.mxu0 0.0
        %3114 = vmatprep.subr.mxu0 0.0
        %3115 = vmatpush1.msra.mxu0 0.0
        %3116 = vmatprep.subr.mxu0 0.0
        %3117 = vmatpush1.msra.mxu0 0.0
        %3118 = vmatprep.subr.mxu0 0.0
        %3119 = vmatpush1.msra.mxu0 0.0
        %3120 = vmatprep.subr.mxu0 0.0
        %3121 = vmatpush1.msra.mxu0 0.0
        %3122 = vmatprep.subr.mxu0 0.0
        %3123 = vmatpush1.msra.mxu0 0.0
        %3124 = vmatprep.subr.mxu0 0.0
        %3125 = vmatpush1.msra.mxu0 0.0
        %3126 = vmatprep.subr.mxu0 0.0
        %3127 = vmatpush1.msra.mxu0 0.0
        %3128 = vmatprep.subr.mxu0 0.0
        %3129 = vmatpush1.msra.mxu0 0.0
        %3130 = vmatprep.subr.mxu0 0.0
        %3131 = vmatpush1.msra.mxu0 0.0
        %3132 = vmatprep.subr.mxu0 0.0
        %3133 = vmatpush1.msra.mxu0 0.0
        %3134 = vmatprep.subr.mxu0 0.0
        %3135 = vmatpush1.msra.mxu0 0.0
        %3136 = vmatprep.subr.mxu0 0.0
        %3137 = vmatpush1.msra.mxu0 0.0
        %3138 = vmatprep.subr.mxu0 0.0
        %3139 = vmatpush1.msra.mxu0 0.0
        %3140 = vmatprep.subr.mxu0 0.0
        %3141 = vmatpush1.msra.mxu0 0.0
        %3142 = vmatprep.subr.mxu0 0.0
        %3143 = vmatpush1.msra.mxu0 0.0
        %3144 = vmatprep.subr.mxu0 0.0
        %3145 = vmatpush1.msra.mxu0 0.0
        %3146 = vmatprep.subr.mxu0 0.0
        %3147 = vmatpush1.msra.mxu0 0.0
        %3148 = vmatprep.subr.mxu0 0.0
        %3149 = vmatpush1.msra.mxu0 0.0
        %3150 = vmatprep.subr.mxu0 0.0
        %3151 = vmatpush1.msra.mxu0 0.0
        %3152 = vmatprep.subr.mxu0 0.0
        %3153 = vmatpush1.msra.mxu0 0.0
        %3154 = vmatprep.subr.mxu0 0.0
        %3155 = vmatpush1.msra.mxu0 0.0
        %3156 = vmatprep.subr.mxu0 0.0
        %3157 = vmatpush1.msra.mxu0 0.0
        %3158 = vmatprep.subr.mxu0 0.0
        %3159 = vmatpush1.msra.mxu0 0.0
        %3160 = vmatprep.subr.mxu0 0.0
        %3161 = vmatpush1.msra.mxu0 0.0
        %3162 = vmatprep.subr.mxu0 0.0
        %3163 = vmatpush1.msra.mxu0 0.0
        %3164 = vmatprep.subr.mxu0 0.0
        %3165 = vmatpush1.msra.mxu0 0.0
        %3166 = vmatprep.subr.mxu0 0.0
        %3167 = vmatpush1.msra.mxu0 0.0
        %3168 = vmatprep.mubr.f32.mxu0 0.0
        %3169 = vmatmul.mubr.f32.gmra.mrb[0].mxu0 %v3099
        %v3170 = vpop.f32.mrb[0].mxu0
        %v3171 = vadd.f32 %v3096, %v3170
        %v3172 = vpop.f32.mrb[0].mxu0
        %3173 = vmatprep.mubr.f32.mxu0 0.0
        %3174 = vmatmul.mubr.f32.gmra.mrb[0].mxu0 %v3102
        %v3175 = vpop.f32.mrb[0].mxu0
        %v3176 = vadd.f32 %v3096, %v3175
        %v3177 = vpop.f32.mrb[0].mxu0
        %3178 = vdwg.mxu0
        %3180 = vrot.lane.b32.xlu0 %v3171, 96
        %v3181 = vpop.permute.xlu0 %3180
        %v3182 = vsel %vm901, %v3171, 0
        %v3184 = vsel %vm901, %v3181, 0
        %3186 = vmatprep.subr.mxu0 0.0
        %3187 = vmatpush1.xpose.msra.mxu0 %v3184
        %3188 = vmatprep.subr.mxu0 0.0
        %3189 = vmatpush1.xpose.msra.mxu0 0.0
        %3190 = vmatprep.subr.mxu0 0.0
        %3191 = vmatpush1.xpose.msra.mxu0 0.0
        %3192 = vmatprep.subr.mxu0 0.0
        %3193 = vmatpush1.xpose.msra.mxu0 0.0
        %3194 = vmatprep.subr.mxu0 0.0
        %3195 = vmatpush1.xpose.msra.mxu0 0.0
        %3196 = vmatprep.subr.mxu0 0.0
        %3197 = vmatpush1.xpose.msra.mxu0 0.0
        %3198 = vmatprep.subr.mxu0 0.0
        %3199 = vmatpush1.xpose.msra.mxu0 0.0
        %3200 = vmatprep.subr.mxu0 0.0
        %3201 = vmatpush1.xpose.msra.mxu0 0.0
        %3202 = vmatprep.subr.mxu0 0.0
        %3203 = vmatpush1.xpose.msra.mxu0 0.0
        %3204 = vmatprep.subr.mxu0 0.0
        %3205 = vmatpush1.xpose.msra.mxu0 0.0
        %3206 = vmatprep.subr.mxu0 0.0
        %3207 = vmatpush1.xpose.msra.mxu0 0.0
        %3208 = vmatprep.subr.mxu0 0.0
        %3209 = vmatpush1.xpose.msra.mxu0 0.0
        %3210 = vmatprep.subr.mxu0 0.0
        %3211 = vmatpush1.xpose.msra.mxu0 0.0
        %3212 = vmatprep.subr.mxu0 0.0
        %3213 = vmatpush1.xpose.msra.mxu0 0.0
        %3214 = vmatprep.subr.mxu0 0.0
        %3215 = vmatpush1.xpose.msra.mxu0 0.0
        %3216 = vmatprep.subr.mxu0 0.0
        %3217 = vmatpush1.xpose.msra.mxu0 0.0
        %3218 = vmatprep.subr.mxu0 0.0
        %3219 = vmatpush1.xpose.msra.mxu0 0.0
        %3220 = vmatprep.subr.mxu0 0.0
        %3221 = vmatpush1.xpose.msra.mxu0 0.0
        %3222 = vmatprep.subr.mxu0 0.0
        %3223 = vmatpush1.xpose.msra.mxu0 0.0
        %3224 = vmatprep.subr.mxu0 0.0
        %3225 = vmatpush1.xpose.msra.mxu0 0.0
        %3226 = vmatprep.subr.mxu0 0.0
        %3227 = vmatpush1.xpose.msra.mxu0 0.0
        %3228 = vmatprep.subr.mxu0 0.0
        %3229 = vmatpush1.xpose.msra.mxu0 0.0
        %3230 = vmatprep.subr.mxu0 0.0
        %3231 = vmatpush1.xpose.msra.mxu0 0.0
        %3232 = vmatprep.subr.mxu0 0.0
        %3233 = vmatpush1.xpose.msra.mxu0 0.0
        %3234 = vmatprep.subr.mxu0 0.0
        %3235 = vmatpush1.xpose.msra.mxu0 0.0
        %3236 = vmatprep.subr.mxu0 0.0
        %3237 = vmatpush1.xpose.msra.mxu0 0.0
        %3238 = vmatprep.subr.mxu0 0.0
        %3239 = vmatpush1.xpose.msra.mxu0 0.0
        %3240 = vmatprep.subr.mxu0 0.0
        %3241 = vmatpush1.xpose.msra.mxu0 0.0
        %3242 = vmatprep.subr.mxu0 0.0
        %3243 = vmatpush1.xpose.msra.mxu0 0.0
        %3244 = vmatprep.subr.mxu0 0.0
        %3245 = vmatpush1.xpose.msra.mxu0 0.0
        %3246 = vmatprep.subr.mxu0 0.0
        %3247 = vmatpush1.xpose.msra.mxu0 0.0
        %3248 = vmatprep.subr.mxu0 0.0
        %3249 = vmatpush1.xpose.msra.mxu0 0.0
        %3250 = vmatprep.mubr.f32.mxu0 0.0
        %3251 = vmatmul.mubr.f32.gmra.mrb[0].mxu0 %v3182
        %v3252 = vpop.f32.mrb[0].mxu0
        %v3253 = vadd.f32 0.0, %v3252
        %v3254 = vpop.f32.mrb[0].mxu0
        %3255 = vdwg.mxu0
        %3257 = vrot.lane.b32.xlu0 %v3176, 96
        %v3258 = vpop.permute.xlu0 %3257
        %v3259 = vsel %vm901, %v3176, 0
        %v3261 = vsel %vm901, %v3258, 0
        %3263 = vmatprep.subr.mxu0 0.0
        %3264 = vmatpush1.xpose.msra.mxu0 %v3261
        %3265 = vmatprep.subr.mxu0 0.0
        %3266 = vmatpush1.xpose.msra.mxu0 0.0
        %3267 = vmatprep.subr.mxu0 0.0
        %3268 = vmatpush1.xpose.msra.mxu0 0.0
        %3269 = vmatprep.subr.mxu0 0.0
        %3270 = vmatpush1.xpose.msra.mxu0 0.0
        %3271 = vmatprep.subr.mxu0 0.0
        %3272 = vmatpush1.xpose.msra.mxu0 0.0
        %3273 = vmatprep.subr.mxu0 0.0
        %3274 = vmatpush1.xpose.msra.mxu0 0.0
        %3275 = vmatprep.subr.mxu0 0.0
        %3276 = vmatpush1.xpose.msra.mxu0 0.0
        %3277 = vmatprep.subr.mxu0 0.0
        %3278 = vmatpush1.xpose.msra.mxu0 0.0
        %3279 = vmatprep.subr.mxu0 0.0
        %3280 = vmatpush1.xpose.msra.mxu0 0.0
        %3281 = vmatprep.subr.mxu0 0.0
        %3282 = vmatpush1.xpose.msra.mxu0 0.0
        %3283 = vmatprep.subr.mxu0 0.0
        %3284 = vmatpush1.xpose.msra.mxu0 0.0
        %3285 = vmatprep.subr.mxu0 0.0
        %3286 = vmatpush1.xpose.msra.mxu0 0.0
        %3287 = vmatprep.subr.mxu0 0.0
        %3288 = vmatpush1.xpose.msra.mxu0 0.0
        %3289 = vmatprep.subr.mxu0 0.0
        %3290 = vmatpush1.xpose.msra.mxu0 0.0
        %3291 = vmatprep.subr.mxu0 0.0
        %3292 = vmatpush1.xpose.msra.mxu0 0.0
        %3293 = vmatprep.subr.mxu0 0.0
        %3294 = vmatpush1.xpose.msra.mxu0 0.0
        %3295 = vmatprep.subr.mxu0 0.0
        %3296 = vmatpush1.xpose.msra.mxu0 0.0
        %3297 = vmatprep.subr.mxu0 0.0
        %3298 = vmatpush1.xpose.msra.mxu0 0.0
        %3299 = vmatprep.subr.mxu0 0.0
        %3300 = vmatpush1.xpose.msra.mxu0 0.0
        %3301 = vmatprep.subr.mxu0 0.0
        %3302 = vmatpush1.xpose.msra.mxu0 0.0
        %3303 = vmatprep.subr.mxu0 0.0
        %3304 = vmatpush1.xpose.msra.mxu0 0.0
        %3305 = vmatprep.subr.mxu0 0.0
        %3306 = vmatpush1.xpose.msra.mxu0 0.0
        %3307 = vmatprep.subr.mxu0 0.0
        %3308 = vmatpush1.xpose.msra.mxu0 0.0
        %3309 = vmatprep.subr.mxu0 0.0
        %3310 = vmatpush1.xpose.msra.mxu0 0.0
        %3311 = vmatprep.subr.mxu0 0.0
        %3312 = vmatpush1.xpose.msra.mxu0 0.0
        %3313 = vmatprep.subr.mxu0 0.0
        %3314 = vmatpush1.xpose.msra.mxu0 0.0
        %3315 = vmatprep.subr.mxu0 0.0
        %3316 = vmatpush1.xpose.msra.mxu0 0.0
        %3317 = vmatprep.subr.mxu0 0.0
        %3318 = vmatpush1.xpose.msra.mxu0 0.0
        %3319 = vmatprep.subr.mxu0 0.0
        %3320 = vmatpush1.xpose.msra.mxu0 0.0
        %3321 = vmatprep.subr.mxu0 0.0
        %3322 = vmatpush1.xpose.msra.mxu0 0.0
        %3323 = vmatprep.subr.mxu0 0.0
        %3324 = vmatpush1.xpose.msra.mxu0 0.0
        %3325 = vmatprep.subr.mxu0 0.0
        %3326 = vmatpush1.xpose.msra.mxu0 0.0
        %3327 = vmatprep.mubr.f32.mxu0 0.0
        %3328 = vmatmul.mubr.f32.gmra.mrb[0].mxu0 %v3259
        %v3329 = vpop.f32.mrb[0].mxu0
        %v3330 = vadd.f32 0.0, %v3329
        %v3331 = vpop.f32.mrb[0].mxu0
        %3332 = vdwg.mxu0
        %v3333 = vmul.f32 %v3253, 0.35355338
        %v3334 = vmul.f32 %v3330, 0.35355338
        %v3335 = vadd.f32 %v3333, %v1265
        %v3336 = vadd.f32 %v3334, %v1269
        %v3337 = vsel %vm901, %v3335, -inf
        %3338 = vmax.xlane.f32.xlu0 %v3337
        %v3339 = vpop.xlane.xlu0 %3338
        %v3340 = vsel %vm901, %v3336, -inf
        %3341 = vmax.xlane.f32.xlu0 %v3340
        %v3342 = vpop.xlane.xlu0 %3341
        %v3343 = vsub.f32 %v3335, %v3339
        %v3344 = vsub.f32 %v3336, %v3342
        %v3345 = vmul.f32 %v3343, 1.442695
        %v3346 = vpow.pop %v3345
        %v3347 = vmul.f32 %v3344, 1.442695
        %v3348 = vpow.pop %v3347
        %v3349 = vsel %vm901, %v3346, 0.0
        %3350 = vadd.xlane.f32.xlu0 %v3349
        %v3351 = vpop.xlane.xlu0 %3350
        %v3352 = vsel %vm901, %v3348, 0.0
        %3353 = vadd.xlane.f32.xlu0 %v3352
        %v3354 = vpop.xlane.xlu0 %3353
        %v3355 = vrcp.pop %v3351
        %v3356 = vrcp.pop %v3354
        %v3357 = vmul.f32 %v3346, %v3355
        %v3358 = vmul.f32 %v3348, %v3356
        %3359 = vrot.lane.b32.xlu0 %v3171, 64
        %v3360 = vpop.permute.xlu0 %3359
        %v3363 = vsel %vm901, %v3357, 0
        %3365 = vmatprep.subr.mxu0 0.0
        %3366 = vmatpush1.msra.mxu0 %v3360
        %3367 = vmatprep.subr.mxu0 0.0
        %3368 = vmatpush1.msra.mxu0 0.0
        %3369 = vmatprep.subr.mxu0 0.0
        %3370 = vmatpush1.msra.mxu0 0.0
        %3371 = vmatprep.subr.mxu0 0.0
        %3372 = vmatpush1.msra.mxu0 0.0
        %3373 = vmatprep.subr.mxu0 0.0
        %3374 = vmatpush1.msra.mxu0 0.0
        %3375 = vmatprep.subr.mxu0 0.0
        %3376 = vmatpush1.msra.mxu0 0.0
        %3377 = vmatprep.subr.mxu0 0.0
        %3378 = vmatpush1.msra.mxu0 0.0
        %3379 = vmatprep.subr.mxu0 0.0
        %3380 = vmatpush1.msra.mxu0 0.0
        %3381 = vmatprep.subr.mxu0 0.0
        %3382 = vmatpush1.msra.mxu0 0.0
        %3383 = vmatprep.subr.mxu0 0.0
        %3384 = vmatpush1.msra.mxu0 0.0
        %3385 = vmatprep.subr.mxu0 0.0
        %3386 = vmatpush1.msra.mxu0 0.0
        %3387 = vmatprep.subr.mxu0 0.0
        %3388 = vmatpush1.msra.mxu0 0.0
        %3389 = vmatprep.subr.mxu0 0.0
        %3390 = vmatpush1.msra.mxu0 0.0
        %3391 = vmatprep.subr.mxu0 0.0
        %3392 = vmatpush1.msra.mxu0 0.0
        %3393 = vmatprep.subr.mxu0 0.0
        %3394 = vmatpush1.msra.mxu0 0.0
        %3395 = vmatprep.subr.mxu0 0.0
        %3396 = vmatpush1.msra.mxu0 0.0
        %3397 = vmatprep.subr.mxu0 0.0
        %3398 = vmatpush1.msra.mxu0 0.0
        %3399 = vmatprep.subr.mxu0 0.0
        %3400 = vmatpush1.msra.mxu0 0.0
        %3401 = vmatprep.subr.mxu0 0.0
        %3402 = vmatpush1.msra.mxu0 0.0
        %3403 = vmatprep.subr.mxu0 0.0
        %3404 = vmatpush1.msra.mxu0 0.0
        %3405 = vmatprep.subr.mxu0 0.0
        %3406 = vmatpush1.msra.mxu0 0.0
        %3407 = vmatprep.subr.mxu0 0.0
        %3408 = vmatpush1.msra.mxu0 0.0
        %3409 = vmatprep.subr.mxu0 0.0
        %3410 = vmatpush1.msra.mxu0 0.0
        %3411 = vmatprep.subr.mxu0 0.0
        %3412 = vmatpush1.msra.mxu0 0.0
        %3413 = vmatprep.subr.mxu0 0.0
        %3414 = vmatpush1.msra.mxu0 0.0
        %3415 = vmatprep.subr.mxu0 0.0
        %3416 = vmatpush1.msra.mxu0 0.0
        %3417 = vmatprep.subr.mxu0 0.0
        %3418 = vmatpush1.msra.mxu0 0.0
        %3419 = vmatprep.subr.mxu0 0.0
        %3420 = vmatpush1.msra.mxu0 0.0
        %3421 = vmatprep.subr.mxu0 0.0
        %3422 = vmatpush1.msra.mxu0 0.0
        %3423 = vmatprep.subr.mxu0 0.0
        %3424 = vmatpush1.msra.mxu0 0.0
        %3425 = vmatprep.subr.mxu0 0.0
        %3426 = vmatpush1.msra.mxu0 0.0
        %3427 = vmatprep.subr.mxu0 0.0
        %3428 = vmatpush1.msra.mxu0 0.0
        %3429 = vmatprep.mubr.f32.mxu0 0.0
        %3430 = vmatmul.mubr.f32.gmra.mrb[0].mxu0 %v3363
        %v3431 = vpop.f32.mrb[0].mxu0
        %v3432 = vadd.f32 0.0, %v3431
        %v3433 = vpop.f32.mrb[0].mxu0
        %3434 = vdwg.mxu0
        %3435 = vrot.lane.b32.xlu0 %v3176, 64
        %v3436 = vpop.permute.xlu0 %3435
        %v3439 = vsel %vm901, %v3358, 0
        %3441 = vmatprep.subr.mxu0 0.0
        %3442 = vmatpush1.msra.mxu0 %v3436
        %3443 = vmatprep.subr.mxu0 0.0
        %3444 = vmatpush1.msra.mxu0 0.0
        %3445 = vmatprep.subr.mxu0 0.0
        %3446 = vmatpush1.msra.mxu0 0.0
        %3447 = vmatprep.subr.mxu0 0.0
        %3448 = vmatpush1.msra.mxu0 0.0
        %3449 = vmatprep.subr.mxu0 0.0
        %3450 = vmatpush1.msra.mxu0 0.0
        %3451 = vmatprep.subr.mxu0 0.0
        %3452 = vmatpush1.msra.mxu0 0.0
        %3453 = vmatprep.subr.mxu0 0.0
        %3454 = vmatpush1.msra.mxu0 0.0
        %3455 = vmatprep.subr.mxu0 0.0
        %3456 = vmatpush1.msra.mxu0 0.0
        %3457 = vmatprep.subr.mxu0 0.0
        %3458 = vmatpush1.msra.mxu0 0.0
        %3459 = vmatprep.subr.mxu0 0.0
        %3460 = vmatpush1.msra.mxu0 0.0
        %3461 = vmatprep.subr.mxu0 0.0
        %3462 = vmatpush1.msra.mxu0 0.0
        %3463 = vmatprep.subr.mxu0 0.0
        %3464 = vmatpush1.msra.mxu0 0.0
        %3465 = vmatprep.subr.mxu0 0.0
        %3466 = vmatpush1.msra.mxu0 0.0
        %3467 = vmatprep.subr.mxu0 0.0
        %3468 = vmatpush1.msra.mxu0 0.0
        %3469 = vmatprep.subr.mxu0 0.0
        %3470 = vmatpush1.msra.mxu0 0.0
        %3471 = vmatprep.subr.mxu0 0.0
        %3472 = vmatpush1.msra.mxu0 0.0
        %3473 = vmatprep.subr.mxu0 0.0
        %3474 = vmatpush1.msra.mxu0 0.0
        %3475 = vmatprep.subr.mxu0 0.0
        %3476 = vmatpush1.msra.mxu0 0.0
        %3477 = vmatprep.subr.mxu0 0.0
        %3478 = vmatpush1.msra.mxu0 0.0
        %3479 = vmatprep.subr.mxu0 0.0
        %3480 = vmatpush1.msra.mxu0 0.0
        %3481 = vmatprep.subr.mxu0 0.0
        %3482 = vmatpush1.msra.mxu0 0.0
        %3483 = vmatprep.subr.mxu0 0.0
        %3484 = vmatpush1.msra.mxu0 0.0
        %3485 = vmatprep.subr.mxu0 0.0
        %3486 = vmatpush1.msra.mxu0 0.0
        %3487 = vmatprep.subr.mxu0 0.0
        %3488 = vmatpush1.msra.mxu0 0.0
        %3489 = vmatprep.subr.mxu0 0.0
        %3490 = vmatpush1.msra.mxu0 0.0
        %3491 = vmatprep.subr.mxu0 0.0
        %3492 = vmatpush1.msra.mxu0 0.0
        %3493 = vmatprep.subr.mxu0 0.0
        %3494 = vmatpush1.msra.mxu0 0.0
        %3495 = vmatprep.subr.mxu0 0.0
        %3496 = vmatpush1.msra.mxu0 0.0
        %3497 = vmatprep.subr.mxu0 0.0
        %3498 = vmatpush1.msra.mxu0 0.0
        %3499 = vmatprep.subr.mxu0 0.0
        %3500 = vmatpush1.msra.mxu0 0.0
        %3501 = vmatprep.subr.mxu0 0.0
        %3502 = vmatpush1.msra.mxu0 0.0
        %3503 = vmatprep.subr.mxu0 0.0
        %3504 = vmatpush1.msra.mxu0 0.0
        %3505 = vmatprep.mubr.f32.mxu0 0.0
        %3506 = vmatmul.mubr.f32.gmra.mrb[0].mxu0 %v3439
        %v3507 = vpop.f32.mrb[0].mxu0
        %v3508 = vadd.f32 0.0, %v3507
        %v3509 = vpop.f32.mrb[0].mxu0
        %3510 = vdwg.mxu0
        %3511 = vrot.lane.b32.xlu0 %v3171, 120
        %v3512 = vpop.permute.xlu0 %3511
        %3513 = vrot.lane.b32.xlu0 %v3171, 88
        %v3514 = vpop.permute.xlu0 %3513
        %v3515 = vsel %vm901, %v3512, 0
        %v3517 = vsel %vm901, %v3514, 0
        %3519 = vmatprep.subr.mxu0 0.0
        %3520 = vmatpush1.xpose.msra.mxu0 %v3517
        %3521 = vmatprep.subr.mxu0 0.0
        %3522 = vmatpush1.xpose.msra.mxu0 0.0
        %3523 = vmatprep.subr.mxu0 0.0
        %3524 = vmatpush1.xpose.msra.mxu0 0.0
        %3525 = vmatprep.subr.mxu0 0.0
        %3526 = vmatpush1.xpose.msra.mxu0 0.0
        %3527 = vmatprep.subr.mxu0 0.0
        %3528 = vmatpush1.xpose.msra.mxu0 0.0
        %3529 = vmatprep.subr.mxu0 0.0
        %3530 = vmatpush1.xpose.msra.mxu0 0.0
        %3531 = vmatprep.subr.mxu0 0.0
        %3532 = vmatpush1.xpose.msra.mxu0 0.0
        %3533 = vmatprep.subr.mxu0 0.0
        %3534 = vmatpush1.xpose.msra.mxu0 0.0
        %3535 = vmatprep.subr.mxu0 0.0
        %3536 = vmatpush1.xpose.msra.mxu0 0.0
        %3537 = vmatprep.subr.mxu0 0.0
        %3538 = vmatpush1.xpose.msra.mxu0 0.0
        %3539 = vmatprep.subr.mxu0 0.0
        %3540 = vmatpush1.xpose.msra.mxu0 0.0
        %3541 = vmatprep.subr.mxu0 0.0
        %3542 = vmatpush1.xpose.msra.mxu0 0.0
        %3543 = vmatprep.subr.mxu0 0.0
        %3544 = vmatpush1.xpose.msra.mxu0 0.0
        %3545 = vmatprep.subr.mxu0 0.0
        %3546 = vmatpush1.xpose.msra.mxu0 0.0
        %3547 = vmatprep.subr.mxu0 0.0
        %3548 = vmatpush1.xpose.msra.mxu0 0.0
        %3549 = vmatprep.subr.mxu0 0.0
        %3550 = vmatpush1.xpose.msra.mxu0 0.0
        %3551 = vmatprep.subr.mxu0 0.0
        %3552 = vmatpush1.xpose.msra.mxu0 0.0
        %3553 = vmatprep.subr.mxu0 0.0
        %3554 = vmatpush1.xpose.msra.mxu0 0.0
        %3555 = vmatprep.subr.mxu0 0.0
        %3556 = vmatpush1.xpose.msra.mxu0 0.0
        %3557 = vmatprep.subr.mxu0 0.0
        %3558 = vmatpush1.xpose.msra.mxu0 0.0
        %3559 = vmatprep.subr.mxu0 0.0
        %3560 = vmatpush1.xpose.msra.mxu0 0.0
        %3561 = vmatprep.subr.mxu0 0.0
        %3562 = vmatpush1.xpose.msra.mxu0 0.0
        %3563 = vmatprep.subr.mxu0 0.0
        %3564 = vmatpush1.xpose.msra.mxu0 0.0
        %3565 = vmatprep.subr.mxu0 0.0
        %3566 = vmatpush1.xpose.msra.mxu0 0.0
        %3567 = vmatprep.subr.mxu0 0.0
        %3568 = vmatpush1.xpose.msra.mxu0 0.0
        %3569 = vmatprep.subr.mxu0 0.0
        %3570 = vmatpush1.xpose.msra.mxu0 0.0
        %3571 = vmatprep.subr.mxu0 0.0
        %3572 = vmatpush1.xpose.msra.mxu0 0.0
        %3573 = vmatprep.subr.mxu0 0.0
        %3574 = vmatpush1.xpose.msra.mxu0 0.0
        %3575 = vmatprep.subr.mxu0 0.0
        %3576 = vmatpush1.xpose.msra.mxu0 0.0
        %3577 = vmatprep.subr.mxu0 0.0
        %3578 = vmatpush1.xpose.msra.mxu0 0.0
        %3579 = vmatprep.subr.mxu0 0.0
        %3580 = vmatpush1.xpose.msra.mxu0 0.0
        %3581 = vmatprep.subr.mxu0 0.0
        %3582 = vmatpush1.xpose.msra.mxu0 0.0
        %3583 = vmatprep.mubr.f32.mxu0 0.0
        %3584 = vmatmul.mubr.f32.gmra.mrb[0].mxu0 %v3515
        %v3585 = vpop.f32.mrb[0].mxu0
        %v3586 = vadd.f32 0.0, %v3585
        %v3587 = vpop.f32.mrb[0].mxu0
        %3588 = vdwg.mxu0
        %3589 = vrot.lane.b32.xlu0 %v3176, 120
        %v3590 = vpop.permute.xlu0 %3589
        %3591 = vrot.lane.b32.xlu0 %v3176, 88
        %v3592 = vpop.permute.xlu0 %3591
        %v3593 = vsel %vm901, %v3590, 0
        %v3595 = vsel %vm901, %v3592, 0
        %3597 = vmatprep.subr.mxu0 0.0
        %3598 = vmatpush1.xpose.msra.mxu0 %v3595
        %3599 = vmatprep.subr.mxu0 0.0
        %3600 = vmatpush1.xpose.msra.mxu0 0.0
        %3601 = vmatprep.subr.mxu0 0.0
        %3602 = vmatpush1.xpose.msra.mxu0 0.0
        %3603 = vmatprep.subr.mxu0 0.0
        %3604 = vmatpush1.xpose.msra.mxu0 0.0
        %3605 = vmatprep.subr.mxu0 0.0
        %3606 = vmatpush1.xpose.msra.mxu0 0.0
        %3607 = vmatprep.subr.mxu0 0.0
        %3608 = vmatpush1.xpose.msra.mxu0 0.0
        %3609 = vmatprep.subr.mxu0 0.0
        %3610 = vmatpush1.xpose.msra.mxu0 0.0
        %3611 = vmatprep.subr.mxu0 0.0
        %3612 = vmatpush1.xpose.msra.mxu0 0.0
        %3613 = vmatprep.subr.mxu0 0.0
        %3614 = vmatpush1.xpose.msra.mxu0 0.0
        %3615 = vmatprep.subr.mxu0 0.0
        %3616 = vmatpush1.xpose.msra.mxu0 0.0
        %3617 = vmatprep.subr.mxu0 0.0
        %3618 = vmatpush1.xpose.msra.mxu0 0.0
        %3619 = vmatprep.subr.mxu0 0.0
        %3620 = vmatpush1.xpose.msra.mxu0 0.0
        %3621 = vmatprep.subr.mxu0 0.0
        %3622 = vmatpush1.xpose.msra.mxu0 0.0
        %3623 = vmatprep.subr.mxu0 0.0
        %3624 = vmatpush1.xpose.msra.mxu0 0.0
        %3625 = vmatprep.subr.mxu0 0.0
        %3626 = vmatpush1.xpose.msra.mxu0 0.0
        %3627 = vmatprep.subr.mxu0 0.0
        %3628 = vmatpush1.xpose.msra.mxu0 0.0
        %3629 = vmatprep.subr.mxu0 0.0
        %3630 = vmatpush1.xpose.msra.mxu0 0.0
        %3631 = vmatprep.subr.mxu0 0.0
        %3632 = vmatpush1.xpose.msra.mxu0 0.0
        %3633 = vmatprep.subr.mxu0 0.0
        %3634 = vmatpush1.xpose.msra.mxu0 0.0
        %3635 = vmatprep.subr.mxu0 0.0
        %3636 = vmatpush1.xpose.msra.mxu0 0.0
        %3637 = vmatprep.subr.mxu0 0.0
        %3638 = vmatpush1.xpose.msra.mxu0 0.0
        %3639 = vmatprep.subr.mxu0 0.0
        %3640 = vmatpush1.xpose.msra.mxu0 0.0
        %3641 = vmatprep.subr.mxu0 0.0
        %3642 = vmatpush1.xpose.msra.mxu0 0.0
        %3643 = vmatprep.subr.mxu0 0.0
        %3644 = vmatpush1.xpose.msra.mxu0 0.0
        %3645 = vmatprep.subr.mxu0 0.0
        %3646 = vmatpush1.xpose.msra.mxu0 0.0
        %3647 = vmatprep.subr.mxu0 0.0
        %3648 = vmatpush1.xpose.msra.mxu0 0.0
        %3649 = vmatprep.subr.mxu0 0.0
        %3650 = vmatpush1.xpose.msra.mxu0 0.0
        %3651 = vmatprep.subr.mxu0 0.0
        %3652 = vmatpush1.xpose.msra.mxu0 0.0
        %3653 = vmatprep.subr.mxu0 0.0
        %3654 = vmatpush1.xpose.msra.mxu0 0.0
        %3655 = vmatprep.subr.mxu0 0.0
        %3656 = vmatpush1.xpose.msra.mxu0 0.0
        %3657 = vmatprep.subr.mxu0 0.0
        %3658 = vmatpush1.xpose.msra.mxu0 0.0
        %3659 = vmatprep.subr.mxu0 0.0
        %3660 = vmatpush1.xpose.msra.mxu0 0.0
        %3661 = vmatprep.mubr.f32.mxu0 0.0
        %3662 = vmatmul.mubr.f32.gmra.mrb[0].mxu0 %v3593
        %v3663 = vpop.f32.mrb[0].mxu0
        %v3664 = vadd.f32 0.0, %v3663
        %v3665 = vpop.f32.mrb[0].mxu0
        %3666 = vdwg.mxu0
        %v3667 = vmul.f32 %v3586, 0.35355338
        %v3668 = vmul.f32 %v3664, 0.35355338
        %v3669 = vadd.f32 %v3667, %v1265
        %v3670 = vadd.f32 %v3668, %v1269
        %v3671 = vsel %vm901, %v3669, -inf
        %3672 = vmax.xlane.f32.xlu0 %v3671
        %v3673 = vpop.xlane.xlu0 %3672
        %v3674 = vsel %vm901, %v3670, -inf
        %3675 = vmax.xlane.f32.xlu0 %v3674
        %v3676 = vpop.xlane.xlu0 %3675
        %v3677 = vsub.f32 %v3669, %v3673
        %v3678 = vsub.f32 %v3670, %v3676
        %v3679 = vmul.f32 %v3677, 1.442695
        %v3680 = vpow.pop %v3679
        %v3681 = vmul.f32 %v3678, 1.442695
        %v3682 = vpow.pop %v3681
        %v3683 = vsel %vm901, %v3680, 0.0
        %3684 = vadd.xlane.f32.xlu0 %v3683
        %v3685 = vpop.xlane.xlu0 %3684
        %v3686 = vsel %vm901, %v3682, 0.0
        %3687 = vadd.xlane.f32.xlu0 %v3686
        %v3688 = vpop.xlane.xlu0 %3687
        %v3689 = vrcp.pop %v3685
        %v3690 = vrcp.pop %v3688
        %v3691 = vmul.f32 %v3680, %v3689
        %v3692 = vmul.f32 %v3682, %v3690
        %3693 = vrot.lane.b32.xlu0 %v3171, 56
        %v3694 = vpop.permute.xlu0 %3693
        %v3697 = vsel %vm901, %v3691, 0
        %3699 = vmatprep.subr.mxu0 0.0
        %3700 = vmatpush1.msra.mxu0 %v3694
        %3701 = vmatprep.subr.mxu0 0.0
        %3702 = vmatpush1.msra.mxu0 0.0
        %3703 = vmatprep.subr.mxu0 0.0
        %3704 = vmatpush1.msra.mxu0 0.0
        %3705 = vmatprep.subr.mxu0 0.0
        %3706 = vmatpush1.msra.mxu0 0.0
        %3707 = vmatprep.subr.mxu0 0.0
        %3708 = vmatpush1.msra.mxu0 0.0
        %3709 = vmatprep.subr.mxu0 0.0
        %3710 = vmatpush1.msra.mxu0 0.0
        %3711 = vmatprep.subr.mxu0 0.0
        %3712 = vmatpush1.msra.mxu0 0.0
        %3713 = vmatprep.subr.mxu0 0.0
        %3714 = vmatpush1.msra.mxu0 0.0
        %3715 = vmatprep.subr.mxu0 0.0
        %3716 = vmatpush1.msra.mxu0 0.0
        %3717 = vmatprep.subr.mxu0 0.0
        %3718 = vmatpush1.msra.mxu0 0.0
        %3719 = vmatprep.subr.mxu0 0.0
        %3720 = vmatpush1.msra.mxu0 0.0
        %3721 = vmatprep.subr.mxu0 0.0
        %3722 = vmatpush1.msra.mxu0 0.0
        %3723 = vmatprep.subr.mxu0 0.0
        %3724 = vmatpush1.msra.mxu0 0.0
        %3725 = vmatprep.subr.mxu0 0.0
        %3726 = vmatpush1.msra.mxu0 0.0
        %3727 = vmatprep.subr.mxu0 0.0
        %3728 = vmatpush1.msra.mxu0 0.0
        %3729 = vmatprep.subr.mxu0 0.0
        %3730 = vmatpush1.msra.mxu0 0.0
        %3731 = vmatprep.subr.mxu0 0.0
        %3732 = vmatpush1.msra.mxu0 0.0
        %3733 = vmatprep.subr.mxu0 0.0
        %3734 = vmatpush1.msra.mxu0 0.0
        %3735 = vmatprep.subr.mxu0 0.0
        %3736 = vmatpush1.msra.mxu0 0.0
        %3737 = vmatprep.subr.mxu0 0.0
        %3738 = vmatpush1.msra.mxu0 0.0
        %3739 = vmatprep.subr.mxu0 0.0
        %3740 = vmatpush1.msra.mxu0 0.0
        %3741 = vmatprep.subr.mxu0 0.0
        %3742 = vmatpush1.msra.mxu0 0.0
        %3743 = vmatprep.subr.mxu0 0.0
        %3744 = vmatpush1.msra.mxu0 0.0
        %3745 = vmatprep.subr.mxu0 0.0
        %3746 = vmatpush1.msra.mxu0 0.0
        %3747 = vmatprep.subr.mxu0 0.0
        %3748 = vmatpush1.msra.mxu0 0.0
        %3749 = vmatprep.subr.mxu0 0.0
        %3750 = vmatpush1.msra.mxu0 0.0
        %3751 = vmatprep.subr.mxu0 0.0
        %3752 = vmatpush1.msra.mxu0 0.0
        %3753 = vmatprep.subr.mxu0 0.0
        %3754 = vmatpush1.msra.mxu0 0.0
        %3755 = vmatprep.subr.mxu0 0.0
        %3756 = vmatpush1.msra.mxu0 0.0
        %3757 = vmatprep.subr.mxu0 0.0
        %3758 = vmatpush1.msra.mxu0 0.0
        %3759 = vmatprep.subr.mxu0 0.0
        %3760 = vmatpush1.msra.mxu0 0.0
        %3761 = vmatprep.subr.mxu0 0.0
        %3762 = vmatpush1.msra.mxu0 0.0
        %3763 = vmatprep.mubr.f32.mxu0 0.0
        %3764 = vmatmul.mubr.f32.gmra.mrb[0].mxu0 %v3697
        %v3765 = vpop.f32.mrb[0].mxu0
        %v3766 = vadd.f32 0.0, %v3765
        %v3767 = vpop.f32.mrb[0].mxu0
        %3768 = vdwg.mxu0
        %3769 = vrot.lane.b32.xlu0 %v3176, 56
        %v3770 = vpop.permute.xlu0 %3769
        %v3773 = vsel %vm901, %v3692, 0
        %3775 = vmatprep.subr.mxu0 0.0
        %3776 = vmatpush1.msra.mxu0 %v3770
        %3777 = vmatprep.subr.mxu0 0.0
        %3778 = vmatpush1.msra.mxu0 0.0
        %3779 = vmatprep.subr.mxu0 0.0
        %3780 = vmatpush1.msra.mxu0 0.0
        %3781 = vmatprep.subr.mxu0 0.0
        %3782 = vmatpush1.msra.mxu0 0.0
        %3783 = vmatprep.subr.mxu0 0.0
        %3784 = vmatpush1.msra.mxu0 0.0
        %3785 = vmatprep.subr.mxu0 0.0
        %3786 = vmatpush1.msra.mxu0 0.0
        %3787 = vmatprep.subr.mxu0 0.0
        %3788 = vmatpush1.msra.mxu0 0.0
        %3789 = vmatprep.subr.mxu0 0.0
        %3790 = vmatpush1.msra.mxu0 0.0
        %3791 = vmatprep.subr.mxu0 0.0
        %3792 = vmatpush1.msra.mxu0 0.0
        %3793 = vmatprep.subr.mxu0 0.0
        %3794 = vmatpush1.msra.mxu0 0.0
        %3795 = vmatprep.subr.mxu0 0.0
        %3796 = vmatpush1.msra.mxu0 0.0
        %3797 = vmatprep.subr.mxu0 0.0
        %3798 = vmatpush1.msra.mxu0 0.0
        %3799 = vmatprep.subr.mxu0 0.0
        %3800 = vmatpush1.msra.mxu0 0.0
        %3801 = vmatprep.subr.mxu0 0.0
        %3802 = vmatpush1.msra.mxu0 0.0
        %3803 = vmatprep.subr.mxu0 0.0
        %3804 = vmatpush1.msra.mxu0 0.0
        %3805 = vmatprep.subr.mxu0 0.0
        %3806 = vmatpush1.msra.mxu0 0.0
        %3807 = vmatprep.subr.mxu0 0.0
        %3808 = vmatpush1.msra.mxu0 0.0
        %3809 = vmatprep.subr.mxu0 0.0
        %3810 = vmatpush1.msra.mxu0 0.0
        %3811 = vmatprep.subr.mxu0 0.0
        %3812 = vmatpush1.msra.mxu0 0.0
        %3813 = vmatprep.subr.mxu0 0.0
        %3814 = vmatpush1.msra.mxu0 0.0
        %3815 = vmatprep.subr.mxu0 0.0
        %3816 = vmatpush1.msra.mxu0 0.0
        %3817 = vmatprep.subr.mxu0 0.0
        %3818 = vmatpush1.msra.mxu0 0.0
        %3819 = vmatprep.subr.mxu0 0.0
        %3820 = vmatpush1.msra.mxu0 0.0
        %3821 = vmatprep.subr.mxu0 0.0
        %3822 = vmatpush1.msra.mxu0 0.0
        %3823 = vmatprep.subr.mxu0 0.0
        %3824 = vmatpush1.msra.mxu0 0.0
        %3825 = vmatprep.subr.mxu0 0.0
        %3826 = vmatpush1.msra.mxu0 0.0
        %3827 = vmatprep.subr.mxu0 0.0
        %3828 = vmatpush1.msra.mxu0 0.0
        %3829 = vmatprep.subr.mxu0 0.0
        %3830 = vmatpush1.msra.mxu0 0.0
        %3831 = vmatprep.subr.mxu0 0.0
        %3832 = vmatpush1.msra.mxu0 0.0
        %3833 = vmatprep.subr.mxu0 0.0
        %3834 = vmatpush1.msra.mxu0 0.0
        %3835 = vmatprep.subr.mxu0 0.0
        %3836 = vmatpush1.msra.mxu0 0.0
        %3837 = vmatprep.subr.mxu0 0.0
        %3838 = vmatpush1.msra.mxu0 0.0
        %3839 = vmatprep.mubr.f32.mxu0 0.0
        %3840 = vmatmul.mubr.f32.gmra.mrb[0].mxu0 %v3773
        %v3841 = vpop.f32.mrb[0].mxu0
        %v3842 = vadd.f32 0.0, %v3841
        %v3843 = vpop.f32.mrb[0].mxu0
        %3844 = vdwg.mxu0
        %v3846 = vsel %vm901, %v3766, 0
        %v3849 = vsel %vm901, %v3842, 0
        %3851 = vmatprep.subr.mxu0 0.0
        %3852 = vmatpush1.msra.mxu0 %v3061
        %3853 = vmatprep.subr.mxu0 0.0
        %3854 = vmatpush1.msra.mxu0 0.0
        %3855 = vmatprep.subr.mxu0 0.0
        %3856 = vmatpush1.msra.mxu0 0.0
        %3857 = vmatprep.subr.mxu0 0.0
        %3858 = vmatpush1.msra.mxu0 0.0
        %3859 = vmatprep.subr.mxu0 0.0
        %3860 = vmatpush1.msra.mxu0 0.0
        %3861 = vmatprep.subr.mxu0 0.0
        %3862 = vmatpush1.msra.mxu0 0.0
        %3863 = vmatprep.subr.mxu0 0.0
        %3864 = vmatpush1.msra.mxu0 0.0
        %3865 = vmatprep.subr.mxu0 0.0
        %3866 = vmatpush1.msra.mxu0 0.0
        %3867 = vmatprep.subr.mxu0 0.0
        %3868 = vmatpush1.msra.mxu0 0.0
        %3869 = vmatprep.subr.mxu0 0.0
        %3870 = vmatpush1.msra.mxu0 0.0
        %3871 = vmatprep.subr.mxu0 0.0
        %3872 = vmatpush1.msra.mxu0 0.0
        %3873 = vmatprep.subr.mxu0 0.0
        %3874 = vmatpush1.msra.mxu0 0.0
        %3875 = vmatprep.subr.mxu0 0.0
        %3876 = vmatpush1.msra.mxu0 0.0
        %3877 = vmatprep.subr.mxu0 0.0
        %3878 = vmatpush1.msra.mxu0 0.0
        %3879 = vmatprep.subr.mxu0 0.0
        %3880 = vmatpush1.msra.mxu0 0.0
        %3881 = vmatprep.subr.mxu0 0.0
        %3882 = vmatpush1.msra.mxu0 0.0
        %3883 = vmatprep.subr.mxu0 0.0
        %3884 = vmatpush1.msra.mxu0 0.0
        %3885 = vmatprep.subr.mxu0 0.0
        %3886 = vmatpush1.msra.mxu0 0.0
        %3887 = vmatprep.subr.mxu0 0.0
        %3888 = vmatpush1.msra.mxu0 0.0
        %3889 = vmatprep.subr.mxu0 0.0
        %3890 = vmatpush1.msra.mxu0 0.0
        %3891 = vmatprep.subr.mxu0 0.0
        %3892 = vmatpush1.msra.mxu0 0.0
        %3893 = vmatprep.subr.mxu0 0.0
        %3894 = vmatpush1.msra.mxu0 0.0
        %3895 = vmatprep.subr.mxu0 0.0
        %3896 = vmatpush1.msra.mxu0 0.0
        %3897 = vmatprep.subr.mxu0 0.0
        %3898 = vmatpush1.msra.mxu0 0.0
        %3899 = vmatprep.subr.mxu0 0.0
        %3900 = vmatpush1.msra.mxu0 0.0
        %3901 = vmatprep.subr.mxu0 0.0
        %3902 = vmatpush1.msra.mxu0 0.0
        %3903 = vmatprep.subr.mxu0 0.0
        %3904 = vmatpush1.msra.mxu0 0.0
        %3905 = vmatprep.subr.mxu0 0.0
        %3906 = vmatpush1.msra.mxu0 0.0
        %3907 = vmatprep.subr.mxu0 0.0
        %3908 = vmatpush1.msra.mxu0 0.0
        %3909 = vmatprep.subr.mxu0 0.0
        %3910 = vmatpush1.msra.mxu0 0.0
        %3911 = vmatprep.subr.mxu0 0.0
        %3912 = vmatpush1.msra.mxu0 0.0
        %3913 = vmatprep.subr.mxu0 0.0
        %3914 = vmatpush1.msra.mxu0 0.0
        %3915 = vmatprep.mubr.f32.mxu0 0.0
        %3916 = vmatmul.mubr.f32.gmra.mrb[0].mxu0 %v3846
        %v3917 = vpop.f32.mrb[0].mxu0
        %v3918 = vadd.f32 0.0, %v3917
        %v3919 = vpop.f32.mrb[0].mxu0
        %3920 = vmatprep.mubr.f32.mxu0 0.0
        %3921 = vmatmul.mubr.f32.gmra.mrb[0].mxu0 %v3849
        %v3922 = vpop.f32.mrb[0].mxu0
        %v3923 = vadd.f32 0.0, %v3922
        %v3924 = vpop.f32.mrb[0].mxu0
        %3925 = vdwg.mxu0
        %v3927 = vsel %vm901, %v3432, 0
        %v3930 = vsel %vm901, %v3508, 0
        %3932 = vmatprep.subr.mxu0 0.0
        %3933 = vmatpush1.msra.mxu0 %v3060
        %3934 = vmatprep.subr.mxu0 0.0
        %3935 = vmatpush1.msra.mxu0 0.0
        %3936 = vmatprep.subr.mxu0 0.0
        %3937 = vmatpush1.msra.mxu0 0.0
        %3938 = vmatprep.subr.mxu0 0.0
        %3939 = vmatpush1.msra.mxu0 0.0
        %3940 = vmatprep.subr.mxu0 0.0
        %3941 = vmatpush1.msra.mxu0 0.0
        %3942 = vmatprep.subr.mxu0 0.0
        %3943 = vmatpush1.msra.mxu0 0.0
        %3944 = vmatprep.subr.mxu0 0.0
        %3945 = vmatpush1.msra.mxu0 0.0
        %3946 = vmatprep.subr.mxu0 0.0
        %3947 = vmatpush1.msra.mxu0 0.0
        %3948 = vmatprep.subr.mxu0 0.0
        %3949 = vmatpush1.msra.mxu0 0.0
        %3950 = vmatprep.subr.mxu0 0.0
        %3951 = vmatpush1.msra.mxu0 0.0
        %3952 = vmatprep.subr.mxu0 0.0
        %3953 = vmatpush1.msra.mxu0 0.0
        %3954 = vmatprep.subr.mxu0 0.0
        %3955 = vmatpush1.msra.mxu0 0.0
        %3956 = vmatprep.subr.mxu0 0.0
        %3957 = vmatpush1.msra.mxu0 0.0
        %3958 = vmatprep.subr.mxu0 0.0
        %3959 = vmatpush1.msra.mxu0 0.0
        %3960 = vmatprep.subr.mxu0 0.0
        %3961 = vmatpush1.msra.mxu0 0.0
        %3962 = vmatprep.subr.mxu0 0.0
        %3963 = vmatpush1.msra.mxu0 0.0
        %3964 = vmatprep.subr.mxu0 0.0
        %3965 = vmatpush1.msra.mxu0 0.0
        %3966 = vmatprep.subr.mxu0 0.0
        %3967 = vmatpush1.msra.mxu0 0.0
        %3968 = vmatprep.subr.mxu0 0.0
        %3969 = vmatpush1.msra.mxu0 0.0
        %3970 = vmatprep.subr.mxu0 0.0
        %3971 = vmatpush1.msra.mxu0 0.0
        %3972 = vmatprep.subr.mxu0 0.0
        %3973 = vmatpush1.msra.mxu0 0.0
        %3974 = vmatprep.subr.mxu0 0.0
        %3975 = vmatpush1.msra.mxu0 0.0
        %3976 = vmatprep.subr.mxu0 0.0
        %3977 = vmatpush1.msra.mxu0 0.0
        %3978 = vmatprep.subr.mxu0 0.0
        %3979 = vmatpush1.msra.mxu0 0.0
        %3980 = vmatprep.subr.mxu0 0.0
        %3981 = vmatpush1.msra.mxu0 0.0
        %3982 = vmatprep.subr.mxu0 0.0
        %3983 = vmatpush1.msra.mxu0 0.0
        %3984 = vmatprep.subr.mxu0 0.0
        %3985 = vmatpush1.msra.mxu0 0.0
        %3986 = vmatprep.subr.mxu0 0.0
        %3987 = vmatpush1.msra.mxu0 0.0
        %3988 = vmatprep.subr.mxu0 0.0
        %3989 = vmatpush1.msra.mxu0 0.0
        %3990 = vmatprep.subr.mxu0 0.0
        %3991 = vmatpush1.msra.mxu0 0.0
        %3992 = vmatprep.subr.mxu0 0.0
        %3993 = vmatpush1.msra.mxu0 0.0
        %3994 = vmatprep.subr.mxu0 0.0
        %3995 = vmatpush1.msra.mxu0 0.0
        %3996 = vmatprep.mubr.f32.mxu0 0.0
        %3997 = vmatmul.mubr.f32.gmra.mrb[0].mxu0 %v3927
        %v3998 = vpop.f32.mrb[0].mxu0
        %v3999 = vadd.f32 %v3918, %v3998
        %v4000 = vpop.f32.mrb[0].mxu0
        %4001 = vmatprep.mubr.f32.mxu0 0.0
        %4002 = vmatmul.mubr.f32.gmra.mrb[0].mxu0 %v3930
        %v4003 = vpop.f32.mrb[0].mxu0
        %v4004 = vadd.f32 %v3923, %v4003
        %v4005 = vpop.f32.mrb[0].mxu0
        %4006 = vdwg.mxu0
        %4007 = vrot.lane.b32.xlu0 %v3171, 112
        %v4008 = vpop.permute.xlu0 %4007
        %4009 = vrot.lane.b32.xlu0 %v3171, 80
        %v4010 = vpop.permute.xlu0 %4009
        %v4011 = vsel %vm901, %v4008, 0
        %v4013 = vsel %vm901, %v4010, 0
        %4015 = vmatprep.subr.mxu0 0.0
        %4016 = vmatpush1.xpose.msra.mxu0 %v4013
        %4017 = vmatprep.subr.mxu0 0.0
        %4018 = vmatpush1.xpose.msra.mxu0 0.0
        %4019 = vmatprep.subr.mxu0 0.0
        %4020 = vmatpush1.xpose.msra.mxu0 0.0
        %4021 = vmatprep.subr.mxu0 0.0
        %4022 = vmatpush1.xpose.msra.mxu0 0.0
        %4023 = vmatprep.subr.mxu0 0.0
        %4024 = vmatpush1.xpose.msra.mxu0 0.0
        %4025 = vmatprep.subr.mxu0 0.0
        %4026 = vmatpush1.xpose.msra.mxu0 0.0
        %4027 = vmatprep.subr.mxu0 0.0
        %4028 = vmatpush1.xpose.msra.mxu0 0.0
        %4029 = vmatprep.subr.mxu0 0.0
        %4030 = vmatpush1.xpose.msra.mxu0 0.0
        %4031 = vmatprep.subr.mxu0 0.0
        %4032 = vmatpush1.xpose.msra.mxu0 0.0
        %4033 = vmatprep.subr.mxu0 0.0
        %4034 = vmatpush1.xpose.msra.mxu0 0.0
        %4035 = vmatprep.subr.mxu0 0.0
        %4036 = vmatpush1.xpose.msra.mxu0 0.0
        %4037 = vmatprep.subr.mxu0 0.0
        %4038 = vmatpush1.xpose.msra.mxu0 0.0
        %4039 = vmatprep.subr.mxu0 0.0
        %4040 = vmatpush1.xpose.msra.mxu0 0.0
        %4041 = vmatprep.subr.mxu0 0.0
        %4042 = vmatpush1.xpose.msra.mxu0 0.0
        %4043 = vmatprep.subr.mxu0 0.0
        %4044 = vmatpush1.xpose.msra.mxu0 0.0
        %4045 = vmatprep.subr.mxu0 0.0
        %4046 = vmatpush1.xpose.msra.mxu0 0.0
        %4047 = vmatprep.subr.mxu0 0.0
        %4048 = vmatpush1.xpose.msra.mxu0 0.0
        %4049 = vmatprep.subr.mxu0 0.0
        %4050 = vmatpush1.xpose.msra.mxu0 0.0
        %4051 = vmatprep.subr.mxu0 0.0
        %4052 = vmatpush1.xpose.msra.mxu0 0.0
        %4053 = vmatprep.subr.mxu0 0.0
        %4054 = vmatpush1.xpose.msra.mxu0 0.0
        %4055 = vmatprep.subr.mxu0 0.0
        %4056 = vmatpush1.xpose.msra.mxu0 0.0
        %4057 = vmatprep.subr.mxu0 0.0
        %4058 = vmatpush1.xpose.msra.mxu0 0.0
        %4059 = vmatprep.subr.mxu0 0.0
        %4060 = vmatpush1.xpose.msra.mxu0 0.0
        %4061 = vmatprep.subr.mxu0 0.0
        %4062 = vmatpush1.xpose.msra.mxu0 0.0
        %4063 = vmatprep.subr.mxu0 0.0
        %4064 = vmatpush1.xpose.msra.mxu0 0.0
        %4065 = vmatprep.subr.mxu0 0.0
        %4066 = vmatpush1.xpose.msra.mxu0 0.0
        %4067 = vmatprep.subr.mxu0 0.0
        %4068 = vmatpush1.xpose.msra.mxu0 0.0
        %4069 = vmatprep.subr.mxu0 0.0
        %4070 = vmatpush1.xpose.msra.mxu0 0.0
        %4071 = vmatprep.subr.mxu0 0.0
        %4072 = vmatpush1.xpose.msra.mxu0 0.0
        %4073 = vmatprep.subr.mxu0 0.0
        %4074 = vmatpush1.xpose.msra.mxu0 0.0
        %4075 = vmatprep.subr.mxu0 0.0
        %4076 = vmatpush1.xpose.msra.mxu0 0.0
        %4077 = vmatprep.subr.mxu0 0.0
        %4078 = vmatpush1.xpose.msra.mxu0 0.0
        %4079 = vmatprep.mubr.f32.mxu0 0.0
        %4080 = vmatmul.mubr.f32.gmra.mrb[0].mxu0 %v4011
        %v4081 = vpop.f32.mrb[0].mxu0
        %v4082 = vadd.f32 0.0, %v4081
        %v4083 = vpop.f32.mrb[0].mxu0
        %4084 = vdwg.mxu0
        %4085 = vrot.lane.b32.xlu0 %v3176, 112
        %v4086 = vpop.permute.xlu0 %4085
        %4087 = vrot.lane.b32.xlu0 %v3176, 80
        %v4088 = vpop.permute.xlu0 %4087
        %v4089 = vsel %vm901, %v4086, 0
        %v4091 = vsel %vm901, %v4088, 0
        %4093 = vmatprep.subr.mxu0 0.0
        %4094 = vmatpush1.xpose.msra.mxu0 %v4091
        %4095 = vmatprep.subr.mxu0 0.0
        %4096 = vmatpush1.xpose.msra.mxu0 0.0
        %4097 = vmatprep.subr.mxu0 0.0
        %4098 = vmatpush1.xpose.msra.mxu0 0.0
        %4099 = vmatprep.subr.mxu0 0.0
        %4100 = vmatpush1.xpose.msra.mxu0 0.0
        %4101 = vmatprep.subr.mxu0 0.0
        %4102 = vmatpush1.xpose.msra.mxu0 0.0
        %4103 = vmatprep.subr.mxu0 0.0
        %4104 = vmatpush1.xpose.msra.mxu0 0.0
        %4105 = vmatprep.subr.mxu0 0.0
        %4106 = vmatpush1.xpose.msra.mxu0 0.0
        %4107 = vmatprep.subr.mxu0 0.0
        %4108 = vmatpush1.xpose.msra.mxu0 0.0
        %4109 = vmatprep.subr.mxu0 0.0
        %4110 = vmatpush1.xpose.msra.mxu0 0.0
        %4111 = vmatprep.subr.mxu0 0.0
        %4112 = vmatpush1.xpose.msra.mxu0 0.0
        %4113 = vmatprep.subr.mxu0 0.0
        %4114 = vmatpush1.xpose.msra.mxu0 0.0
        %4115 = vmatprep.subr.mxu0 0.0
        %4116 = vmatpush1.xpose.msra.mxu0 0.0
        %4117 = vmatprep.subr.mxu0 0.0
        %4118 = vmatpush1.xpose.msra.mxu0 0.0
        %4119 = vmatprep.subr.mxu0 0.0
        %4120 = vmatpush1.xpose.msra.mxu0 0.0
        %4121 = vmatprep.subr.mxu0 0.0
        %4122 = vmatpush1.xpose.msra.mxu0 0.0
        %4123 = vmatprep.subr.mxu0 0.0
        %4124 = vmatpush1.xpose.msra.mxu0 0.0
        %4125 = vmatprep.subr.mxu0 0.0
        %4126 = vmatpush1.xpose.msra.mxu0 0.0
        %4127 = vmatprep.subr.mxu0 0.0
        %4128 = vmatpush1.xpose.msra.mxu0 0.0
        %4129 = vmatprep.subr.mxu0 0.0
        %4130 = vmatpush1.xpose.msra.mxu0 0.0
        %4131 = vmatprep.subr.mxu0 0.0
        %4132 = vmatpush1.xpose.msra.mxu0 0.0
        %4133 = vmatprep.subr.mxu0 0.0
        %4134 = vmatpush1.xpose.msra.mxu0 0.0
        %4135 = vmatprep.subr.mxu0 0.0
        %4136 = vmatpush1.xpose.msra.mxu0 0.0
        %4137 = vmatprep.subr.mxu0 0.0
        %4138 = vmatpush1.xpose.msra.mxu0 0.0
        %4139 = vmatprep.subr.mxu0 0.0
        %4140 = vmatpush1.xpose.msra.mxu0 0.0
        %4141 = vmatprep.subr.mxu0 0.0
        %4142 = vmatpush1.xpose.msra.mxu0 0.0
        %4143 = vmatprep.subr.mxu0 0.0
        %4144 = vmatpush1.xpose.msra.mxu0 0.0
        %4145 = vmatprep.subr.mxu0 0.0
        %4146 = vmatpush1.xpose.msra.mxu0 0.0
        %4147 = vmatprep.subr.mxu0 0.0
        %4148 = vmatpush1.xpose.msra.mxu0 0.0
        %4149 = vmatprep.subr.mxu0 0.0
        %4150 = vmatpush1.xpose.msra.mxu0 0.0
        %4151 = vmatprep.subr.mxu0 0.0
        %4152 = vmatpush1.xpose.msra.mxu0 0.0
        %4153 = vmatprep.subr.mxu0 0.0
        %4154 = vmatpush1.xpose.msra.mxu0 0.0
        %4155 = vmatprep.subr.mxu0 0.0
        %4156 = vmatpush1.xpose.msra.mxu0 0.0
        %4157 = vmatprep.mubr.f32.mxu0 0.0
        %4158 = vmatmul.mubr.f32.gmra.mrb[0].mxu0 %v4089
        %v4159 = vpop.f32.mrb[0].mxu0
        %v4160 = vadd.f32 0.0, %v4159
        %v4161 = vpop.f32.mrb[0].mxu0
        %4162 = vdwg.mxu0
        %v4163 = vmul.f32 %v4082, 0.35355338
        %v4164 = vmul.f32 %v4160, 0.35355338
        %v4165 = vadd.f32 %v4163, %v1265
        %v4166 = vadd.f32 %v4164, %v1269
        %v4167 = vsel %vm901, %v4165, -inf
        %4168 = vmax.xlane.f32.xlu0 %v4167
        %v4169 = vpop.xlane.xlu0 %4168
        %v4170 = vsel %vm901, %v4166, -inf
        %4171 = vmax.xlane.f32.xlu0 %v4170
        %v4172 = vpop.xlane.xlu0 %4171
        %v4173 = vsub.f32 %v4165, %v4169
        %v4174 = vsub.f32 %v4166, %v4172
        %v4175 = vmul.f32 %v4173, 1.442695
        %v4176 = vpow.pop %v4175
        %v4177 = vmul.f32 %v4174, 1.442695
        %v4178 = vpow.pop %v4177
        %v4179 = vsel %vm901, %v4176, 0.0
        %4180 = vadd.xlane.f32.xlu0 %v4179
        %v4181 = vpop.xlane.xlu0 %4180
        %v4182 = vsel %vm901, %v4178, 0.0
        %4183 = vadd.xlane.f32.xlu0 %v4182
        %v4184 = vpop.xlane.xlu0 %4183
        %v4185 = vrcp.pop %v4181
        %v4186 = vrcp.pop %v4184
        %v4187 = vmul.f32 %v4176, %v4185
        %v4188 = vmul.f32 %v4178, %v4186
        %4189 = vrot.lane.b32.xlu0 %v3171, 48
        %v4190 = vpop.permute.xlu0 %4189
        %v4193 = vsel %vm901, %v4187, 0
        %4195 = vmatprep.subr.mxu0 0.0
        %4196 = vmatpush1.msra.mxu0 %v4190
        %4197 = vmatprep.subr.mxu0 0.0
        %4198 = vmatpush1.msra.mxu0 0.0
        %4199 = vmatprep.subr.mxu0 0.0
        %4200 = vmatpush1.msra.mxu0 0.0
        %4201 = vmatprep.subr.mxu0 0.0
        %4202 = vmatpush1.msra.mxu0 0.0
        %4203 = vmatprep.subr.mxu0 0.0
        %4204 = vmatpush1.msra.mxu0 0.0
        %4205 = vmatprep.subr.mxu0 0.0
        %4206 = vmatpush1.msra.mxu0 0.0
        %4207 = vmatprep.subr.mxu0 0.0
        %4208 = vmatpush1.msra.mxu0 0.0
        %4209 = vmatprep.subr.mxu0 0.0
        %4210 = vmatpush1.msra.mxu0 0.0
        %4211 = vmatprep.subr.mxu0 0.0
        %4212 = vmatpush1.msra.mxu0 0.0
        %4213 = vmatprep.subr.mxu0 0.0
        %4214 = vmatpush1.msra.mxu0 0.0
        %4215 = vmatprep.subr.mxu0 0.0
        %4216 = vmatpush1.msra.mxu0 0.0
        %4217 = vmatprep.subr.mxu0 0.0
        %4218 = vmatpush1.msra.mxu0 0.0
        %4219 = vmatprep.subr.mxu0 0.0
        %4220 = vmatpush1.msra.mxu0 0.0
        %4221 = vmatprep.subr.mxu0 0.0
        %4222 = vmatpush1.msra.mxu0 0.0
        %4223 = vmatprep.subr.mxu0 0.0
        %4224 = vmatpush1.msra.mxu0 0.0
        %4225 = vmatprep.subr.mxu0 0.0
        %4226 = vmatpush1.msra.mxu0 0.0
        %4227 = vmatprep.subr.mxu0 0.0
        %4228 = vmatpush1.msra.mxu0 0.0
        %4229 = vmatprep.subr.mxu0 0.0
        %4230 = vmatpush1.msra.mxu0 0.0
        %4231 = vmatprep.subr.mxu0 0.0
        %4232 = vmatpush1.msra.mxu0 0.0
        %4233 = vmatprep.subr.mxu0 0.0
        %4234 = vmatpush1.msra.mxu0 0.0
        %4235 = vmatprep.subr.mxu0 0.0
        %4236 = vmatpush1.msra.mxu0 0.0
        %4237 = vmatprep.subr.mxu0 0.0
        %4238 = vmatpush1.msra.mxu0 0.0
        %4239 = vmatprep.subr.mxu0 0.0
        %4240 = vmatpush1.msra.mxu0 0.0
        %4241 = vmatprep.subr.mxu0 0.0
        %4242 = vmatpush1.msra.mxu0 0.0
        %4243 = vmatprep.subr.mxu0 0.0
        %4244 = vmatpush1.msra.mxu0 0.0
        %4245 = vmatprep.subr.mxu0 0.0
        %4246 = vmatpush1.msra.mxu0 0.0
        %4247 = vmatprep.subr.mxu0 0.0
        %4248 = vmatpush1.msra.mxu0 0.0
        %4249 = vmatprep.subr.mxu0 0.0
        %4250 = vmatpush1.msra.mxu0 0.0
        %4251 = vmatprep.subr.mxu0 0.0
        %4252 = vmatpush1.msra.mxu0 0.0
        %4253 = vmatprep.subr.mxu0 0.0
        %4254 = vmatpush1.msra.mxu0 0.0
        %4255 = vmatprep.subr.mxu0 0.0
        %4256 = vmatpush1.msra.mxu0 0.0
        %4257 = vmatprep.subr.mxu0 0.0
        %4258 = vmatpush1.msra.mxu0 0.0
        %4259 = vmatprep.mubr.f32.mxu0 0.0
        %4260 = vmatmul.mubr.f32.gmra.mrb[0].mxu0 %v4193
        %v4261 = vpop.f32.mrb[0].mxu0
        %v4262 = vadd.f32 0.0, %v4261
        %v4263 = vpop.f32.mrb[0].mxu0
        %4264 = vdwg.mxu0
        %4265 = vrot.lane.b32.xlu0 %v3176, 48
        %v4266 = vpop.permute.xlu0 %4265
        %v4269 = vsel %vm901, %v4188, 0
        %4271 = vmatprep.subr.mxu0 0.0
        %4272 = vmatpush1.msra.mxu0 %v4266
        %4273 = vmatprep.subr.mxu0 0.0
        %4274 = vmatpush1.msra.mxu0 0.0
        %4275 = vmatprep.subr.mxu0 0.0
        %4276 = vmatpush1.msra.mxu0 0.0
        %4277 = vmatprep.subr.mxu0 0.0
        %4278 = vmatpush1.msra.mxu0 0.0
        %4279 = vmatprep.subr.mxu0 0.0
        %4280 = vmatpush1.msra.mxu0 0.0
        %4281 = vmatprep.subr.mxu0 0.0
        %4282 = vmatpush1.msra.mxu0 0.0
        %4283 = vmatprep.subr.mxu0 0.0
        %4284 = vmatpush1.msra.mxu0 0.0
        %4285 = vmatprep.subr.mxu0 0.0
        %4286 = vmatpush1.msra.mxu0 0.0
        %4287 = vmatprep.subr.mxu0 0.0
        %4288 = vmatpush1.msra.mxu0 0.0
        %4289 = vmatprep.subr.mxu0 0.0
        %4290 = vmatpush1.msra.mxu0 0.0
        %4291 = vmatprep.subr.mxu0 0.0
        %4292 = vmatpush1.msra.mxu0 0.0
        %4293 = vmatprep.subr.mxu0 0.0
        %4294 = vmatpush1.msra.mxu0 0.0
        %4295 = vmatprep.subr.mxu0 0.0
        %4296 = vmatpush1.msra.mxu0 0.0
        %4297 = vmatprep.subr.mxu0 0.0
        %4298 = vmatpush1.msra.mxu0 0.0
        %4299 = vmatprep.subr.mxu0 0.0
        %4300 = vmatpush1.msra.mxu0 0.0
        %4301 = vmatprep.subr.mxu0 0.0
        %4302 = vmatpush1.msra.mxu0 0.0
        %4303 = vmatprep.subr.mxu0 0.0
        %4304 = vmatpush1.msra.mxu0 0.0
        %4305 = vmatprep.subr.mxu0 0.0
        %4306 = vmatpush1.msra.mxu0 0.0
        %4307 = vmatprep.subr.mxu0 0.0
        %4308 = vmatpush1.msra.mxu0 0.0
        %4309 = vmatprep.subr.mxu0 0.0
        %4310 = vmatpush1.msra.mxu0 0.0
        %4311 = vmatprep.subr.mxu0 0.0
        %4312 = vmatpush1.msra.mxu0 0.0
        %4313 = vmatprep.subr.mxu0 0.0
        %4314 = vmatpush1.msra.mxu0 0.0
        %4315 = vmatprep.subr.mxu0 0.0
        %4316 = vmatpush1.msra.mxu0 0.0
        %4317 = vmatprep.subr.mxu0 0.0
        %4318 = vmatpush1.msra.mxu0 0.0
        %4319 = vmatprep.subr.mxu0 0.0
        %4320 = vmatpush1.msra.mxu0 0.0
        %4321 = vmatprep.subr.mxu0 0.0
        %4322 = vmatpush1.msra.mxu0 0.0
        %4323 = vmatprep.subr.mxu0 0.0
        %4324 = vmatpush1.msra.mxu0 0.0
        %4325 = vmatprep.subr.mxu0 0.0
        %4326 = vmatpush1.msra.mxu0 0.0
        %4327 = vmatprep.subr.mxu0 0.0
        %4328 = vmatpush1.msra.mxu0 0.0
        %4329 = vmatprep.subr.mxu0 0.0
        %4330 = vmatpush1.msra.mxu0 0.0
        %4331 = vmatprep.subr.mxu0 0.0
        %4332 = vmatpush1.msra.mxu0 0.0
        %4333 = vmatprep.subr.mxu0 0.0
        %4334 = vmatpush1.msra.mxu0 0.0
        %4335 = vmatprep.mubr.f32.mxu0 0.0
        %4336 = vmatmul.mubr.f32.gmra.mrb[0].mxu0 %v4269
        %v4337 = vpop.f32.mrb[0].mxu0
        %v4338 = vadd.f32 0.0, %v4337
        %v4339 = vpop.f32.mrb[0].mxu0
        %4340 = vdwg.mxu0
        %v4342 = vsel %vm901, %v4262, 0
        %v4345 = vsel %vm901, %v4338, 0
        %4347 = vmatprep.subr.mxu0 0.0
        %4348 = vmatpush1.msra.mxu0 %v3062
        %4349 = vmatprep.subr.mxu0 0.0
        %4350 = vmatpush1.msra.mxu0 0.0
        %4351 = vmatprep.subr.mxu0 0.0
        %4352 = vmatpush1.msra.mxu0 0.0
        %4353 = vmatprep.subr.mxu0 0.0
        %4354 = vmatpush1.msra.mxu0 0.0
        %4355 = vmatprep.subr.mxu0 0.0
        %4356 = vmatpush1.msra.mxu0 0.0
        %4357 = vmatprep.subr.mxu0 0.0
        %4358 = vmatpush1.msra.mxu0 0.0
        %4359 = vmatprep.subr.mxu0 0.0
        %4360 = vmatpush1.msra.mxu0 0.0
        %4361 = vmatprep.subr.mxu0 0.0
        %4362 = vmatpush1.msra.mxu0 0.0
        %4363 = vmatprep.subr.mxu0 0.0
        %4364 = vmatpush1.msra.mxu0 0.0
        %4365 = vmatprep.subr.mxu0 0.0
        %4366 = vmatpush1.msra.mxu0 0.0
        %4367 = vmatprep.subr.mxu0 0.0
        %4368 = vmatpush1.msra.mxu0 0.0
        %4369 = vmatprep.subr.mxu0 0.0
        %4370 = vmatpush1.msra.mxu0 0.0
        %4371 = vmatprep.subr.mxu0 0.0
        %4372 = vmatpush1.msra.mxu0 0.0
        %4373 = vmatprep.subr.mxu0 0.0
        %4374 = vmatpush1.msra.mxu0 0.0
        %4375 = vmatprep.subr.mxu0 0.0
        %4376 = vmatpush1.msra.mxu0 0.0
        %4377 = vmatprep.subr.mxu0 0.0
        %4378 = vmatpush1.msra.mxu0 0.0
        %4379 = vmatprep.subr.mxu0 0.0
        %4380 = vmatpush1.msra.mxu0 0.0
        %4381 = vmatprep.subr.mxu0 0.0
        %4382 = vmatpush1.msra.mxu0 0.0
        %4383 = vmatprep.subr.mxu0 0.0
        %4384 = vmatpush1.msra.mxu0 0.0
        %4385 = vmatprep.subr.mxu0 0.0
        %4386 = vmatpush1.msra.mxu0 0.0
        %4387 = vmatprep.subr.mxu0 0.0
        %4388 = vmatpush1.msra.mxu0 0.0
        %4389 = vmatprep.subr.mxu0 0.0
        %4390 = vmatpush1.msra.mxu0 0.0
        %4391 = vmatprep.subr.mxu0 0.0
        %4392 = vmatpush1.msra.mxu0 0.0
        %4393 = vmatprep.subr.mxu0 0.0
        %4394 = vmatpush1.msra.mxu0 0.0
        %4395 = vmatprep.subr.mxu0 0.0
        %4396 = vmatpush1.msra.mxu0 0.0
        %4397 = vmatprep.subr.mxu0 0.0
        %4398 = vmatpush1.msra.mxu0 0.0
        %4399 = vmatprep.subr.mxu0 0.0
        %4400 = vmatpush1.msra.mxu0 0.0
        %4401 = vmatprep.subr.mxu0 0.0
        %4402 = vmatpush1.msra.mxu0 0.0
        %4403 = vmatprep.subr.mxu0 0.0
        %4404 = vmatpush1.msra.mxu0 0.0
        %4405 = vmatprep.subr.mxu0 0.0
        %4406 = vmatpush1.msra.mxu0 0.0
        %4407 = vmatprep.subr.mxu0 0.0
        %4408 = vmatpush1.msra.mxu0 0.0
        %4409 = vmatprep.subr.mxu0 0.0
        %4410 = vmatpush1.msra.mxu0 0.0
        %4411 = vmatprep.mubr.f32.mxu0 0.0
        %4412 = vmatmul.mubr.f32.gmra.mrb[0].mxu0 %v4342
        %v4413 = vpop.f32.mrb[0].mxu0
        %v4414 = vadd.f32 0.0, %v4413
        %v4415 = vpop.f32.mrb[0].mxu0
        %4416 = vmatprep.mubr.f32.mxu0 0.0
        %4417 = vmatmul.mubr.f32.gmra.mrb[0].mxu0 %v4345
        %v4418 = vpop.f32.mrb[0].mxu0
        %v4419 = vadd.f32 0.0, %v4418
        %v4420 = vpop.f32.mrb[0].mxu0
        %4421 = vdwg.mxu0
        %v4422 = vadd.f32 %v3999, %v4414
        %v4423 = vadd.f32 %v4004, %v4419
        %4424 = vrot.lane.b32.xlu0 %v3171, 104
        %v4425 = vpop.permute.xlu0 %4424
        %4426 = vrot.lane.b32.xlu0 %v3171, 72
        %v4427 = vpop.permute.xlu0 %4426
        %v4428 = vsel %vm901, %v4425, 0
        %v4430 = vsel %vm901, %v4427, 0
        %4432 = vmatprep.subr.mxu0 0.0
        %4433 = vmatpush1.xpose.msra.mxu0 %v4430
        %4434 = vmatprep.subr.mxu0 0.0
        %4435 = vmatpush1.xpose.msra.mxu0 0.0
        %4436 = vmatprep.subr.mxu0 0.0
        %4437 = vmatpush1.xpose.msra.mxu0 0.0
        %4438 = vmatprep.subr.mxu0 0.0
        %4439 = vmatpush1.xpose.msra.mxu0 0.0
        %4440 = vmatprep.subr.mxu0 0.0
        %4441 = vmatpush1.xpose.msra.mxu0 0.0
        %4442 = vmatprep.subr.mxu0 0.0
        %4443 = vmatpush1.xpose.msra.mxu0 0.0
        %4444 = vmatprep.subr.mxu0 0.0
        %4445 = vmatpush1.xpose.msra.mxu0 0.0
        %4446 = vmatprep.subr.mxu0 0.0
        %4447 = vmatpush1.xpose.msra.mxu0 0.0
        %4448 = vmatprep.subr.mxu0 0.0
        %4449 = vmatpush1.xpose.msra.mxu0 0.0
        %4450 = vmatprep.subr.mxu0 0.0
        %4451 = vmatpush1.xpose.msra.mxu0 0.0
        %4452 = vmatprep.subr.mxu0 0.0
        %4453 = vmatpush1.xpose.msra.mxu0 0.0
        %4454 = vmatprep.subr.mxu0 0.0
        %4455 = vmatpush1.xpose.msra.mxu0 0.0
        %4456 = vmatprep.subr.mxu0 0.0
        %4457 = vmatpush1.xpose.msra.mxu0 0.0
        %4458 = vmatprep.subr.mxu0 0.0
        %4459 = vmatpush1.xpose.msra.mxu0 0.0
        %4460 = vmatprep.subr.mxu0 0.0
        %4461 = vmatpush1.xpose.msra.mxu0 0.0
        %4462 = vmatprep.subr.mxu0 0.0
        %4463 = vmatpush1.xpose.msra.mxu0 0.0
        %4464 = vmatprep.subr.mxu0 0.0
        %4465 = vmatpush1.xpose.msra.mxu0 0.0
        %4466 = vmatprep.subr.mxu0 0.0
        %4467 = vmatpush1.xpose.msra.mxu0 0.0
        %4468 = vmatprep.subr.mxu0 0.0
        %4469 = vmatpush1.xpose.msra.mxu0 0.0
        %4470 = vmatprep.subr.mxu0 0.0
        %4471 = vmatpush1.xpose.msra.mxu0 0.0
        %4472 = vmatprep.subr.mxu0 0.0
        %4473 = vmatpush1.xpose.msra.mxu0 0.0
        %4474 = vmatprep.subr.mxu0 0.0
        %4475 = vmatpush1.xpose.msra.mxu0 0.0
        %4476 = vmatprep.subr.mxu0 0.0
        %4477 = vmatpush1.xpose.msra.mxu0 0.0
        %4478 = vmatprep.subr.mxu0 0.0
        %4479 = vmatpush1.xpose.msra.mxu0 0.0
        %4480 = vmatprep.subr.mxu0 0.0
        %4481 = vmatpush1.xpose.msra.mxu0 0.0
        %4482 = vmatprep.subr.mxu0 0.0
        %4483 = vmatpush1.xpose.msra.mxu0 0.0
        %4484 = vmatprep.subr.mxu0 0.0
        %4485 = vmatpush1.xpose.msra.mxu0 0.0
        %4486 = vmatprep.subr.mxu0 0.0
        %4487 = vmatpush1.xpose.msra.mxu0 0.0
        %4488 = vmatprep.subr.mxu0 0.0
        %4489 = vmatpush1.xpose.msra.mxu0 0.0
        %4490 = vmatprep.subr.mxu0 0.0
        %4491 = vmatpush1.xpose.msra.mxu0 0.0
        %4492 = vmatprep.subr.mxu0 0.0
        %4493 = vmatpush1.xpose.msra.mxu0 0.0
        %4494 = vmatprep.subr.mxu0 0.0
        %4495 = vmatpush1.xpose.msra.mxu0 0.0
        %4496 = vmatprep.mubr.f32.mxu0 0.0
        %4497 = vmatmul.mubr.f32.gmra.mrb[0].mxu0 %v4428
        %v4498 = vpop.f32.mrb[0].mxu0
        %v4499 = vadd.f32 0.0, %v4498
        %v4500 = vpop.f32.mrb[0].mxu0
        %4501 = vdwg.mxu0
        %4502 = vrot.lane.b32.xlu0 %v3176, 104
        %v4503 = vpop.permute.xlu0 %4502
        %4504 = vrot.lane.b32.xlu0 %v3176, 72
        %v4505 = vpop.permute.xlu0 %4504
        %v4506 = vsel %vm901, %v4503, 0
        %v4508 = vsel %vm901, %v4505, 0
        %4510 = vmatprep.subr.mxu0 0.0
        %4511 = vmatpush1.xpose.msra.mxu0 %v4508
        %4512 = vmatprep.subr.mxu0 0.0
        %4513 = vmatpush1.xpose.msra.mxu0 0.0
        %4514 = vmatprep.subr.mxu0 0.0
        %4515 = vmatpush1.xpose.msra.mxu0 0.0
        %4516 = vmatprep.subr.mxu0 0.0
        %4517 = vmatpush1.xpose.msra.mxu0 0.0
        %4518 = vmatprep.subr.mxu0 0.0
        %4519 = vmatpush1.xpose.msra.mxu0 0.0
        %4520 = vmatprep.subr.mxu0 0.0
        %4521 = vmatpush1.xpose.msra.mxu0 0.0
        %4522 = vmatprep.subr.mxu0 0.0
        %4523 = vmatpush1.xpose.msra.mxu0 0.0
        %4524 = vmatprep.subr.mxu0 0.0
        %4525 = vmatpush1.xpose.msra.mxu0 0.0
        %4526 = vmatprep.subr.mxu0 0.0
        %4527 = vmatpush1.xpose.msra.mxu0 0.0
        %4528 = vmatprep.subr.mxu0 0.0
        %4529 = vmatpush1.xpose.msra.mxu0 0.0
        %4530 = vmatprep.subr.mxu0 0.0
        %4531 = vmatpush1.xpose.msra.mxu0 0.0
        %4532 = vmatprep.subr.mxu0 0.0
        %4533 = vmatpush1.xpose.msra.mxu0 0.0
        %4534 = vmatprep.subr.mxu0 0.0
        %4535 = vmatpush1.xpose.msra.mxu0 0.0
        %4536 = vmatprep.subr.mxu0 0.0
        %4537 = vmatpush1.xpose.msra.mxu0 0.0
        %4538 = vmatprep.subr.mxu0 0.0
        %4539 = vmatpush1.xpose.msra.mxu0 0.0
        %4540 = vmatprep.subr.mxu0 0.0
        %4541 = vmatpush1.xpose.msra.mxu0 0.0
        %4542 = vmatprep.subr.mxu0 0.0
        %4543 = vmatpush1.xpose.msra.mxu0 0.0
        %4544 = vmatprep.subr.mxu0 0.0
        %4545 = vmatpush1.xpose.msra.mxu0 0.0
        %4546 = vmatprep.subr.mxu0 0.0
        %4547 = vmatpush1.xpose.msra.mxu0 0.0
        %4548 = vmatprep.subr.mxu0 0.0
        %4549 = vmatpush1.xpose.msra.mxu0 0.0
        %4550 = vmatprep.subr.mxu0 0.0
        %4551 = vmatpush1.xpose.msra.mxu0 0.0
        %4552 = vmatprep.subr.mxu0 0.0
        %4553 = vmatpush1.xpose.msra.mxu0 0.0
        %4554 = vmatprep.subr.mxu0 0.0
        %4555 = vmatpush1.xpose.msra.mxu0 0.0
        %4556 = vmatprep.subr.mxu0 0.0
        %4557 = vmatpush1.xpose.msra.mxu0 0.0
        %4558 = vmatprep.subr.mxu0 0.0
        %4559 = vmatpush1.xpose.msra.mxu0 0.0
        %4560 = vmatprep.subr.mxu0 0.0
        %4561 = vmatpush1.xpose.msra.mxu0 0.0
        %4562 = vmatprep.subr.mxu0 0.0
        %4563 = vmatpush1.xpose.msra.mxu0 0.0
        %4564 = vmatprep.subr.mxu0 0.0
        %4565 = vmatpush1.xpose.msra.mxu0 0.0
        %4566 = vmatprep.subr.mxu0 0.0
        %4567 = vmatpush1.xpose.msra.mxu0 0.0
        %4568 = vmatprep.subr.mxu0 0.0
        %4569 = vmatpush1.xpose.msra.mxu0 0.0
        %4570 = vmatprep.subr.mxu0 0.0
        %4571 = vmatpush1.xpose.msra.mxu0 0.0
        %4572 = vmatprep.subr.mxu0 0.0
        %4573 = vmatpush1.xpose.msra.mxu0 0.0
        %4574 = vmatprep.mubr.f32.mxu0 0.0
        %4575 = vmatmul.mubr.f32.gmra.mrb[0].mxu0 %v4506
        %v4576 = vpop.f32.mrb[0].mxu0
        %v4577 = vadd.f32 0.0, %v4576
        %v4578 = vpop.f32.mrb[0].mxu0
        %4579 = vdwg.mxu0
        %v4580 = vmul.f32 %v4499, 0.35355338
        %v4581 = vmul.f32 %v4577, 0.35355338
        %v4582 = vadd.f32 %v4580, %v1265
        %v4583 = vadd.f32 %v4581, %v1269
        %v4584 = vsel %vm901, %v4582, -inf
        %4585 = vmax.xlane.f32.xlu0 %v4584
        %v4586 = vpop.xlane.xlu0 %4585
        %v4587 = vsel %vm901, %v4583, -inf
        %4588 = vmax.xlane.f32.xlu0 %v4587
        %v4589 = vpop.xlane.xlu0 %4588
        %v4590 = vsub.f32 %v4582, %v4586
        %v4591 = vsub.f32 %v4583, %v4589
        %v4592 = vmul.f32 %v4590, 1.442695
        %v4593 = vpow.pop %v4592
        %v4594 = vmul.f32 %v4591, 1.442695
        %v4595 = vpow.pop %v4594
        %v4596 = vsel %vm901, %v4593, 0.0
        %4597 = vadd.xlane.f32.xlu0 %v4596
        %v4598 = vpop.xlane.xlu0 %4597
        %v4599 = vsel %vm901, %v4595, 0.0
        %4600 = vadd.xlane.f32.xlu0 %v4599
        %v4601 = vpop.xlane.xlu0 %4600
        %v4602 = vrcp.pop %v4598
        %v4603 = vrcp.pop %v4601
        %v4604 = vmul.f32 %v4593, %v4602
        %v4605 = vmul.f32 %v4595, %v4603
        %4606 = vrot.lane.b32.xlu0 %v3171, 40
        %v4607 = vpop.permute.xlu0 %4606
        %v4610 = vsel %vm901, %v4604, 0
        %4612 = vmatprep.subr.mxu0 0.0
        %4613 = vmatpush1.msra.mxu0 %v4607
        %4614 = vmatprep.subr.mxu0 0.0
        %4615 = vmatpush1.msra.mxu0 0.0
        %4616 = vmatprep.subr.mxu0 0.0
        %4617 = vmatpush1.msra.mxu0 0.0
        %4618 = vmatprep.subr.mxu0 0.0
        %4619 = vmatpush1.msra.mxu0 0.0
        %4620 = vmatprep.subr.mxu0 0.0
        %4621 = vmatpush1.msra.mxu0 0.0
        %4622 = vmatprep.subr.mxu0 0.0
        %4623 = vmatpush1.msra.mxu0 0.0
        %4624 = vmatprep.subr.mxu0 0.0
        %4625 = vmatpush1.msra.mxu0 0.0
        %4626 = vmatprep.subr.mxu0 0.0
        %4627 = vmatpush1.msra.mxu0 0.0
        %4628 = vmatprep.subr.mxu0 0.0
        %4629 = vmatpush1.msra.mxu0 0.0
        %4630 = vmatprep.subr.mxu0 0.0
        %4631 = vmatpush1.msra.mxu0 0.0
        %4632 = vmatprep.subr.mxu0 0.0
        %4633 = vmatpush1.msra.mxu0 0.0
        %4634 = vmatprep.subr.mxu0 0.0
        %4635 = vmatpush1.msra.mxu0 0.0
        %4636 = vmatprep.subr.mxu0 0.0
        %4637 = vmatpush1.msra.mxu0 0.0
        %4638 = vmatprep.subr.mxu0 0.0
        %4639 = vmatpush1.msra.mxu0 0.0
        %4640 = vmatprep.subr.mxu0 0.0
        %4641 = vmatpush1.msra.mxu0 0.0
        %4642 = vmatprep.subr.mxu0 0.0
        %4643 = vmatpush1.msra.mxu0 0.0
        %4644 = vmatprep.subr.mxu0 0.0
        %4645 = vmatpush1.msra.mxu0 0.0
        %4646 = vmatprep.subr.mxu0 0.0
        %4647 = vmatpush1.msra.mxu0 0.0
        %4648 = vmatprep.subr.mxu0 0.0
        %4649 = vmatpush1.msra.mxu0 0.0
        %4650 = vmatprep.subr.mxu0 0.0
        %4651 = vmatpush1.msra.mxu0 0.0
        %4652 = vmatprep.subr.mxu0 0.0
        %4653 = vmatpush1.msra.mxu0 0.0
        %4654 = vmatprep.subr.mxu0 0.0
        %4655 = vmatpush1.msra.mxu0 0.0
        %4656 = vmatprep.subr.mxu0 0.0
        %4657 = vmatpush1.msra.mxu0 0.0
        %4658 = vmatprep.subr.mxu0 0.0
        %4659 = vmatpush1.msra.mxu0 0.0
        %4660 = vmatprep.subr.mxu0 0.0
        %4661 = vmatpush1.msra.mxu0 0.0
        %4662 = vmatprep.subr.mxu0 0.0
        %4663 = vmatpush1.msra.mxu0 0.0
        %4664 = vmatprep.subr.mxu0 0.0
        %4665 = vmatpush1.msra.mxu0 0.0
        %4666 = vmatprep.subr.mxu0 0.0
        %4667 = vmatpush1.msra.mxu0 0.0
        %4668 = vmatprep.subr.mxu0 0.0
        %4669 = vmatpush1.msra.mxu0 0.0
        %4670 = vmatprep.subr.mxu0 0.0
        %4671 = vmatpush1.msra.mxu0 0.0
        %4672 = vmatprep.subr.mxu0 0.0
        %4673 = vmatpush1.msra.mxu0 0.0
        %4674 = vmatprep.subr.mxu0 0.0
        %4675 = vmatpush1.msra.mxu0 0.0
        %4676 = vmatprep.mubr.f32.mxu0 0.0
        %4677 = vmatmul.mubr.f32.gmra.mrb[0].mxu0 %v4610
        %v4678 = vpop.f32.mrb[0].mxu0
        %v4679 = vadd.f32 0.0, %v4678
        %v4680 = vpop.f32.mrb[0].mxu0
        %4681 = vdwg.mxu0
        %4682 = vrot.lane.b32.xlu0 %v3176, 40
        %v4683 = vpop.permute.xlu0 %4682
        %v4686 = vsel %vm901, %v4605, 0
        %4688 = vmatprep.subr.mxu0 0.0
        %4689 = vmatpush1.msra.mxu0 %v4683
        %4690 = vmatprep.subr.mxu0 0.0
        %4691 = vmatpush1.msra.mxu0 0.0
        %4692 = vmatprep.subr.mxu0 0.0
        %4693 = vmatpush1.msra.mxu0 0.0
        %4694 = vmatprep.subr.mxu0 0.0
        %4695 = vmatpush1.msra.mxu0 0.0
        %4696 = vmatprep.subr.mxu0 0.0
        %4697 = vmatpush1.msra.mxu0 0.0
        %4698 = vmatprep.subr.mxu0 0.0
        %4699 = vmatpush1.msra.mxu0 0.0
        %4700 = vmatprep.subr.mxu0 0.0
        %4701 = vmatpush1.msra.mxu0 0.0
        %4702 = vmatprep.subr.mxu0 0.0
        %4703 = vmatpush1.msra.mxu0 0.0
        %4704 = vmatprep.subr.mxu0 0.0
        %4705 = vmatpush1.msra.mxu0 0.0
        %4706 = vmatprep.subr.mxu0 0.0
        %4707 = vmatpush1.msra.mxu0 0.0
        %4708 = vmatprep.subr.mxu0 0.0
        %4709 = vmatpush1.msra.mxu0 0.0
        %4710 = vmatprep.subr.mxu0 0.0
        %4711 = vmatpush1.msra.mxu0 0.0
        %4712 = vmatprep.subr.mxu0 0.0
        %4713 = vmatpush1.msra.mxu0 0.0
        %4714 = vmatprep.subr.mxu0 0.0
        %4715 = vmatpush1.msra.mxu0 0.0
        %4716 = vmatprep.subr.mxu0 0.0
        %4717 = vmatpush1.msra.mxu0 0.0
        %4718 = vmatprep.subr.mxu0 0.0
        %4719 = vmatpush1.msra.mxu0 0.0
        %4720 = vmatprep.subr.mxu0 0.0
        %4721 = vmatpush1.msra.mxu0 0.0
        %4722 = vmatprep.subr.mxu0 0.0
        %4723 = vmatpush1.msra.mxu0 0.0
        %4724 = vmatprep.subr.mxu0 0.0
        %4725 = vmatpush1.msra.mxu0 0.0
        %4726 = vmatprep.subr.mxu0 0.0
        %4727 = vmatpush1.msra.mxu0 0.0
        %4728 = vmatprep.subr.mxu0 0.0
        %4729 = vmatpush1.msra.mxu0 0.0
        %4730 = vmatprep.subr.mxu0 0.0
        %4731 = vmatpush1.msra.mxu0 0.0
        %4732 = vmatprep.subr.mxu0 0.0
        %4733 = vmatpush1.msra.mxu0 0.0
        %4734 = vmatprep.subr.mxu0 0.0
        %4735 = vmatpush1.msra.mxu0 0.0
        %4736 = vmatprep.subr.mxu0 0.0
        %4737 = vmatpush1.msra.mxu0 0.0
        %4738 = vmatprep.subr.mxu0 0.0
        %4739 = vmatpush1.msra.mxu0 0.0
        %4740 = vmatprep.subr.mxu0 0.0
        %4741 = vmatpush1.msra.mxu0 0.0
        %4742 = vmatprep.subr.mxu0 0.0
        %4743 = vmatpush1.msra.mxu0 0.0
        %4744 = vmatprep.subr.mxu0 0.0
        %4745 = vmatpush1.msra.mxu0 0.0
        %4746 = vmatprep.subr.mxu0 0.0
        %4747 = vmatpush1.msra.mxu0 0.0
        %4748 = vmatprep.subr.mxu0 0.0
        %4749 = vmatpush1.msra.mxu0 0.0
        %4750 = vmatprep.subr.mxu0 0.0
        %4751 = vmatpush1.msra.mxu0 0.0
        %4752 = vmatprep.mubr.f32.mxu0 0.0
        %4753 = vmatmul.mubr.f32.gmra.mrb[0].mxu0 %v4686
        %v4754 = vpop.f32.mrb[0].mxu0
        %v4755 = vadd.f32 0.0, %v4754
        %v4756 = vpop.f32.mrb[0].mxu0
        %4757 = vdwg.mxu0
        %v4759 = vsel %vm901, %v4679, 0
        %v4762 = vsel %vm901, %v4755, 0
        %4764 = vmatprep.subr.mxu0 0.0
        %4765 = vmatpush1.msra.mxu0 %v3063
        %4766 = vmatprep.subr.mxu0 0.0
        %4767 = vmatpush1.msra.mxu0 0.0
        %4768 = vmatprep.subr.mxu0 0.0
        %4769 = vmatpush1.msra.mxu0 0.0
        %4770 = vmatprep.subr.mxu0 0.0
        %4771 = vmatpush1.msra.mxu0 0.0
        %4772 = vmatprep.subr.mxu0 0.0
        %4773 = vmatpush1.msra.mxu0 0.0
        %4774 = vmatprep.subr.mxu0 0.0
        %4775 = vmatpush1.msra.mxu0 0.0
        %4776 = vmatprep.subr.mxu0 0.0
        %4777 = vmatpush1.msra.mxu0 0.0
        %4778 = vmatprep.subr.mxu0 0.0
        %4779 = vmatpush1.msra.mxu0 0.0
        %4780 = vmatprep.subr.mxu0 0.0
        %4781 = vmatpush1.msra.mxu0 0.0
        %4782 = vmatprep.subr.mxu0 0.0
        %4783 = vmatpush1.msra.mxu0 0.0
        %4784 = vmatprep.subr.mxu0 0.0
        %4785 = vmatpush1.msra.mxu0 0.0
        %4786 = vmatprep.subr.mxu0 0.0
        %4787 = vmatpush1.msra.mxu0 0.0
        %4788 = vmatprep.subr.mxu0 0.0
        %4789 = vmatpush1.msra.mxu0 0.0
        %4790 = vmatprep.subr.mxu0 0.0
        %4791 = vmatpush1.msra.mxu0 0.0
        %4792 = vmatprep.subr.mxu0 0.0
        %4793 = vmatpush1.msra.mxu0 0.0
        %4794 = vmatprep.subr.mxu0 0.0
        %4795 = vmatpush1.msra.mxu0 0.0
        %4796 = vmatprep.subr.mxu0 0.0
        %4797 = vmatpush1.msra.mxu0 0.0
        %4798 = vmatprep.subr.mxu0 0.0
        %4799 = vmatpush1.msra.mxu0 0.0
        %4800 = vmatprep.subr.mxu0 0.0
        %4801 = vmatpush1.msra.mxu0 0.0
        %4802 = vmatprep.subr.mxu0 0.0
        %4803 = vmatpush1.msra.mxu0 0.0
        %4804 = vmatprep.subr.mxu0 0.0
        %4805 = vmatpush1.msra.mxu0 0.0
        %4806 = vmatprep.subr.mxu0 0.0
        %4807 = vmatpush1.msra.mxu0 0.0
        %4808 = vmatprep.subr.mxu0 0.0
        %4809 = vmatpush1.msra.mxu0 0.0
        %4810 = vmatprep.subr.mxu0 0.0
        %4811 = vmatpush1.msra.mxu0 0.0
        %4812 = vmatprep.subr.mxu0 0.0
        %4813 = vmatpush1.msra.mxu0 0.0
        %4814 = vmatprep.subr.mxu0 0.0
        %4815 = vmatpush1.msra.mxu0 0.0
        %4816 = vmatprep.subr.mxu0 0.0
        %4817 = vmatpush1.msra.mxu0 0.0
        %4818 = vmatprep.subr.mxu0 0.0
        %4819 = vmatpush1.msra.mxu0 0.0
        %4820 = vmatprep.subr.mxu0 0.0
        %4821 = vmatpush1.msra.mxu0 0.0
        %4822 = vmatprep.subr.mxu0 0.0
        %4823 = vmatpush1.msra.mxu0 0.0
        %4824 = vmatprep.subr.mxu0 0.0
        %4825 = vmatpush1.msra.mxu0 0.0
        %4826 = vmatprep.subr.mxu0 0.0
        %4827 = vmatpush1.msra.mxu0 0.0
        %4828 = vmatprep.mubr.f32.mxu0 0.0
        %4829 = vmatmul.mubr.f32.gmra.mrb[0].mxu0 %v4759
        %v4830 = vpop.f32.mrb[0].mxu0
        %v4831 = vadd.f32 0.0, %v4830
        %v4832 = vpop.f32.mrb[0].mxu0
        %4833 = vmatprep.mubr.f32.mxu0 0.0
        %4834 = vmatmul.mubr.f32.gmra.mrb[0].mxu0 %v4762
        %v4835 = vpop.f32.mrb[0].mxu0
        %v4836 = vadd.f32 0.0, %v4835
        %v4837 = vpop.f32.mrb[0].mxu0
        %4838 = vdwg.mxu0
        %v4839 = vadd.f32 %v4422, %v4831
        %v4840 = vadd.f32 %v4423, %v4836
        %v4842 = vlaneseq
        %v4843 = vshrl.u32 %v4842, 7
        %v4844 = vsub.s32 0, %v4843
        %v4845 = vrot.slane %v3065, %v4844
        %v4847 = vadd.f32 %v4839, %v4845
        %v4848 = vadd.f32 %v4840, %v4845
        %v4849 = vadd.f32 %v3050, %v4847
        %v4850 = vadd.f32 %v3051, %v4848
        %v4851 = vsel %vm1022, %v4849, 0.0
        %4852 = vadd.xlane.f32.xlu0 %v4851
        %v4853 = vpop.xlane.xlu0 %4852
        %v4854 = vsel %vm1022, %v4850, 0.0
        %4855 = vadd.xlane.f32.xlu0 %v4854
        %v4856 = vpop.xlane.xlu0 %4855
        %v4857 = vmul.f32 %v4853, %v2794
        %v4858 = vmul.f32 %v4856, %v2794
        %v4859 = vsub.f32 %v4849, %v4857
        %v4860 = vsub.f32 %v4850, %v4858
        %v4861 = vmul.f32 %v4859, %v4859
        %v4862 = vmul.f32 %v4860, %v4860
        %v4863 = vsel %vm1022, %v4861, 0.0
        %4864 = vadd.xlane.f32.xlu0 %v4863
        %v4865 = vpop.xlane.xlu0 %4864
        %v4866 = vsel %vm1022, %v4862, 0.0
        %4867 = vadd.xlane.f32.xlu0 %v4866
        %v4868 = vpop.xlane.xlu0 %4867
        %v4869 = vmul.f32 %v4865, %v2794
        %v4870 = vmul.f32 %v4868, %v2794
        %v4871 = vadd.f32 %v4869, 1e-05
        %v4872 = vadd.f32 %v4870, 1e-05
        %v4873 = vrsqrt.pop %v4871
        %v4874 = vrsqrt.pop %v4872
        %v4875 = vmul.f32 %v4859, %v4873
        %v4876 = vmul.f32 %v4860, %v4874
        %v4878 = vlaneseq
        %v4879 = vshrl.u32 %v4878, 7
        %v4880 = vsub.s32 0, %v4879
        %v4881 = vrot.slane %v3067, %v4880
        %v4883 = vmul.f32 %v4875, %v4881
        %v4884 = vmul.f32 %v4876, %v4881
        %v4886 = vlaneseq
        %v4887 = vshrl.u32 %v4886, 7
        %v4888 = vsub.s32 0, %v4887
        %v4889 = vrot.slane %v3069, %v4888
        %v4891 = vadd.f32 %v4883, %v4889
        %v4892 = vadd.f32 %v4884, %v4889
        %v4894 = vlaneseq
        %v4895 = vshrl.u32 %v4894, 7
        %v4896 = vsub.s32 0, %v4895
        %v4897 = vrot.slane %v3076, %v4896
        %v4900 = vsel %vm1022, %v4891, 0
        %v4903 = vsel %vm1022, %v4892, 0
        %4905 = vmatprep.subr.mxu0 0.0
        %4906 = vmatpush1.msra.mxu0 %v3071
        %4907 = vmatprep.subr.mxu0 0.0
        %4908 = vmatpush1.msra.mxu0 %v3072
        %4909 = vmatprep.subr.mxu0 0.0
        %4910 = vmatpush1.msra.mxu0 %v3073
        %4911 = vmatprep.subr.mxu0 0.0
        %4912 = vmatpush1.msra.mxu0 %v3074
        %4913 = vmatprep.subr.mxu0 0.0
        %4914 = vmatpush1.msra.mxu0 0.0
        %4915 = vmatprep.subr.mxu0 0.0
        %4916 = vmatpush1.msra.mxu0 0.0
        %4917 = vmatprep.subr.mxu0 0.0
        %4918 = vmatpush1.msra.mxu0 0.0
        %4919 = vmatprep.subr.mxu0 0.0
        %4920 = vmatpush1.msra.mxu0 0.0
        %4921 = vmatprep.subr.mxu0 0.0
        %4922 = vmatpush1.msra.mxu0 0.0
        %4923 = vmatprep.subr.mxu0 0.0
        %4924 = vmatpush1.msra.mxu0 0.0
        %4925 = vmatprep.subr.mxu0 0.0
        %4926 = vmatpush1.msra.mxu0 0.0
        %4927 = vmatprep.subr.mxu0 0.0
        %4928 = vmatpush1.msra.mxu0 0.0
        %4929 = vmatprep.subr.mxu0 0.0
        %4930 = vmatpush1.msra.mxu0 0.0
        %4931 = vmatprep.subr.mxu0 0.0
        %4932 = vmatpush1.msra.mxu0 0.0
        %4933 = vmatprep.subr.mxu0 0.0
        %4934 = vmatpush1.msra.mxu0 0.0
        %4935 = vmatprep.subr.mxu0 0.0
        %4936 = vmatpush1.msra.mxu0 0.0
        %4937 = vmatprep.subr.mxu0 0.0
        %4938 = vmatpush1.msra.mxu0 0.0
        %4939 = vmatprep.subr.mxu0 0.0
        %4940 = vmatpush1.msra.mxu0 0.0
        %4941 = vmatprep.subr.mxu0 0.0
        %4942 = vmatpush1.msra.mxu0 0.0
        %4943 = vmatprep.subr.mxu0 0.0
        %4944 = vmatpush1.msra.mxu0 0.0
        %4945 = vmatprep.subr.mxu0 0.0
        %4946 = vmatpush1.msra.mxu0 0.0
        %4947 = vmatprep.subr.mxu0 0.0
        %4948 = vmatpush1.msra.mxu0 0.0
        %4949 = vmatprep.subr.mxu0 0.0
        %4950 = vmatpush1.msra.mxu0 0.0
        %4951 = vmatprep.subr.mxu0 0.0
        %4952 = vmatpush1.msra.mxu0 0.0
        %4953 = vmatprep.subr.mxu0 0.0
        %4954 = vmatpush1.msra.mxu0 0.0
        %4955 = vmatprep.subr.mxu0 0.0
        %4956 = vmatpush1.msra.mxu0 0.0
        %4957 = vmatprep.subr.mxu0 0.0
        %4958 = vmatpush1.msra.mxu0 0.0
        %4959 = vmatprep.subr.mxu0 0.0
        %4960 = vmatpush1.msra.mxu0 0.0
        %4961 = vmatprep.subr.mxu0 0.0
        %4962 = vmatpush1.msra.mxu0 0.0
        %4963 = vmatprep.subr.mxu0 0.0
        %4964 = vmatpush1.msra.mxu0 0.0
        %4965 = vmatprep.subr.mxu0 0.0
        %4966 = vmatpush1.msra.mxu0 0.0
        %4967 = vmatprep.subr.mxu0 0.0
        %4968 = vmatpush1.msra.mxu0 0.0
        %4969 = vmatprep.mubr.f32.mxu0 0.0
        %4970 = vmatmul.mubr.f32.gmra.mrb[0].mxu0 %v4900
        %v4971 = vpop.f32.mrb[0].mxu0
        %v4972 = vadd.f32 %v4897, %v4971
        %v4973 = vpop.f32.mrb[0].mxu0
        %4974 = vmatprep.mubr.f32.mxu0 0.0
        %4975 = vmatmul.mubr.f32.gmra.mrb[0].mxu0 %v4903
        %v4976 = vpop.f32.mrb[0].mxu0
        %v4977 = vadd.f32 %v4897, %v4976
        %v4978 = vpop.f32.mrb[0].mxu0
        %4979 = vdwg.mxu0
        %v4980 = vmax.f32 %v4972, 0.0
        %v4981 = vmax.f32 %v4977, 0.0
        %v4983 = vlaneseq
        %v4984 = vshrl.u32 %v4983, 7
        %v4985 = vsub.s32 0, %v4984
        %v4986 = vrot.slane %v3087, %v4985
        %v4989 = vsel %vm2926, %v4980, 0
        %v4992 = vsel %vm2926, %v4981, 0
        %4994 = vmatprep.subr.mxu0 0.0
        %4995 = vmatpush1.msra.mxu0 %v3078
        %4996 = vmatprep.subr.mxu0 0.0
        %4997 = vmatpush1.msra.mxu0 %v3079
        %4998 = vmatprep.subr.mxu0 0.0
        %4999 = vmatpush1.msra.mxu0 %v3080
        %5000 = vmatprep.subr.mxu0 0.0
        %5001 = vmatpush1.msra.mxu0 %v3081
        %5002 = vmatprep.subr.mxu0 0.0
        %5003 = vmatpush1.msra.mxu0 %v3082
        %5004 = vmatprep.subr.mxu0 0.0
        %5005 = vmatpush1.msra.mxu0 %v3083
        %5006 = vmatprep.subr.mxu0 0.0
        %5007 = vmatpush1.msra.mxu0 %v3084
        %5008 = vmatprep.subr.mxu0 0.0
        %5009 = vmatpush1.msra.mxu0 %v3085
        %5010 = vmatprep.subr.mxu0 0.0
        %5011 = vmatpush1.msra.mxu0 0.0
        %5012 = vmatprep.subr.mxu0 0.0
        %5013 = vmatpush1.msra.mxu0 0.0
        %5014 = vmatprep.subr.mxu0 0.0
        %5015 = vmatpush1.msra.mxu0 0.0
        %5016 = vmatprep.subr.mxu0 0.0
        %5017 = vmatpush1.msra.mxu0 0.0
        %5018 = vmatprep.subr.mxu0 0.0
        %5019 = vmatpush1.msra.mxu0 0.0
        %5020 = vmatprep.subr.mxu0 0.0
        %5021 = vmatpush1.msra.mxu0 0.0
        %5022 = vmatprep.subr.mxu0 0.0
        %5023 = vmatpush1.msra.mxu0 0.0
        %5024 = vmatprep.subr.mxu0 0.0
        %5025 = vmatpush1.msra.mxu0 0.0
        %5026 = vmatprep.subr.mxu0 0.0
        %5027 = vmatpush1.msra.mxu0 0.0
        %5028 = vmatprep.subr.mxu0 0.0
        %5029 = vmatpush1.msra.mxu0 0.0
        %5030 = vmatprep.subr.mxu0 0.0
        %5031 = vmatpush1.msra.mxu0 0.0
        %5032 = vmatprep.subr.mxu0 0.0
        %5033 = vmatpush1.msra.mxu0 0.0
        %5034 = vmatprep.subr.mxu0 0.0
        %5035 = vmatpush1.msra.mxu0 0.0
        %5036 = vmatprep.subr.mxu0 0.0
        %5037 = vmatpush1.msra.mxu0 0.0
        %5038 = vmatprep.subr.mxu0 0.0
        %5039 = vmatpush1.msra.mxu0 0.0
        %5040 = vmatprep.subr.mxu0 0.0
        %5041 = vmatpush1.msra.mxu0 0.0
        %5042 = vmatprep.subr.mxu0 0.0
        %5043 = vmatpush1.msra.mxu0 0.0
        %5044 = vmatprep.subr.mxu0 0.0
        %5045 = vmatpush1.msra.mxu0 0.0
        %5046 = vmatprep.subr.mxu0 0.0
        %5047 = vmatpush1.msra.mxu0 0.0
        %5048 = vmatprep.subr.mxu0 0.0
        %5049 = vmatpush1.msra.mxu0 0.0
        %5050 = vmatprep.subr.mxu0 0.0
        %5051 = vmatpush1.msra.mxu0 0.0
        %5052 = vmatprep.subr.mxu0 0.0
        %5053 = vmatpush1.msra.mxu0 0.0
        %5054 = vmatprep.subr.mxu0 0.0
        %5055 = vmatpush1.msra.mxu0 0.0
        %5056 = vmatprep.subr.mxu0 0.0
        %5057 = vmatpush1.msra.mxu0 0.0
        %5058 = vmatprep.mubr.f32.mxu0 0.0
        %5059 = vmatmul.mubr.f32.gmra.mrb[0].mxu0 %v4989
        %v5060 = vpop.f32.mrb[0].mxu0
        %v5061 = vadd.f32 %v4986, %v5060
        %v5062 = vpop.f32.mrb[0].mxu0
        %5063 = vmatprep.mubr.f32.mxu0 0.0
        %5064 = vmatmul.mubr.f32.gmra.mrb[0].mxu0 %v4992
        %v5065 = vpop.f32.mrb[0].mxu0
        %v5066 = vadd.f32 %v4986, %v5065
        %v5067 = vpop.f32.mrb[0].mxu0
        %5068 = vdwg.mxu0
        %v5069 = vadd.f32 %v4891, %v5061
        %v5070 = vadd.f32 %v4892, %v5066
        %v5071 = vsel %vm1022, %v5069, 0.0
        %5072 = vadd.xlane.f32.xlu0 %v5071
        %v5073 = vpop.xlane.xlu0 %5072
        %v5074 = vsel %vm1022, %v5070, 0.0
        %5075 = vadd.xlane.f32.xlu0 %v5074
        %v5076 = vpop.xlane.xlu0 %5075
        %v5077 = vmul.f32 %v5073, %v2794
        %v5078 = vmul.f32 %v5076, %v2794
        %v5079 = vsub.f32 %v5069, %v5077
        %v5080 = vsub.f32 %v5070, %v5078
        %v5081 = vmul.f32 %v5079, %v5079
        %v5082 = vmul.f32 %v5080, %v5080
        %v5083 = vsel %vm1022, %v5081, 0.0
        %5084 = vadd.xlane.f32.xlu0 %v5083
        %v5085 = vpop.xlane.xlu0 %5084
        %v5086 = vsel %vm1022, %v5082, 0.0
        %5087 = vadd.xlane.f32.xlu0 %v5086
        %v5088 = vpop.xlane.xlu0 %5087
        %v5089 = vmul.f32 %v5085, %v2794
        %v5090 = vmul.f32 %v5088, %v2794
        %v5091 = vadd.f32 %v5089, 1e-05
        %v5092 = vadd.f32 %v5090, 1e-05
        %v5093 = vrsqrt.pop %v5091
        %v5094 = vrsqrt.pop %v5092
        %v5095 = vmul.f32 %v5079, %v5093
        %v5096 = vmul.f32 %v5080, %v5094
        %v5098 = vlaneseq
        %v5099 = vshrl.u32 %v5098, 7
        %v5100 = vsub.s32 0, %v5099
        %v5101 = vrot.slane %v3089, %v5100
        %v5103 = vmul.f32 %v5095, %v5101
        %v5104 = vmul.f32 %v5096, %v5101
        %v5106 = vlaneseq
        %v5107 = vshrl.u32 %v5106, 7
        %v5108 = vsub.s32 0, %v5107
        %v5109 = vrot.slane %v3091, %v5108
        %v5111 = vadd.f32 %v5103, %v5109
        %v5112 = vadd.f32 %v5104, %v5109
        %s5113 = scalar_lea.vmem %s843, 64
        %v5114 = vld [vmem:[%s5113] sm:$0xff]
        %v5115 = vld [vmem:[%s5113 + $0x8] sm:$0xff]
        %v5116 = vld [vmem:[%s5113 + $0x10] sm:$0xff]
        %v5117 = vld [vmem:[%s5113 + $0x18] sm:$0xff]
        %s5118 = scalar_lea.vmem %s847, 2
        %v5119 = vld [vmem:[%s5118] sm:$0x1]
        %s5120 = scalar_lea.vmem %s852, 64
        %v5121 = vld [vmem:[%s5120] sm:$0xff]
        %v5122 = vld [vmem:[%s5120 + $0x8] sm:$0xff]
        %v5123 = vld [vmem:[%s5120 + $0x10] sm:$0xff]
        %v5124 = vld [vmem:[%s5120 + $0x18] sm:$0xff]
        %s5125 = scalar_lea.vmem %s856, 2
        %v5126 = vld [vmem:[%s5125] sm:$0x1]
        %s5127 = scalar_lea.vmem %s860, 2
        %v5128 = vld [vmem:[%s5127] sm:$0x1]
        %s5129 = scalar_lea.vmem %s864, 2
        %v5130 = vld [vmem:[%s5129] sm:$0x1]
        %s5131 = scalar_lea.vmem %s869, 64
        %v5132 = vld [vmem:[%s5131] sm:$0xff]
        %v5133 = vld [vmem:[%s5131 + $0x8] sm:$0xff]
        %v5134 = vld [vmem:[%s5131 + $0x10] sm:$0xff]
        %v5135 = vld [vmem:[%s5131 + $0x18] sm:$0xff]
        %s5136 = scalar_lea.vmem %s873, 2
        %v5137 = vld [vmem:[%s5136] sm:$0x1]
        %s5138 = scalar_lea.vmem %s878, 128
        %v5139 = vld [vmem:[%s5138] sm:$0xff]
        %v5140 = vld [vmem:[%s5138 + $0x8] sm:$0xff]
        %v5141 = vld [vmem:[%s5138 + $0x10] sm:$0xff]
        %v5142 = vld [vmem:[%s5138 + $0x18] sm:$0xff]
        %v5143 = vld [vmem:[%s5138 + $0x20] sm:$0xff]
        %v5144 = vld [vmem:[%s5138 + $0x28] sm:$0xff]
        %v5145 = vld [vmem:[%s5138 + $0x30] sm:$0xff]
        %v5146 = vld [vmem:[%s5138 + $0x38] sm:$0xff]
        %s5147 = scalar_lea.vmem %s882, 2
        %v5148 = vld [vmem:[%s5147] sm:$0x1]
        %s5149 = scalar_lea.vmem %s886, 2
        %v5150 = vld [vmem:[%s5149] sm:$0x1]
        %s5151 = scalar_lea.vmem %s890, 2
        %v5152 = vld [vmem:[%s5151] sm:$0x1]
        %v5154 = vlaneseq
        %v5155 = vshrl.u32 %v5154, 7
        %v5156 = vsub.s32 0, %v5155
        %v5157 = vrot.slane %v5119, %v5156
        %v5160 = vsel %vm1022, %v5111, 0
        %v5163 = vsel %vm1022, %v5112, 0
        %5165 = vmatprep.subr.mxu0 0.0
        %5166 = vmatpush1.msra.mxu0 %v5114
        %5167 = vmatprep.subr.mxu0 0.0
        %5168 = vmatpush1.msra.mxu0 %v5115
        %5169 = vmatprep.subr.mxu0 0.0
        %5170 = vmatpush1.msra.mxu0 %v5116
        %5171 = vmatprep.subr.mxu0 0.0
        %5172 = vmatpush1.msra.mxu0 %v5117
        %5173 = vmatprep.subr.mxu0 0.0
        %5174 = vmatpush1.msra.mxu0 0.0
        %5175 = vmatprep.subr.mxu0 0.0
        %5176 = vmatpush1.msra.mxu0 0.0
        %5177 = vmatprep.subr.mxu0 0.0
        %5178 = vmatpush1.msra.mxu0 0.0
        %5179 = vmatprep.subr.mxu0 0.0
        %5180 = vmatpush1.msra.mxu0 0.0
        %5181 = vmatprep.subr.mxu0 0.0
        %5182 = vmatpush1.msra.mxu0 0.0
        %5183 = vmatprep.subr.mxu0 0.0
        %5184 = vmatpush1.msra.mxu0 0.0
        %5185 = vmatprep.subr.mxu0 0.0
        %5186 = vmatpush1.msra.mxu0 0.0
        %5187 = vmatprep.subr.mxu0 0.0
        %5188 = vmatpush1.msra.mxu0 0.0
        %5189 = vmatprep.subr.mxu0 0.0
        %5190 = vmatpush1.msra.mxu0 0.0
        %5191 = vmatprep.subr.mxu0 0.0
        %5192 = vmatpush1.msra.mxu0 0.0
        %5193 = vmatprep.subr.mxu0 0.0
        %5194 = vmatpush1.msra.mxu0 0.0
        %5195 = vmatprep.subr.mxu0 0.0
        %5196 = vmatpush1.msra.mxu0 0.0
        %5197 = vmatprep.subr.mxu0 0.0
        %5198 = vmatpush1.msra.mxu0 0.0
        %5199 = vmatprep.subr.mxu0 0.0
        %5200 = vmatpush1.msra.mxu0 0.0
        %5201 = vmatprep.subr.mxu0 0.0
        %5202 = vmatpush1.msra.mxu0 0.0
        %5203 = vmatprep.subr.mxu0 0.0
        %5204 = vmatpush1.msra.mxu0 0.0
        %5205 = vmatprep.subr.mxu0 0.0
        %5206 = vmatpush1.msra.mxu0 0.0
        %5207 = vmatprep.subr.mxu0 0.0
        %5208 = vmatpush1.msra.mxu0 0.0
        %5209 = vmatprep.subr.mxu0 0.0
        %5210 = vmatpush1.msra.mxu0 0.0
        %5211 = vmatprep.subr.mxu0 0.0
        %5212 = vmatpush1.msra.mxu0 0.0
        %5213 = vmatprep.subr.mxu0 0.0
        %5214 = vmatpush1.msra.mxu0 0.0
        %5215 = vmatprep.subr.mxu0 0.0
        %5216 = vmatpush1.msra.mxu0 0.0
        %5217 = vmatprep.subr.mxu0 0.0
        %5218 = vmatpush1.msra.mxu0 0.0
        %5219 = vmatprep.subr.mxu0 0.0
        %5220 = vmatpush1.msra.mxu0 0.0
        %5221 = vmatprep.subr.mxu0 0.0
        %5222 = vmatpush1.msra.mxu0 0.0
        %5223 = vmatprep.subr.mxu0 0.0
        %5224 = vmatpush1.msra.mxu0 0.0
        %5225 = vmatprep.subr.mxu0 0.0
        %5226 = vmatpush1.msra.mxu0 0.0
        %5227 = vmatprep.subr.mxu0 0.0
        %5228 = vmatpush1.msra.mxu0 0.0
        %5229 = vmatprep.mubr.f32.mxu0 0.0
        %5230 = vmatmul.mubr.f32.gmra.mrb[0].mxu0 %v5160
        %v5231 = vpop.f32.mrb[0].mxu0
        %v5232 = vadd.f32 %v5157, %v5231
        %v5233 = vpop.f32.mrb[0].mxu0
        %5234 = vmatprep.mubr.f32.mxu0 0.0
        %5235 = vmatmul.mubr.f32.gmra.mrb[0].mxu0 %v5163
        %v5236 = vpop.f32.mrb[0].mxu0
        %v5237 = vadd.f32 %v5157, %v5236
        %v5238 = vpop.f32.mrb[0].mxu0
        %5239 = vdwg.mxu0
        %5241 = vrot.lane.b32.xlu0 %v5232, 96
        %v5242 = vpop.permute.xlu0 %5241
        %v5243 = vsel %vm901, %v5232, 0
        %v5245 = vsel %vm901, %v5242, 0
        %5247 = vmatprep.subr.mxu0 0.0
        %5248 = vmatpush1.xpose.msra.mxu0 %v5245
        %5249 = vmatprep.subr.mxu0 0.0
        %5250 = vmatpush1.xpose.msra.mxu0 0.0
        %5251 = vmatprep.subr.mxu0 0.0
        %5252 = vmatpush1.xpose.msra.mxu0 0.0
        %5253 = vmatprep.subr.mxu0 0.0
        %5254 = vmatpush1.xpose.msra.mxu0 0.0
        %5255 = vmatprep.subr.mxu0 0.0
        %5256 = vmatpush1.xpose.msra.mxu0 0.0
        %5257 = vmatprep.subr.mxu0 0.0
        %5258 = vmatpush1.xpose.msra.mxu0 0.0
        %5259 = vmatprep.subr.mxu0 0.0
        %5260 = vmatpush1.xpose.msra.mxu0 0.0
        %5261 = vmatprep.subr.mxu0 0.0
        %5262 = vmatpush1.xpose.msra.mxu0 0.0
        %5263 = vmatprep.subr.mxu0 0.0
        %5264 = vmatpush1.xpose.msra.mxu0 0.0
        %5265 = vmatprep.subr.mxu0 0.0
        %5266 = vmatpush1.xpose.msra.mxu0 0.0
        %5267 = vmatprep.subr.mxu0 0.0
        %5268 = vmatpush1.xpose.msra.mxu0 0.0
        %5269 = vmatprep.subr.mxu0 0.0
        %5270 = vmatpush1.xpose.msra.mxu0 0.0
        %5271 = vmatprep.subr.mxu0 0.0
        %5272 = vmatpush1.xpose.msra.mxu0 0.0
        %5273 = vmatprep.subr.mxu0 0.0
        %5274 = vmatpush1.xpose.msra.mxu0 0.0
        %5275 = vmatprep.subr.mxu0 0.0
        %5276 = vmatpush1.xpose.msra.mxu0 0.0
        %5277 = vmatprep.subr.mxu0 0.0
        %5278 = vmatpush1.xpose.msra.mxu0 0.0
        %5279 = vmatprep.subr.mxu0 0.0
        %5280 = vmatpush1.xpose.msra.mxu0 0.0
        %5281 = vmatprep.subr.mxu0 0.0
        %5282 = vmatpush1.xpose.msra.mxu0 0.0
        %5283 = vmatprep.subr.mxu0 0.0
        %5284 = vmatpush1.xpose.msra.mxu0 0.0
        %5285 = vmatprep.subr.mxu0 0.0
        %5286 = vmatpush1.xpose.msra.mxu0 0.0
        %5287 = vmatprep.subr.mxu0 0.0
        %5288 = vmatpush1.xpose.msra.mxu0 0.0
        %5289 = vmatprep.subr.mxu0 0.0
        %5290 = vmatpush1.xpose.msra.mxu0 0.0
        %5291 = vmatprep.subr.mxu0 0.0
        %5292 = vmatpush1.xpose.msra.mxu0 0.0
        %5293 = vmatprep.subr.mxu0 0.0
        %5294 = vmatpush1.xpose.msra.mxu0 0.0
        %5295 = vmatprep.subr.mxu0 0.0
        %5296 = vmatpush1.xpose.msra.mxu0 0.0
        %5297 = vmatprep.subr.mxu0 0.0
        %5298 = vmatpush1.xpose.msra.mxu0 0.0
        %5299 = vmatprep.subr.mxu0 0.0
        %5300 = vmatpush1.xpose.msra.mxu0 0.0
        %5301 = vmatprep.subr.mxu0 0.0
        %5302 = vmatpush1.xpose.msra.mxu0 0.0
        %5303 = vmatprep.subr.mxu0 0.0
        %5304 = vmatpush1.xpose.msra.mxu0 0.0
        %5305 = vmatprep.subr.mxu0 0.0
        %5306 = vmatpush1.xpose.msra.mxu0 0.0
        %5307 = vmatprep.subr.mxu0 0.0
        %5308 = vmatpush1.xpose.msra.mxu0 0.0
        %5309 = vmatprep.subr.mxu0 0.0
        %5310 = vmatpush1.xpose.msra.mxu0 0.0
        %5311 = vmatprep.mubr.f32.mxu0 0.0
        %5312 = vmatmul.mubr.f32.gmra.mrb[0].mxu0 %v5243
        %v5313 = vpop.f32.mrb[0].mxu0
        %v5314 = vadd.f32 0.0, %v5313
        %v5315 = vpop.f32.mrb[0].mxu0
        %5316 = vdwg.mxu0
        %5318 = vrot.lane.b32.xlu0 %v5237, 96
        %v5319 = vpop.permute.xlu0 %5318
        %v5320 = vsel %vm901, %v5237, 0
        %v5322 = vsel %vm901, %v5319, 0
        %5324 = vmatprep.subr.mxu0 0.0
        %5325 = vmatpush1.xpose.msra.mxu0 %v5322
        %5326 = vmatprep.subr.mxu0 0.0
        %5327 = vmatpush1.xpose.msra.mxu0 0.0
        %5328 = vmatprep.subr.mxu0 0.0
        %5329 = vmatpush1.xpose.msra.mxu0 0.0
        %5330 = vmatprep.subr.mxu0 0.0
        %5331 = vmatpush1.xpose.msra.mxu0 0.0
        %5332 = vmatprep.subr.mxu0 0.0
        %5333 = vmatpush1.xpose.msra.mxu0 0.0
        %5334 = vmatprep.subr.mxu0 0.0
        %5335 = vmatpush1.xpose.msra.mxu0 0.0
        %5336 = vmatprep.subr.mxu0 0.0
        %5337 = vmatpush1.xpose.msra.mxu0 0.0
        %5338 = vmatprep.subr.mxu0 0.0
        %5339 = vmatpush1.xpose.msra.mxu0 0.0
        %5340 = vmatprep.subr.mxu0 0.0
        %5341 = vmatpush1.xpose.msra.mxu0 0.0
        %5342 = vmatprep.subr.mxu0 0.0
        %5343 = vmatpush1.xpose.msra.mxu0 0.0
        %5344 = vmatprep.subr.mxu0 0.0
        %5345 = vmatpush1.xpose.msra.mxu0 0.0
        %5346 = vmatprep.subr.mxu0 0.0
        %5347 = vmatpush1.xpose.msra.mxu0 0.0
        %5348 = vmatprep.subr.mxu0 0.0
        %5349 = vmatpush1.xpose.msra.mxu0 0.0
        %5350 = vmatprep.subr.mxu0 0.0
        %5351 = vmatpush1.xpose.msra.mxu0 0.0
        %5352 = vmatprep.subr.mxu0 0.0
        %5353 = vmatpush1.xpose.msra.mxu0 0.0
        %5354 = vmatprep.subr.mxu0 0.0
        %5355 = vmatpush1.xpose.msra.mxu0 0.0
        %5356 = vmatprep.subr.mxu0 0.0
        %5357 = vmatpush1.xpose.msra.mxu0 0.0
        %5358 = vmatprep.subr.mxu0 0.0
        %5359 = vmatpush1.xpose.msra.mxu0 0.0
        %5360 = vmatprep.subr.mxu0 0.0
        %5361 = vmatpush1.xpose.msra.mxu0 0.0
        %5362 = vmatprep.subr.mxu0 0.0
        %5363 = vmatpush1.xpose.msra.mxu0 0.0
        %5364 = vmatprep.subr.mxu0 0.0
        %5365 = vmatpush1.xpose.msra.mxu0 0.0
        %5366 = vmatprep.subr.mxu0 0.0
        %5367 = vmatpush1.xpose.msra.mxu0 0.0
        %5368 = vmatprep.subr.mxu0 0.0
        %5369 = vmatpush1.xpose.msra.mxu0 0.0
        %5370 = vmatprep.subr.mxu0 0.0
        %5371 = vmatpush1.xpose.msra.mxu0 0.0
        %5372 = vmatprep.subr.mxu0 0.0
        %5373 = vmatpush1.xpose.msra.mxu0 0.0
        %5374 = vmatprep.subr.mxu0 0.0
        %5375 = vmatpush1.xpose.msra.mxu0 0.0
        %5376 = vmatprep.subr.mxu0 0.0
        %5377 = vmatpush1.xpose.msra.mxu0 0.0
        %5378 = vmatprep.subr.mxu0 0.0
        %5379 = vmatpush1.xpose.msra.mxu0 0.0
        %5380 = vmatprep.subr.mxu0 0.0
        %5381 = vmatpush1.xpose.msra.mxu0 0.0
        %5382 = vmatprep.subr.mxu0 0.0
        %5383 = vmatpush1.xpose.msra.mxu0 0.0
        %5384 = vmatprep.subr.mxu0 0.0
        %5385 = vmatpush1.xpose.msra.mxu0 0.0
        %5386 = vmatprep.subr.mxu0 0.0
        %5387 = vmatpush1.xpose.msra.mxu0 0.0
        %5388 = vmatprep.mubr.f32.mxu0 0.0
        %5389 = vmatmul.mubr.f32.gmra.mrb[0].mxu0 %v5320
        %v5390 = vpop.f32.mrb[0].mxu0
        %v5391 = vadd.f32 0.0, %v5390
        %v5392 = vpop.f32.mrb[0].mxu0
        %5393 = vdwg.mxu0
        %v5394 = vmul.f32 %v5314, 0.35355338
        %v5395 = vmul.f32 %v5391, 0.35355338
        %v5396 = vadd.f32 %v5394, %v1265
        %v5397 = vadd.f32 %v5395, %v1269
        %v5398 = vsel %vm901, %v5396, -inf
        %5399 = vmax.xlane.f32.xlu0 %v5398
        %v5400 = vpop.xlane.xlu0 %5399
        %v5401 = vsel %vm901, %v5397, -inf
        %5402 = vmax.xlane.f32.xlu0 %v5401
        %v5403 = vpop.xlane.xlu0 %5402
        %v5404 = vsub.f32 %v5396, %v5400
        %v5405 = vsub.f32 %v5397, %v5403
        %v5406 = vmul.f32 %v5404, 1.442695
        %v5407 = vpow.pop %v5406
        %v5408 = vmul.f32 %v5405, 1.442695
        %v5409 = vpow.pop %v5408
        %v5410 = vsel %vm901, %v5407, 0.0
        %5411 = vadd.xlane.f32.xlu0 %v5410
        %v5412 = vpop.xlane.xlu0 %5411
        %v5413 = vsel %vm901, %v5409, 0.0
        %5414 = vadd.xlane.f32.xlu0 %v5413
        %v5415 = vpop.xlane.xlu0 %5414
        %v5416 = vrcp.pop %v5412
        %v5417 = vrcp.pop %v5415
        %v5418 = vmul.f32 %v5407, %v5416
        %v5419 = vmul.f32 %v5409, %v5417
        %5420 = vrot.lane.b32.xlu0 %v5232, 64
        %v5421 = vpop.permute.xlu0 %5420
        %v5424 = vsel %vm901, %v5418, 0
        %5426 = vmatprep.subr.mxu0 0.0
        %5427 = vmatpush1.msra.mxu0 %v5421
        %5428 = vmatprep.subr.mxu0 0.0
        %5429 = vmatpush1.msra.mxu0 0.0
        %5430 = vmatprep.subr.mxu0 0.0
        %5431 = vmatpush1.msra.mxu0 0.0
        %5432 = vmatprep.subr.mxu0 0.0
        %5433 = vmatpush1.msra.mxu0 0.0
        %5434 = vmatprep.subr.mxu0 0.0
        %5435 = vmatpush1.msra.mxu0 0.0
        %5436 = vmatprep.subr.mxu0 0.0
        %5437 = vmatpush1.msra.mxu0 0.0
        %5438 = vmatprep.subr.mxu0 0.0
        %5439 = vmatpush1.msra.mxu0 0.0
        %5440 = vmatprep.subr.mxu0 0.0
        %5441 = vmatpush1.msra.mxu0 0.0
        %5442 = vmatprep.subr.mxu0 0.0
        %5443 = vmatpush1.msra.mxu0 0.0
        %5444 = vmatprep.subr.mxu0 0.0
        %5445 = vmatpush1.msra.mxu0 0.0
        %5446 = vmatprep.subr.mxu0 0.0
        %5447 = vmatpush1.msra.mxu0 0.0
        %5448 = vmatprep.subr.mxu0 0.0
        %5449 = vmatpush1.msra.mxu0 0.0
        %5450 = vmatprep.subr.mxu0 0.0
        %5451 = vmatpush1.msra.mxu0 0.0
        %5452 = vmatprep.subr.mxu0 0.0
        %5453 = vmatpush1.msra.mxu0 0.0
        %5454 = vmatprep.subr.mxu0 0.0
        %5455 = vmatpush1.msra.mxu0 0.0
        %5456 = vmatprep.subr.mxu0 0.0
        %5457 = vmatpush1.msra.mxu0 0.0
        %5458 = vmatprep.subr.mxu0 0.0
        %5459 = vmatpush1.msra.mxu0 0.0
        %5460 = vmatprep.subr.mxu0 0.0
        %5461 = vmatpush1.msra.mxu0 0.0
        %5462 = vmatprep.subr.mxu0 0.0
        %5463 = vmatpush1.msra.mxu0 0.0
        %5464 = vmatprep.subr.mxu0 0.0
        %5465 = vmatpush1.msra.mxu0 0.0
        %5466 = vmatprep.subr.mxu0 0.0
        %5467 = vmatpush1.msra.mxu0 0.0
        %5468 = vmatprep.subr.mxu0 0.0
        %5469 = vmatpush1.msra.mxu0 0.0
        %5470 = vmatprep.subr.mxu0 0.0
        %5471 = vmatpush1.msra.mxu0 0.0
        %5472 = vmatprep.subr.mxu0 0.0
        %5473 = vmatpush1.msra.mxu0 0.0
        %5474 = vmatprep.subr.mxu0 0.0
        %5475 = vmatpush1.msra.mxu0 0.0
        %5476 = vmatprep.subr.mxu0 0.0
        %5477 = vmatpush1.msra.mxu0 0.0
        %5478 = vmatprep.subr.mxu0 0.0
        %5479 = vmatpush1.msra.mxu0 0.0
        %5480 = vmatprep.subr.mxu0 0.0
        %5481 = vmatpush1.msra.mxu0 0.0
        %5482 = vmatprep.subr.mxu0 0.0
        %5483 = vmatpush1.msra.mxu0 0.0
        %5484 = vmatprep.subr.mxu0 0.0
        %5485 = vmatpush1.msra.mxu0 0.0
        %5486 = vmatprep.subr.mxu0 0.0
        %5487 = vmatpush1.msra.mxu0 0.0
        %5488 = vmatprep.subr.mxu0 0.0
        %5489 = vmatpush1.msra.mxu0 0.0
        %5490 = vmatprep.mubr.f32.mxu0 0.0
        %5491 = vmatmul.mubr.f32.gmra.mrb[0].mxu0 %v5424
        %v5492 = vpop.f32.mrb[0].mxu0
        %v5493 = vadd.f32 0.0, %v5492
        %v5494 = vpop.f32.mrb[0].mxu0
        %5495 = vdwg.mxu0
        %5496 = vrot.lane.b32.xlu0 %v5237, 64
        %v5497 = vpop.permute.xlu0 %5496
        %v5500 = vsel %vm901, %v5419, 0
        %5502 = vmatprep.subr.mxu0 0.0
        %5503 = vmatpush1.msra.mxu0 %v5497
        %5504 = vmatprep.subr.mxu0 0.0
        %5505 = vmatpush1.msra.mxu0 0.0
        %5506 = vmatprep.subr.mxu0 0.0
        %5507 = vmatpush1.msra.mxu0 0.0
        %5508 = vmatprep.subr.mxu0 0.0
        %5509 = vmatpush1.msra.mxu0 0.0
        %5510 = vmatprep.subr.mxu0 0.0
        %5511 = vmatpush1.msra.mxu0 0.0
        %5512 = vmatprep.subr.mxu0 0.0
        %5513 = vmatpush1.msra.mxu0 0.0
        %5514 = vmatprep.subr.mxu0 0.0
        %5515 = vmatpush1.msra.mxu0 0.0
        %5516 = vmatprep.subr.mxu0 0.0
        %5517 = vmatpush1.msra.mxu0 0.0
        %5518 = vmatprep.subr.mxu0 0.0
        %5519 = vmatpush1.msra.mxu0 0.0
        %5520 = vmatprep.subr.mxu0 0.0
        %5521 = vmatpush1.msra.mxu0 0.0
        %5522 = vmatprep.subr.mxu0 0.0
        %5523 = vmatpush1.msra.mxu0 0.0
        %5524 = vmatprep.subr.mxu0 0.0
        %5525 = vmatpush1.msra.mxu0 0.0
        %5526 = vmatprep.subr.mxu0 0.0
        %5527 = vmatpush1.msra.mxu0 0.0
        %5528 = vmatprep.subr.mxu0 0.0
        %5529 = vmatpush1.msra.mxu0 0.0
        %5530 = vmatprep.subr.mxu0 0.0
        %5531 = vmatpush1.msra.mxu0 0.0
        %5532 = vmatprep.subr.mxu0 0.0
        %5533 = vmatpush1.msra.mxu0 0.0
        %5534 = vmatprep.subr.mxu0 0.0
        %5535 = vmatpush1.msra.mxu0 0.0
        %5536 = vmatprep.subr.mxu0 0.0
        %5537 = vmatpush1.msra.mxu0 0.0
        %5538 = vmatprep.subr.mxu0 0.0
        %5539 = vmatpush1.msra.mxu0 0.0
        %5540 = vmatprep.subr.mxu0 0.0
        %5541 = vmatpush1.msra.mxu0 0.0
        %5542 = vmatprep.subr.mxu0 0.0
        %5543 = vmatpush1.msra.mxu0 0.0
        %5544 = vmatprep.subr.mxu0 0.0
        %5545 = vmatpush1.msra.mxu0 0.0
        %5546 = vmatprep.subr.mxu0 0.0
        %5547 = vmatpush1.msra.mxu0 0.0
        %5548 = vmatprep.subr.mxu0 0.0
        %5549 = vmatpush1.msra.mxu0 0.0
        %5550 = vmatprep.subr.mxu0 0.0
        %5551 = vmatpush1.msra.mxu0 0.0
        %5552 = vmatprep.subr.mxu0 0.0
        %5553 = vmatpush1.msra.mxu0 0.0
        %5554 = vmatprep.subr.mxu0 0.0
        %5555 = vmatpush1.msra.mxu0 0.0
        %5556 = vmatprep.subr.mxu0 0.0
        %5557 = vmatpush1.msra.mxu0 0.0
        %5558 = vmatprep.subr.mxu0 0.0
        %5559 = vmatpush1.msra.mxu0 0.0
        %5560 = vmatprep.subr.mxu0 0.0
        %5561 = vmatpush1.msra.mxu0 0.0
        %5562 = vmatprep.subr.mxu0 0.0
        %5563 = vmatpush1.msra.mxu0 0.0
        %5564 = vmatprep.subr.mxu0 0.0
        %5565 = vmatpush1.msra.mxu0 0.0
        %5566 = vmatprep.mubr.f32.mxu0 0.0
        %5567 = vmatmul.mubr.f32.gmra.mrb[0].mxu0 %v5500
        %v5568 = vpop.f32.mrb[0].mxu0
        %v5569 = vadd.f32 0.0, %v5568
        %v5570 = vpop.f32.mrb[0].mxu0
        %5571 = vdwg.mxu0
        %5572 = vrot.lane.b32.xlu0 %v5232, 120
        %v5573 = vpop.permute.xlu0 %5572
        %5574 = vrot.lane.b32.xlu0 %v5232, 88
        %v5575 = vpop.permute.xlu0 %5574
        %v5576 = vsel %vm901, %v5573, 0
        %v5578 = vsel %vm901, %v5575, 0
        %5580 = vmatprep.subr.mxu0 0.0
        %5581 = vmatpush1.xpose.msra.mxu0 %v5578
        %5582 = vmatprep.subr.mxu0 0.0
        %5583 = vmatpush1.xpose.msra.mxu0 0.0
        %5584 = vmatprep.subr.mxu0 0.0
        %5585 = vmatpush1.xpose.msra.mxu0 0.0
        %5586 = vmatprep.subr.mxu0 0.0
        %5587 = vmatpush1.xpose.msra.mxu0 0.0
        %5588 = vmatprep.subr.mxu0 0.0
        %5589 = vmatpush1.xpose.msra.mxu0 0.0
        %5590 = vmatprep.subr.mxu0 0.0
        %5591 = vmatpush1.xpose.msra.mxu0 0.0
        %5592 = vmatprep.subr.mxu0 0.0
        %5593 = vmatpush1.xpose.msra.mxu0 0.0
        %5594 = vmatprep.subr.mxu0 0.0
        %5595 = vmatpush1.xpose.msra.mxu0 0.0
        %5596 = vmatprep.subr.mxu0 0.0
        %5597 = vmatpush1.xpose.msra.mxu0 0.0
        %5598 = vmatprep.subr.mxu0 0.0
        %5599 = vmatpush1.xpose.msra.mxu0 0.0
        %5600 = vmatprep.subr.mxu0 0.0
        %5601 = vmatpush1.xpose.msra.mxu0 0.0
        %5602 = vmatprep.subr.mxu0 0.0
        %5603 = vmatpush1.xpose.msra.mxu0 0.0
        %5604 = vmatprep.subr.mxu0 0.0
        %5605 = vmatpush1.xpose.msra.mxu0 0.0
        %5606 = vmatprep.subr.mxu0 0.0
        %5607 = vmatpush1.xpose.msra.mxu0 0.0
        %5608 = vmatprep.subr.mxu0 0.0
        %5609 = vmatpush1.xpose.msra.mxu0 0.0
        %5610 = vmatprep.subr.mxu0 0.0
        %5611 = vmatpush1.xpose.msra.mxu0 0.0
        %5612 = vmatprep.subr.mxu0 0.0
        %5613 = vmatpush1.xpose.msra.mxu0 0.0
        %5614 = vmatprep.subr.mxu0 0.0
        %5615 = vmatpush1.xpose.msra.mxu0 0.0
        %5616 = vmatprep.subr.mxu0 0.0
        %5617 = vmatpush1.xpose.msra.mxu0 0.0
        %5618 = vmatprep.subr.mxu0 0.0
        %5619 = vmatpush1.xpose.msra.mxu0 0.0
        %5620 = vmatprep.subr.mxu0 0.0
        %5621 = vmatpush1.xpose.msra.mxu0 0.0
        %5622 = vmatprep.subr.mxu0 0.0
        %5623 = vmatpush1.xpose.msra.mxu0 0.0
        %5624 = vmatprep.subr.mxu0 0.0
        %5625 = vmatpush1.xpose.msra.mxu0 0.0
        %5626 = vmatprep.subr.mxu0 0.0
        %5627 = vmatpush1.xpose.msra.mxu0 0.0
        %5628 = vmatprep.subr.mxu0 0.0
        %5629 = vmatpush1.xpose.msra.mxu0 0.0
        %5630 = vmatprep.subr.mxu0 0.0
        %5631 = vmatpush1.xpose.msra.mxu0 0.0
        %5632 = vmatprep.subr.mxu0 0.0
        %5633 = vmatpush1.xpose.msra.mxu0 0.0
        %5634 = vmatprep.subr.mxu0 0.0
        %5635 = vmatpush1.xpose.msra.mxu0 0.0
        %5636 = vmatprep.subr.mxu0 0.0
        %5637 = vmatpush1.xpose.msra.mxu0 0.0
        %5638 = vmatprep.subr.mxu0 0.0
        %5639 = vmatpush1.xpose.msra.mxu0 0.0
        %5640 = vmatprep.subr.mxu0 0.0
        %5641 = vmatpush1.xpose.msra.mxu0 0.0
        %5642 = vmatprep.subr.mxu0 0.0
        %5643 = vmatpush1.xpose.msra.mxu0 0.0
        %5644 = vmatprep.mubr.f32.mxu0 0.0
        %5645 = vmatmul.mubr.f32.gmra.mrb[0].mxu0 %v5576
        %v5646 = vpop.f32.mrb[0].mxu0
        %v5647 = vadd.f32 0.0, %v5646
        %v5648 = vpop.f32.mrb[0].mxu0
        %5649 = vdwg.mxu0
        %5650 = vrot.lane.b32.xlu0 %v5237, 120
        %v5651 = vpop.permute.xlu0 %5650
        %5652 = vrot.lane.b32.xlu0 %v5237, 88
        %v5653 = vpop.permute.xlu0 %5652
        %v5654 = vsel %vm901, %v5651, 0
        %v5656 = vsel %vm901, %v5653, 0
        %5658 = vmatprep.subr.mxu0 0.0
        %5659 = vmatpush1.xpose.msra.mxu0 %v5656
        %5660 = vmatprep.subr.mxu0 0.0
        %5661 = vmatpush1.xpose.msra.mxu0 0.0
        %5662 = vmatprep.subr.mxu0 0.0
        %5663 = vmatpush1.xpose.msra.mxu0 0.0
        %5664 = vmatprep.subr.mxu0 0.0
        %5665 = vmatpush1.xpose.msra.mxu0 0.0
        %5666 = vmatprep.subr.mxu0 0.0
        %5667 = vmatpush1.xpose.msra.mxu0 0.0
        %5668 = vmatprep.subr.mxu0 0.0
        %5669 = vmatpush1.xpose.msra.mxu0 0.0
        %5670 = vmatprep.subr.mxu0 0.0
        %5671 = vmatpush1.xpose.msra.mxu0 0.0
        %5672 = vmatprep.subr.mxu0 0.0
        %5673 = vmatpush1.xpose.msra.mxu0 0.0
        %5674 = vmatprep.subr.mxu0 0.0
        %5675 = vmatpush1.xpose.msra.mxu0 0.0
        %5676 = vmatprep.subr.mxu0 0.0
        %5677 = vmatpush1.xpose.msra.mxu0 0.0
        %5678 = vmatprep.subr.mxu0 0.0
        %5679 = vmatpush1.xpose.msra.mxu0 0.0
        %5680 = vmatprep.subr.mxu0 0.0
        %5681 = vmatpush1.xpose.msra.mxu0 0.0
        %5682 = vmatprep.subr.mxu0 0.0
        %5683 = vmatpush1.xpose.msra.mxu0 0.0
        %5684 = vmatprep.subr.mxu0 0.0
        %5685 = vmatpush1.xpose.msra.mxu0 0.0
        %5686 = vmatprep.subr.mxu0 0.0
        %5687 = vmatpush1.xpose.msra.mxu0 0.0
        %5688 = vmatprep.subr.mxu0 0.0
        %5689 = vmatpush1.xpose.msra.mxu0 0.0
        %5690 = vmatprep.subr.mxu0 0.0
        %5691 = vmatpush1.xpose.msra.mxu0 0.0
        %5692 = vmatprep.subr.mxu0 0.0
        %5693 = vmatpush1.xpose.msra.mxu0 0.0
        %5694 = vmatprep.subr.mxu0 0.0
        %5695 = vmatpush1.xpose.msra.mxu0 0.0
        %5696 = vmatprep.subr.mxu0 0.0
        %5697 = vmatpush1.xpose.msra.mxu0 0.0
        %5698 = vmatprep.subr.mxu0 0.0
        %5699 = vmatpush1.xpose.msra.mxu0 0.0
        %5700 = vmatprep.subr.mxu0 0.0
        %5701 = vmatpush1.xpose.msra.mxu0 0.0
        %5702 = vmatprep.subr.mxu0 0.0
        %5703 = vmatpush1.xpose.msra.mxu0 0.0
        %5704 = vmatprep.subr.mxu0 0.0
        %5705 = vmatpush1.xpose.msra.mxu0 0.0
        %5706 = vmatprep.subr.mxu0 0.0
        %5707 = vmatpush1.xpose.msra.mxu0 0.0
        %5708 = vmatprep.subr.mxu0 0.0
        %5709 = vmatpush1.xpose.msra.mxu0 0.0
        %5710 = vmatprep.subr.mxu0 0.0
        %5711 = vmatpush1.xpose.msra.mxu0 0.0
        %5712 = vmatprep.subr.mxu0 0.0
        %5713 = vmatpush1.xpose.msra.mxu0 0.0
        %5714 = vmatprep.subr.mxu0 0.0
        %5715 = vmatpush1.xpose.msra.mxu0 0.0
        %5716 = vmatprep.subr.mxu0 0.0
        %5717 = vmatpush1.xpose.msra.mxu0 0.0
        %5718 = vmatprep.subr.mxu0 0.0
        %5719 = vmatpush1.xpose.msra.mxu0 0.0
        %5720 = vmatprep.subr.mxu0 0.0
        %5721 = vmatpush1.xpose.msra.mxu0 0.0
        %5722 = vmatprep.mubr.f32.mxu0 0.0
        %5723 = vmatmul.mubr.f32.gmra.mrb[0].mxu0 %v5654
        %v5724 = vpop.f32.mrb[0].mxu0
        %v5725 = vadd.f32 0.0, %v5724
        %v5726 = vpop.f32.mrb[0].mxu0
        %5727 = vdwg.mxu0
        %v5728 = vmul.f32 %v5647, 0.35355338
        %v5729 = vmul.f32 %v5725, 0.35355338
        %v5730 = vadd.f32 %v5728, %v1265
        %v5731 = vadd.f32 %v5729, %v1269
        %v5732 = vsel %vm901, %v5730, -inf
        %5733 = vmax.xlane.f32.xlu0 %v5732
        %v5734 = vpop.xlane.xlu0 %5733
        %v5735 = vsel %vm901, %v5731, -inf
        %5736 = vmax.xlane.f32.xlu0 %v5735
        %v5737 = vpop.xlane.xlu0 %5736
        %v5738 = vsub.f32 %v5730, %v5734
        %v5739 = vsub.f32 %v5731, %v5737
        %v5740 = vmul.f32 %v5738, 1.442695
        %v5741 = vpow.pop %v5740
        %v5742 = vmul.f32 %v5739, 1.442695
        %v5743 = vpow.pop %v5742
        %v5744 = vsel %vm901, %v5741, 0.0
        %5745 = vadd.xlane.f32.xlu0 %v5744
        %v5746 = vpop.xlane.xlu0 %5745
        %v5747 = vsel %vm901, %v5743, 0.0
        %5748 = vadd.xlane.f32.xlu0 %v5747
        %v5749 = vpop.xlane.xlu0 %5748
        %v5750 = vrcp.pop %v5746
        %v5751 = vrcp.pop %v5749
        %v5752 = vmul.f32 %v5741, %v5750
        %v5753 = vmul.f32 %v5743, %v5751
        %5754 = vrot.lane.b32.xlu0 %v5232, 56
        %v5755 = vpop.permute.xlu0 %5754
        %v5758 = vsel %vm901, %v5752, 0
        %5760 = vmatprep.subr.mxu0 0.0
        %5761 = vmatpush1.msra.mxu0 %v5755
        %5762 = vmatprep.subr.mxu0 0.0
        %5763 = vmatpush1.msra.mxu0 0.0
        %5764 = vmatprep.subr.mxu0 0.0
        %5765 = vmatpush1.msra.mxu0 0.0
        %5766 = vmatprep.subr.mxu0 0.0
        %5767 = vmatpush1.msra.mxu0 0.0
        %5768 = vmatprep.subr.mxu0 0.0
        %5769 = vmatpush1.msra.mxu0 0.0
        %5770 = vmatprep.subr.mxu0 0.0
        %5771 = vmatpush1.msra.mxu0 0.0
        %5772 = vmatprep.subr.mxu0 0.0
        %5773 = vmatpush1.msra.mxu0 0.0
        %5774 = vmatprep.subr.mxu0 0.0
        %5775 = vmatpush1.msra.mxu0 0.0
        %5776 = vmatprep.subr.mxu0 0.0
        %5777 = vmatpush1.msra.mxu0 0.0
        %5778 = vmatprep.subr.mxu0 0.0
        %5779 = vmatpush1.msra.mxu0 0.0
        %5780 = vmatprep.subr.mxu0 0.0
        %5781 = vmatpush1.msra.mxu0 0.0
        %5782 = vmatprep.subr.mxu0 0.0
        %5783 = vmatpush1.msra.mxu0 0.0
        %5784 = vmatprep.subr.mxu0 0.0
        %5785 = vmatpush1.msra.mxu0 0.0
        %5786 = vmatprep.subr.mxu0 0.0
        %5787 = vmatpush1.msra.mxu0 0.0
        %5788 = vmatprep.subr.mxu0 0.0
        %5789 = vmatpush1.msra.mxu0 0.0
        %5790 = vmatprep.subr.mxu0 0.0
        %5791 = vmatpush1.msra.mxu0 0.0
        %5792 = vmatprep.subr.mxu0 0.0
        %5793 = vmatpush1.msra.mxu0 0.0
        %5794 = vmatprep.subr.mxu0 0.0
        %5795 = vmatpush1.msra.mxu0 0.0
        %5796 = vmatprep.subr.mxu0 0.0
        %5797 = vmatpush1.msra.mxu0 0.0
        %5798 = vmatprep.subr.mxu0 0.0
        %5799 = vmatpush1.msra.mxu0 0.0
        %5800 = vmatprep.subr.mxu0 0.0
        %5801 = vmatpush1.msra.mxu0 0.0
        %5802 = vmatprep.subr.mxu0 0.0
        %5803 = vmatpush1.msra.mxu0 0.0
        %5804 = vmatprep.subr.mxu0 0.0
        %5805 = vmatpush1.msra.mxu0 0.0
        %5806 = vmatprep.subr.mxu0 0.0
        %5807 = vmatpush1.msra.mxu0 0.0
        %5808 = vmatprep.subr.mxu0 0.0
        %5809 = vmatpush1.msra.mxu0 0.0
        %5810 = vmatprep.subr.mxu0 0.0
        %5811 = vmatpush1.msra.mxu0 0.0
        %5812 = vmatprep.subr.mxu0 0.0
        %5813 = vmatpush1.msra.mxu0 0.0
        %5814 = vmatprep.subr.mxu0 0.0
        %5815 = vmatpush1.msra.mxu0 0.0
        %5816 = vmatprep.subr.mxu0 0.0
        %5817 = vmatpush1.msra.mxu0 0.0
        %5818 = vmatprep.subr.mxu0 0.0
        %5819 = vmatpush1.msra.mxu0 0.0
        %5820 = vmatprep.subr.mxu0 0.0
        %5821 = vmatpush1.msra.mxu0 0.0
        %5822 = vmatprep.subr.mxu0 0.0
        %5823 = vmatpush1.msra.mxu0 0.0
        %5824 = vmatprep.mubr.f32.mxu0 0.0
        %5825 = vmatmul.mubr.f32.gmra.mrb[0].mxu0 %v5758
        %v5826 = vpop.f32.mrb[0].mxu0
        %v5827 = vadd.f32 0.0, %v5826
        %v5828 = vpop.f32.mrb[0].mxu0
        %5829 = vdwg.mxu0
        %5830 = vrot.lane.b32.xlu0 %v5237, 56
        %v5831 = vpop.permute.xlu0 %5830
        %v5834 = vsel %vm901, %v5753, 0
        %5836 = vmatprep.subr.mxu0 0.0
        %5837 = vmatpush1.msra.mxu0 %v5831
        %5838 = vmatprep.subr.mxu0 0.0
        %5839 = vmatpush1.msra.mxu0 0.0
        %5840 = vmatprep.subr.mxu0 0.0
        %5841 = vmatpush1.msra.mxu0 0.0
        %5842 = vmatprep.subr.mxu0 0.0
        %5843 = vmatpush1.msra.mxu0 0.0
        %5844 = vmatprep.subr.mxu0 0.0
        %5845 = vmatpush1.msra.mxu0 0.0
        %5846 = vmatprep.subr.mxu0 0.0
        %5847 = vmatpush1.msra.mxu0 0.0
        %5848 = vmatprep.subr.mxu0 0.0
        %5849 = vmatpush1.msra.mxu0 0.0
        %5850 = vmatprep.subr.mxu0 0.0
        %5851 = vmatpush1.msra.mxu0 0.0
        %5852 = vmatprep.subr.mxu0 0.0
        %5853 = vmatpush1.msra.mxu0 0.0
        %5854 = vmatprep.subr.mxu0 0.0
        %5855 = vmatpush1.msra.mxu0 0.0
        %5856 = vmatprep.subr.mxu0 0.0
        %5857 = vmatpush1.msra.mxu0 0.0
        %5858 = vmatprep.subr.mxu0 0.0
        %5859 = vmatpush1.msra.mxu0 0.0
        %5860 = vmatprep.subr.mxu0 0.0
        %5861 = vmatpush1.msra.mxu0 0.0
        %5862 = vmatprep.subr.mxu0 0.0
        %5863 = vmatpush1.msra.mxu0 0.0
        %5864 = vmatprep.subr.mxu0 0.0
        %5865 = vmatpush1.msra.mxu0 0.0
        %5866 = vmatprep.subr.mxu0 0.0
        %5867 = vmatpush1.msra.mxu0 0.0
        %5868 = vmatprep.subr.mxu0 0.0
        %5869 = vmatpush1.msra.mxu0 0.0
        %5870 = vmatprep.subr.mxu0 0.0
        %5871 = vmatpush1.msra.mxu0 0.0
        %5872 = vmatprep.subr.mxu0 0.0
        %5873 = vmatpush1.msra.mxu0 0.0
        %5874 = vmatprep.subr.mxu0 0.0
        %5875 = vmatpush1.msra.mxu0 0.0
        %5876 = vmatprep.subr.mxu0 0.0
        %5877 = vmatpush1.msra.mxu0 0.0
        %5878 = vmatprep.subr.mxu0 0.0
        %5879 = vmatpush1.msra.mxu0 0.0
        %5880 = vmatprep.subr.mxu0 0.0
        %5881 = vmatpush1.msra.mxu0 0.0
        %5882 = vmatprep.subr.mxu0 0.0
        %5883 = vmatpush1.msra.mxu0 0.0
        %5884 = vmatprep.subr.mxu0 0.0
        %5885 = vmatpush1.msra.mxu0 0.0
        %5886 = vmatprep.subr.mxu0 0.0
        %5887 = vmatpush1.msra.mxu0 0.0
        %5888 = vmatprep.subr.mxu0 0.0
        %5889 = vmatpush1.msra.mxu0 0.0
        %5890 = vmatprep.subr.mxu0 0.0
        %5891 = vmatpush1.msra.mxu0 0.0
        %5892 = vmatprep.subr.mxu0 0.0
        %5893 = vmatpush1.msra.mxu0 0.0
        %5894 = vmatprep.subr.mxu0 0.0
        %5895 = vmatpush1.msra.mxu0 0.0
        %5896 = vmatprep.subr.mxu0 0.0
        %5897 = vmatpush1.msra.mxu0 0.0
        %5898 = vmatprep.subr.mxu0 0.0
        %5899 = vmatpush1.msra.mxu0 0.0
        %5900 = vmatprep.mubr.f32.mxu0 0.0
        %5901 = vmatmul.mubr.f32.gmra.mrb[0].mxu0 %v5834
        %v5902 = vpop.f32.mrb[0].mxu0
        %v5903 = vadd.f32 0.0, %v5902
        %v5904 = vpop.f32.mrb[0].mxu0
        %5905 = vdwg.mxu0
        %v5907 = vsel %vm901, %v5827, 0
        %v5910 = vsel %vm901, %v5903, 0
        %5912 = vmatprep.subr.mxu0 0.0
        %5913 = vmatpush1.msra.mxu0 %v5122
        %5914 = vmatprep.subr.mxu0 0.0
        %5915 = vmatpush1.msra.mxu0 0.0
        %5916 = vmatprep.subr.mxu0 0.0
        %5917 = vmatpush1.msra.mxu0 0.0
        %5918 = vmatprep.subr.mxu0 0.0
        %5919 = vmatpush1.msra.mxu0 0.0
        %5920 = vmatprep.subr.mxu0 0.0
        %5921 = vmatpush1.msra.mxu0 0.0
        %5922 = vmatprep.subr.mxu0 0.0
        %5923 = vmatpush1.msra.mxu0 0.0
        %5924 = vmatprep.subr.mxu0 0.0
        %5925 = vmatpush1.msra.mxu0 0.0
        %5926 = vmatprep.subr.mxu0 0.0
        %5927 = vmatpush1.msra.mxu0 0.0
        %5928 = vmatprep.subr.mxu0 0.0
        %5929 = vmatpush1.msra.mxu0 0.0
        %5930 = vmatprep.subr.mxu0 0.0
        %5931 = vmatpush1.msra.mxu0 0.0
        %5932 = vmatprep.subr.mxu0 0.0
        %5933 = vmatpush1.msra.mxu0 0.0
        %5934 = vmatprep.subr.mxu0 0.0
        %5935 = vmatpush1.msra.mxu0 0.0
        %5936 = vmatprep.subr.mxu0 0.0
        %5937 = vmatpush1.msra.mxu0 0.0
        %5938 = vmatprep.subr.mxu0 0.0
        %5939 = vmatpush1.msra.mxu0 0.0
        %5940 = vmatprep.subr.mxu0 0.0
        %5941 = vmatpush1.msra.mxu0 0.0
        %5942 = vmatprep.subr.mxu0 0.0
        %5943 = vmatpush1.msra.mxu0 0.0
        %5944 = vmatprep.subr.mxu0 0.0
        %5945 = vmatpush1.msra.mxu0 0.0
        %5946 = vmatprep.subr.mxu0 0.0
        %5947 = vmatpush1.msra.mxu0 0.0
        %5948 = vmatprep.subr.mxu0 0.0
        %5949 = vmatpush1.msra.mxu0 0.0
        %5950 = vmatprep.subr.mxu0 0.0
        %5951 = vmatpush1.msra.mxu0 0.0
        %5952 = vmatprep.subr.mxu0 0.0
        %5953 = vmatpush1.msra.mxu0 0.0
        %5954 = vmatprep.subr.mxu0 0.0
        %5955 = vmatpush1.msra.mxu0 0.0
        %5956 = vmatprep.subr.mxu0 0.0
        %5957 = vmatpush1.msra.mxu0 0.0
        %5958 = vmatprep.subr.mxu0 0.0
        %5959 = vmatpush1.msra.mxu0 0.0
        %5960 = vmatprep.subr.mxu0 0.0
        %5961 = vmatpush1.msra.mxu0 0.0
        %5962 = vmatprep.subr.mxu0 0.0
        %5963 = vmatpush1.msra.mxu0 0.0
        %5964 = vmatprep.subr.mxu0 0.0
        %5965 = vmatpush1.msra.mxu0 0.0
        %5966 = vmatprep.subr.mxu0 0.0
        %5967 = vmatpush1.msra.mxu0 0.0
        %5968 = vmatprep.subr.mxu0 0.0
        %5969 = vmatpush1.msra.mxu0 0.0
        %5970 = vmatprep.subr.mxu0 0.0
        %5971 = vmatpush1.msra.mxu0 0.0
        %5972 = vmatprep.subr.mxu0 0.0
        %5973 = vmatpush1.msra.mxu0 0.0
        %5974 = vmatprep.subr.mxu0 0.0
        %5975 = vmatpush1.msra.mxu0 0.0
        %5976 = vmatprep.mubr.f32.mxu0 0.0
        %5977 = vmatmul.mubr.f32.gmra.mrb[0].mxu0 %v5907
        %v5978 = vpop.f32.mrb[0].mxu0
        %v5979 = vadd.f32 0.0, %v5978
        %v5980 = vpop.f32.mrb[0].mxu0
        %5981 = vmatprep.mubr.f32.mxu0 0.0
        %5982 = vmatmul.mubr.f32.gmra.mrb[0].mxu0 %v5910
        %v5983 = vpop.f32.mrb[0].mxu0
        %v5984 = vadd.f32 0.0, %v5983
        %v5985 = vpop.f32.mrb[0].mxu0
        %5986 = vdwg.mxu0
        %v5988 = vsel %vm901, %v5493, 0
        %v5991 = vsel %vm901, %v5569, 0
        %5993 = vmatprep.subr.mxu0 0.0
        %5994 = vmatpush1.msra.mxu0 %v5121
        %5995 = vmatprep.subr.mxu0 0.0
        %5996 = vmatpush1.msra.mxu0 0.0
        %5997 = vmatprep.subr.mxu0 0.0
        %5998 = vmatpush1.msra.mxu0 0.0
        %5999 = vmatprep.subr.mxu0 0.0
        %6000 = vmatpush1.msra.mxu0 0.0
        %6001 = vmatprep.subr.mxu0 0.0
        %6002 = vmatpush1.msra.mxu0 0.0
        %6003 = vmatprep.subr.mxu0 0.0
        %6004 = vmatpush1.msra.mxu0 0.0
        %6005 = vmatprep.subr.mxu0 0.0
        %6006 = vmatpush1.msra.mxu0 0.0
        %6007 = vmatprep.subr.mxu0 0.0
        %6008 = vmatpush1.msra.mxu0 0.0
        %6009 = vmatprep.subr.mxu0 0.0
        %6010 = vmatpush1.msra.mxu0 0.0
        %6011 = vmatprep.subr.mxu0 0.0
        %6012 = vmatpush1.msra.mxu0 0.0
        %6013 = vmatprep.subr.mxu0 0.0
        %6014 = vmatpush1.msra.mxu0 0.0
        %6015 = vmatprep.subr.mxu0 0.0
        %6016 = vmatpush1.msra.mxu0 0.0
        %6017 = vmatprep.subr.mxu0 0.0
        %6018 = vmatpush1.msra.mxu0 0.0
        %6019 = vmatprep.subr.mxu0 0.0
        %6020 = vmatpush1.msra.mxu0 0.0
        %6021 = vmatprep.subr.mxu0 0.0
        %6022 = vmatpush1.msra.mxu0 0.0
        %6023 = vmatprep.subr.mxu0 0.0
        %6024 = vmatpush1.msra.mxu0 0.0
        %6025 = vmatprep.subr.mxu0 0.0
        %6026 = vmatpush1.msra.mxu0 0.0
        %6027 = vmatprep.subr.mxu0 0.0
        %6028 = vmatpush1.msra.mxu0 0.0
        %6029 = vmatprep.subr.mxu0 0.0
        %6030 = vmatpush1.msra.mxu0 0.0
        %6031 = vmatprep.subr.mxu0 0.0
        %6032 = vmatpush1.msra.mxu0 0.0
        %6033 = vmatprep.subr.mxu0 0.0
        %6034 = vmatpush1.msra.mxu0 0.0
        %6035 = vmatprep.subr.mxu0 0.0
        %6036 = vmatpush1.msra.mxu0 0.0
        %6037 = vmatprep.subr.mxu0 0.0
        %6038 = vmatpush1.msra.mxu0 0.0
        %6039 = vmatprep.subr.mxu0 0.0
        %6040 = vmatpush1.msra.mxu0 0.0
        %6041 = vmatprep.subr.mxu0 0.0
        %6042 = vmatpush1.msra.mxu0 0.0
        %6043 = vmatprep.subr.mxu0 0.0
        %6044 = vmatpush1.msra.mxu0 0.0
        %6045 = vmatprep.subr.mxu0 0.0
        %6046 = vmatpush1.msra.mxu0 0.0
        %6047 = vmatprep.subr.mxu0 0.0
        %6048 = vmatpush1.msra.mxu0 0.0
        %6049 = vmatprep.subr.mxu0 0.0
        %6050 = vmatpush1.msra.mxu0 0.0
        %6051 = vmatprep.subr.mxu0 0.0
        %6052 = vmatpush1.msra.mxu0 0.0
        %6053 = vmatprep.subr.mxu0 0.0
        %6054 = vmatpush1.msra.mxu0 0.0
        %6055 = vmatprep.subr.mxu0 0.0
        %6056 = vmatpush1.msra.mxu0 0.0
        %6057 = vmatprep.mubr.f32.mxu0 0.0
        %6058 = vmatmul.mubr.f32.gmra.mrb[0].mxu0 %v5988
        %v6059 = vpop.f32.mrb[0].mxu0
        %v6060 = vadd.f32 %v5979, %v6059
        %v6061 = vpop.f32.mrb[0].mxu0
        %6062 = vmatprep.mubr.f32.mxu0 0.0
        %6063 = vmatmul.mubr.f32.gmra.mrb[0].mxu0 %v5991
        %v6064 = vpop.f32.mrb[0].mxu0
        %v6065 = vadd.f32 %v5984, %v6064
        %v6066 = vpop.f32.mrb[0].mxu0
        %6067 = vdwg.mxu0
        %6068 = vrot.lane.b32.xlu0 %v5232, 112
        %v6069 = vpop.permute.xlu0 %6068
        %6070 = vrot.lane.b32.xlu0 %v5232, 80
        %v6071 = vpop.permute.xlu0 %6070
        %v6072 = vsel %vm901, %v6069, 0
        %v6074 = vsel %vm901, %v6071, 0
        %6076 = vmatprep.subr.mxu0 0.0
        %6077 = vmatpush1.xpose.msra.mxu0 %v6074
        %6078 = vmatprep.subr.mxu0 0.0
        %6079 = vmatpush1.xpose.msra.mxu0 0.0
        %6080 = vmatprep.subr.mxu0 0.0
        %6081 = vmatpush1.xpose.msra.mxu0 0.0
        %6082 = vmatprep.subr.mxu0 0.0
        %6083 = vmatpush1.xpose.msra.mxu0 0.0
        %6084 = vmatprep.subr.mxu0 0.0
        %6085 = vmatpush1.xpose.msra.mxu0 0.0
        %6086 = vmatprep.subr.mxu0 0.0
        %6087 = vmatpush1.xpose.msra.mxu0 0.0
        %6088 = vmatprep.subr.mxu0 0.0
        %6089 = vmatpush1.xpose.msra.mxu0 0.0
        %6090 = vmatprep.subr.mxu0 0.0
        %6091 = vmatpush1.xpose.msra.mxu0 0.0
        %6092 = vmatprep.subr.mxu0 0.0
        %6093 = vmatpush1.xpose.msra.mxu0 0.0
        %6094 = vmatprep.subr.mxu0 0.0
        %6095 = vmatpush1.xpose.msra.mxu0 0.0
        %6096 = vmatprep.subr.mxu0 0.0
        %6097 = vmatpush1.xpose.msra.mxu0 0.0
        %6098 = vmatprep.subr.mxu0 0.0
        %6099 = vmatpush1.xpose.msra.mxu0 0.0
        %6100 = vmatprep.subr.mxu0 0.0
        %6101 = vmatpush1.xpose.msra.mxu0 0.0
        %6102 = vmatprep.subr.mxu0 0.0
        %6103 = vmatpush1.xpose.msra.mxu0 0.0
        %6104 = vmatprep.subr.mxu0 0.0
        %6105 = vmatpush1.xpose.msra.mxu0 0.0
        %6106 = vmatprep.subr.mxu0 0.0
        %6107 = vmatpush1.xpose.msra.mxu0 0.0
        %6108 = vmatprep.subr.mxu0 0.0
        %6109 = vmatpush1.xpose.msra.mxu0 0.0
        %6110 = vmatprep.subr.mxu0 0.0
        %6111 = vmatpush1.xpose.msra.mxu0 0.0
        %6112 = vmatprep.subr.mxu0 0.0
        %6113 = vmatpush1.xpose.msra.mxu0 0.0
        %6114 = vmatprep.subr.mxu0 0.0
        %6115 = vmatpush1.xpose.msra.mxu0 0.0
        %6116 = vmatprep.subr.mxu0 0.0
        %6117 = vmatpush1.xpose.msra.mxu0 0.0
        %6118 = vmatprep.subr.mxu0 0.0
        %6119 = vmatpush1.xpose.msra.mxu0 0.0
        %6120 = vmatprep.subr.mxu0 0.0
        %6121 = vmatpush1.xpose.msra.mxu0 0.0
        %6122 = vmatprep.subr.mxu0 0.0
        %6123 = vmatpush1.xpose.msra.mxu0 0.0
        %6124 = vmatprep.subr.mxu0 0.0
        %6125 = vmatpush1.xpose.msra.mxu0 0.0
        %6126 = vmatprep.subr.mxu0 0.0
        %6127 = vmatpush1.xpose.msra.mxu0 0.0
        %6128 = vmatprep.subr.mxu0 0.0
        %6129 = vmatpush1.xpose.msra.mxu0 0.0
        %6130 = vmatprep.subr.mxu0 0.0
        %6131 = vmatpush1.xpose.msra.mxu0 0.0
        %6132 = vmatprep.subr.mxu0 0.0
        %6133 = vmatpush1.xpose.msra.mxu0 0.0
        %6134 = vmatprep.subr.mxu0 0.0
        %6135 = vmatpush1.xpose.msra.mxu0 0.0
        %6136 = vmatprep.subr.mxu0 0.0
        %6137 = vmatpush1.xpose.msra.mxu0 0.0
        %6138 = vmatprep.subr.mxu0 0.0
        %6139 = vmatpush1.xpose.msra.mxu0 0.0
        %6140 = vmatprep.mubr.f32.mxu0 0.0
        %6141 = vmatmul.mubr.f32.gmra.mrb[0].mxu0 %v6072
        %v6142 = vpop.f32.mrb[0].mxu0
        %v6143 = vadd.f32 0.0, %v6142
        %v6144 = vpop.f32.mrb[0].mxu0
        %6145 = vdwg.mxu0
        %6146 = vrot.lane.b32.xlu0 %v5237, 112
        %v6147 = vpop.permute.xlu0 %6146
        %6148 = vrot.lane.b32.xlu0 %v5237, 80
        %v6149 = vpop.permute.xlu0 %6148
        %v6150 = vsel %vm901, %v6147, 0
        %v6152 = vsel %vm901, %v6149, 0
        %6154 = vmatprep.subr.mxu0 0.0
        %6155 = vmatpush1.xpose.msra.mxu0 %v6152
        %6156 = vmatprep.subr.mxu0 0.0
        %6157 = vmatpush1.xpose.msra.mxu0 0.0
        %6158 = vmatprep.subr.mxu0 0.0
        %6159 = vmatpush1.xpose.msra.mxu0 0.0
        %6160 = vmatprep.subr.mxu0 0.0
        %6161 = vmatpush1.xpose.msra.mxu0 0.0
        %6162 = vmatprep.subr.mxu0 0.0
        %6163 = vmatpush1.xpose.msra.mxu0 0.0
        %6164 = vmatprep.subr.mxu0 0.0
        %6165 = vmatpush1.xpose.msra.mxu0 0.0
        %6166 = vmatprep.subr.mxu0 0.0
        %6167 = vmatpush1.xpose.msra.mxu0 0.0
        %6168 = vmatprep.subr.mxu0 0.0
        %6169 = vmatpush1.xpose.msra.mxu0 0.0
        %6170 = vmatprep.subr.mxu0 0.0
        %6171 = vmatpush1.xpose.msra.mxu0 0.0
        %6172 = vmatprep.subr.mxu0 0.0
        %6173 = vmatpush1.xpose.msra.mxu0 0.0
        %6174 = vmatprep.subr.mxu0 0.0
        %6175 = vmatpush1.xpose.msra.mxu0 0.0
        %6176 = vmatprep.subr.mxu0 0.0
        %6177 = vmatpush1.xpose.msra.mxu0 0.0
        %6178 = vmatprep.subr.mxu0 0.0
        %6179 = vmatpush1.xpose.msra.mxu0 0.0
        %6180 = vmatprep.subr.mxu0 0.0
        %6181 = vmatpush1.xpose.msra.mxu0 0.0
        %6182 = vmatprep.subr.mxu0 0.0
        %6183 = vmatpush1.xpose.msra.mxu0 0.0
        %6184 = vmatprep.subr.mxu0 0.0
        %6185 = vmatpush1.xpose.msra.mxu0 0.0
        %6186 = vmatprep.subr.mxu0 0.0
        %6187 = vmatpush1.xpose.msra.mxu0 0.0
        %6188 = vmatprep.subr.mxu0 0.0
        %6189 = vmatpush1.xpose.msra.mxu0 0.0
        %6190 = vmatprep.subr.mxu0 0.0
        %6191 = vmatpush1.xpose.msra.mxu0 0.0
        %6192 = vmatprep.subr.mxu0 0.0
        %6193 = vmatpush1.xpose.msra.mxu0 0.0
        %6194 = vmatprep.subr.mxu0 0.0
        %6195 = vmatpush1.xpose.msra.mxu0 0.0
        %6196 = vmatprep.subr.mxu0 0.0
        %6197 = vmatpush1.xpose.msra.mxu0 0.0
        %6198 = vmatprep.subr.mxu0 0.0
        %6199 = vmatpush1.xpose.msra.mxu0 0.0
        %6200 = vmatprep.subr.mxu0 0.0
        %6201 = vmatpush1.xpose.msra.mxu0 0.0
        %6202 = vmatprep.subr.mxu0 0.0
        %6203 = vmatpush1.xpose.msra.mxu0 0.0
        %6204 = vmatprep.subr.mxu0 0.0
        %6205 = vmatpush1.xpose.msra.mxu0 0.0
        %6206 = vmatprep.subr.mxu0 0.0
        %6207 = vmatpush1.xpose.msra.mxu0 0.0
        %6208 = vmatprep.subr.mxu0 0.0
        %6209 = vmatpush1.xpose.msra.mxu0 0.0
        %6210 = vmatprep.subr.mxu0 0.0
        %6211 = vmatpush1.xpose.msra.mxu0 0.0
        %6212 = vmatprep.subr.mxu0 0.0
        %6213 = vmatpush1.xpose.msra.mxu0 0.0
        %6214 = vmatprep.subr.mxu0 0.0
        %6215 = vmatpush1.xpose.msra.mxu0 0.0
        %6216 = vmatprep.subr.mxu0 0.0
        %6217 = vmatpush1.xpose.msra.mxu0 0.0
        %6218 = vmatprep.mubr.f32.mxu0 0.0
        %6219 = vmatmul.mubr.f32.gmra.mrb[0].mxu0 %v6150
        %v6220 = vpop.f32.mrb[0].mxu0
        %v6221 = vadd.f32 0.0, %v6220
        %v6222 = vpop.f32.mrb[0].mxu0
        %6223 = vdwg.mxu0
        %v6224 = vmul.f32 %v6143, 0.35355338
        %v6225 = vmul.f32 %v6221, 0.35355338
        %v6226 = vadd.f32 %v6224, %v1265
        %v6227 = vadd.f32 %v6225, %v1269
        %v6228 = vsel %vm901, %v6226, -inf
        %6229 = vmax.xlane.f32.xlu0 %v6228
        %v6230 = vpop.xlane.xlu0 %6229
        %v6231 = vsel %vm901, %v6227, -inf
        %6232 = vmax.xlane.f32.xlu0 %v6231
        %v6233 = vpop.xlane.xlu0 %6232
        %v6234 = vsub.f32 %v6226, %v6230
        %v6235 = vsub.f32 %v6227, %v6233
        %v6236 = vmul.f32 %v6234, 1.442695
        %v6237 = vpow.pop %v6236
        %v6238 = vmul.f32 %v6235, 1.442695
        %v6239 = vpow.pop %v6238
        %v6240 = vsel %vm901, %v6237, 0.0
        %6241 = vadd.xlane.f32.xlu0 %v6240
        %v6242 = vpop.xlane.xlu0 %6241
        %v6243 = vsel %vm901, %v6239, 0.0
        %6244 = vadd.xlane.f32.xlu0 %v6243
        %v6245 = vpop.xlane.xlu0 %6244
        %v6246 = vrcp.pop %v6242
        %v6247 = vrcp.pop %v6245
        %v6248 = vmul.f32 %v6237, %v6246
        %v6249 = vmul.f32 %v6239, %v6247
        %6250 = vrot.lane.b32.xlu0 %v5232, 48
        %v6251 = vpop.permute.xlu0 %6250
        %v6254 = vsel %vm901, %v6248, 0
        %6256 = vmatprep.subr.mxu0 0.0
        %6257 = vmatpush1.msra.mxu0 %v6251
        %6258 = vmatprep.subr.mxu0 0.0
        %6259 = vmatpush1.msra.mxu0 0.0
        %6260 = vmatprep.subr.mxu0 0.0
        %6261 = vmatpush1.msra.mxu0 0.0
        %6262 = vmatprep.subr.mxu0 0.0
        %6263 = vmatpush1.msra.mxu0 0.0
        %6264 = vmatprep.subr.mxu0 0.0
        %6265 = vmatpush1.msra.mxu0 0.0
        %6266 = vmatprep.subr.mxu0 0.0
        %6267 = vmatpush1.msra.mxu0 0.0
        %6268 = vmatprep.subr.mxu0 0.0
        %6269 = vmatpush1.msra.mxu0 0.0
        %6270 = vmatprep.subr.mxu0 0.0
        %6271 = vmatpush1.msra.mxu0 0.0
        %6272 = vmatprep.subr.mxu0 0.0
        %6273 = vmatpush1.msra.mxu0 0.0
        %6274 = vmatprep.subr.mxu0 0.0
        %6275 = vmatpush1.msra.mxu0 0.0
        %6276 = vmatprep.subr.mxu0 0.0
        %6277 = vmatpush1.msra.mxu0 0.0
        %6278 = vmatprep.subr.mxu0 0.0
        %6279 = vmatpush1.msra.mxu0 0.0
        %6280 = vmatprep.subr.mxu0 0.0
        %6281 = vmatpush1.msra.mxu0 0.0
        %6282 = vmatprep.subr.mxu0 0.0
        %6283 = vmatpush1.msra.mxu0 0.0
        %6284 = vmatprep.subr.mxu0 0.0
        %6285 = vmatpush1.msra.mxu0 0.0
        %6286 = vmatprep.subr.mxu0 0.0
        %6287 = vmatpush1.msra.mxu0 0.0
        %6288 = vmatprep.subr.mxu0 0.0
        %6289 = vmatpush1.msra.mxu0 0.0
        %6290 = vmatprep.subr.mxu0 0.0
        %6291 = vmatpush1.msra.mxu0 0.0
        %6292 = vmatprep.subr.mxu0 0.0
        %6293 = vmatpush1.msra.mxu0 0.0
        %6294 = vmatprep.subr.mxu0 0.0
        %6295 = vmatpush1.msra.mxu0 0.0
        %6296 = vmatprep.subr.mxu0 0.0
        %6297 = vmatpush1.msra.mxu0 0.0
        %6298 = vmatprep.subr.mxu0 0.0
        %6299 = vmatpush1.msra.mxu0 0.0
        %6300 = vmatprep.subr.mxu0 0.0
        %6301 = vmatpush1.msra.mxu0 0.0
        %6302 = vmatprep.subr.mxu0 0.0
        %6303 = vmatpush1.msra.mxu0 0.0
        %6304 = vmatprep.subr.mxu0 0.0
        %6305 = vmatpush1.msra.mxu0 0.0
        %6306 = vmatprep.subr.mxu0 0.0
        %6307 = vmatpush1.msra.mxu0 0.0
        %6308 = vmatprep.subr.mxu0 0.0
        %6309 = vmatpush1.msra.mxu0 0.0
        %6310 = vmatprep.subr.mxu0 0.0
        %6311 = vmatpush1.msra.mxu0 0.0
        %6312 = vmatprep.subr.mxu0 0.0
        %6313 = vmatpush1.msra.mxu0 0.0
        %6314 = vmatprep.subr.mxu0 0.0
        %6315 = vmatpush1.msra.mxu0 0.0
        %6316 = vmatprep.subr.mxu0 0.0
        %6317 = vmatpush1.msra.mxu0 0.0
        %6318 = vmatprep.subr.mxu0 0.0
        %6319 = vmatpush1.msra.mxu0 0.0
        %6320 = vmatprep.mubr.f32.mxu0 0.0
        %6321 = vmatmul.mubr.f32.gmra.mrb[0].mxu0 %v6254
        %v6322 = vpop.f32.mrb[0].mxu0
        %v6323 = vadd.f32 0.0, %v6322
        %v6324 = vpop.f32.mrb[0].mxu0
        %6325 = vdwg.mxu0
        %6326 = vrot.lane.b32.xlu0 %v5237, 48
        %v6327 = vpop.permute.xlu0 %6326
        %v6330 = vsel %vm901, %v6249, 0
        %6332 = vmatprep.subr.mxu0 0.0
        %6333 = vmatpush1.msra.mxu0 %v6327
        %6334 = vmatprep.subr.mxu0 0.0
        %6335 = vmatpush1.msra.mxu0 0.0
        %6336 = vmatprep.subr.mxu0 0.0
        %6337 = vmatpush1.msra.mxu0 0.0
        %6338 = vmatprep.subr.mxu0 0.0
        %6339 = vmatpush1.msra.mxu0 0.0
        %6340 = vmatprep.subr.mxu0 0.0
        %6341 = vmatpush1.msra.mxu0 0.0
        %6342 = vmatprep.subr.mxu0 0.0
        %6343 = vmatpush1.msra.mxu0 0.0
        %6344 = vmatprep.subr.mxu0 0.0
        %6345 = vmatpush1.msra.mxu0 0.0
        %6346 = vmatprep.subr.mxu0 0.0
        %6347 = vmatpush1.msra.mxu0 0.0
        %6348 = vmatprep.subr.mxu0 0.0
        %6349 = vmatpush1.msra.mxu0 0.0
        %6350 = vmatprep.subr.mxu0 0.0
        %6351 = vmatpush1.msra.mxu0 0.0
        %6352 = vmatprep.subr.mxu0 0.0
        %6353 = vmatpush1.msra.mxu0 0.0
        %6354 = vmatprep.subr.mxu0 0.0
        %6355 = vmatpush1.msra.mxu0 0.0
        %6356 = vmatprep.subr.mxu0 0.0
        %6357 = vmatpush1.msra.mxu0 0.0
        %6358 = vmatprep.subr.mxu0 0.0
        %6359 = vmatpush1.msra.mxu0 0.0
        %6360 = vmatprep.subr.mxu0 0.0
        %6361 = vmatpush1.msra.mxu0 0.0
        %6362 = vmatprep.subr.mxu0 0.0
        %6363 = vmatpush1.msra.mxu0 0.0
        %6364 = vmatprep.subr.mxu0 0.0
        %6365 = vmatpush1.msra.mxu0 0.0
        %6366 = vmatprep.subr.mxu0 0.0
        %6367 = vmatpush1.msra.mxu0 0.0
        %6368 = vmatprep.subr.mxu0 0.0
        %6369 = vmatpush1.msra.mxu0 0.0
        %6370 = vmatprep.subr.mxu0 0.0
        %6371 = vmatpush1.msra.mxu0 0.0
        %6372 = vmatprep.subr.mxu0 0.0
        %6373 = vmatpush1.msra.mxu0 0.0
        %6374 = vmatprep.subr.mxu0 0.0
        %6375 = vmatpush1.msra.mxu0 0.0
        %6376 = vmatprep.subr.mxu0 0.0
        %6377 = vmatpush1.msra.mxu0 0.0
        %6378 = vmatprep.subr.mxu0 0.0
        %6379 = vmatpush1.msra.mxu0 0.0
        %6380 = vmatprep.subr.mxu0 0.0
        %6381 = vmatpush1.msra.mxu0 0.0
        %6382 = vmatprep.subr.mxu0 0.0
        %6383 = vmatpush1.msra.mxu0 0.0
        %6384 = vmatprep.subr.mxu0 0.0
        %6385 = vmatpush1.msra.mxu0 0.0
        %6386 = vmatprep.subr.mxu0 0.0
        %6387 = vmatpush1.msra.mxu0 0.0
        %6388 = vmatprep.subr.mxu0 0.0
        %6389 = vmatpush1.msra.mxu0 0.0
        %6390 = vmatprep.subr.mxu0 0.0
        %6391 = vmatpush1.msra.mxu0 0.0
        %6392 = vmatprep.subr.mxu0 0.0
        %6393 = vmatpush1.msra.mxu0 0.0
        %6394 = vmatprep.subr.mxu0 0.0
        %6395 = vmatpush1.msra.mxu0 0.0
        %6396 = vmatprep.mubr.f32.mxu0 0.0
        %6397 = vmatmul.mubr.f32.gmra.mrb[0].mxu0 %v6330
        %v6398 = vpop.f32.mrb[0].mxu0
        %v6399 = vadd.f32 0.0, %v6398
        %v6400 = vpop.f32.mrb[0].mxu0
        %6401 = vdwg.mxu0
        %v6403 = vsel %vm901, %v6323, 0
        %v6406 = vsel %vm901, %v6399, 0
        %6408 = vmatprep.subr.mxu0 0.0
        %6409 = vmatpush1.msra.mxu0 %v5123
        %6410 = vmatprep.subr.mxu0 0.0
        %6411 = vmatpush1.msra.mxu0 0.0
        %6412 = vmatprep.subr.mxu0 0.0
        %6413 = vmatpush1.msra.mxu0 0.0
        %6414 = vmatprep.subr.mxu0 0.0
        %6415 = vmatpush1.msra.mxu0 0.0
        %6416 = vmatprep.subr.mxu0 0.0
        %6417 = vmatpush1.msra.mxu0 0.0
        %6418 = vmatprep.subr.mxu0 0.0
        %6419 = vmatpush1.msra.mxu0 0.0
        %6420 = vmatprep.subr.mxu0 0.0
        %6421 = vmatpush1.msra.mxu0 0.0
        %6422 = vmatprep.subr.mxu0 0.0
        %6423 = vmatpush1.msra.mxu0 0.0
        %6424 = vmatprep.subr.mxu0 0.0
        %6425 = vmatpush1.msra.mxu0 0.0
        %6426 = vmatprep.subr.mxu0 0.0
        %6427 = vmatpush1.msra.mxu0 0.0
        %6428 = vmatprep.subr.mxu0 0.0
        %6429 = vmatpush1.msra.mxu0 0.0
        %6430 = vmatprep.subr.mxu0 0.0
        %6431 = vmatpush1.msra.mxu0 0.0
        %6432 = vmatprep.subr.mxu0 0.0
        %6433 = vmatpush1.msra.mxu0 0.0
        %6434 = vmatprep.subr.mxu0 0.0
        %6435 = vmatpush1.msra.mxu0 0.0
        %6436 = vmatprep.subr.mxu0 0.0
        %6437 = vmatpush1.msra.mxu0 0.0
        %6438 = vmatprep.subr.mxu0 0.0
        %6439 = vmatpush1.msra.mxu0 0.0
        %6440 = vmatprep.subr.mxu0 0.0
        %6441 = vmatpush1.msra.mxu0 0.0
        %6442 = vmatprep.subr.mxu0 0.0
        %6443 = vmatpush1.msra.mxu0 0.0
        %6444 = vmatprep.subr.mxu0 0.0
        %6445 = vmatpush1.msra.mxu0 0.0
        %6446 = vmatprep.subr.mxu0 0.0
        %6447 = vmatpush1.msra.mxu0 0.0
        %6448 = vmatprep.subr.mxu0 0.0
        %6449 = vmatpush1.msra.mxu0 0.0
        %6450 = vmatprep.subr.mxu0 0.0
        %6451 = vmatpush1.msra.mxu0 0.0
        %6452 = vmatprep.subr.mxu0 0.0
        %6453 = vmatpush1.msra.mxu0 0.0
        %6454 = vmatprep.subr.mxu0 0.0
        %6455 = vmatpush1.msra.mxu0 0.0
        %6456 = vmatprep.subr.mxu0 0.0
        %6457 = vmatpush1.msra.mxu0 0.0
        %6458 = vmatprep.subr.mxu0 0.0
        %6459 = vmatpush1.msra.mxu0 0.0
        %6460 = vmatprep.subr.mxu0 0.0
        %6461 = vmatpush1.msra.mxu0 0.0
        %6462 = vmatprep.subr.mxu0 0.0
        %6463 = vmatpush1.msra.mxu0 0.0
        %6464 = vmatprep.subr.mxu0 0.0
        %6465 = vmatpush1.msra.mxu0 0.0
        %6466 = vmatprep.subr.mxu0 0.0
        %6467 = vmatpush1.msra.mxu0 0.0
        %6468 = vmatprep.subr.mxu0 0.0
        %6469 = vmatpush1.msra.mxu0 0.0
        %6470 = vmatprep.subr.mxu0 0.0
        %6471 = vmatpush1.msra.mxu0 0.0
        %6472 = vmatprep.mubr.f32.mxu0 0.0
        %6473 = vmatmul.mubr.f32.gmra.mrb[0].mxu0 %v6403
        %v6474 = vpop.f32.mrb[0].mxu0
        %v6475 = vadd.f32 0.0, %v6474
        %v6476 = vpop.f32.mrb[0].mxu0
        %6477 = vmatprep.mubr.f32.mxu0 0.0
        %6478 = vmatmul.mubr.f32.gmra.mrb[0].mxu0 %v6406
        %v6479 = vpop.f32.mrb[0].mxu0
        %v6480 = vadd.f32 0.0, %v6479
        %v6481 = vpop.f32.mrb[0].mxu0
        %6482 = vdwg.mxu0
        %v6483 = vadd.f32 %v6060, %v6475
        %v6484 = vadd.f32 %v6065, %v6480
        %6485 = vrot.lane.b32.xlu0 %v5232, 104
        %v6486 = vpop.permute.xlu0 %6485
        %6487 = vrot.lane.b32.xlu0 %v5232, 72
        %v6488 = vpop.permute.xlu0 %6487
        %v6489 = vsel %vm901, %v6486, 0
        %v6491 = vsel %vm901, %v6488, 0
        %6493 = vmatprep.subr.mxu0 0.0
        %6494 = vmatpush1.xpose.msra.mxu0 %v6491
        %6495 = vmatprep.subr.mxu0 0.0
        %6496 = vmatpush1.xpose.msra.mxu0 0.0
        %6497 = vmatprep.subr.mxu0 0.0
        %6498 = vmatpush1.xpose.msra.mxu0 0.0
        %6499 = vmatprep.subr.mxu0 0.0
        %6500 = vmatpush1.xpose.msra.mxu0 0.0
        %6501 = vmatprep.subr.mxu0 0.0
        %6502 = vmatpush1.xpose.msra.mxu0 0.0
        %6503 = vmatprep.subr.mxu0 0.0
        %6504 = vmatpush1.xpose.msra.mxu0 0.0
        %6505 = vmatprep.subr.mxu0 0.0
        %6506 = vmatpush1.xpose.msra.mxu0 0.0
        %6507 = vmatprep.subr.mxu0 0.0
        %6508 = vmatpush1.xpose.msra.mxu0 0.0
        %6509 = vmatprep.subr.mxu0 0.0
        %6510 = vmatpush1.xpose.msra.mxu0 0.0
        %6511 = vmatprep.subr.mxu0 0.0
        %6512 = vmatpush1.xpose.msra.mxu0 0.0
        %6513 = vmatprep.subr.mxu0 0.0
        %6514 = vmatpush1.xpose.msra.mxu0 0.0
        %6515 = vmatprep.subr.mxu0 0.0
        %6516 = vmatpush1.xpose.msra.mxu0 0.0
        %6517 = vmatprep.subr.mxu0 0.0
        %6518 = vmatpush1.xpose.msra.mxu0 0.0
        %6519 = vmatprep.subr.mxu0 0.0
        %6520 = vmatpush1.xpose.msra.mxu0 0.0
        %6521 = vmatprep.subr.mxu0 0.0
        %6522 = vmatpush1.xpose.msra.mxu0 0.0
        %6523 = vmatprep.subr.mxu0 0.0
        %6524 = vmatpush1.xpose.msra.mxu0 0.0
        %6525 = vmatprep.subr.mxu0 0.0
        %6526 = vmatpush1.xpose.msra.mxu0 0.0
        %6527 = vmatprep.subr.mxu0 0.0
        %6528 = vmatpush1.xpose.msra.mxu0 0.0
        %6529 = vmatprep.subr.mxu0 0.0
        %6530 = vmatpush1.xpose.msra.mxu0 0.0
        %6531 = vmatprep.subr.mxu0 0.0
        %6532 = vmatpush1.xpose.msra.mxu0 0.0
        %6533 = vmatprep.subr.mxu0 0.0
        %6534 = vmatpush1.xpose.msra.mxu0 0.0
        %6535 = vmatprep.subr.mxu0 0.0
        %6536 = vmatpush1.xpose.msra.mxu0 0.0
        %6537 = vmatprep.subr.mxu0 0.0
        %6538 = vmatpush1.xpose.msra.mxu0 0.0
        %6539 = vmatprep.subr.mxu0 0.0
        %6540 = vmatpush1.xpose.msra.mxu0 0.0
        %6541 = vmatprep.subr.mxu0 0.0
        %6542 = vmatpush1.xpose.msra.mxu0 0.0
        %6543 = vmatprep.subr.mxu0 0.0
        %6544 = vmatpush1.xpose.msra.mxu0 0.0
        %6545 = vmatprep.subr.mxu0 0.0
        %6546 = vmatpush1.xpose.msra.mxu0 0.0
        %6547 = vmatprep.subr.mxu0 0.0
        %6548 = vmatpush1.xpose.msra.mxu0 0.0
        %6549 = vmatprep.subr.mxu0 0.0
        %6550 = vmatpush1.xpose.msra.mxu0 0.0
        %6551 = vmatprep.subr.mxu0 0.0
        %6552 = vmatpush1.xpose.msra.mxu0 0.0
        %6553 = vmatprep.subr.mxu0 0.0
        %6554 = vmatpush1.xpose.msra.mxu0 0.0
        %6555 = vmatprep.subr.mxu0 0.0
        %6556 = vmatpush1.xpose.msra.mxu0 0.0
        %6557 = vmatprep.mubr.f32.mxu0 0.0
        %6558 = vmatmul.mubr.f32.gmra.mrb[0].mxu0 %v6489
        %v6559 = vpop.f32.mrb[0].mxu0
        %v6560 = vadd.f32 0.0, %v6559
        %v6561 = vpop.f32.mrb[0].mxu0
        %6562 = vdwg.mxu0
        %6563 = vrot.lane.b32.xlu0 %v5237, 104
        %v6564 = vpop.permute.xlu0 %6563
        %6565 = vrot.lane.b32.xlu0 %v5237, 72
        %v6566 = vpop.permute.xlu0 %6565
        %v6567 = vsel %vm901, %v6564, 0
        %v6569 = vsel %vm901, %v6566, 0
        %6571 = vmatprep.subr.mxu0 0.0
        %6572 = vmatpush1.xpose.msra.mxu0 %v6569
        %6573 = vmatprep.subr.mxu0 0.0
        %6574 = vmatpush1.xpose.msra.mxu0 0.0
        %6575 = vmatprep.subr.mxu0 0.0
        %6576 = vmatpush1.xpose.msra.mxu0 0.0
        %6577 = vmatprep.subr.mxu0 0.0
        %6578 = vmatpush1.xpose.msra.mxu0 0.0
        %6579 = vmatprep.subr.mxu0 0.0
        %6580 = vmatpush1.xpose.msra.mxu0 0.0
        %6581 = vmatprep.subr.mxu0 0.0
        %6582 = vmatpush1.xpose.msra.mxu0 0.0
        %6583 = vmatprep.subr.mxu0 0.0
        %6584 = vmatpush1.xpose.msra.mxu0 0.0
        %6585 = vmatprep.subr.mxu0 0.0
        %6586 = vmatpush1.xpose.msra.mxu0 0.0
        %6587 = vmatprep.subr.mxu0 0.0
        %6588 = vmatpush1.xpose.msra.mxu0 0.0
        %6589 = vmatprep.subr.mxu0 0.0
        %6590 = vmatpush1.xpose.msra.mxu0 0.0
        %6591 = vmatprep.subr.mxu0 0.0
        %6592 = vmatpush1.xpose.msra.mxu0 0.0
        %6593 = vmatprep.subr.mxu0 0.0
        %6594 = vmatpush1.xpose.msra.mxu0 0.0
        %6595 = vmatprep.subr.mxu0 0.0
        %6596 = vmatpush1.xpose.msra.mxu0 0.0
        %6597 = vmatprep.subr.mxu0 0.0
        %6598 = vmatpush1.xpose.msra.mxu0 0.0
        %6599 = vmatprep.subr.mxu0 0.0
        %6600 = vmatpush1.xpose.msra.mxu0 0.0
        %6601 = vmatprep.subr.mxu0 0.0
        %6602 = vmatpush1.xpose.msra.mxu0 0.0
        %6603 = vmatprep.subr.mxu0 0.0
        %6604 = vmatpush1.xpose.msra.mxu0 0.0
        %6605 = vmatprep.subr.mxu0 0.0
        %6606 = vmatpush1.xpose.msra.mxu0 0.0
        %6607 = vmatprep.subr.mxu0 0.0
        %6608 = vmatpush1.xpose.msra.mxu0 0.0
        %6609 = vmatprep.subr.mxu0 0.0
        %6610 = vmatpush1.xpose.msra.mxu0 0.0
        %6611 = vmatprep.subr.mxu0 0.0
        %6612 = vmatpush1.xpose.msra.mxu0 0.0
        %6613 = vmatprep.subr.mxu0 0.0
        %6614 = vmatpush1.xpose.msra.mxu0 0.0
        %6615 = vmatprep.subr.mxu0 0.0
        %6616 = vmatpush1.xpose.msra.mxu0 0.0
        %6617 = vmatprep.subr.mxu0 0.0
        %6618 = vmatpush1.xpose.msra.mxu0 0.0
        %6619 = vmatprep.subr.mxu0 0.0
        %6620 = vmatpush1.xpose.msra.mxu0 0.0
        %6621 = vmatprep.subr.mxu0 0.0
        %6622 = vmatpush1.xpose.msra.mxu0 0.0
        %6623 = vmatprep.subr.mxu0 0.0
        %6624 = vmatpush1.xpose.msra.mxu0 0.0
        %6625 = vmatprep.subr.mxu0 0.0
        %6626 = vmatpush1.xpose.msra.mxu0 0.0
        %6627 = vmatprep.subr.mxu0 0.0
        %6628 = vmatpush1.xpose.msra.mxu0 0.0
        %6629 = vmatprep.subr.mxu0 0.0
        %6630 = vmatpush1.xpose.msra.mxu0 0.0
        %6631 = vmatprep.subr.mxu0 0.0
        %6632 = vmatpush1.xpose.msra.mxu0 0.0
        %6633 = vmatprep.subr.mxu0 0.0
        %6634 = vmatpush1.xpose.msra.mxu0 0.0
        %6635 = vmatprep.mubr.f32.mxu0 0.0
        %6636 = vmatmul.mubr.f32.gmra.mrb[0].mxu0 %v6567
        %v6637 = vpop.f32.mrb[0].mxu0
        %v6638 = vadd.f32 0.0, %v6637
        %v6639 = vpop.f32.mrb[0].mxu0
        %6640 = vdwg.mxu0
        %v6641 = vmul.f32 %v6560, 0.35355338
        %v6642 = vmul.f32 %v6638, 0.35355338
        %v6643 = vadd.f32 %v6641, %v1265
        %v6644 = vadd.f32 %v6642, %v1269
        %v6645 = vsel %vm901, %v6643, -inf
        %6646 = vmax.xlane.f32.xlu0 %v6645
        %v6647 = vpop.xlane.xlu0 %6646
        %v6648 = vsel %vm901, %v6644, -inf
        %6649 = vmax.xlane.f32.xlu0 %v6648
        %v6650 = vpop.xlane.xlu0 %6649
        %v6651 = vsub.f32 %v6643, %v6647
        %v6652 = vsub.f32 %v6644, %v6650
        %v6653 = vmul.f32 %v6651, 1.442695
        %v6654 = vpow.pop %v6653
        %v6655 = vmul.f32 %v6652, 1.442695
        %v6656 = vpow.pop %v6655
        %v6657 = vsel %vm901, %v6654, 0.0
        %6658 = vadd.xlane.f32.xlu0 %v6657
        %v6659 = vpop.xlane.xlu0 %6658
        %v6660 = vsel %vm901, %v6656, 0.0
        %6661 = vadd.xlane.f32.xlu0 %v6660
        %v6662 = vpop.xlane.xlu0 %6661
        %v6663 = vrcp.pop %v6659
        %v6664 = vrcp.pop %v6662
        %v6665 = vmul.f32 %v6654, %v6663
        %v6666 = vmul.f32 %v6656, %v6664
        %6667 = vrot.lane.b32.xlu0 %v5232, 40
        %v6668 = vpop.permute.xlu0 %6667
        %v6671 = vsel %vm901, %v6665, 0
        %6673 = vmatprep.subr.mxu0 0.0
        %6674 = vmatpush1.msra.mxu0 %v6668
        %6675 = vmatprep.subr.mxu0 0.0
        %6676 = vmatpush1.msra.mxu0 0.0
        %6677 = vmatprep.subr.mxu0 0.0
        %6678 = vmatpush1.msra.mxu0 0.0
        %6679 = vmatprep.subr.mxu0 0.0
        %6680 = vmatpush1.msra.mxu0 0.0
        %6681 = vmatprep.subr.mxu0 0.0
        %6682 = vmatpush1.msra.mxu0 0.0
        %6683 = vmatprep.subr.mxu0 0.0
        %6684 = vmatpush1.msra.mxu0 0.0
        %6685 = vmatprep.subr.mxu0 0.0
        %6686 = vmatpush1.msra.mxu0 0.0
        %6687 = vmatprep.subr.mxu0 0.0
        %6688 = vmatpush1.msra.mxu0 0.0
        %6689 = vmatprep.subr.mxu0 0.0
        %6690 = vmatpush1.msra.mxu0 0.0
        %6691 = vmatprep.subr.mxu0 0.0
        %6692 = vmatpush1.msra.mxu0 0.0
        %6693 = vmatprep.subr.mxu0 0.0
        %6694 = vmatpush1.msra.mxu0 0.0
        %6695 = vmatprep.subr.mxu0 0.0
        %6696 = vmatpush1.msra.mxu0 0.0
        %6697 = vmatprep.subr.mxu0 0.0
        %6698 = vmatpush1.msra.mxu0 0.0
        %6699 = vmatprep.subr.mxu0 0.0
        %6700 = vmatpush1.msra.mxu0 0.0
        %6701 = vmatprep.subr.mxu0 0.0
        %6702 = vmatpush1.msra.mxu0 0.0
        %6703 = vmatprep.subr.mxu0 0.0
        %6704 = vmatpush1.msra.mxu0 0.0
        %6705 = vmatprep.subr.mxu0 0.0
        %6706 = vmatpush1.msra.mxu0 0.0
        %6707 = vmatprep.subr.mxu0 0.0
        %6708 = vmatpush1.msra.mxu0 0.0
        %6709 = vmatprep.subr.mxu0 0.0
        %6710 = vmatpush1.msra.mxu0 0.0
        %6711 = vmatprep.subr.mxu0 0.0
        %6712 = vmatpush1.msra.mxu0 0.0
        %6713 = vmatprep.subr.mxu0 0.0
        %6714 = vmatpush1.msra.mxu0 0.0
        %6715 = vmatprep.subr.mxu0 0.0
        %6716 = vmatpush1.msra.mxu0 0.0
        %6717 = vmatprep.subr.mxu0 0.0
        %6718 = vmatpush1.msra.mxu0 0.0
        %6719 = vmatprep.subr.mxu0 0.0
        %6720 = vmatpush1.msra.mxu0 0.0
        %6721 = vmatprep.subr.mxu0 0.0
        %6722 = vmatpush1.msra.mxu0 0.0
        %6723 = vmatprep.subr.mxu0 0.0
        %6724 = vmatpush1.msra.mxu0 0.0
        %6725 = vmatprep.subr.mxu0 0.0
        %6726 = vmatpush1.msra.mxu0 0.0
        %6727 = vmatprep.subr.mxu0 0.0
        %6728 = vmatpush1.msra.mxu0 0.0
        %6729 = vmatprep.subr.mxu0 0.0
        %6730 = vmatpush1.msra.mxu0 0.0
        %6731 = vmatprep.subr.mxu0 0.0
        %6732 = vmatpush1.msra.mxu0 0.0
        %6733 = vmatprep.subr.mxu0 0.0
        %6734 = vmatpush1.msra.mxu0 0.0
        %6735 = vmatprep.subr.mxu0 0.0
        %6736 = vmatpush1.msra.mxu0 0.0
        %6737 = vmatprep.mubr.f32.mxu0 0.0
        %6738 = vmatmul.mubr.f32.gmra.mrb[0].mxu0 %v6671
        %v6739 = vpop.f32.mrb[0].mxu0
        %v6740 = vadd.f32 0.0, %v6739
        %v6741 = vpop.f32.mrb[0].mxu0
        %6742 = vdwg.mxu0
        %6743 = vrot.lane.b32.xlu0 %v5237, 40
        %v6744 = vpop.permute.xlu0 %6743
        %v6747 = vsel %vm901, %v6666, 0
        %6749 = vmatprep.subr.mxu0 0.0
        %6750 = vmatpush1.msra.mxu0 %v6744
        %6751 = vmatprep.subr.mxu0 0.0
        %6752 = vmatpush1.msra.mxu0 0.0
        %6753 = vmatprep.subr.mxu0 0.0
        %6754 = vmatpush1.msra.mxu0 0.0
        %6755 = vmatprep.subr.mxu0 0.0
        %6756 = vmatpush1.msra.mxu0 0.0
        %6757 = vmatprep.subr.mxu0 0.0
        %6758 = vmatpush1.msra.mxu0 0.0
        %6759 = vmatprep.subr.mxu0 0.0
        %6760 = vmatpush1.msra.mxu0 0.0
        %6761 = vmatprep.subr.mxu0 0.0
        %6762 = vmatpush1.msra.mxu0 0.0
        %6763 = vmatprep.subr.mxu0 0.0
        %6764 = vmatpush1.msra.mxu0 0.0
        %6765 = vmatprep.subr.mxu0 0.0
        %6766 = vmatpush1.msra.mxu0 0.0
        %6767 = vmatprep.subr.mxu0 0.0
        %6768 = vmatpush1.msra.mxu0 0.0
        %6769 = vmatprep.subr.mxu0 0.0
        %6770 = vmatpush1.msra.mxu0 0.0
        %6771 = vmatprep.subr.mxu0 0.0
        %6772 = vmatpush1.msra.mxu0 0.0
        %6773 = vmatprep.subr.mxu0 0.0
        %6774 = vmatpush1.msra.mxu0 0.0
        %6775 = vmatprep.subr.mxu0 0.0
        %6776 = vmatpush1.msra.mxu0 0.0
        %6777 = vmatprep.subr.mxu0 0.0
        %6778 = vmatpush1.msra.mxu0 0.0
        %6779 = vmatprep.subr.mxu0 0.0
        %6780 = vmatpush1.msra.mxu0 0.0
        %6781 = vmatprep.subr.mxu0 0.0
        %6782 = vmatpush1.msra.mxu0 0.0
        %6783 = vmatprep.subr.mxu0 0.0
        %6784 = vmatpush1.msra.mxu0 0.0
        %6785 = vmatprep.subr.mxu0 0.0
        %6786 = vmatpush1.msra.mxu0 0.0
        %6787 = vmatprep.subr.mxu0 0.0
        %6788 = vmatpush1.msra.mxu0 0.0
        %6789 = vmatprep.subr.mxu0 0.0
        %6790 = vmatpush1.msra.mxu0 0.0
        %6791 = vmatprep.subr.mxu0 0.0
        %6792 = vmatpush1.msra.mxu0 0.0
        %6793 = vmatprep.subr.mxu0 0.0
        %6794 = vmatpush1.msra.mxu0 0.0
        %6795 = vmatprep.subr.mxu0 0.0
        %6796 = vmatpush1.msra.mxu0 0.0
        %6797 = vmatprep.subr.mxu0 0.0
        %6798 = vmatpush1.msra.mxu0 0.0
        %6799 = vmatprep.subr.mxu0 0.0
        %6800 = vmatpush1.msra.mxu0 0.0
        %6801 = vmatprep.subr.mxu0 0.0
        %6802 = vmatpush1.msra.mxu0 0.0
        %6803 = vmatprep.subr.mxu0 0.0
        %6804 = vmatpush1.msra.mxu0 0.0
        %6805 = vmatprep.subr.mxu0 0.0
        %6806 = vmatpush1.msra.mxu0 0.0
        %6807 = vmatprep.subr.mxu0 0.0
        %6808 = vmatpush1.msra.mxu0 0.0
        %6809 = vmatprep.subr.mxu0 0.0
        %6810 = vmatpush1.msra.mxu0 0.0
        %6811 = vmatprep.subr.mxu0 0.0
        %6812 = vmatpush1.msra.mxu0 0.0
        %6813 = vmatprep.mubr.f32.mxu0 0.0
        %6814 = vmatmul.mubr.f32.gmra.mrb[0].mxu0 %v6747
        %v6815 = vpop.f32.mrb[0].mxu0
        %v6816 = vadd.f32 0.0, %v6815
        %v6817 = vpop.f32.mrb[0].mxu0
        %6818 = vdwg.mxu0
        %v6820 = vsel %vm901, %v6740, 0
        %v6823 = vsel %vm901, %v6816, 0
        %6825 = vmatprep.subr.mxu0 0.0
        %6826 = vmatpush1.msra.mxu0 %v5124
        %6827 = vmatprep.subr.mxu0 0.0
        %6828 = vmatpush1.msra.mxu0 0.0
        %6829 = vmatprep.subr.mxu0 0.0
        %6830 = vmatpush1.msra.mxu0 0.0
        %6831 = vmatprep.subr.mxu0 0.0
        %6832 = vmatpush1.msra.mxu0 0.0
        %6833 = vmatprep.subr.mxu0 0.0
        %6834 = vmatpush1.msra.mxu0 0.0
        %6835 = vmatprep.subr.mxu0 0.0
        %6836 = vmatpush1.msra.mxu0 0.0
        %6837 = vmatprep.subr.mxu0 0.0
        %6838 = vmatpush1.msra.mxu0 0.0
        %6839 = vmatprep.subr.mxu0 0.0
        %6840 = vmatpush1.msra.mxu0 0.0
        %6841 = vmatprep.subr.mxu0 0.0
        %6842 = vmatpush1.msra.mxu0 0.0
        %6843 = vmatprep.subr.mxu0 0.0
        %6844 = vmatpush1.msra.mxu0 0.0
        %6845 = vmatprep.subr.mxu0 0.0
        %6846 = vmatpush1.msra.mxu0 0.0
        %6847 = vmatprep.subr.mxu0 0.0
        %6848 = vmatpush1.msra.mxu0 0.0
        %6849 = vmatprep.subr.mxu0 0.0
        %6850 = vmatpush1.msra.mxu0 0.0
        %6851 = vmatprep.subr.mxu0 0.0
        %6852 = vmatpush1.msra.mxu0 0.0
        %6853 = vmatprep.subr.mxu0 0.0
        %6854 = vmatpush1.msra.mxu0 0.0
        %6855 = vmatprep.subr.mxu0 0.0
        %6856 = vmatpush1.msra.mxu0 0.0
        %6857 = vmatprep.subr.mxu0 0.0
        %6858 = vmatpush1.msra.mxu0 0.0
        %6859 = vmatprep.subr.mxu0 0.0
        %6860 = vmatpush1.msra.mxu0 0.0
        %6861 = vmatprep.subr.mxu0 0.0
        %6862 = vmatpush1.msra.mxu0 0.0
        %6863 = vmatprep.subr.mxu0 0.0
        %6864 = vmatpush1.msra.mxu0 0.0
        %6865 = vmatprep.subr.mxu0 0.0
        %6866 = vmatpush1.msra.mxu0 0.0
        %6867 = vmatprep.subr.mxu0 0.0
        %6868 = vmatpush1.msra.mxu0 0.0
        %6869 = vmatprep.subr.mxu0 0.0
        %6870 = vmatpush1.msra.mxu0 0.0
        %6871 = vmatprep.subr.mxu0 0.0
        %6872 = vmatpush1.msra.mxu0 0.0
        %6873 = vmatprep.subr.mxu0 0.0
        %6874 = vmatpush1.msra.mxu0 0.0
        %6875 = vmatprep.subr.mxu0 0.0
        %6876 = vmatpush1.msra.mxu0 0.0
        %6877 = vmatprep.subr.mxu0 0.0
        %6878 = vmatpush1.msra.mxu0 0.0
        %6879 = vmatprep.subr.mxu0 0.0
        %6880 = vmatpush1.msra.mxu0 0.0
        %6881 = vmatprep.subr.mxu0 0.0
        %6882 = vmatpush1.msra.mxu0 0.0
        %6883 = vmatprep.subr.mxu0 0.0
        %6884 = vmatpush1.msra.mxu0 0.0
        %6885 = vmatprep.subr.mxu0 0.0
        %6886 = vmatpush1.msra.mxu0 0.0
        %6887 = vmatprep.subr.mxu0 0.0
        %6888 = vmatpush1.msra.mxu0 0.0
        %6889 = vmatprep.mubr.f32.mxu0 0.0
        %6890 = vmatmul.mubr.f32.gmra.mrb[0].mxu0 %v6820
        %v6891 = vpop.f32.mrb[0].mxu0
        %v6892 = vadd.f32 0.0, %v6891
        %v6893 = vpop.f32.mrb[0].mxu0
        %6894 = vmatprep.mubr.f32.mxu0 0.0
        %6895 = vmatmul.mubr.f32.gmra.mrb[0].mxu0 %v6823
        %v6896 = vpop.f32.mrb[0].mxu0
        %v6897 = vadd.f32 0.0, %v6896
        %v6898 = vpop.f32.mrb[0].mxu0
        %6899 = vdwg.mxu0
        %v6900 = vadd.f32 %v6483, %v6892
        %v6901 = vadd.f32 %v6484, %v6897
        %v6903 = vlaneseq
        %v6904 = vshrl.u32 %v6903, 7
        %v6905 = vsub.s32 0, %v6904
        %v6906 = vrot.slane %v5126, %v6905
        %v6908 = vadd.f32 %v6900, %v6906
        %v6909 = vadd.f32 %v6901, %v6906
        %v6910 = vadd.f32 %v5111, %v6908
        %v6911 = vadd.f32 %v5112, %v6909
        %v6912 = vsel %vm1022, %v6910, 0.0
        %6913 = vadd.xlane.f32.xlu0 %v6912
        %v6914 = vpop.xlane.xlu0 %6913
        %v6915 = vsel %vm1022, %v6911, 0.0
        %6916 = vadd.xlane.f32.xlu0 %v6915
        %v6917 = vpop.xlane.xlu0 %6916
        %v6918 = vmul.f32 %v6914, %v2794
        %v6919 = vmul.f32 %v6917, %v2794
        %v6920 = vsub.f32 %v6910, %v6918
        %v6921 = vsub.f32 %v6911, %v6919
        %v6922 = vmul.f32 %v6920, %v6920
        %v6923 = vmul.f32 %v6921, %v6921
        %v6924 = vsel %vm1022, %v6922, 0.0
        %6925 = vadd.xlane.f32.xlu0 %v6924
        %v6926 = vpop.xlane.xlu0 %6925
        %v6927 = vsel %vm1022, %v6923, 0.0
        %6928 = vadd.xlane.f32.xlu0 %v6927
        %v6929 = vpop.xlane.xlu0 %6928
        %v6930 = vmul.f32 %v6926, %v2794
        %v6931 = vmul.f32 %v6929, %v2794
        %v6932 = vadd.f32 %v6930, 1e-05
        %v6933 = vadd.f32 %v6931, 1e-05
        %v6934 = vrsqrt.pop %v6932
        %v6935 = vrsqrt.pop %v6933
        %v6936 = vmul.f32 %v6920, %v6934
        %v6937 = vmul.f32 %v6921, %v6935
        %v6939 = vlaneseq
        %v6940 = vshrl.u32 %v6939, 7
        %v6941 = vsub.s32 0, %v6940
        %v6942 = vrot.slane %v5128, %v6941
        %v6944 = vmul.f32 %v6936, %v6942
        %v6945 = vmul.f32 %v6937, %v6942
        %v6947 = vlaneseq
        %v6948 = vshrl.u32 %v6947, 7
        %v6949 = vsub.s32 0, %v6948
        %v6950 = vrot.slane %v5130, %v6949
        %v6952 = vadd.f32 %v6944, %v6950
        %v6953 = vadd.f32 %v6945, %v6950
        %v6955 = vlaneseq
        %v6956 = vshrl.u32 %v6955, 7
        %v6957 = vsub.s32 0, %v6956
        %v6958 = vrot.slane %v5137, %v6957
        %v6961 = vsel %vm1022, %v6952, 0
        %v6964 = vsel %vm1022, %v6953, 0
        %6966 = vmatprep.subr.mxu0 0.0
        %6967 = vmatpush1.msra.mxu0 %v5132
        %6968 = vmatprep.subr.mxu0 0.0
        %6969 = vmatpush1.msra.mxu0 %v5133
        %6970 = vmatprep.subr.mxu0 0.0
        %6971 = vmatpush1.msra.mxu0 %v5134
        %6972 = vmatprep.subr.mxu0 0.0
        %6973 = vmatpush1.msra.mxu0 %v5135
        %6974 = vmatprep.subr.mxu0 0.0
        %6975 = vmatpush1.msra.mxu0 0.0
        %6976 = vmatprep.subr.mxu0 0.0
        %6977 = vmatpush1.msra.mxu0 0.0
        %6978 = vmatprep.subr.mxu0 0.0
        %6979 = vmatpush1.msra.mxu0 0.0
        %6980 = vmatprep.subr.mxu0 0.0
        %6981 = vmatpush1.msra.mxu0 0.0
        %6982 = vmatprep.subr.mxu0 0.0
        %6983 = vmatpush1.msra.mxu0 0.0
        %6984 = vmatprep.subr.mxu0 0.0
        %6985 = vmatpush1.msra.mxu0 0.0
        %6986 = vmatprep.subr.mxu0 0.0
        %6987 = vmatpush1.msra.mxu0 0.0
        %6988 = vmatprep.subr.mxu0 0.0
        %6989 = vmatpush1.msra.mxu0 0.0
        %6990 = vmatprep.subr.mxu0 0.0
        %6991 = vmatpush1.msra.mxu0 0.0
        %6992 = vmatprep.subr.mxu0 0.0
        %6993 = vmatpush1.msra.mxu0 0.0
        %6994 = vmatprep.subr.mxu0 0.0
        %6995 = vmatpush1.msra.mxu0 0.0
        %6996 = vmatprep.subr.mxu0 0.0
        %6997 = vmatpush1.msra.mxu0 0.0
        %6998 = vmatprep.subr.mxu0 0.0
        %6999 = vmatpush1.msra.mxu0 0.0
        %7000 = vmatprep.subr.mxu0 0.0
        %7001 = vmatpush1.msra.mxu0 0.0
        %7002 = vmatprep.subr.mxu0 0.0
        %7003 = vmatpush1.msra.mxu0 0.0
        %7004 = vmatprep.subr.mxu0 0.0
        %7005 = vmatpush1.msra.mxu0 0.0
        %7006 = vmatprep.subr.mxu0 0.0
        %7007 = vmatpush1.msra.mxu0 0.0
        %7008 = vmatprep.subr.mxu0 0.0
        %7009 = vmatpush1.msra.mxu0 0.0
        %7010 = vmatprep.subr.mxu0 0.0
        %7011 = vmatpush1.msra.mxu0 0.0
        %7012 = vmatprep.subr.mxu0 0.0
        %7013 = vmatpush1.msra.mxu0 0.0
        %7014 = vmatprep.subr.mxu0 0.0
        %7015 = vmatpush1.msra.mxu0 0.0
        %7016 = vmatprep.subr.mxu0 0.0
        %7017 = vmatpush1.msra.mxu0 0.0
        %7018 = vmatprep.subr.mxu0 0.0
        %7019 = vmatpush1.msra.mxu0 0.0
        %7020 = vmatprep.subr.mxu0 0.0
        %7021 = vmatpush1.msra.mxu0 0.0
        %7022 = vmatprep.subr.mxu0 0.0
        %7023 = vmatpush1.msra.mxu0 0.0
        %7024 = vmatprep.subr.mxu0 0.0
        %7025 = vmatpush1.msra.mxu0 0.0
        %7026 = vmatprep.subr.mxu0 0.0
        %7027 = vmatpush1.msra.mxu0 0.0
        %7028 = vmatprep.subr.mxu0 0.0
        %7029 = vmatpush1.msra.mxu0 0.0
        %7030 = vmatprep.mubr.f32.mxu0 0.0
        %7031 = vmatmul.mubr.f32.gmra.mrb[0].mxu0 %v6961
        %v7032 = vpop.f32.mrb[0].mxu0
        %v7033 = vadd.f32 %v6958, %v7032
        %v7034 = vpop.f32.mrb[0].mxu0
        %7035 = vmatprep.mubr.f32.mxu0 0.0
        %7036 = vmatmul.mubr.f32.gmra.mrb[0].mxu0 %v6964
        %v7037 = vpop.f32.mrb[0].mxu0
        %v7038 = vadd.f32 %v6958, %v7037
        %v7039 = vpop.f32.mrb[0].mxu0
        %7040 = vdwg.mxu0
        %v7041 = vmax.f32 %v7033, 0.0
        %v7042 = vmax.f32 %v7038, 0.0
        %v7044 = vlaneseq
        %v7045 = vshrl.u32 %v7044, 7
        %v7046 = vsub.s32 0, %v7045
        %v7047 = vrot.slane %v5148, %v7046
        %v7050 = vsel %vm2926, %v7041, 0
        %v7053 = vsel %vm2926, %v7042, 0
        %7055 = vmatprep.subr.mxu0 0.0
        %7056 = vmatpush1.msra.mxu0 %v5139
        %7057 = vmatprep.subr.mxu0 0.0
        %7058 = vmatpush1.msra.mxu0 %v5140
        %7059 = vmatprep.subr.mxu0 0.0
        %7060 = vmatpush1.msra.mxu0 %v5141
        %7061 = vmatprep.subr.mxu0 0.0
        %7062 = vmatpush1.msra.mxu0 %v5142
        %7063 = vmatprep.subr.mxu0 0.0
        %7064 = vmatpush1.msra.mxu0 %v5143
        %7065 = vmatprep.subr.mxu0 0.0
        %7066 = vmatpush1.msra.mxu0 %v5144
        %7067 = vmatprep.subr.mxu0 0.0
        %7068 = vmatpush1.msra.mxu0 %v5145
        %7069 = vmatprep.subr.mxu0 0.0
        %7070 = vmatpush1.msra.mxu0 %v5146
        %7071 = vmatprep.subr.mxu0 0.0
        %7072 = vmatpush1.msra.mxu0 0.0
        %7073 = vmatprep.subr.mxu0 0.0
        %7074 = vmatpush1.msra.mxu0 0.0
        %7075 = vmatprep.subr.mxu0 0.0
        %7076 = vmatpush1.msra.mxu0 0.0
        %7077 = vmatprep.subr.mxu0 0.0
        %7078 = vmatpush1.msra.mxu0 0.0
        %7079 = vmatprep.subr.mxu0 0.0
        %7080 = vmatpush1.msra.mxu0 0.0
        %7081 = vmatprep.subr.mxu0 0.0
        %7082 = vmatpush1.msra.mxu0 0.0
        %7083 = vmatprep.subr.mxu0 0.0
        %7084 = vmatpush1.msra.mxu0 0.0
        %7085 = vmatprep.subr.mxu0 0.0
        %7086 = vmatpush1.msra.mxu0 0.0
        %7087 = vmatprep.subr.mxu0 0.0
        %7088 = vmatpush1.msra.mxu0 0.0
        %7089 = vmatprep.subr.mxu0 0.0
        %7090 = vmatpush1.msra.mxu0 0.0
        %7091 = vmatprep.subr.mxu0 0.0
        %7092 = vmatpush1.msra.mxu0 0.0
        %7093 = vmatprep.subr.mxu0 0.0
        %7094 = vmatpush1.msra.mxu0 0.0
        %7095 = vmatprep.subr.mxu0 0.0
        %7096 = vmatpush1.msra.mxu0 0.0
        %7097 = vmatprep.subr.mxu0 0.0
        %7098 = vmatpush1.msra.mxu0 0.0
        %7099 = vmatprep.subr.mxu0 0.0
        %7100 = vmatpush1.msra.mxu0 0.0
        %7101 = vmatprep.subr.mxu0 0.0
        %7102 = vmatpush1.msra.mxu0 0.0
        %7103 = vmatprep.subr.mxu0 0.0
        %7104 = vmatpush1.msra.mxu0 0.0
        %7105 = vmatprep.subr.mxu0 0.0
        %7106 = vmatpush1.msra.mxu0 0.0
        %7107 = vmatprep.subr.mxu0 0.0
        %7108 = vmatpush1.msra.mxu0 0.0
        %7109 = vmatprep.subr.mxu0 0.0
        %7110 = vmatpush1.msra.mxu0 0.0
        %7111 = vmatprep.subr.mxu0 0.0
        %7112 = vmatpush1.msra.mxu0 0.0
        %7113 = vmatprep.subr.mxu0 0.0
        %7114 = vmatpush1.msra.mxu0 0.0
        %7115 = vmatprep.subr.mxu0 0.0
        %7116 = vmatpush1.msra.mxu0 0.0
        %7117 = vmatprep.subr.mxu0 0.0
        %7118 = vmatpush1.msra.mxu0 0.0
        %7119 = vmatprep.mubr.f32.mxu0 0.0
        %7120 = vmatmul.mubr.f32.gmra.mrb[0].mxu0 %v7050
        %v7121 = vpop.f32.mrb[0].mxu0
        %v7122 = vadd.f32 %v7047, %v7121
        %v7123 = vpop.f32.mrb[0].mxu0
        %7124 = vmatprep.mubr.f32.mxu0 0.0
        %7125 = vmatmul.mubr.f32.gmra.mrb[0].mxu0 %v7053
        %v7126 = vpop.f32.mrb[0].mxu0
        %v7127 = vadd.f32 %v7047, %v7126
        %v7128 = vpop.f32.mrb[0].mxu0
        %7129 = vdwg.mxu0
        %v7130 = vadd.f32 %v6952, %v7122
        %v7131 = vadd.f32 %v6953, %v7127
        %v7132 = vsel %vm1022, %v7130, 0.0
        %7133 = vadd.xlane.f32.xlu0 %v7132
        %v7134 = vpop.xlane.xlu0 %7133
        %v7135 = vsel %vm1022, %v7131, 0.0
        %7136 = vadd.xlane.f32.xlu0 %v7135
        %v7137 = vpop.xlane.xlu0 %7136
        %v7138 = vmul.f32 %v7134, %v2794
        %v7139 = vmul.f32 %v7137, %v2794
        %v7140 = vsub.f32 %v7130, %v7138
        %v7141 = vsub.f32 %v7131, %v7139
        %v7142 = vmul.f32 %v7140, %v7140
        %v7143 = vmul.f32 %v7141, %v7141
        %v7144 = vsel %vm1022, %v7142, 0.0
        %7145 = vadd.xlane.f32.xlu0 %v7144
        %v7146 = vpop.xlane.xlu0 %7145
        %v7147 = vsel %vm1022, %v7143, 0.0
        %7148 = vadd.xlane.f32.xlu0 %v7147
        %v7149 = vpop.xlane.xlu0 %7148
        %v7150 = vmul.f32 %v7146, %v2794
        %v7151 = vmul.f32 %v7149, %v2794
        %v7152 = vadd.f32 %v7150, 1e-05
        %v7153 = vadd.f32 %v7151, 1e-05
        %v7154 = vrsqrt.pop %v7152
        %v7155 = vrsqrt.pop %v7153
        %v7156 = vmul.f32 %v7140, %v7154
        %v7157 = vmul.f32 %v7141, %v7155
        %v7159 = vlaneseq
        %v7160 = vshrl.u32 %v7159, 7
        %v7161 = vsub.s32 0, %v7160
        %v7162 = vrot.slane %v5150, %v7161
        %v7164 = vmul.f32 %v7156, %v7162
        %v7165 = vmul.f32 %v7157, %v7162
        %v7167 = vlaneseq
        %v7168 = vshrl.u32 %v7167, 7
        %v7169 = vsub.s32 0, %v7168
        %v7170 = vrot.slane %v5152, %v7169
        %v7172 = vadd.f32 %v7164, %v7170
        %v7173 = vadd.f32 %v7165, %v7170
        %7174 = vst.msk [vmem:[%s838] sm:$0xff] %vm1022, %v7172
        %7175 = vst.msk [vmem:[%s838 + $0x8] sm:$0xff] %vm1022, %v7173
        %s7176 = sand.u32 %s485, 1
        %s7177 = scalar_lea.sflag [#allocation4], %s7176
        %s7178 = sand.u32 %s485, 1
        %s7179 = smul.addr %s7178, 16
        %s7180 = scalar_lea.vmem [#allocation10], %s7179
        // Predicated region
        $region105: #{tpu_custom_call.1} parent=87 // pred_check
          %p7181 = pneg %p495
        $region106: #{tpu_custom_call.1} parent=87 // pred_check_branch
          %7183 = sbr.rel (%p7181) target = $region108
        $region107: #{tpu_custom_call.1} parent=87 // pred_region
          %s7185 = ssub.s32 256, 256
          %7186 = vsyncadd %s7177, %s7185
          %s7187 = smul.addr %s40, 2
          %s7188 = smul.addr %s7187, 128
          %s7189 = scalar_lea.hbm %s17, %s7188
          %s7190 = sshll.u32 %s7180, 4
          %s7191 = int_to_ptr.vmem [resolvable:$true] %s7190
          %7196 = dma.vmem_to_hbm [thread:$0]  %s7191, 256, %s7189, %s7177, 128, 128, 8
        $region108: #{tpu_custom_call.1} parent=87 // pred_fallthru
          _
      $region88: #{tpu_custom_call.1} parent=5 // pred_fallthru
        _
      %p7197 = scmp.le.s32.totalorder 2, %s35
      // Predicated region
      $region109: #{tpu_custom_call.1} parent=5 // pred_check
        %p7198 = pneg %p7197
      $region110: #{tpu_custom_call.1} parent=5 // pred_check_branch
        %7200 = sbr.rel (%p7198) target = $region112
      $region111: #{tpu_custom_call.1} parent=5 // pred_region
        %s7201 = ssub.s32 %s35, 2
        // Predicated region
        $region113: #{tpu_custom_call.1} parent=111 // pred_check
          %p7202 = pneg %p501
        $region114: #{tpu_custom_call.1} parent=111 // pred_check_branch
          %7204 = sbr.rel (%p7202) target = $region116
        $region115: #{tpu_custom_call.1} parent=111 // pred_region
          %s7205 = sand.u32 %s486, 1
          %s7206 = scalar_lea.sflag [#allocation4], %s7205
          %s7207 = sand.u32 %s486, 1
          %s7208 = smul.addr %s7207, 16
          %s7209 = scalar_lea.vmem [#allocation10], %s7208
          %7210 = dma.done %s7206, 256
        $region116: #{tpu_custom_call.1} parent=111 // pred_fallthru
          _
      $region112: #{tpu_custom_call.1} parent=5 // pred_fallthru
        _
    $region6: #{tpu_custom_call.1} parent=1 // loop_footer
      %s39 = sadd.s32 1, %s35
    $region7: #{tpu_custom_call.1} parent=1 // loop_footer_branch
      %34 = sbr.rel target = $region3
    $region8: #{tpu_custom_call.1} parent=1 // loop_exit
      _
    %7211 = vsyncpa [#allocation3], 1
    %s7212 = scalar_lea.sflag [#allocation3], 1
    %7213 = vsyncpa %s7212, 1
    %7214 = vsyncpa [#allocation6], 1
    %s7215 = scalar_lea.sflag [#allocation6], 1
    %7216 = vsyncpa %s7215, 1
    %7217 = vsyncpa [#allocation9], 1
    %s7218 = scalar_lea.sflag [#allocation9], 1
    %7219 = vsyncpa %s7218, 1
    %7220 = vsyncpa [#allocation4], 1
    %s7221 = scalar_lea.sflag [#allocation4], 1
    %7222 = vsyncpa %s7221, 1

</llo_original>
